<compile_context>
chip_gen: v7x
topology: tpu7x:2x2x1
jax: 0.10.0
libtpu: 0.0.40
codegen_flags: <defaults>
</compile_context>

<pallas_src>
import functools

import jax
import jax.numpy as jnp
from jax import lax
from jax.experimental import pallas as pl
from jax.experimental.pallas import tpu as pltpu


def _pick_tile(dim, pref, quantum):
    """Largest power-of-two tile in [quantum, pref] dividing `dim`, else full dim.

    `quantum` is 8 for sublane-mapped dims and 128 for lane-mapped dims so the
    resulting block shapes always satisfy the (8, 128) tiling constraint.
    """
    t = pref
    while t >= quantum:
        if t <= dim and dim % t == 0:
            return t
        t //= 2
    return dim  # full-extent block is always legal


def wrapped_model_kernel(x_lhs_ref, wt_ref, b_ref, x_diff_ref, partial_ref,
                         acc_ref, *, precision=None):
    """One (row-tile i, K-tile k) grid step of loss = mean((x @ W^T + b - x)^2).

    x_lhs_ref:   [TM, TK]    x K-slice (matmul LHS), native dtype
    wt_ref:      [TK, D]     pre-transposed weight slab W^T[k, :], native dtype
    b_ref:       [1,  D]     bias (fetched once; block index constant)
    x_diff_ref:  [TM, D]     full x row slab for the fused MSE epilogue
    partial_ref: [1, 8, 128] lane-dense per-row-tile partial SSE output
    acc_ref:     [TM, D] f32 VMEM scratch accumulator for the y row slab
    """
    k = pl.program_id(1)

    @pl.when(k == 0)
    def _init():
        acc_ref[...] = jnp.zeros_like(acc_ref)

    # MXU matmul on the native operand dtype (bf16 preferred), f32 accumulation.
    acc_ref[...] += jnp.dot(
        x_lhs_ref[...], wt_ref[...],
        preferred_element_type=jnp.float32, precision=precision)

    @pl.when(k == pl.num_programs(1) - 1)
    def _finalize():
        # Fused MSE epilogue: y is never written back to HBM.
        y = acc_ref[...] + b_ref[...].astype(jnp.float32)
        diff = y - x_diff_ref[...].astype(jnp.float32)
        sse = jnp.sum(diff * diff)
        # Lane-dense (8, 128) store of this row tile's partial SSE (unmasked vst).
        partial_ref[...] = jnp.full(partial_ref.shape, sse, dtype=jnp.float32)


def wrapped_model_forward(x, w, b, *, tm_pref=256, tk_pref=256, precision=None):
    """loss = mean((x @ w.T + b - x)**2), matmul + MSE fused in one Pallas kernel."""
    B, D = x.shape
    assert w.shape == (D, D), "model is a D -> D Linear layer"
    assert b.shape == (D,)

    # Layout plumbing outside the kernel: PyTorch stores W as [out, in]; the MXU
    # consumes W^T = [in, out] directly with zero in-kernel XLU work.
    w_t = jnp.transpose(w)
    b2d = b.reshape(1, D)

    tm = _pick_tile(B, tm_pref, 8)     # sublane-mapped row tile
    tk = _pick_tile(D, tk_pref, 128)   # lane-mapped contraction tile
    num_m = B // tm
    num_k = D // tk

    itemsize = jnp.dtype(x.dtype).itemsize
    cost = pl.CostEstimate(
        flops=2 * B * D * D + 3 * B * D,
        transcendentals=0,
        bytes_accessed=(2 * B * D + D * D + D) * itemsize + num_m * 8 * 128 * 4,
    )

    kernel = functools.partial(wrapped_model_kernel, precision=precision)

    partials = pl.pallas_call(
        kernel,
        out_shape=jax.ShapeDtypeStruct((num_m, 8, 128), jnp.float32),
        grid_spec=pltpu.PrefetchScalarGridSpec(
            num_scalar_prefetch=0,
            grid=(num_m, num_k),                               # K innermost
            in_specs=[
                pl.BlockSpec((tm, tk), lambda i, k: (i, k)),   # x as matmul LHS
                pl.BlockSpec((tk, D), lambda i, k: (k, 0)),    # W^T K-slab (full N)
                pl.BlockSpec((1, D), lambda i, k: (0, 0)),     # bias (DMA'd once)
                pl.BlockSpec((tm, D), lambda i, k: (i, 0)),    # x rows for the diff
            ],
            out_specs=pl.BlockSpec((1, 8, 128), lambda i, k: (i, 0, 0)),
            scratch_shapes=[pltpu.VMEM((tm, D), jnp.float32)],
        ),
        compiler_params=pltpu.CompilerParams(
            # Row tiles are independent (each writes its own partial block), so the
            # batch axis can be split across TensorCores; K is the reduction axis.
            dimension_semantics=("parallel", "arbitrary"),
        ),
        cost_estimate=cost,
    )(x, w_t, b2d, x)

    # Tiny finalize in the wrapper: sum the per-row-tile partials, divide by n.
    sse = jnp.sum(partials[:, 0, 0])
    return sse / jnp.float32(B * D)


if __name__ == "__main__":
    key = jax.random.PRNGKey(0)
    kx, kw, kb = jax.random.split(key, 3)

    # Small but big enough to exercise a real (2, 2) grid with 256-wide tiles.
    B, D = 512, 512

    x = jax.random.normal(kx, (B, D), dtype=jnp.float32)
    w = jax.random.normal(kw, (D, D), dtype=jnp.float32) * (1.0 / jnp.sqrt(D))
    b = jax.random.normal(kb, (D,), dtype=jnp.float32) * 0.01

    # f32 path (exact check; HIGHEST precision on both kernel and reference).
    loss = wrapped_model_forward(x, w, b, precision=lax.Precision.HIGHEST)
    jax.block_until_ready(loss)

    y_ref = jnp.dot(x, w.T, precision=lax.Precision.HIGHEST) + b
    loss_ref = jnp.mean((y_ref - x) ** 2)
    assert jnp.allclose(loss, loss_ref, rtol=1e-4, atol=1e-6), (loss, loss_ref)

    # bf16 operand path (preferred at scale: 2x MXU throughput, half the VMEM/HBM
    # traffic; accumulation and the MSE epilogue stay f32 inside the kernel).
    xb = x.astype(jnp.bfloat16)
    wb = w.astype(jnp.bfloat16)
    bb = b.astype(jnp.bfloat16)
    loss_bf16 = wrapped_model_forward(xb, wb, bb)
    jax.block_until_ready(loss_bf16)
    assert jnp.allclose(loss_bf16, loss_ref, rtol=5e-2, atol=1e-3), (loss_bf16, loss_ref)

    print("KERNEL_OK")
</pallas_src>

<mosaic_0001>
module attributes {stable_mosaic.version = 11 : i64} {
  func.func @wrapped_model_kernel(%arg0: i32, %arg1: i32, %arg2: memref<256x256xf32, #tpu.memory_space<vmem>>, %arg3: memref<256x512xf32, #tpu.memory_space<vmem>>, %arg4: memref<1x512xf32, #tpu.memory_space<vmem>>, %arg5: memref<256x512xf32, #tpu.memory_space<vmem>>, %arg6: memref<1x8x128xf32, #tpu.memory_space<vmem>>, %arg7: memref<256x512xf32, #tpu.memory_space<vmem>>) attributes {dimension_semantics = [#tpu.dimension_semantics<parallel>, #tpu.dimension_semantics<arbitrary>], iteration_bounds = array<i64: 2, 2>, scalar_prefetch = 0 : i64, scratch_operands = 1 : i64, tpu.core_type = #tpu.core_type<tc>, window_params = [{transform_indices = @transform_0, window_bounds = array<i64: 256, 256>}, {transform_indices = @transform_1, window_bounds = array<i64: 256, 512>}, {pipeline_mode = #tpu.pipeline_mode<synchronous>, transform_indices = @transform_2, window_bounds = array<i64: 1, 512>}, {transform_indices = @transform_3, window_bounds = array<i64: 256, 512>}, {transform_indices = @transform_4, window_bounds = array<i64: 1, 8, 128>}]} {
    %c0_i32 = arith.constant 0 : i32
    %0 = arith.cmpi eq, %arg1, %c0_i32 : i32
    %1 = arith.extui %0 : i1 to i32
    %c0_i32_0 = arith.constant 0 : i32
    %2 = arith.cmpi ne, %1, %c0_i32_0 : i32
    scf.if %2 {
      %cst_9 = arith.constant 0.000000e+00 : f32
      %12 = vector.broadcast %cst_9 : f32 to vector<256x512xf32>
      %c0_10 = arith.constant 0 : index
      %c0_11 = arith.constant 0 : index
      %13 = vector.load %arg7[%c0_10, %c0_11] : memref<256x512xf32, #tpu.memory_space<vmem>>, vector<256x512xf32>
      tpu.vector_store %arg7[%c0_10, %c0_11], %12 {strides = array<i32>} : memref<256x512xf32, #tpu.memory_space<vmem>>, vector<256x512xf32>,
    } else {
    }
    %c0 = arith.constant 0 : index
    %c0_1 = arith.constant 0 : index
    %3 = vector.load %arg7[%c0, %c0_1] : memref<256x512xf32, #tpu.memory_space<vmem>>, vector<256x512xf32>
    %c0_2 = arith.constant 0 : index
    %c0_3 = arith.constant 0 : index
    %4 = vector.load %arg2[%c0_2, %c0_3] : memref<256x256xf32, #tpu.memory_space<vmem>>, vector<256x256xf32>
    %c0_4 = arith.constant 0 : index
    %c0_5 = arith.constant 0 : index
    %5 = vector.load %arg3[%c0_4, %c0_5] : memref<256x512xf32, #tpu.memory_space<vmem>>, vector<256x512xf32>
    %cst = arith.constant dense<0.000000e+00> : vector<256x512xf32>
    %6 = tpu.matmul %4, %5, %cst {dimension_numbers = #tpu.dot_dimension_numbers<[1], [0], [0], [1], [0, 0, 1, 1], [], []>, precision = #tpu.contract_precision<fp32>} : vector<256x256xf32>, vector<256x512xf32>, vector<256x512xf32> -> vector<256x512xf32>
    %7 = arith.addf %3, %6 : vector<256x512xf32>
    %c0_6 = arith.constant 0 : index
    %c0_7 = arith.constant 0 : index
    %8 = vector.load %arg7[%c0_6, %c0_7] : memref<256x512xf32, #tpu.memory_space<vmem>>, vector<256x512xf32>
    tpu.vector_store %arg7[%c0_6, %c0_7], %7 {strides = array<i32>} : memref<256x512xf32, #tpu.memory_space<vmem>>, vector<256x512xf32>,
    %c1_i32 = arith.constant 1 : i32
    %9 = arith.cmpi eq, %arg1, %c1_i32 : i32
    %10 = arith.extui %9 : i1 to i32
    %c0_i32_8 = arith.constant 0 : i32
    %11 = arith.cmpi ne, %10, %c0_i32_8 : i32
    scf.if %11 {
      %c0_9 = arith.constant 0 : index
      %c0_10 = arith.constant 0 : index
      %12 = vector.load %arg7[%c0_9, %c0_10] : memref<256x512xf32, #tpu.memory_space<vmem>>, vector<256x512xf32>
      %c0_11 = arith.constant 0 : index
      %c0_12 = arith.constant 0 : index
      %13 = vector.load %arg4[%c0_11, %c0_12] : memref<1x512xf32, #tpu.memory_space<vmem>>, vector<1x512xf32>
      %14 = vector.broadcast %13 : vector<1x512xf32> to vector<256x512xf32>
      %15 = arith.addf %12, %14 : vector<256x512xf32>
      %c0_13 = arith.constant 0 : index
      %c0_14 = arith.constant 0 : index
      %16 = vector.load %arg5[%c0_13, %c0_14] : memref<256x512xf32, #tpu.memory_space<vmem>>, vector<256x512xf32>
      %17 = arith.subf %15, %16 : vector<256x512xf32>
      %18 = arith.mulf %17, %17 : vector<256x512xf32>
      %19 = vector.shape_cast %18 : vector<256x512xf32> to vector<1x256x512xf32>
      %cst_15 = arith.constant dense<0.000000e+00> : vector<1xf32>
      %20 = vector.multi_reduction <add>, %19, %cst_15 [1, 2] : vector<1x256x512xf32> to vector<1xf32>
      %21 = vector.shape_cast %20 : vector<1xf32> to vector<1x1x1xf32>
      %22 = vector.extract %21[0, 0, 0] : f32 from vector<1x1x1xf32>
      %23 = vector.broadcast %22 : f32 to vector<1x8x128xf32>
      %c0_16 = arith.constant 0 : index
      %c0_17 = arith.constant 0 : index
      %c0_18 = arith.constant 0 : index
      %24 = vector.load %arg6[%c0_16, %c0_17, %c0_18] : memref<1x8x128xf32, #tpu.memory_space<vmem>>, vector<1x8x128xf32>
      tpu.vector_store %arg6[%c0_16, %c0_17, %c0_18], %23 {strides = array<i32>} : memref<1x8x128xf32, #tpu.memory_space<vmem>>, vector<1x8x128xf32>,
    } else {
    }
    return
  }
  func.func @transform_0(%arg0: i32, %arg1: i32) -> (i32, i32) {
    %c0_i32 = arith.constant 0 : i32
    return %arg0, %arg1 : i32, i32
  }
  func.func @transform_1(%arg0: i32, %arg1: i32) -> (i32, i32) {
    %c0_i32 = arith.constant 0 : i32
    %c0_i32_0 = arith.constant 0 : i32
    return %arg1, %c0_i32 : i32, i32
  }
  func.func @transform_2(%arg0: i32, %arg1: i32) -> (i32, i32) {
    %c0_i32 = arith.constant 0 : i32
    %c0_i32_0 = arith.constant 0 : i32
    %c0_i32_1 = arith.constant 0 : i32
    return %c0_i32, %c0_i32_0 : i32, i32
  }
  func.func @transform_3(%arg0: i32, %arg1: i32) -> (i32, i32) {
    %c0_i32 = arith.constant 0 : i32
    %c0_i32_0 = arith.constant 0 : i32
    return %arg0, %c0_i32 : i32, i32
  }
  func.func @transform_4(%arg0: i32, %arg1: i32) -> (i32, i32, i32) {
    %c0_i32 = arith.constant 0 : i32
    %c0_i32_0 = arith.constant 0 : i32
    %c0_i32_1 = arith.constant 0 : i32
    return %arg0, %c0_i32, %c0_i32_0 : i32, i32, i32
  }
}

</mosaic_0001>

<llo_original>
// kernel: tpu_custom_call.1
$region0: #{tpu_custom_call.1}
  #allocation0 [shape = 'u32[]', space=smem, size = 0x4, offset = 0x4, fixed_abs, tag = 'smem constant byte address 0x4 - core index']
  #allocation1 [shape = 'u32[144,128]{1,0:T(1,128)}', space=vmem, size = 0x12000, scoped, tag = 'internal scratch']
  #allocation2 [shape = 'f32[256,512]{1,0:T(8,128)}', space=vmem, size = 0x80000, scoped, tag = 'scratch operand']
  %s0 = inlined_call_operand.hbm [shape: f32[512,512], index: 0, kind: input, shape index: {}]
  %s1 = inlined_call_operand.hbm [shape: f32[512,512], index: 1, kind: input, shape index: {}]
  %s2 = inlined_call_operand.vmem [shape: f32[1,512], index: 2, kind: input, shape index: {}]
  %s3 = inlined_call_operand.hbm [shape: f32[512,512], index: 3, kind: input, shape index: {}]
  %s4 = inlined_call_operand.hbm [shape: f32[2,8,128], index: 4, kind: output, shape index: {}]
  %s5 = sld [smem:[#allocation0]]
  $region69: #{tpu_custom_call.1} parent=0
    _
  %s7 = ssub.s32 1, %s5
  %s8 = scalar_select 0, %s7, %s5
  $region1: #{tpu_custom_call.1} parent=0
    #allocation3 [shape = 'u8[524288]{0}', space=vmem, size = 0x80000, scoped, tag = 'input window, operand 0']
    #allocation4 [shape = 's32[2]{0}', space=sflag, size = 0x8, scoped, tag = 'scoped memory for tpu_custom_call.1']
    #allocation5 [shape = 's32[2]{0}', space=sflag, size = 0x8, scoped, tag = 'scoped memory for tpu_custom_call.1']
    #allocation6 [shape = 'u8[1048576]{0}', space=vmem, size = 0x100000, scoped, tag = 'input window, operand 1']
    #allocation7 [shape = 's32[2]{0}', space=sflag, size = 0x8, scoped, tag = 'scoped memory for tpu_custom_call.1']
    #allocation8 [shape = 'u8[1048576]{0}', space=vmem, size = 0x100000, scoped, tag = 'input window, operand 3']
    #allocation9 [shape = 'u8[8192]{0}', space=vmem, size = 0x2000, scoped, tag = 'output window, operand 0']
    %9 = vsyncpa [#allocation4], 0
    %s10 = scalar_lea.sflag [#allocation4], 1
    %11 = vsyncpa %s10, 0
    %12 = vsyncpa [#allocation7], 0
    %s13 = scalar_lea.sflag [#allocation7], 1
    %14 = vsyncpa %s13, 0
    %15 = vsyncpa [#allocation5], 0
    %s16 = scalar_lea.sflag [#allocation5], 1
    %17 = vsyncpa %s16, 0
    loop: start=0, step=1, limit=6
    $region2: #{tpu_custom_call.1} parent=1 // loop_pre_header
      _
    $region3: #{tpu_custom_call.1} parent=1 // loop_header
      %s19 = sphi 0, %s23
      %p20 = scmp.ge.s32.totalorder %s19, 6
      %s26 = sphi 0, %s38
      %s27 = sphi 0, %s34
      %s28 = sphi 0, %s26
      %s29 = sphi 0, %s27
      %s30 = sphi 0, %s28
      %s31 = sphi 0, %s29
      %s43 = sphi 0, %s45
      %s46 = sphi 0, %s43
      %s47 = sphi 0, %s46
      %s63 = sphi 0, %s47
      %s69 = sphi 0, %s71
      %s72 = sphi 0, %s69
      %s73 = sphi 0, %s72
      %s89 = sphi 0, %s73
      %s93 = sphi 0, %s93
      %s95 = sphi 0, %s93
      %s96 = sphi 0, %s95
      %s110 = sphi 0, %s96
      %s116 = sphi 0, %s118
      %s119 = sphi 0, %s116
      %s120 = sphi 0, %s119
      %s136 = sphi 0, %s120
      %s142 = sphi 0, %s144
      %s145 = sphi 0, %s142
      %s146 = sphi 0, %s145
      %s162 = sphi 0, %s146
    $region4: #{tpu_custom_call.1} parent=1 // loop_header_branch
      %22 = sbr.rel (%p20) target = $region8
    $region5: #{tpu_custom_call.1} parent=1 // loop_body
      %s24 = ssub.s32 %s19, 1
      %s25 = ssub.s32 %s19, 2
      %s32 = sadd.s32 1, %s27
      %p33 = scmp.ge.s32.totalorder %s32, 2
      %s34 = scalar_select %p33, 0, %s32
      %s35 = sadd.s32 1, %s26
      %s36 = scalar_select %p33, %s35, %s26
      %p37 = scmp.ge.s32.totalorder %s36, 2
      %s38 = scalar_select %p37, 0, %s36
      %s39 = ssub.s32 %s26, %s38
      %s40 = ssub.s32 %s27, %s34
      %s41 = sor.u32 %s39, %s40
      %p42 = scmp.eq.s32.totalorder %s41, 0
      %s44 = sadd.s32 %s43, 1
      %s45 = scalar_select %p42, %s43, %s44
      %p48 = pneg %p42
      %p49 = scmp.eq.s32.totalorder %s19, 3
      %p50 = por %p48, %p49
      %p51 = scmp.ne.s32.totalorder %s43, %s46
      %p52 = scmp.eq.s32.totalorder %s19, 0
      %p53 = por %p51, %p52
      %p54 = scmp.ne.s32.totalorder %s43, %s46
      %p55 = scmp.eq.s32.totalorder %s24, 3
      %p56 = por %p54, %p55
      %p57 = scmp.ne.s32.totalorder %s46, %s47
      %p58 = scmp.eq.s32.totalorder %s24, 0
      %p59 = por %p57, %p58
      %p60 = scmp.ne.s32.totalorder %s46, %s47
      %p61 = scmp.eq.s32.totalorder %s25, 3
      %p62 = por %p60, %p61
      %p64 = scmp.ne.s32.totalorder %s47, %s63
      %p65 = scmp.eq.s32.totalorder %s25, 0
      %p66 = por %p64, %p65
      %s67 = ssub.s32 %s27, %s34
      %p68 = scmp.eq.s32.totalorder %s67, 0
      %s70 = sadd.s32 %s69, 1
      %s71 = scalar_select %p68, %s69, %s70
      %p74 = pneg %p68
      %p75 = scmp.eq.s32.totalorder %s19, 3
      %p76 = por %p74, %p75
      %p77 = scmp.ne.s32.totalorder %s69, %s72
      %p78 = scmp.eq.s32.totalorder %s19, 0
      %p79 = por %p77, %p78
      %p80 = scmp.ne.s32.totalorder %s69, %s72
      %p81 = scmp.eq.s32.totalorder %s24, 3
      %p82 = por %p80, %p81
      %p83 = scmp.ne.s32.totalorder %s72, %s73
      %p84 = scmp.eq.s32.totalorder %s24, 0
      %p85 = por %p83, %p84
      %p86 = scmp.ne.s32.totalorder %s72, %s73
      %p87 = scmp.eq.s32.totalorder %s25, 3
      %p88 = por %p86, %p87
      %p90 = scmp.ne.s32.totalorder %s73, %s89
      %p91 = scmp.eq.s32.totalorder %s25, 0
      %p92 = por %p90, %p91
      %s94 = sadd.s32 %s93, 1
      %p97 = scmp.eq.s32.totalorder %s19, 3
      %p98 = scmp.ne.s32.totalorder %s93, %s95
      %p99 = scmp.eq.s32.totalorder %s19, 0
      %p100 = por %p98, %p99
      %p101 = scmp.ne.s32.totalorder %s93, %s95
      %p102 = scmp.eq.s32.totalorder %s24, 3
      %p103 = por %p101, %p102
      %p104 = scmp.ne.s32.totalorder %s95, %s96
      %p105 = scmp.eq.s32.totalorder %s24, 0
      %p106 = por %p104, %p105
      %p107 = scmp.ne.s32.totalorder %s95, %s96
      %p108 = scmp.eq.s32.totalorder %s25, 3
      %p109 = por %p107, %p108
      %p111 = scmp.ne.s32.totalorder %s96, %s110
      %p112 = scmp.eq.s32.totalorder %s25, 0
      %p113 = por %p111, %p112
      %s114 = ssub.s32 %s26, %s38
      %p115 = scmp.eq.s32.totalorder %s114, 0
      %s117 = sadd.s32 %s116, 1
      %s118 = scalar_select %p115, %s116, %s117
      %p121 = pneg %p115
      %p122 = scmp.eq.s32.totalorder %s19, 3
      %p123 = por %p121, %p122
      %p124 = scmp.ne.s32.totalorder %s116, %s119
      %p125 = scmp.eq.s32.totalorder %s19, 0
      %p126 = por %p124, %p125
      %p127 = scmp.ne.s32.totalorder %s116, %s119
      %p128 = scmp.eq.s32.totalorder %s24, 3
      %p129 = por %p127, %p128
      %p130 = scmp.ne.s32.totalorder %s119, %s120
      %p131 = scmp.eq.s32.totalorder %s24, 0
      %p132 = por %p130, %p131
      %p133 = scmp.ne.s32.totalorder %s119, %s120
      %p134 = scmp.eq.s32.totalorder %s25, 3
      %p135 = por %p133, %p134
      %p137 = scmp.ne.s32.totalorder %s120, %s136
      %p138 = scmp.eq.s32.totalorder %s25, 0
      %p139 = por %p137, %p138
      %s140 = ssub.s32 %s26, %s38
      %p141 = scmp.eq.s32.totalorder %s140, 0
      %s143 = sadd.s32 %s142, 1
      %s144 = scalar_select %p141, %s142, %s143
      %p147 = pneg %p141
      %p148 = scmp.eq.s32.totalorder %s19, 3
      %p149 = por %p147, %p148
      %p150 = scmp.ne.s32.totalorder %s142, %s145
      %p151 = scmp.eq.s32.totalorder %s19, 0
      %p152 = por %p150, %p151
      %p153 = scmp.ne.s32.totalorder %s142, %s145
      %p154 = scmp.eq.s32.totalorder %s24, 3
      %p155 = por %p153, %p154
      %p156 = scmp.ne.s32.totalorder %s145, %s146
      %p157 = scmp.eq.s32.totalorder %s24, 0
      %p158 = por %p156, %p157
      %p159 = scmp.ne.s32.totalorder %s145, %s146
      %p160 = scmp.eq.s32.totalorder %s25, 3
      %p161 = por %p159, %p160
      %p163 = scmp.ne.s32.totalorder %s146, %s162
      %p164 = scmp.eq.s32.totalorder %s25, 0
      %p165 = por %p163, %p164
      %p166 = scmp.le.s32.totalorder 1, %s19
      %p167 = scmp.lt.s32.totalorder %s19, 5
      %p168 = pnand %p166, %p167
      %p169 = pneg %p168
      // Predicated region
      $region9: #{tpu_custom_call.1} parent=5 // pred_check
        _
      $region10: #{tpu_custom_call.1} parent=5 // pred_check_branch
        %171 = sbr.rel (%p168) target = $region12
      $region11: #{tpu_custom_call.1} parent=5 // pred_region
        %s172 = ssub.s32 %s19, 1
        // Predicated region
        $region13: #{tpu_custom_call.1} parent=11 // pred_check
          %p173 = pneg %p106
        $region14: #{tpu_custom_call.1} parent=11 // pred_check_branch
          %175 = sbr.rel (%p173) target = $region16
        $region15: #{tpu_custom_call.1} parent=11 // pred_region
          _
        $region16: #{tpu_custom_call.1} parent=11 // pred_fallthru
          _
      $region12: #{tpu_custom_call.1} parent=5 // pred_fallthru
        _
      %p176 = scmp.lt.s32.totalorder %s19, 4
      // Predicated region
      $region17: #{tpu_custom_call.1} parent=5 // pred_check
        %p177 = pneg %p176
      $region18: #{tpu_custom_call.1} parent=5 // pred_check_branch
        %179 = sbr.rel (%p177) target = $region20
      $region19: #{tpu_custom_call.1} parent=5 // pred_region
        // Predicated region
        $region21: #{tpu_custom_call.1} parent=19 // pred_check
          %p180 = pneg %p53
        $region22: #{tpu_custom_call.1} parent=19 // pred_check_branch
          %182 = sbr.rel (%p180) target = $region24
        $region23: #{tpu_custom_call.1} parent=19 // pred_region
          %s183 = sand.u32 %s43, 1
          %s184 = scalar_lea.sflag [#allocation4], %s183
          %s185 = sand.u32 %s43, 1
          %s186 = smul.addr %s185, 512
          %s187 = scalar_lea.vmem [#allocation3], %s186
          %s188 = smul.u32 32, %s26
          %s189 = smul.u32 2, %s27
          %s191 = ssub.s32 8192, 8192
          %192 = vsyncadd %s184, %s191
          %s193 = smul.addr %s188, 4
          %s194 = sadd.s32 %s189, %s193
          %s195 = smul.addr %s194, 128
          %s196 = scalar_lea.hbm %s0, %s195
          %s197 = sshll.u32 %s187, 4
          %s198 = int_to_ptr.vmem [resolvable:$true] %s197
          %203 = dma.hbm_to_vmem [thread:$0]  %s196, 8192, %s198, %s184, 512, 256, 16
        $region24: #{tpu_custom_call.1} parent=19 // pred_fallthru
          _
        // Predicated region
        $region25: #{tpu_custom_call.1} parent=19 // pred_check
          %p204 = pneg %p79
        $region26: #{tpu_custom_call.1} parent=19 // pred_check_branch
          %206 = sbr.rel (%p204) target = $region28
        $region27: #{tpu_custom_call.1} parent=19 // pred_region
          %s207 = sand.u32 %s19, 1
          %s208 = scalar_lea.sflag [#allocation7], %s207
          %s209 = sand.u32 %s69, 1
          %s210 = smul.addr %s209, 1024
          %s211 = scalar_lea.vmem [#allocation6], %s210
          %s212 = smul.u32 32, %s27
          %s214 = ssub.s32 16384, 16384
          %215 = vsyncadd %s208, %s214
          %s216 = smul.addr %s212, 4
          %s217 = smul.addr %s216, 128
          %s218 = scalar_lea.hbm %s1, %s217
          %s219 = sshll.u32 %s211, 4
          %s220 = int_to_ptr.vmem [resolvable:$true] %s219
          %225 = dma.hbm_to_vmem [thread:$0]  %s218, 16384, %s220, %s208, 512, 512, 32
        $region28: #{tpu_custom_call.1} parent=19 // pred_fallthru
          _
        // Predicated region
        $region29: #{tpu_custom_call.1} parent=19 // pred_check
          %p226 = pneg %p126
        $region30: #{tpu_custom_call.1} parent=19 // pred_check_branch
          %228 = sbr.rel (%p226) target = $region32
        $region31: #{tpu_custom_call.1} parent=19 // pred_region
          %s229 = sand.u32 %s19, 1
          %s230 = scalar_lea.sflag [#allocation7], %s229
          %s231 = sand.u32 %s116, 1
          %s232 = smul.addr %s231, 1024
          %s233 = scalar_lea.vmem [#allocation8], %s232
          %s234 = smul.u32 32, %s26
          %s236 = ssub.s32 16384, 16384
          %237 = vsyncadd %s230, %s236
          %s238 = smul.addr %s234, 4
          %s239 = smul.addr %s238, 128
          %s240 = scalar_lea.hbm %s3, %s239
          %s241 = sshll.u32 %s233, 4
          %s242 = int_to_ptr.vmem [resolvable:$true] %s241
          %247 = dma.hbm_to_vmem [thread:$0]  %s240, 16384, %s242, %s230, 512, 512, 32
        $region32: #{tpu_custom_call.1} parent=19 // pred_fallthru
          _
      $region20: #{tpu_custom_call.1} parent=5 // pred_fallthru
        _
      %p248 = scmp.le.s32.totalorder 1, %s19
      %p249 = scmp.lt.s32.totalorder %s19, 5
      %p250 = pnand %p248, %p249
      %p251 = pneg %p250
      // Predicated region
      $region33: #{tpu_custom_call.1} parent=5 // pred_check
        _
      $region34: #{tpu_custom_call.1} parent=5 // pred_check_branch
        %253 = sbr.rel (%p250) target = $region36
      $region35: #{tpu_custom_call.1} parent=5 // pred_region
        %s254 = ssub.s32 %s19, 1
        %s255 = sand.u32 %s46, 1
        %s256 = scalar_lea.sflag [#allocation4], %s255
        %s257 = sand.u32 %s46, 1
        %s258 = smul.addr %s257, 512
        %s259 = scalar_lea.vmem [#allocation3], %s258
        // Predicated region
        $region37: #{tpu_custom_call.1} parent=35 // pred_check
          %p260 = pneg %p59
        $region38: #{tpu_custom_call.1} parent=35 // pred_check_branch
          %262 = sbr.rel (%p260) target = $region40
        $region39: #{tpu_custom_call.1} parent=35 // pred_region
          %263 = dma.done %s256, 8192
        $region40: #{tpu_custom_call.1} parent=35 // pred_fallthru
          _
        %s264 = sand.u32 %s24, 1
        %s265 = scalar_lea.sflag [#allocation7], %s264
        %s266 = sand.u32 %s72, 1
        %s267 = smul.addr %s266, 1024
        %s268 = scalar_lea.vmem [#allocation6], %s267
        // Predicated region
        $region41: #{tpu_custom_call.1} parent=35 // pred_check
          %p269 = pneg %p85
        $region42: #{tpu_custom_call.1} parent=35 // pred_check_branch
          %271 = sbr.rel (%p269) target = $region44
        $region43: #{tpu_custom_call.1} parent=35 // pred_region
          %272 = dma.done %s265, 16384
        $region44: #{tpu_custom_call.1} parent=35 // pred_fallthru
          _
        %s273 = sand.u32 %s24, 1
        %s274 = scalar_lea.sflag [#allocation7], %s273
        %s275 = sand.u32 %s119, 1
        %s276 = smul.addr %s275, 1024
        %s277 = scalar_lea.vmem [#allocation8], %s276
        // Predicated region
        $region45: #{tpu_custom_call.1} parent=35 // pred_check
          %p278 = pneg %p132
        $region46: #{tpu_custom_call.1} parent=35 // pred_check_branch
          %280 = sbr.rel (%p278) target = $region48
        $region47: #{tpu_custom_call.1} parent=35 // pred_region
          %281 = dma.done %s274, 16384
        $region48: #{tpu_custom_call.1} parent=35 // pred_fallthru
          _
        %s282 = sand.u32 %s46, 1
        %s283 = scalar_lea.sflag [#allocation4], %s282
        %s284 = sand.u32 %s46, 1
        %s285 = smul.addr %s284, 512
        %s286 = scalar_lea.vmem [#allocation3], %s285
        %p287 = pneg %p59
        %p288 = pneg %p56
        %s289 = sand.u32 %s24, 1
        %s290 = scalar_lea.sflag [#allocation7], %s289
        %s291 = sand.u32 %s72, 1
        %s292 = smul.addr %s291, 1024
        %s293 = scalar_lea.vmem [#allocation6], %s292
        %p294 = pneg %p85
        %p295 = pneg %p82
        %p296 = pneg %p106
        %p297 = pneg %p103
        %s298 = sand.u32 %s24, 1
        %s299 = scalar_lea.sflag [#allocation7], %s298
        %s300 = sand.u32 %s119, 1
        %s301 = smul.addr %s300, 1024
        %s302 = scalar_lea.vmem [#allocation8], %s301
        %p303 = pneg %p132
        %p304 = pneg %p129
        %p305 = pneg %p158
        %p306 = pneg %p155
        %s307 = sand.u32 %s145, 1
        %s308 = scalar_lea.sflag [#allocation5], %s307
        %s309 = sand.u32 %s145, 1
        %s310 = smul.addr %s309, 8
        %s311 = scalar_lea.vmem [#allocation9], %s310
        %s312 = smul.u32 32, %s28
        %s313 = smul.u32 2, %s29
        %s314 = smul.u32 32, %s29
        %s315 = smul.u32 32, %s28
        %p316 = scmp.eq.s32.totalorder %s29, 0
        // Predicated region
        $region49: #{tpu_custom_call.1} parent=35 // pred_check
          %p317 = pneg %p316
        $region50: #{tpu_custom_call.1} parent=35 // pred_check_branch
          %319 = sbr.rel (%p317) target = $region52
        $region51: #{tpu_custom_call.1} parent=35 // pred_region
          %320 = vst [vmem:[#allocation2] sm:$0xff] 0.0
          %321 = vst [vmem:[#allocation2 + $0x8] sm:$0xff] 0.0
          %322 = vst [vmem:[#allocation2 + $0x10] sm:$0xff] 0.0
          %323 = vst [vmem:[#allocation2 + $0x18] sm:$0xff] 0.0
          %324 = vst [vmem:[#allocation2 + $0x20] sm:$0xff] 0.0
          %325 = vst [vmem:[#allocation2 + $0x28] sm:$0xff] 0.0
          %326 = vst [vmem:[#allocation2 + $0x30] sm:$0xff] 0.0
          %327 = vst [vmem:[#allocation2 + $0x38] sm:$0xff] 0.0
          %328 = vst [vmem:[#allocation2 + $0x40] sm:$0xff] 0.0
          %329 = vst [vmem:[#allocation2 + $0x48] sm:$0xff] 0.0
          %330 = vst [vmem:[#allocation2 + $0x50] sm:$0xff] 0.0
          %331 = vst [vmem:[#allocation2 + $0x58] sm:$0xff] 0.0
          %332 = vst [vmem:[#allocation2 + $0x60] sm:$0xff] 0.0
          %333 = vst [vmem:[#allocation2 + $0x68] sm:$0xff] 0.0
          %334 = vst [vmem:[#allocation2 + $0x70] sm:$0xff] 0.0
          %335 = vst [vmem:[#allocation2 + $0x78] sm:$0xff] 0.0
          %336 = vst [vmem:[#allocation2 + $0x80] sm:$0xff] 0.0
          %337 = vst [vmem:[#allocation2 + $0x88] sm:$0xff] 0.0
          %338 = vst [vmem:[#allocation2 + $0x90] sm:$0xff] 0.0
          %339 = vst [vmem:[#allocation2 + $0x98] sm:$0xff] 0.0
          %340 = vst [vmem:[#allocation2 + $0xa0] sm:$0xff] 0.0
          %341 = vst [vmem:[#allocation2 + $0xa8] sm:$0xff] 0.0
          %342 = vst [vmem:[#allocation2 + $0xb0] sm:$0xff] 0.0
          %343 = vst [vmem:[#allocation2 + $0xb8] sm:$0xff] 0.0
          %344 = vst [vmem:[#allocation2 + $0xc0] sm:$0xff] 0.0
          %345 = vst [vmem:[#allocation2 + $0xc8] sm:$0xff] 0.0
          %346 = vst [vmem:[#allocation2 + $0xd0] sm:$0xff] 0.0
          %347 = vst [vmem:[#allocation2 + $0xd8] sm:$0xff] 0.0
          %348 = vst [vmem:[#allocation2 + $0xe0] sm:$0xff] 0.0
          %349 = vst [vmem:[#allocation2 + $0xe8] sm:$0xff] 0.0
          %350 = vst [vmem:[#allocation2 + $0xf0] sm:$0xff] 0.0
          %351 = vst [vmem:[#allocation2 + $0xf8] sm:$0xff] 0.0
          %352 = vst [vmem:[#allocation2 + $0x100] sm:$0xff] 0.0
          %353 = vst [vmem:[#allocation2 + $0x108] sm:$0xff] 0.0
          %354 = vst [vmem:[#allocation2 + $0x110] sm:$0xff] 0.0
          %355 = vst [vmem:[#allocation2 + $0x118] sm:$0xff] 0.0
          %356 = vst [vmem:[#allocation2 + $0x120] sm:$0xff] 0.0
          %357 = vst [vmem:[#allocation2 + $0x128] sm:$0xff] 0.0
          %358 = vst [vmem:[#allocation2 + $0x130] sm:$0xff] 0.0
          %359 = vst [vmem:[#allocation2 + $0x138] sm:$0xff] 0.0
          %360 = vst [vmem:[#allocation2 + $0x140] sm:$0xff] 0.0
          %361 = vst [vmem:[#allocation2 + $0x148] sm:$0xff] 0.0
          %362 = vst [vmem:[#allocation2 + $0x150] sm:$0xff] 0.0
          %363 = vst [vmem:[#allocation2 + $0x158] sm:$0xff] 0.0
          %364 = vst [vmem:[#allocation2 + $0x160] sm:$0xff] 0.0
          %365 = vst [vmem:[#allocation2 + $0x168] sm:$0xff] 0.0
          %366 = vst [vmem:[#allocation2 + $0x170] sm:$0xff] 0.0
          %367 = vst [vmem:[#allocation2 + $0x178] sm:$0xff] 0.0
          %368 = vst [vmem:[#allocation2 + $0x180] sm:$0xff] 0.0
          %369 = vst [vmem:[#allocation2 + $0x188] sm:$0xff] 0.0
          %370 = vst [vmem:[#allocation2 + $0x190] sm:$0xff] 0.0
          %371 = vst [vmem:[#allocation2 + $0x198] sm:$0xff] 0.0
          %372 = vst [vmem:[#allocation2 + $0x1a0] sm:$0xff] 0.0
          %373 = vst [vmem:[#allocation2 + $0x1a8] sm:$0xff] 0.0
          %374 = vst [vmem:[#allocation2 + $0x1b0] sm:$0xff] 0.0
          %375 = vst [vmem:[#allocation2 + $0x1b8] sm:$0xff] 0.0
          %376 = vst [vmem:[#allocation2 + $0x1c0] sm:$0xff] 0.0
          %377 = vst [vmem:[#allocation2 + $0x1c8] sm:$0xff] 0.0
          %378 = vst [vmem:[#allocation2 + $0x1d0] sm:$0xff] 0.0
          %379 = vst [vmem:[#allocation2 + $0x1d8] sm:$0xff] 0.0
          %380 = vst [vmem:[#allocation2 + $0x1e0] sm:$0xff] 0.0
          %381 = vst [vmem:[#allocation2 + $0x1e8] sm:$0xff] 0.0
          %382 = vst [vmem:[#allocation2 + $0x1f0] sm:$0xff] 0.0
          %383 = vst [vmem:[#allocation2 + $0x1f8] sm:$0xff] 0.0
          %384 = vst [vmem:[#allocation2 + $0x200] sm:$0xff] 0.0
          %385 = vst [vmem:[#allocation2 + $0x208] sm:$0xff] 0.0
          %386 = vst [vmem:[#allocation2 + $0x210] sm:$0xff] 0.0
          %387 = vst [vmem:[#allocation2 + $0x218] sm:$0xff] 0.0
          %388 = vst [vmem:[#allocation2 + $0x220] sm:$0xff] 0.0
          %389 = vst [vmem:[#allocation2 + $0x228] sm:$0xff] 0.0
          %390 = vst [vmem:[#allocation2 + $0x230] sm:$0xff] 0.0
          %391 = vst [vmem:[#allocation2 + $0x238] sm:$0xff] 0.0
          %392 = vst [vmem:[#allocation2 + $0x240] sm:$0xff] 0.0
          %393 = vst [vmem:[#allocation2 + $0x248] sm:$0xff] 0.0
          %394 = vst [vmem:[#allocation2 + $0x250] sm:$0xff] 0.0
          %395 = vst [vmem:[#allocation2 + $0x258] sm:$0xff] 0.0
          %396 = vst [vmem:[#allocation2 + $0x260] sm:$0xff] 0.0
          %397 = vst [vmem:[#allocation2 + $0x268] sm:$0xff] 0.0
          %398 = vst [vmem:[#allocation2 + $0x270] sm:$0xff] 0.0
          %399 = vst [vmem:[#allocation2 + $0x278] sm:$0xff] 0.0
          %400 = vst [vmem:[#allocation2 + $0x280] sm:$0xff] 0.0
          %401 = vst [vmem:[#allocation2 + $0x288] sm:$0xff] 0.0
          %402 = vst [vmem:[#allocation2 + $0x290] sm:$0xff] 0.0
          %403 = vst [vmem:[#allocation2 + $0x298] sm:$0xff] 0.0
          %404 = vst [vmem:[#allocation2 + $0x2a0] sm:$0xff] 0.0
          %405 = vst [vmem:[#allocation2 + $0x2a8] sm:$0xff] 0.0
          %406 = vst [vmem:[#allocation2 + $0x2b0] sm:$0xff] 0.0
          %407 = vst [vmem:[#allocation2 + $0x2b8] sm:$0xff] 0.0
          %408 = vst [vmem:[#allocation2 + $0x2c0] sm:$0xff] 0.0
          %409 = vst [vmem:[#allocation2 + $0x2c8] sm:$0xff] 0.0
          %410 = vst [vmem:[#allocation2 + $0x2d0] sm:$0xff] 0.0
          %411 = vst [vmem:[#allocation2 + $0x2d8] sm:$0xff] 0.0
          %412 = vst [vmem:[#allocation2 + $0x2e0] sm:$0xff] 0.0
          %413 = vst [vmem:[#allocation2 + $0x2e8] sm:$0xff] 0.0
          %414 = vst [vmem:[#allocation2 + $0x2f0] sm:$0xff] 0.0
          %415 = vst [vmem:[#allocation2 + $0x2f8] sm:$0xff] 0.0
          %416 = vst [vmem:[#allocation2 + $0x300] sm:$0xff] 0.0
          %417 = vst [vmem:[#allocation2 + $0x308] sm:$0xff] 0.0
          %418 = vst [vmem:[#allocation2 + $0x310] sm:$0xff] 0.0
          %419 = vst [vmem:[#allocation2 + $0x318] sm:$0xff] 0.0
          %420 = vst [vmem:[#allocation2 + $0x320] sm:$0xff] 0.0
          %421 = vst [vmem:[#allocation2 + $0x328] sm:$0xff] 0.0
          %422 = vst [vmem:[#allocation2 + $0x330] sm:$0xff] 0.0
          %423 = vst [vmem:[#allocation2 + $0x338] sm:$0xff] 0.0
          %424 = vst [vmem:[#allocation2 + $0x340] sm:$0xff] 0.0
          %425 = vst [vmem:[#allocation2 + $0x348] sm:$0xff] 0.0
          %426 = vst [vmem:[#allocation2 + $0x350] sm:$0xff] 0.0
          %427 = vst [vmem:[#allocation2 + $0x358] sm:$0xff] 0.0
          %428 = vst [vmem:[#allocation2 + $0x360] sm:$0xff] 0.0
          %429 = vst [vmem:[#allocation2 + $0x368] sm:$0xff] 0.0
          %430 = vst [vmem:[#allocation2 + $0x370] sm:$0xff] 0.0
          %431 = vst [vmem:[#allocation2 + $0x378] sm:$0xff] 0.0
          %432 = vst [vmem:[#allocation2 + $0x380] sm:$0xff] 0.0
          %433 = vst [vmem:[#allocation2 + $0x388] sm:$0xff] 0.0
          %434 = vst [vmem:[#allocation2 + $0x390] sm:$0xff] 0.0
          %435 = vst [vmem:[#allocation2 + $0x398] sm:$0xff] 0.0
          %436 = vst [vmem:[#allocation2 + $0x3a0] sm:$0xff] 0.0
          %437 = vst [vmem:[#allocation2 + $0x3a8] sm:$0xff] 0.0
          %438 = vst [vmem:[#allocation2 + $0x3b0] sm:$0xff] 0.0
          %439 = vst [vmem:[#allocation2 + $0x3b8] sm:$0xff] 0.0
          %440 = vst [vmem:[#allocation2 + $0x3c0] sm:$0xff] 0.0
          %441 = vst [vmem:[#allocation2 + $0x3c8] sm:$0xff] 0.0
          %442 = vst [vmem:[#allocation2 + $0x3d0] sm:$0xff] 0.0
          %443 = vst [vmem:[#allocation2 + $0x3d8] sm:$0xff] 0.0
          %444 = vst [vmem:[#allocation2 + $0x3e0] sm:$0xff] 0.0
          %445 = vst [vmem:[#allocation2 + $0x3e8] sm:$0xff] 0.0
          %446 = vst [vmem:[#allocation2 + $0x3f0] sm:$0xff] 0.0
          %447 = vst [vmem:[#allocation2 + $0x3f8] sm:$0xff] 0.0
        $region52: #{tpu_custom_call.1} parent=35 // pred_fallthru
          _
        %v448 = vld [vmem:[#allocation2] sm:$0xff]
        %v449 = vld [vmem:[#allocation2 + $0x8] sm:$0xff]
        %v450 = vld [vmem:[#allocation2 + $0x10] sm:$0xff]
        %v451 = vld [vmem:[#allocation2 + $0x18] sm:$0xff]
        %v452 = vld [vmem:[#allocation2 + $0x20] sm:$0xff]
        %v453 = vld [vmem:[#allocation2 + $0x28] sm:$0xff]
        %v454 = vld [vmem:[#allocation2 + $0x30] sm:$0xff]
        %v455 = vld [vmem:[#allocation2 + $0x38] sm:$0xff]
        %v456 = vld [vmem:[#allocation2 + $0x40] sm:$0xff]
        %v457 = vld [vmem:[#allocation2 + $0x48] sm:$0xff]
        %v458 = vld [vmem:[#allocation2 + $0x50] sm:$0xff]
        %v459 = vld [vmem:[#allocation2 + $0x58] sm:$0xff]
        %v460 = vld [vmem:[#allocation2 + $0x60] sm:$0xff]
        %v461 = vld [vmem:[#allocation2 + $0x68] sm:$0xff]
        %v462 = vld [vmem:[#allocation2 + $0x70] sm:$0xff]
        %v463 = vld [vmem:[#allocation2 + $0x78] sm:$0xff]
        %v464 = vld [vmem:[#allocation2 + $0x80] sm:$0xff]
        %v465 = vld [vmem:[#allocation2 + $0x88] sm:$0xff]
        %v466 = vld [vmem:[#allocation2 + $0x90] sm:$0xff]
        %v467 = vld [vmem:[#allocation2 + $0x98] sm:$0xff]
        %v468 = vld [vmem:[#allocation2 + $0xa0] sm:$0xff]
        %v469 = vld [vmem:[#allocation2 + $0xa8] sm:$0xff]
        %v470 = vld [vmem:[#allocation2 + $0xb0] sm:$0xff]
        %v471 = vld [vmem:[#allocation2 + $0xb8] sm:$0xff]
        %v472 = vld [vmem:[#allocation2 + $0xc0] sm:$0xff]
        %v473 = vld [vmem:[#allocation2 + $0xc8] sm:$0xff]
        %v474 = vld [vmem:[#allocation2 + $0xd0] sm:$0xff]
        %v475 = vld [vmem:[#allocation2 + $0xd8] sm:$0xff]
        %v476 = vld [vmem:[#allocation2 + $0xe0] sm:$0xff]
        %v477 = vld [vmem:[#allocation2 + $0xe8] sm:$0xff]
        %v478 = vld [vmem:[#allocation2 + $0xf0] sm:$0xff]
        %v479 = vld [vmem:[#allocation2 + $0xf8] sm:$0xff]
        %v480 = vld [vmem:[#allocation2 + $0x100] sm:$0xff]
        %v481 = vld [vmem:[#allocation2 + $0x108] sm:$0xff]
        %v482 = vld [vmem:[#allocation2 + $0x110] sm:$0xff]
        %v483 = vld [vmem:[#allocation2 + $0x118] sm:$0xff]
        %v484 = vld [vmem:[#allocation2 + $0x120] sm:$0xff]
        %v485 = vld [vmem:[#allocation2 + $0x128] sm:$0xff]
        %v486 = vld [vmem:[#allocation2 + $0x130] sm:$0xff]
        %v487 = vld [vmem:[#allocation2 + $0x138] sm:$0xff]
        %v488 = vld [vmem:[#allocation2 + $0x140] sm:$0xff]
        %v489 = vld [vmem:[#allocation2 + $0x148] sm:$0xff]
        %v490 = vld [vmem:[#allocation2 + $0x150] sm:$0xff]
        %v491 = vld [vmem:[#allocation2 + $0x158] sm:$0xff]
        %v492 = vld [vmem:[#allocation2 + $0x160] sm:$0xff]
        %v493 = vld [vmem:[#allocation2 + $0x168] sm:$0xff]
        %v494 = vld [vmem:[#allocation2 + $0x170] sm:$0xff]
        %v495 = vld [vmem:[#allocation2 + $0x178] sm:$0xff]
        %v496 = vld [vmem:[#allocation2 + $0x180] sm:$0xff]
        %v497 = vld [vmem:[#allocation2 + $0x188] sm:$0xff]
        %v498 = vld [vmem:[#allocation2 + $0x190] sm:$0xff]
        %v499 = vld [vmem:[#allocation2 + $0x198] sm:$0xff]
        %v500 = vld [vmem:[#allocation2 + $0x1a0] sm:$0xff]
        %v501 = vld [vmem:[#allocation2 + $0x1a8] sm:$0xff]
        %v502 = vld [vmem:[#allocation2 + $0x1b0] sm:$0xff]
        %v503 = vld [vmem:[#allocation2 + $0x1b8] sm:$0xff]
        %v504 = vld [vmem:[#allocation2 + $0x1c0] sm:$0xff]
        %v505 = vld [vmem:[#allocation2 + $0x1c8] sm:$0xff]
        %v506 = vld [vmem:[#allocation2 + $0x1d0] sm:$0xff]
        %v507 = vld [vmem:[#allocation2 + $0x1d8] sm:$0xff]
        %v508 = vld [vmem:[#allocation2 + $0x1e0] sm:$0xff]
        %v509 = vld [vmem:[#allocation2 + $0x1e8] sm:$0xff]
        %v510 = vld [vmem:[#allocation2 + $0x1f0] sm:$0xff]
        %v511 = vld [vmem:[#allocation2 + $0x1f8] sm:$0xff]
        %v512 = vld [vmem:[#allocation2 + $0x200] sm:$0xff]
        %v513 = vld [vmem:[#allocation2 + $0x208] sm:$0xff]
        %v514 = vld [vmem:[#allocation2 + $0x210] sm:$0xff]
        %v515 = vld [vmem:[#allocation2 + $0x218] sm:$0xff]
        %v516 = vld [vmem:[#allocation2 + $0x220] sm:$0xff]
        %v517 = vld [vmem:[#allocation2 + $0x228] sm:$0xff]
        %v518 = vld [vmem:[#allocation2 + $0x230] sm:$0xff]
        %v519 = vld [vmem:[#allocation2 + $0x238] sm:$0xff]
        %v520 = vld [vmem:[#allocation2 + $0x240] sm:$0xff]
        %v521 = vld [vmem:[#allocation2 + $0x248] sm:$0xff]
        %v522 = vld [vmem:[#allocation2 + $0x250] sm:$0xff]
        %v523 = vld [vmem:[#allocation2 + $0x258] sm:$0xff]
        %v524 = vld [vmem:[#allocation2 + $0x260] sm:$0xff]
        %v525 = vld [vmem:[#allocation2 + $0x268] sm:$0xff]
        %v526 = vld [vmem:[#allocation2 + $0x270] sm:$0xff]
        %v527 = vld [vmem:[#allocation2 + $0x278] sm:$0xff]
        %v528 = vld [vmem:[#allocation2 + $0x280] sm:$0xff]
        %v529 = vld [vmem:[#allocation2 + $0x288] sm:$0xff]
        %v530 = vld [vmem:[#allocation2 + $0x290] sm:$0xff]
        %v531 = vld [vmem:[#allocation2 + $0x298] sm:$0xff]
        %v532 = vld [vmem:[#allocation2 + $0x2a0] sm:$0xff]
        %v533 = vld [vmem:[#allocation2 + $0x2a8] sm:$0xff]
        %v534 = vld [vmem:[#allocation2 + $0x2b0] sm:$0xff]
        %v535 = vld [vmem:[#allocation2 + $0x2b8] sm:$0xff]
        %v536 = vld [vmem:[#allocation2 + $0x2c0] sm:$0xff]
        %v537 = vld [vmem:[#allocation2 + $0x2c8] sm:$0xff]
        %v538 = vld [vmem:[#allocation2 + $0x2d0] sm:$0xff]
        %v539 = vld [vmem:[#allocation2 + $0x2d8] sm:$0xff]
        %v540 = vld [vmem:[#allocation2 + $0x2e0] sm:$0xff]
        %v541 = vld [vmem:[#allocation2 + $0x2e8] sm:$0xff]
        %v542 = vld [vmem:[#allocation2 + $0x2f0] sm:$0xff]
        %v543 = vld [vmem:[#allocation2 + $0x2f8] sm:$0xff]
        %v544 = vld [vmem:[#allocation2 + $0x300] sm:$0xff]
        %v545 = vld [vmem:[#allocation2 + $0x308] sm:$0xff]
        %v546 = vld [vmem:[#allocation2 + $0x310] sm:$0xff]
        %v547 = vld [vmem:[#allocation2 + $0x318] sm:$0xff]
        %v548 = vld [vmem:[#allocation2 + $0x320] sm:$0xff]
        %v549 = vld [vmem:[#allocation2 + $0x328] sm:$0xff]
        %v550 = vld [vmem:[#allocation2 + $0x330] sm:$0xff]
        %v551 = vld [vmem:[#allocation2 + $0x338] sm:$0xff]
        %v552 = vld [vmem:[#allocation2 + $0x340] sm:$0xff]
        %v553 = vld [vmem:[#allocation2 + $0x348] sm:$0xff]
        %v554 = vld [vmem:[#allocation2 + $0x350] sm:$0xff]
        %v555 = vld [vmem:[#allocation2 + $0x358] sm:$0xff]
        %v556 = vld [vmem:[#allocation2 + $0x360] sm:$0xff]
        %v557 = vld [vmem:[#allocation2 + $0x368] sm:$0xff]
        %v558 = vld [vmem:[#allocation2 + $0x370] sm:$0xff]
        %v559 = vld [vmem:[#allocation2 + $0x378] sm:$0xff]
        %v560 = vld [vmem:[#allocation2 + $0x380] sm:$0xff]
        %v561 = vld [vmem:[#allocation2 + $0x388] sm:$0xff]
        %v562 = vld [vmem:[#allocation2 + $0x390] sm:$0xff]
        %v563 = vld [vmem:[#allocation2 + $0x398] sm:$0xff]
        %v564 = vld [vmem:[#allocation2 + $0x3a0] sm:$0xff]
        %v565 = vld [vmem:[#allocation2 + $0x3a8] sm:$0xff]
        %v566 = vld [vmem:[#allocation2 + $0x3b0] sm:$0xff]
        %v567 = vld [vmem:[#allocation2 + $0x3b8] sm:$0xff]
        %v568 = vld [vmem:[#allocation2 + $0x3c0] sm:$0xff]
        %v569 = vld [vmem:[#allocation2 + $0x3c8] sm:$0xff]
        %v570 = vld [vmem:[#allocation2 + $0x3d0] sm:$0xff]
        %v571 = vld [vmem:[#allocation2 + $0x3d8] sm:$0xff]
        %v572 = vld [vmem:[#allocation2 + $0x3e0] sm:$0xff]
        %v573 = vld [vmem:[#allocation2 + $0x3e8] sm:$0xff]
        %v574 = vld [vmem:[#allocation2 + $0x3f0] sm:$0xff]
        %v575 = vld [vmem:[#allocation2 + $0x3f8] sm:$0xff]
        %v576 = vld [vmem:[%s259] sm:$0xff]
        %v577 = vld [vmem:[%s259 + $0x8] sm:$0xff]
        %v578 = vld [vmem:[%s259 + $0x10] sm:$0xff]
        %v579 = vld [vmem:[%s259 + $0x18] sm:$0xff]
        %v580 = vld [vmem:[%s259 + $0x20] sm:$0xff]
        %v581 = vld [vmem:[%s259 + $0x28] sm:$0xff]
        %v582 = vld [vmem:[%s259 + $0x30] sm:$0xff]
        %v583 = vld [vmem:[%s259 + $0x38] sm:$0xff]
        %v584 = vld [vmem:[%s259 + $0x40] sm:$0xff]
        %v585 = vld [vmem:[%s259 + $0x48] sm:$0xff]
        %v586 = vld [vmem:[%s259 + $0x50] sm:$0xff]
        %v587 = vld [vmem:[%s259 + $0x58] sm:$0xff]
        %v588 = vld [vmem:[%s259 + $0x60] sm:$0xff]
        %v589 = vld [vmem:[%s259 + $0x68] sm:$0xff]
        %v590 = vld [vmem:[%s259 + $0x70] sm:$0xff]
        %v591 = vld [vmem:[%s259 + $0x78] sm:$0xff]
        %v592 = vld [vmem:[%s259 + $0x80] sm:$0xff]
        %v593 = vld [vmem:[%s259 + $0x88] sm:$0xff]
        %v594 = vld [vmem:[%s259 + $0x90] sm:$0xff]
        %v595 = vld [vmem:[%s259 + $0x98] sm:$0xff]
        %v596 = vld [vmem:[%s259 + $0xa0] sm:$0xff]
        %v597 = vld [vmem:[%s259 + $0xa8] sm:$0xff]
        %v598 = vld [vmem:[%s259 + $0xb0] sm:$0xff]
        %v599 = vld [vmem:[%s259 + $0xb8] sm:$0xff]
        %v600 = vld [vmem:[%s259 + $0xc0] sm:$0xff]
        %v601 = vld [vmem:[%s259 + $0xc8] sm:$0xff]
        %v602 = vld [vmem:[%s259 + $0xd0] sm:$0xff]
        %v603 = vld [vmem:[%s259 + $0xd8] sm:$0xff]
        %v604 = vld [vmem:[%s259 + $0xe0] sm:$0xff]
        %v605 = vld [vmem:[%s259 + $0xe8] sm:$0xff]
        %v606 = vld [vmem:[%s259 + $0xf0] sm:$0xff]
        %v607 = vld [vmem:[%s259 + $0xf8] sm:$0xff]
        %v608 = vld [vmem:[%s259 + $0x100] sm:$0xff]
        %v609 = vld [vmem:[%s259 + $0x108] sm:$0xff]
        %v610 = vld [vmem:[%s259 + $0x110] sm:$0xff]
        %v611 = vld [vmem:[%s259 + $0x118] sm:$0xff]
        %v612 = vld [vmem:[%s259 + $0x120] sm:$0xff]
        %v613 = vld [vmem:[%s259 + $0x128] sm:$0xff]
        %v614 = vld [vmem:[%s259 + $0x130] sm:$0xff]
        %v615 = vld [vmem:[%s259 + $0x138] sm:$0xff]
        %v616 = vld [vmem:[%s259 + $0x140] sm:$0xff]
        %v617 = vld [vmem:[%s259 + $0x148] sm:$0xff]
        %v618 = vld [vmem:[%s259 + $0x150] sm:$0xff]
        %v619 = vld [vmem:[%s259 + $0x158] sm:$0xff]
        %v620 = vld [vmem:[%s259 + $0x160] sm:$0xff]
        %v621 = vld [vmem:[%s259 + $0x168] sm:$0xff]
        %v622 = vld [vmem:[%s259 + $0x170] sm:$0xff]
        %v623 = vld [vmem:[%s259 + $0x178] sm:$0xff]
        %v624 = vld [vmem:[%s259 + $0x180] sm:$0xff]
        %v625 = vld [vmem:[%s259 + $0x188] sm:$0xff]
        %v626 = vld [vmem:[%s259 + $0x190] sm:$0xff]
        %v627 = vld [vmem:[%s259 + $0x198] sm:$0xff]
        %v628 = vld [vmem:[%s259 + $0x1a0] sm:$0xff]
        %v629 = vld [vmem:[%s259 + $0x1a8] sm:$0xff]
        %v630 = vld [vmem:[%s259 + $0x1b0] sm:$0xff]
        %v631 = vld [vmem:[%s259 + $0x1b8] sm:$0xff]
        %v632 = vld [vmem:[%s259 + $0x1c0] sm:$0xff]
        %v633 = vld [vmem:[%s259 + $0x1c8] sm:$0xff]
        %v634 = vld [vmem:[%s259 + $0x1d0] sm:$0xff]
        %v635 = vld [vmem:[%s259 + $0x1d8] sm:$0xff]
        %v636 = vld [vmem:[%s259 + $0x1e0] sm:$0xff]
        %v637 = vld [vmem:[%s259 + $0x1e8] sm:$0xff]
        %v638 = vld [vmem:[%s259 + $0x1f0] sm:$0xff]
        %v639 = vld [vmem:[%s259 + $0x1f8] sm:$0xff]
        %v640 = vld [vmem:[%s268] sm:$0xff]
        %v641 = vld [vmem:[%s268 + $0x8] sm:$0xff]
        %v642 = vld [vmem:[%s268 + $0x10] sm:$0xff]
        %v643 = vld [vmem:[%s268 + $0x18] sm:$0xff]
        %v644 = vld [vmem:[%s268 + $0x20] sm:$0xff]
        %v645 = vld [vmem:[%s268 + $0x28] sm:$0xff]
        %v646 = vld [vmem:[%s268 + $0x30] sm:$0xff]
        %v647 = vld [vmem:[%s268 + $0x38] sm:$0xff]
        %v648 = vld [vmem:[%s268 + $0x40] sm:$0xff]
        %v649 = vld [vmem:[%s268 + $0x48] sm:$0xff]
        %v650 = vld [vmem:[%s268 + $0x50] sm:$0xff]
        %v651 = vld [vmem:[%s268 + $0x58] sm:$0xff]
        %v652 = vld [vmem:[%s268 + $0x60] sm:$0xff]
        %v653 = vld [vmem:[%s268 + $0x68] sm:$0xff]
        %v654 = vld [vmem:[%s268 + $0x70] sm:$0xff]
        %v655 = vld [vmem:[%s268 + $0x78] sm:$0xff]
        %v656 = vld [vmem:[%s268 + $0x80] sm:$0xff]
        %v657 = vld [vmem:[%s268 + $0x88] sm:$0xff]
        %v658 = vld [vmem:[%s268 + $0x90] sm:$0xff]
        %v659 = vld [vmem:[%s268 + $0x98] sm:$0xff]
        %v660 = vld [vmem:[%s268 + $0xa0] sm:$0xff]
        %v661 = vld [vmem:[%s268 + $0xa8] sm:$0xff]
        %v662 = vld [vmem:[%s268 + $0xb0] sm:$0xff]
        %v663 = vld [vmem:[%s268 + $0xb8] sm:$0xff]
        %v664 = vld [vmem:[%s268 + $0xc0] sm:$0xff]
        %v665 = vld [vmem:[%s268 + $0xc8] sm:$0xff]
        %v666 = vld [vmem:[%s268 + $0xd0] sm:$0xff]
        %v667 = vld [vmem:[%s268 + $0xd8] sm:$0xff]
        %v668 = vld [vmem:[%s268 + $0xe0] sm:$0xff]
        %v669 = vld [vmem:[%s268 + $0xe8] sm:$0xff]
        %v670 = vld [vmem:[%s268 + $0xf0] sm:$0xff]
        %v671 = vld [vmem:[%s268 + $0xf8] sm:$0xff]
        %v672 = vld [vmem:[%s268 + $0x100] sm:$0xff]
        %v673 = vld [vmem:[%s268 + $0x108] sm:$0xff]
        %v674 = vld [vmem:[%s268 + $0x110] sm:$0xff]
        %v675 = vld [vmem:[%s268 + $0x118] sm:$0xff]
        %v676 = vld [vmem:[%s268 + $0x120] sm:$0xff]
        %v677 = vld [vmem:[%s268 + $0x128] sm:$0xff]
        %v678 = vld [vmem:[%s268 + $0x130] sm:$0xff]
        %v679 = vld [vmem:[%s268 + $0x138] sm:$0xff]
        %v680 = vld [vmem:[%s268 + $0x140] sm:$0xff]
        %v681 = vld [vmem:[%s268 + $0x148] sm:$0xff]
        %v682 = vld [vmem:[%s268 + $0x150] sm:$0xff]
        %v683 = vld [vmem:[%s268 + $0x158] sm:$0xff]
        %v684 = vld [vmem:[%s268 + $0x160] sm:$0xff]
        %v685 = vld [vmem:[%s268 + $0x168] sm:$0xff]
        %v686 = vld [vmem:[%s268 + $0x170] sm:$0xff]
        %v687 = vld [vmem:[%s268 + $0x178] sm:$0xff]
        %v688 = vld [vmem:[%s268 + $0x180] sm:$0xff]
        %v689 = vld [vmem:[%s268 + $0x188] sm:$0xff]
        %v690 = vld [vmem:[%s268 + $0x190] sm:$0xff]
        %v691 = vld [vmem:[%s268 + $0x198] sm:$0xff]
        %v692 = vld [vmem:[%s268 + $0x1a0] sm:$0xff]
        %v693 = vld [vmem:[%s268 + $0x1a8] sm:$0xff]
        %v694 = vld [vmem:[%s268 + $0x1b0] sm:$0xff]
        %v695 = vld [vmem:[%s268 + $0x1b8] sm:$0xff]
        %v696 = vld [vmem:[%s268 + $0x1c0] sm:$0xff]
        %v697 = vld [vmem:[%s268 + $0x1c8] sm:$0xff]
        %v698 = vld [vmem:[%s268 + $0x1d0] sm:$0xff]
        %v699 = vld [vmem:[%s268 + $0x1d8] sm:$0xff]
        %v700 = vld [vmem:[%s268 + $0x1e0] sm:$0xff]
        %v701 = vld [vmem:[%s268 + $0x1e8] sm:$0xff]
        %v702 = vld [vmem:[%s268 + $0x1f0] sm:$0xff]
        %v703 = vld [vmem:[%s268 + $0x1f8] sm:$0xff]
        %v704 = vld [vmem:[%s268 + $0x200] sm:$0xff]
        %v705 = vld [vmem:[%s268 + $0x208] sm:$0xff]
        %v706 = vld [vmem:[%s268 + $0x210] sm:$0xff]
        %v707 = vld [vmem:[%s268 + $0x218] sm:$0xff]
        %v708 = vld [vmem:[%s268 + $0x220] sm:$0xff]
        %v709 = vld [vmem:[%s268 + $0x228] sm:$0xff]
        %v710 = vld [vmem:[%s268 + $0x230] sm:$0xff]
        %v711 = vld [vmem:[%s268 + $0x238] sm:$0xff]
        %v712 = vld [vmem:[%s268 + $0x240] sm:$0xff]
        %v713 = vld [vmem:[%s268 + $0x248] sm:$0xff]
        %v714 = vld [vmem:[%s268 + $0x250] sm:$0xff]
        %v715 = vld [vmem:[%s268 + $0x258] sm:$0xff]
        %v716 = vld [vmem:[%s268 + $0x260] sm:$0xff]
        %v717 = vld [vmem:[%s268 + $0x268] sm:$0xff]
        %v718 = vld [vmem:[%s268 + $0x270] sm:$0xff]
        %v719 = vld [vmem:[%s268 + $0x278] sm:$0xff]
        %v720 = vld [vmem:[%s268 + $0x280] sm:$0xff]
        %v721 = vld [vmem:[%s268 + $0x288] sm:$0xff]
        %v722 = vld [vmem:[%s268 + $0x290] sm:$0xff]
        %v723 = vld [vmem:[%s268 + $0x298] sm:$0xff]
        %v724 = vld [vmem:[%s268 + $0x2a0] sm:$0xff]
        %v725 = vld [vmem:[%s268 + $0x2a8] sm:$0xff]
        %v726 = vld [vmem:[%s268 + $0x2b0] sm:$0xff]
        %v727 = vld [vmem:[%s268 + $0x2b8] sm:$0xff]
        %v728 = vld [vmem:[%s268 + $0x2c0] sm:$0xff]
        %v729 = vld [vmem:[%s268 + $0x2c8] sm:$0xff]
        %v730 = vld [vmem:[%s268 + $0x2d0] sm:$0xff]
        %v731 = vld [vmem:[%s268 + $0x2d8] sm:$0xff]
        %v732 = vld [vmem:[%s268 + $0x2e0] sm:$0xff]
        %v733 = vld [vmem:[%s268 + $0x2e8] sm:$0xff]
        %v734 = vld [vmem:[%s268 + $0x2f0] sm:$0xff]
        %v735 = vld [vmem:[%s268 + $0x2f8] sm:$0xff]
        %v736 = vld [vmem:[%s268 + $0x300] sm:$0xff]
        %v737 = vld [vmem:[%s268 + $0x308] sm:$0xff]
        %v738 = vld [vmem:[%s268 + $0x310] sm:$0xff]
        %v739 = vld [vmem:[%s268 + $0x318] sm:$0xff]
        %v740 = vld [vmem:[%s268 + $0x320] sm:$0xff]
        %v741 = vld [vmem:[%s268 + $0x328] sm:$0xff]
        %v742 = vld [vmem:[%s268 + $0x330] sm:$0xff]
        %v743 = vld [vmem:[%s268 + $0x338] sm:$0xff]
        %v744 = vld [vmem:[%s268 + $0x340] sm:$0xff]
        %v745 = vld [vmem:[%s268 + $0x348] sm:$0xff]
        %v746 = vld [vmem:[%s268 + $0x350] sm:$0xff]
        %v747 = vld [vmem:[%s268 + $0x358] sm:$0xff]
        %v748 = vld [vmem:[%s268 + $0x360] sm:$0xff]
        %v749 = vld [vmem:[%s268 + $0x368] sm:$0xff]
        %v750 = vld [vmem:[%s268 + $0x370] sm:$0xff]
        %v751 = vld [vmem:[%s268 + $0x378] sm:$0xff]
        %v752 = vld [vmem:[%s268 + $0x380] sm:$0xff]
        %v753 = vld [vmem:[%s268 + $0x388] sm:$0xff]
        %v754 = vld [vmem:[%s268 + $0x390] sm:$0xff]
        %v755 = vld [vmem:[%s268 + $0x398] sm:$0xff]
        %v756 = vld [vmem:[%s268 + $0x3a0] sm:$0xff]
        %v757 = vld [vmem:[%s268 + $0x3a8] sm:$0xff]
        %v758 = vld [vmem:[%s268 + $0x3b0] sm:$0xff]
        %v759 = vld [vmem:[%s268 + $0x3b8] sm:$0xff]
        %v760 = vld [vmem:[%s268 + $0x3c0] sm:$0xff]
        %v761 = vld [vmem:[%s268 + $0x3c8] sm:$0xff]
        %v762 = vld [vmem:[%s268 + $0x3d0] sm:$0xff]
        %v763 = vld [vmem:[%s268 + $0x3d8] sm:$0xff]
        %v764 = vld [vmem:[%s268 + $0x3e0] sm:$0xff]
        %v765 = vld [vmem:[%s268 + $0x3e8] sm:$0xff]
        %v766 = vld [vmem:[%s268 + $0x3f0] sm:$0xff]
        %v767 = vld [vmem:[%s268 + $0x3f8] sm:$0xff]
        %v768 = vand.u32 %v641, 4294901760
        %769 = vmatprep.subr.mxu0 %v768
        %v770 = vand.u32 %v640, 4294901760
        %771 = vmatpush1.msra.mxu0 %v770
        %v772 = vand.u32 %v645, 4294901760
        %773 = vmatprep.subr.mxu0 %v772
        %v774 = vand.u32 %v644, 4294901760
        %775 = vmatpush1.msra.mxu0 %v774
        %v776 = vand.u32 %v649, 4294901760
        %777 = vmatprep.subr.mxu0 %v776
        %v778 = vand.u32 %v648, 4294901760
        %779 = vmatpush1.msra.mxu0 %v778
        %v780 = vand.u32 %v653, 4294901760
        %781 = vmatprep.subr.mxu0 %v780
        %v782 = vand.u32 %v652, 4294901760
        %783 = vmatpush1.msra.mxu0 %v782
        %v784 = vand.u32 %v657, 4294901760
        %785 = vmatprep.subr.mxu0 %v784
        %v786 = vand.u32 %v656, 4294901760
        %787 = vmatpush1.msra.mxu0 %v786
        %v788 = vand.u32 %v661, 4294901760
        %789 = vmatprep.subr.mxu0 %v788
        %v790 = vand.u32 %v660, 4294901760
        %791 = vmatpush1.msra.mxu0 %v790
        %v792 = vand.u32 %v665, 4294901760
        %793 = vmatprep.subr.mxu0 %v792
        %v794 = vand.u32 %v664, 4294901760
        %795 = vmatpush1.msra.mxu0 %v794
        %v796 = vand.u32 %v669, 4294901760
        %797 = vmatprep.subr.mxu0 %v796
        %v798 = vand.u32 %v668, 4294901760
        %799 = vmatpush1.msra.mxu0 %v798
        %v800 = vand.u32 %v673, 4294901760
        %801 = vmatprep.subr.mxu0 %v800
        %v802 = vand.u32 %v672, 4294901760
        %803 = vmatpush1.msra.mxu0 %v802
        %v804 = vand.u32 %v677, 4294901760
        %805 = vmatprep.subr.mxu0 %v804
        %v806 = vand.u32 %v676, 4294901760
        %807 = vmatpush1.msra.mxu0 %v806
        %v808 = vand.u32 %v681, 4294901760
        %809 = vmatprep.subr.mxu0 %v808
        %v810 = vand.u32 %v680, 4294901760
        %811 = vmatpush1.msra.mxu0 %v810
        %v812 = vand.u32 %v685, 4294901760
        %813 = vmatprep.subr.mxu0 %v812
        %v814 = vand.u32 %v684, 4294901760
        %815 = vmatpush1.msra.mxu0 %v814
        %v816 = vand.u32 %v689, 4294901760
        %817 = vmatprep.subr.mxu0 %v816
        %v818 = vand.u32 %v688, 4294901760
        %819 = vmatpush1.msra.mxu0 %v818
        %v820 = vand.u32 %v693, 4294901760
        %821 = vmatprep.subr.mxu0 %v820
        %v822 = vand.u32 %v692, 4294901760
        %823 = vmatpush1.msra.mxu0 %v822
        %v824 = vand.u32 %v697, 4294901760
        %825 = vmatprep.subr.mxu0 %v824
        %v826 = vand.u32 %v696, 4294901760
        %827 = vmatpush1.msra.mxu0 %v826
        %v828 = vand.u32 %v701, 4294901760
        %829 = vmatprep.subr.mxu0 %v828
        %v830 = vand.u32 %v700, 4294901760
        %831 = vmatpush1.msra.mxu0 %v830
        %v832 = vand.u32 %v705, 4294901760
        %833 = vmatprep.subr.mxu0 %v832
        %v834 = vand.u32 %v704, 4294901760
        %835 = vmatpush1.msra.mxu0 %v834
        %v836 = vand.u32 %v709, 4294901760
        %837 = vmatprep.subr.mxu0 %v836
        %v838 = vand.u32 %v708, 4294901760
        %839 = vmatpush1.msra.mxu0 %v838
        %v840 = vand.u32 %v713, 4294901760
        %841 = vmatprep.subr.mxu0 %v840
        %v842 = vand.u32 %v712, 4294901760
        %843 = vmatpush1.msra.mxu0 %v842
        %v844 = vand.u32 %v717, 4294901760
        %845 = vmatprep.subr.mxu0 %v844
        %v846 = vand.u32 %v716, 4294901760
        %847 = vmatpush1.msra.mxu0 %v846
        %v848 = vand.u32 %v721, 4294901760
        %849 = vmatprep.subr.mxu0 %v848
        %v850 = vand.u32 %v720, 4294901760
        %851 = vmatpush1.msra.mxu0 %v850
        %v852 = vand.u32 %v725, 4294901760
        %853 = vmatprep.subr.mxu0 %v852
        %v854 = vand.u32 %v724, 4294901760
        %855 = vmatpush1.msra.mxu0 %v854
        %v856 = vand.u32 %v729, 4294901760
        %857 = vmatprep.subr.mxu0 %v856
        %v858 = vand.u32 %v728, 4294901760
        %859 = vmatpush1.msra.mxu0 %v858
        %v860 = vand.u32 %v733, 4294901760
        %861 = vmatprep.subr.mxu0 %v860
        %v862 = vand.u32 %v732, 4294901760
        %863 = vmatpush1.msra.mxu0 %v862
        %v864 = vand.u32 %v737, 4294901760
        %865 = vmatprep.subr.mxu0 %v864
        %v866 = vand.u32 %v736, 4294901760
        %867 = vmatpush1.msra.mxu0 %v866
        %v868 = vand.u32 %v741, 4294901760
        %869 = vmatprep.subr.mxu0 %v868
        %v870 = vand.u32 %v740, 4294901760
        %871 = vmatpush1.msra.mxu0 %v870
        %v872 = vand.u32 %v745, 4294901760
        %873 = vmatprep.subr.mxu0 %v872
        %v874 = vand.u32 %v744, 4294901760
        %875 = vmatpush1.msra.mxu0 %v874
        %v876 = vand.u32 %v749, 4294901760
        %877 = vmatprep.subr.mxu0 %v876
        %v878 = vand.u32 %v748, 4294901760
        %879 = vmatpush1.msra.mxu0 %v878
        %v880 = vand.u32 %v753, 4294901760
        %881 = vmatprep.subr.mxu0 %v880
        %v882 = vand.u32 %v752, 4294901760
        %883 = vmatpush1.msra.mxu0 %v882
        %v884 = vand.u32 %v757, 4294901760
        %885 = vmatprep.subr.mxu0 %v884
        %v886 = vand.u32 %v756, 4294901760
        %887 = vmatpush1.msra.mxu0 %v886
        %v888 = vand.u32 %v761, 4294901760
        %889 = vmatprep.subr.mxu0 %v888
        %v890 = vand.u32 %v760, 4294901760
        %891 = vmatpush1.msra.mxu0 %v890
        %v892 = vand.u32 %v765, 4294901760
        %893 = vmatprep.subr.mxu0 %v892
        %v894 = vand.u32 %v764, 4294901760
        %895 = vmatpush1.msra.mxu0 %v894
        %v896 = vand.u32 %v577, 4294901760
        %v897 = vsub.f32 %v577, %v896
        %v898 = vand.u32 %v897, 4294901760
        %v899 = vsub.f32 %v897, %v898
        %v900 = vand.u32 %v899, 4294901760
        %901 = vmatprep.mubr.f32.mxu0 %v900
        %v902 = vand.u32 %v576, 4294901760
        %v903 = vsub.f32 %v576, %v902
        %v904 = vand.u32 %v903, 4294901760
        %v905 = vsub.f32 %v903, %v904
        %v906 = vand.u32 %v905, 4294901760
        %907 = vmatmul.mubr.f32.gmra.mrb[0].mxu0 %v906
        %v908 = vpop.f32.mrb[0].mxu0
        %v909 = vadd.f32 0.0, %v908
        %v910 = vpop.f32.mrb[0].mxu0
        %v911 = vadd.f32 0.0, %v910
        %v912 = vand.u32 %v579, 4294901760
        %v913 = vsub.f32 %v579, %v912
        %v914 = vand.u32 %v913, 4294901760
        %v915 = vsub.f32 %v913, %v914
        %v916 = vand.u32 %v915, 4294901760
        %917 = vmatprep.mubr.f32.mxu0 %v916
        %v918 = vand.u32 %v578, 4294901760
        %v919 = vsub.f32 %v578, %v918
        %v920 = vand.u32 %v919, 4294901760
        %v921 = vsub.f32 %v919, %v920
        %v922 = vand.u32 %v921, 4294901760
        %923 = vmatmul.mubr.f32.gmra.mrb[0].mxu0 %v922
        %v924 = vpop.f32.mrb[0].mxu0
        %v925 = vadd.f32 0.0, %v924
        %v926 = vpop.f32.mrb[0].mxu0
        %v927 = vadd.f32 0.0, %v926
        %v928 = vand.u32 %v581, 4294901760
        %v929 = vsub.f32 %v581, %v928
        %v930 = vand.u32 %v929, 4294901760
        %v931 = vsub.f32 %v929, %v930
        %v932 = vand.u32 %v931, 4294901760
        %933 = vmatprep.mubr.f32.mxu0 %v932
        %v934 = vand.u32 %v580, 4294901760
        %v935 = vsub.f32 %v580, %v934
        %v936 = vand.u32 %v935, 4294901760
        %v937 = vsub.f32 %v935, %v936
        %v938 = vand.u32 %v937, 4294901760
        %939 = vmatmul.mubr.f32.gmra.mrb[0].mxu0 %v938
        %v940 = vpop.f32.mrb[0].mxu0
        %v941 = vadd.f32 0.0, %v940
        %v942 = vpop.f32.mrb[0].mxu0
        %v943 = vadd.f32 0.0, %v942
        %v944 = vand.u32 %v583, 4294901760
        %v945 = vsub.f32 %v583, %v944
        %v946 = vand.u32 %v945, 4294901760
        %v947 = vsub.f32 %v945, %v946
        %v948 = vand.u32 %v947, 4294901760
        %949 = vmatprep.mubr.f32.mxu0 %v948
        %v950 = vand.u32 %v582, 4294901760
        %v951 = vsub.f32 %v582, %v950
        %v952 = vand.u32 %v951, 4294901760
        %v953 = vsub.f32 %v951, %v952
        %v954 = vand.u32 %v953, 4294901760
        %955 = vmatmul.mubr.f32.gmra.mrb[0].mxu0 %v954
        %v956 = vpop.f32.mrb[0].mxu0
        %v957 = vadd.f32 0.0, %v956
        %v958 = vpop.f32.mrb[0].mxu0
        %v959 = vadd.f32 0.0, %v958
        %v960 = vand.u32 %v585, 4294901760
        %v961 = vsub.f32 %v585, %v960
        %v962 = vand.u32 %v961, 4294901760
        %v963 = vsub.f32 %v961, %v962
        %v964 = vand.u32 %v963, 4294901760
        %965 = vmatprep.mubr.f32.mxu0 %v964
        %v966 = vand.u32 %v584, 4294901760
        %v967 = vsub.f32 %v584, %v966
        %v968 = vand.u32 %v967, 4294901760
        %v969 = vsub.f32 %v967, %v968
        %v970 = vand.u32 %v969, 4294901760
        %971 = vmatmul.mubr.f32.gmra.mrb[0].mxu0 %v970
        %v972 = vpop.f32.mrb[0].mxu0
        %v973 = vadd.f32 0.0, %v972
        %v974 = vpop.f32.mrb[0].mxu0
        %v975 = vadd.f32 0.0, %v974
        %v976 = vand.u32 %v587, 4294901760
        %v977 = vsub.f32 %v587, %v976
        %v978 = vand.u32 %v977, 4294901760
        %v979 = vsub.f32 %v977, %v978
        %v980 = vand.u32 %v979, 4294901760
        %981 = vmatprep.mubr.f32.mxu0 %v980
        %v982 = vand.u32 %v586, 4294901760
        %v983 = vsub.f32 %v586, %v982
        %v984 = vand.u32 %v983, 4294901760
        %v985 = vsub.f32 %v983, %v984
        %v986 = vand.u32 %v985, 4294901760
        %987 = vmatmul.mubr.f32.gmra.mrb[0].mxu0 %v986
        %v988 = vpop.f32.mrb[0].mxu0
        %v989 = vadd.f32 0.0, %v988
        %v990 = vpop.f32.mrb[0].mxu0
        %v991 = vadd.f32 0.0, %v990
        %v992 = vand.u32 %v589, 4294901760
        %v993 = vsub.f32 %v589, %v992
        %v994 = vand.u32 %v993, 4294901760
        %v995 = vsub.f32 %v993, %v994
        %v996 = vand.u32 %v995, 4294901760
        %997 = vmatprep.mubr.f32.mxu0 %v996
        %v998 = vand.u32 %v588, 4294901760
        %v999 = vsub.f32 %v588, %v998
        %v1000 = vand.u32 %v999, 4294901760
        %v1001 = vsub.f32 %v999, %v1000
        %v1002 = vand.u32 %v1001, 4294901760
        %1003 = vmatmul.mubr.f32.gmra.mrb[0].mxu0 %v1002
        %v1004 = vpop.f32.mrb[0].mxu0
        %v1005 = vadd.f32 0.0, %v1004
        %v1006 = vpop.f32.mrb[0].mxu0
        %v1007 = vadd.f32 0.0, %v1006
        %v1008 = vand.u32 %v591, 4294901760
        %v1009 = vsub.f32 %v591, %v1008
        %v1010 = vand.u32 %v1009, 4294901760
        %v1011 = vsub.f32 %v1009, %v1010
        %v1012 = vand.u32 %v1011, 4294901760
        %1013 = vmatprep.mubr.f32.mxu0 %v1012
        %v1014 = vand.u32 %v590, 4294901760
        %v1015 = vsub.f32 %v590, %v1014
        %v1016 = vand.u32 %v1015, 4294901760
        %v1017 = vsub.f32 %v1015, %v1016
        %v1018 = vand.u32 %v1017, 4294901760
        %1019 = vmatmul.mubr.f32.gmra.mrb[0].mxu0 %v1018
        %v1020 = vpop.f32.mrb[0].mxu0
        %v1021 = vadd.f32 0.0, %v1020
        %v1022 = vpop.f32.mrb[0].mxu0
        %v1023 = vadd.f32 0.0, %v1022
        %v1024 = vand.u32 %v593, 4294901760
        %v1025 = vsub.f32 %v593, %v1024
        %v1026 = vand.u32 %v1025, 4294901760
        %v1027 = vsub.f32 %v1025, %v1026
        %v1028 = vand.u32 %v1027, 4294901760
        %1029 = vmatprep.mubr.f32.mxu0 %v1028
        %v1030 = vand.u32 %v592, 4294901760
        %v1031 = vsub.f32 %v592, %v1030
        %v1032 = vand.u32 %v1031, 4294901760
        %v1033 = vsub.f32 %v1031, %v1032
        %v1034 = vand.u32 %v1033, 4294901760
        %1035 = vmatmul.mubr.f32.gmra.mrb[0].mxu0 %v1034
        %v1036 = vpop.f32.mrb[0].mxu0
        %v1037 = vadd.f32 0.0, %v1036
        %v1038 = vpop.f32.mrb[0].mxu0
        %v1039 = vadd.f32 0.0, %v1038
        %v1040 = vand.u32 %v595, 4294901760
        %v1041 = vsub.f32 %v595, %v1040
        %v1042 = vand.u32 %v1041, 4294901760
        %v1043 = vsub.f32 %v1041, %v1042
        %v1044 = vand.u32 %v1043, 4294901760
        %1045 = vmatprep.mubr.f32.mxu0 %v1044
        %v1046 = vand.u32 %v594, 4294901760
        %v1047 = vsub.f32 %v594, %v1046
        %v1048 = vand.u32 %v1047, 4294901760
        %v1049 = vsub.f32 %v1047, %v1048
        %v1050 = vand.u32 %v1049, 4294901760
        %1051 = vmatmul.mubr.f32.gmra.mrb[0].mxu0 %v1050
        %v1052 = vpop.f32.mrb[0].mxu0
        %v1053 = vadd.f32 0.0, %v1052
        %v1054 = vpop.f32.mrb[0].mxu0
        %v1055 = vadd.f32 0.0, %v1054
        %v1056 = vand.u32 %v597, 4294901760
        %v1057 = vsub.f32 %v597, %v1056
        %v1058 = vand.u32 %v1057, 4294901760
        %v1059 = vsub.f32 %v1057, %v1058
        %v1060 = vand.u32 %v1059, 4294901760
        %1061 = vmatprep.mubr.f32.mxu0 %v1060
        %v1062 = vand.u32 %v596, 4294901760
        %v1063 = vsub.f32 %v596, %v1062
        %v1064 = vand.u32 %v1063, 4294901760
        %v1065 = vsub.f32 %v1063, %v1064
        %v1066 = vand.u32 %v1065, 4294901760
        %1067 = vmatmul.mubr.f32.gmra.mrb[0].mxu0 %v1066
        %v1068 = vpop.f32.mrb[0].mxu0
        %v1069 = vadd.f32 0.0, %v1068
        %v1070 = vpop.f32.mrb[0].mxu0
        %v1071 = vadd.f32 0.0, %v1070
        %v1072 = vand.u32 %v599, 4294901760
        %v1073 = vsub.f32 %v599, %v1072
        %v1074 = vand.u32 %v1073, 4294901760
        %v1075 = vsub.f32 %v1073, %v1074
        %v1076 = vand.u32 %v1075, 4294901760
        %1077 = vmatprep.mubr.f32.mxu0 %v1076
        %v1078 = vand.u32 %v598, 4294901760
        %v1079 = vsub.f32 %v598, %v1078
        %v1080 = vand.u32 %v1079, 4294901760
        %v1081 = vsub.f32 %v1079, %v1080
        %v1082 = vand.u32 %v1081, 4294901760
        %1083 = vmatmul.mubr.f32.gmra.mrb[0].mxu0 %v1082
        %v1084 = vpop.f32.mrb[0].mxu0
        %v1085 = vadd.f32 0.0, %v1084
        %v1086 = vpop.f32.mrb[0].mxu0
        %v1087 = vadd.f32 0.0, %v1086
        %v1088 = vand.u32 %v601, 4294901760
        %v1089 = vsub.f32 %v601, %v1088
        %v1090 = vand.u32 %v1089, 4294901760
        %v1091 = vsub.f32 %v1089, %v1090
        %v1092 = vand.u32 %v1091, 4294901760
        %1093 = vmatprep.mubr.f32.mxu0 %v1092
        %v1094 = vand.u32 %v600, 4294901760
        %v1095 = vsub.f32 %v600, %v1094
        %v1096 = vand.u32 %v1095, 4294901760
        %v1097 = vsub.f32 %v1095, %v1096
        %v1098 = vand.u32 %v1097, 4294901760
        %1099 = vmatmul.mubr.f32.gmra.mrb[0].mxu0 %v1098
        %v1100 = vpop.f32.mrb[0].mxu0
        %v1101 = vadd.f32 0.0, %v1100
        %v1102 = vpop.f32.mrb[0].mxu0
        %v1103 = vadd.f32 0.0, %v1102
        %v1104 = vand.u32 %v603, 4294901760
        %v1105 = vsub.f32 %v603, %v1104
        %v1106 = vand.u32 %v1105, 4294901760
        %v1107 = vsub.f32 %v1105, %v1106
        %v1108 = vand.u32 %v1107, 4294901760
        %1109 = vmatprep.mubr.f32.mxu0 %v1108
        %v1110 = vand.u32 %v602, 4294901760
        %v1111 = vsub.f32 %v602, %v1110
        %v1112 = vand.u32 %v1111, 4294901760
        %v1113 = vsub.f32 %v1111, %v1112
        %v1114 = vand.u32 %v1113, 4294901760
        %1115 = vmatmul.mubr.f32.gmra.mrb[0].mxu0 %v1114
        %v1116 = vpop.f32.mrb[0].mxu0
        %v1117 = vadd.f32 0.0, %v1116
        %v1118 = vpop.f32.mrb[0].mxu0
        %v1119 = vadd.f32 0.0, %v1118
        %v1120 = vand.u32 %v605, 4294901760
        %v1121 = vsub.f32 %v605, %v1120
        %v1122 = vand.u32 %v1121, 4294901760
        %v1123 = vsub.f32 %v1121, %v1122
        %v1124 = vand.u32 %v1123, 4294901760
        %1125 = vmatprep.mubr.f32.mxu0 %v1124
        %v1126 = vand.u32 %v604, 4294901760
        %v1127 = vsub.f32 %v604, %v1126
        %v1128 = vand.u32 %v1127, 4294901760
        %v1129 = vsub.f32 %v1127, %v1128
        %v1130 = vand.u32 %v1129, 4294901760
        %1131 = vmatmul.mubr.f32.gmra.mrb[0].mxu0 %v1130
        %v1132 = vpop.f32.mrb[0].mxu0
        %v1133 = vadd.f32 0.0, %v1132
        %v1134 = vpop.f32.mrb[0].mxu0
        %v1135 = vadd.f32 0.0, %v1134
        %v1136 = vand.u32 %v607, 4294901760
        %v1137 = vsub.f32 %v607, %v1136
        %v1138 = vand.u32 %v1137, 4294901760
        %v1139 = vsub.f32 %v1137, %v1138
        %v1140 = vand.u32 %v1139, 4294901760
        %1141 = vmatprep.mubr.f32.mxu0 %v1140
        %v1142 = vand.u32 %v606, 4294901760
        %v1143 = vsub.f32 %v606, %v1142
        %v1144 = vand.u32 %v1143, 4294901760
        %v1145 = vsub.f32 %v1143, %v1144
        %v1146 = vand.u32 %v1145, 4294901760
        %1147 = vmatmul.mubr.f32.gmra.mrb[0].mxu0 %v1146
        %v1148 = vpop.f32.mrb[0].mxu0
        %v1149 = vadd.f32 0.0, %v1148
        %v1150 = vpop.f32.mrb[0].mxu0
        %v1151 = vadd.f32 0.0, %v1150
        %v1152 = vand.u32 %v609, 4294901760
        %v1153 = vsub.f32 %v609, %v1152
        %v1154 = vand.u32 %v1153, 4294901760
        %v1155 = vsub.f32 %v1153, %v1154
        %v1156 = vand.u32 %v1155, 4294901760
        %1157 = vmatprep.mubr.f32.mxu0 %v1156
        %v1158 = vand.u32 %v608, 4294901760
        %v1159 = vsub.f32 %v608, %v1158
        %v1160 = vand.u32 %v1159, 4294901760
        %v1161 = vsub.f32 %v1159, %v1160
        %v1162 = vand.u32 %v1161, 4294901760
        %1163 = vmatmul.mubr.f32.gmra.mrb[0].mxu0 %v1162
        %v1164 = vpop.f32.mrb[0].mxu0
        %v1165 = vadd.f32 0.0, %v1164
        %v1166 = vpop.f32.mrb[0].mxu0
        %v1167 = vadd.f32 0.0, %v1166
        %v1168 = vand.u32 %v611, 4294901760
        %v1169 = vsub.f32 %v611, %v1168
        %v1170 = vand.u32 %v1169, 4294901760
        %v1171 = vsub.f32 %v1169, %v1170
        %v1172 = vand.u32 %v1171, 4294901760
        %1173 = vmatprep.mubr.f32.mxu0 %v1172
        %v1174 = vand.u32 %v610, 4294901760
        %v1175 = vsub.f32 %v610, %v1174
        %v1176 = vand.u32 %v1175, 4294901760
        %v1177 = vsub.f32 %v1175, %v1176
        %v1178 = vand.u32 %v1177, 4294901760
        %1179 = vmatmul.mubr.f32.gmra.mrb[0].mxu0 %v1178
        %v1180 = vpop.f32.mrb[0].mxu0
        %v1181 = vadd.f32 0.0, %v1180
        %v1182 = vpop.f32.mrb[0].mxu0
        %v1183 = vadd.f32 0.0, %v1182
        %v1184 = vand.u32 %v613, 4294901760
        %v1185 = vsub.f32 %v613, %v1184
        %v1186 = vand.u32 %v1185, 4294901760
        %v1187 = vsub.f32 %v1185, %v1186
        %v1188 = vand.u32 %v1187, 4294901760
        %1189 = vmatprep.mubr.f32.mxu0 %v1188
        %v1190 = vand.u32 %v612, 4294901760
        %v1191 = vsub.f32 %v612, %v1190
        %v1192 = vand.u32 %v1191, 4294901760
        %v1193 = vsub.f32 %v1191, %v1192
        %v1194 = vand.u32 %v1193, 4294901760
        %1195 = vmatmul.mubr.f32.gmra.mrb[0].mxu0 %v1194
        %v1196 = vpop.f32.mrb[0].mxu0
        %v1197 = vadd.f32 0.0, %v1196
        %v1198 = vpop.f32.mrb[0].mxu0
        %v1199 = vadd.f32 0.0, %v1198
        %v1200 = vand.u32 %v615, 4294901760
        %v1201 = vsub.f32 %v615, %v1200
        %v1202 = vand.u32 %v1201, 4294901760
        %v1203 = vsub.f32 %v1201, %v1202
        %v1204 = vand.u32 %v1203, 4294901760
        %1205 = vmatprep.mubr.f32.mxu0 %v1204
        %v1206 = vand.u32 %v614, 4294901760
        %v1207 = vsub.f32 %v614, %v1206
        %v1208 = vand.u32 %v1207, 4294901760
        %v1209 = vsub.f32 %v1207, %v1208
        %v1210 = vand.u32 %v1209, 4294901760
        %1211 = vmatmul.mubr.f32.gmra.mrb[0].mxu0 %v1210
        %v1212 = vpop.f32.mrb[0].mxu0
        %v1213 = vadd.f32 0.0, %v1212
        %v1214 = vpop.f32.mrb[0].mxu0
        %v1215 = vadd.f32 0.0, %v1214
        %v1216 = vand.u32 %v617, 4294901760
        %v1217 = vsub.f32 %v617, %v1216
        %v1218 = vand.u32 %v1217, 4294901760
        %v1219 = vsub.f32 %v1217, %v1218
        %v1220 = vand.u32 %v1219, 4294901760
        %1221 = vmatprep.mubr.f32.mxu0 %v1220
        %v1222 = vand.u32 %v616, 4294901760
        %v1223 = vsub.f32 %v616, %v1222
        %v1224 = vand.u32 %v1223, 4294901760
        %v1225 = vsub.f32 %v1223, %v1224
        %v1226 = vand.u32 %v1225, 4294901760
        %1227 = vmatmul.mubr.f32.gmra.mrb[0].mxu0 %v1226
        %v1228 = vpop.f32.mrb[0].mxu0
        %v1229 = vadd.f32 0.0, %v1228
        %v1230 = vpop.f32.mrb[0].mxu0
        %v1231 = vadd.f32 0.0, %v1230
        %v1232 = vand.u32 %v619, 4294901760
        %v1233 = vsub.f32 %v619, %v1232
        %v1234 = vand.u32 %v1233, 4294901760
        %v1235 = vsub.f32 %v1233, %v1234
        %v1236 = vand.u32 %v1235, 4294901760
        %1237 = vmatprep.mubr.f32.mxu0 %v1236
        %v1238 = vand.u32 %v618, 4294901760
        %v1239 = vsub.f32 %v618, %v1238
        %v1240 = vand.u32 %v1239, 4294901760
        %v1241 = vsub.f32 %v1239, %v1240
        %v1242 = vand.u32 %v1241, 4294901760
        %1243 = vmatmul.mubr.f32.gmra.mrb[0].mxu0 %v1242
        %v1244 = vpop.f32.mrb[0].mxu0
        %v1245 = vadd.f32 0.0, %v1244
        %v1246 = vpop.f32.mrb[0].mxu0
        %v1247 = vadd.f32 0.0, %v1246
        %v1248 = vand.u32 %v621, 4294901760
        %v1249 = vsub.f32 %v621, %v1248
        %v1250 = vand.u32 %v1249, 4294901760
        %v1251 = vsub.f32 %v1249, %v1250
        %v1252 = vand.u32 %v1251, 4294901760
        %1253 = vmatprep.mubr.f32.mxu0 %v1252
        %v1254 = vand.u32 %v620, 4294901760
        %v1255 = vsub.f32 %v620, %v1254
        %v1256 = vand.u32 %v1255, 4294901760
        %v1257 = vsub.f32 %v1255, %v1256
        %v1258 = vand.u32 %v1257, 4294901760
        %1259 = vmatmul.mubr.f32.gmra.mrb[0].mxu0 %v1258
        %v1260 = vpop.f32.mrb[0].mxu0
        %v1261 = vadd.f32 0.0, %v1260
        %v1262 = vpop.f32.mrb[0].mxu0
        %v1263 = vadd.f32 0.0, %v1262
        %v1264 = vand.u32 %v623, 4294901760
        %v1265 = vsub.f32 %v623, %v1264
        %v1266 = vand.u32 %v1265, 4294901760
        %v1267 = vsub.f32 %v1265, %v1266
        %v1268 = vand.u32 %v1267, 4294901760
        %1269 = vmatprep.mubr.f32.mxu0 %v1268
        %v1270 = vand.u32 %v622, 4294901760
        %v1271 = vsub.f32 %v622, %v1270
        %v1272 = vand.u32 %v1271, 4294901760
        %v1273 = vsub.f32 %v1271, %v1272
        %v1274 = vand.u32 %v1273, 4294901760
        %1275 = vmatmul.mubr.f32.gmra.mrb[0].mxu0 %v1274
        %v1276 = vpop.f32.mrb[0].mxu0
        %v1277 = vadd.f32 0.0, %v1276
        %v1278 = vpop.f32.mrb[0].mxu0
        %v1279 = vadd.f32 0.0, %v1278
        %v1280 = vand.u32 %v625, 4294901760
        %v1281 = vsub.f32 %v625, %v1280
        %v1282 = vand.u32 %v1281, 4294901760
        %v1283 = vsub.f32 %v1281, %v1282
        %v1284 = vand.u32 %v1283, 4294901760
        %1285 = vmatprep.mubr.f32.mxu0 %v1284
        %v1286 = vand.u32 %v624, 4294901760
        %v1287 = vsub.f32 %v624, %v1286
        %v1288 = vand.u32 %v1287, 4294901760
        %v1289 = vsub.f32 %v1287, %v1288
        %v1290 = vand.u32 %v1289, 4294901760
        %1291 = vmatmul.mubr.f32.gmra.mrb[0].mxu0 %v1290
        %v1292 = vpop.f32.mrb[0].mxu0
        %v1293 = vadd.f32 0.0, %v1292
        %v1294 = vpop.f32.mrb[0].mxu0
        %v1295 = vadd.f32 0.0, %v1294
        %v1296 = vand.u32 %v627, 4294901760
        %v1297 = vsub.f32 %v627, %v1296
        %v1298 = vand.u32 %v1297, 4294901760
        %v1299 = vsub.f32 %v1297, %v1298
        %v1300 = vand.u32 %v1299, 4294901760
        %1301 = vmatprep.mubr.f32.mxu0 %v1300
        %v1302 = vand.u32 %v626, 4294901760
        %v1303 = vsub.f32 %v626, %v1302
        %v1304 = vand.u32 %v1303, 4294901760
        %v1305 = vsub.f32 %v1303, %v1304
        %v1306 = vand.u32 %v1305, 4294901760
        %1307 = vmatmul.mubr.f32.gmra.mrb[0].mxu0 %v1306
        %v1308 = vpop.f32.mrb[0].mxu0
        %v1309 = vadd.f32 0.0, %v1308
        %v1310 = vpop.f32.mrb[0].mxu0
        %v1311 = vadd.f32 0.0, %v1310
        %v1312 = vand.u32 %v629, 4294901760
        %v1313 = vsub.f32 %v629, %v1312
        %v1314 = vand.u32 %v1313, 4294901760
        %v1315 = vsub.f32 %v1313, %v1314
        %v1316 = vand.u32 %v1315, 4294901760
        %1317 = vmatprep.mubr.f32.mxu0 %v1316
        %v1318 = vand.u32 %v628, 4294901760
        %v1319 = vsub.f32 %v628, %v1318
        %v1320 = vand.u32 %v1319, 4294901760
        %v1321 = vsub.f32 %v1319, %v1320
        %v1322 = vand.u32 %v1321, 4294901760
        %1323 = vmatmul.mubr.f32.gmra.mrb[0].mxu0 %v1322
        %v1324 = vpop.f32.mrb[0].mxu0
        %v1325 = vadd.f32 0.0, %v1324
        %v1326 = vpop.f32.mrb[0].mxu0
        %v1327 = vadd.f32 0.0, %v1326
        %v1328 = vand.u32 %v631, 4294901760
        %v1329 = vsub.f32 %v631, %v1328
        %v1330 = vand.u32 %v1329, 4294901760
        %v1331 = vsub.f32 %v1329, %v1330
        %v1332 = vand.u32 %v1331, 4294901760
        %1333 = vmatprep.mubr.f32.mxu0 %v1332
        %v1334 = vand.u32 %v630, 4294901760
        %v1335 = vsub.f32 %v630, %v1334
        %v1336 = vand.u32 %v1335, 4294901760
        %v1337 = vsub.f32 %v1335, %v1336
        %v1338 = vand.u32 %v1337, 4294901760
        %1339 = vmatmul.mubr.f32.gmra.mrb[0].mxu0 %v1338
        %v1340 = vpop.f32.mrb[0].mxu0
        %v1341 = vadd.f32 0.0, %v1340
        %v1342 = vpop.f32.mrb[0].mxu0
        %v1343 = vadd.f32 0.0, %v1342
        %v1344 = vand.u32 %v633, 4294901760
        %v1345 = vsub.f32 %v633, %v1344
        %v1346 = vand.u32 %v1345, 4294901760
        %v1347 = vsub.f32 %v1345, %v1346
        %v1348 = vand.u32 %v1347, 4294901760
        %1349 = vmatprep.mubr.f32.mxu0 %v1348
        %v1350 = vand.u32 %v632, 4294901760
        %v1351 = vsub.f32 %v632, %v1350
        %v1352 = vand.u32 %v1351, 4294901760
        %v1353 = vsub.f32 %v1351, %v1352
        %v1354 = vand.u32 %v1353, 4294901760
        %1355 = vmatmul.mubr.f32.gmra.mrb[0].mxu0 %v1354
        %v1356 = vpop.f32.mrb[0].mxu0
        %v1357 = vadd.f32 0.0, %v1356
        %v1358 = vpop.f32.mrb[0].mxu0
        %v1359 = vadd.f32 0.0, %v1358
        %v1360 = vand.u32 %v635, 4294901760
        %v1361 = vsub.f32 %v635, %v1360
        %v1362 = vand.u32 %v1361, 4294901760
        %v1363 = vsub.f32 %v1361, %v1362
        %v1364 = vand.u32 %v1363, 4294901760
        %1365 = vmatprep.mubr.f32.mxu0 %v1364
        %v1366 = vand.u32 %v634, 4294901760
        %v1367 = vsub.f32 %v634, %v1366
        %v1368 = vand.u32 %v1367, 4294901760
        %v1369 = vsub.f32 %v1367, %v1368
        %v1370 = vand.u32 %v1369, 4294901760
        %1371 = vmatmul.mubr.f32.gmra.mrb[0].mxu0 %v1370
        %v1372 = vpop.f32.mrb[0].mxu0
        %v1373 = vadd.f32 0.0, %v1372
        %v1374 = vpop.f32.mrb[0].mxu0
        %v1375 = vadd.f32 0.0, %v1374
        %v1376 = vand.u32 %v637, 4294901760
        %v1377 = vsub.f32 %v637, %v1376
        %v1378 = vand.u32 %v1377, 4294901760
        %v1379 = vsub.f32 %v1377, %v1378
        %v1380 = vand.u32 %v1379, 4294901760
        %1381 = vmatprep.mubr.f32.mxu0 %v1380
        %v1382 = vand.u32 %v636, 4294901760
        %v1383 = vsub.f32 %v636, %v1382
        %v1384 = vand.u32 %v1383, 4294901760
        %v1385 = vsub.f32 %v1383, %v1384
        %v1386 = vand.u32 %v1385, 4294901760
        %1387 = vmatmul.mubr.f32.gmra.mrb[0].mxu0 %v1386
        %v1388 = vpop.f32.mrb[0].mxu0
        %v1389 = vadd.f32 0.0, %v1388
        %v1390 = vpop.f32.mrb[0].mxu0
        %v1391 = vadd.f32 0.0, %v1390
        %v1392 = vand.u32 %v639, 4294901760
        %v1393 = vsub.f32 %v639, %v1392
        %v1394 = vand.u32 %v1393, 4294901760
        %v1395 = vsub.f32 %v1393, %v1394
        %v1396 = vand.u32 %v1395, 4294901760
        %1397 = vmatprep.mubr.f32.mxu0 %v1396
        %v1398 = vand.u32 %v638, 4294901760
        %v1399 = vsub.f32 %v638, %v1398
        %v1400 = vand.u32 %v1399, 4294901760
        %v1401 = vsub.f32 %v1399, %v1400
        %v1402 = vand.u32 %v1401, 4294901760
        %1403 = vmatmul.mubr.f32.gmra.mrb[0].mxu0 %v1402
        %v1404 = vpop.f32.mrb[0].mxu0
        %v1405 = vadd.f32 0.0, %v1404
        %v1406 = vpop.f32.mrb[0].mxu0
        %v1407 = vadd.f32 0.0, %v1406
        %1408 = vdwg.mxu0
        %v1409 = vand.u32 %v641, 4294901760
        %v1410 = vsub.f32 %v641, %v1409
        %v1411 = vand.u32 %v1410, 4294901760
        %v1412 = vsub.f32 %v1410, %v1411
        %v1413 = vand.u32 %v1412, 4294901760
        %1414 = vmatprep.subr.mxu0 %v1413
        %v1415 = vand.u32 %v640, 4294901760
        %v1416 = vsub.f32 %v640, %v1415
        %v1417 = vand.u32 %v1416, 4294901760
        %v1418 = vsub.f32 %v1416, %v1417
        %v1419 = vand.u32 %v1418, 4294901760
        %1420 = vmatpush1.msra.mxu0 %v1419
        %v1421 = vand.u32 %v645, 4294901760
        %v1422 = vsub.f32 %v645, %v1421
        %v1423 = vand.u32 %v1422, 4294901760
        %v1424 = vsub.f32 %v1422, %v1423
        %v1425 = vand.u32 %v1424, 4294901760
        %1426 = vmatprep.subr.mxu0 %v1425
        %v1427 = vand.u32 %v644, 4294901760
        %v1428 = vsub.f32 %v644, %v1427
        %v1429 = vand.u32 %v1428, 4294901760
        %v1430 = vsub.f32 %v1428, %v1429
        %v1431 = vand.u32 %v1430, 4294901760
        %1432 = vmatpush1.msra.mxu0 %v1431
        %v1433 = vand.u32 %v649, 4294901760
        %v1434 = vsub.f32 %v649, %v1433
        %v1435 = vand.u32 %v1434, 4294901760
        %v1436 = vsub.f32 %v1434, %v1435
        %v1437 = vand.u32 %v1436, 4294901760
        %1438 = vmatprep.subr.mxu0 %v1437
        %v1439 = vand.u32 %v648, 4294901760
        %v1440 = vsub.f32 %v648, %v1439
        %v1441 = vand.u32 %v1440, 4294901760
        %v1442 = vsub.f32 %v1440, %v1441
        %v1443 = vand.u32 %v1442, 4294901760
        %1444 = vmatpush1.msra.mxu0 %v1443
        %v1445 = vand.u32 %v653, 4294901760
        %v1446 = vsub.f32 %v653, %v1445
        %v1447 = vand.u32 %v1446, 4294901760
        %v1448 = vsub.f32 %v1446, %v1447
        %v1449 = vand.u32 %v1448, 4294901760
        %1450 = vmatprep.subr.mxu0 %v1449
        %v1451 = vand.u32 %v652, 4294901760
        %v1452 = vsub.f32 %v652, %v1451
        %v1453 = vand.u32 %v1452, 4294901760
        %v1454 = vsub.f32 %v1452, %v1453
        %v1455 = vand.u32 %v1454, 4294901760
        %1456 = vmatpush1.msra.mxu0 %v1455
        %v1457 = vand.u32 %v657, 4294901760
        %v1458 = vsub.f32 %v657, %v1457
        %v1459 = vand.u32 %v1458, 4294901760
        %v1460 = vsub.f32 %v1458, %v1459
        %v1461 = vand.u32 %v1460, 4294901760
        %1462 = vmatprep.subr.mxu0 %v1461
        %v1463 = vand.u32 %v656, 4294901760
        %v1464 = vsub.f32 %v656, %v1463
        %v1465 = vand.u32 %v1464, 4294901760
        %v1466 = vsub.f32 %v1464, %v1465
        %v1467 = vand.u32 %v1466, 4294901760
        %1468 = vmatpush1.msra.mxu0 %v1467
        %v1469 = vand.u32 %v661, 4294901760
        %v1470 = vsub.f32 %v661, %v1469
        %v1471 = vand.u32 %v1470, 4294901760
        %v1472 = vsub.f32 %v1470, %v1471
        %v1473 = vand.u32 %v1472, 4294901760
        %1474 = vmatprep.subr.mxu0 %v1473
        %v1475 = vand.u32 %v660, 4294901760
        %v1476 = vsub.f32 %v660, %v1475
        %v1477 = vand.u32 %v1476, 4294901760
        %v1478 = vsub.f32 %v1476, %v1477
        %v1479 = vand.u32 %v1478, 4294901760
        %1480 = vmatpush1.msra.mxu0 %v1479
        %v1481 = vand.u32 %v665, 4294901760
        %v1482 = vsub.f32 %v665, %v1481
        %v1483 = vand.u32 %v1482, 4294901760
        %v1484 = vsub.f32 %v1482, %v1483
        %v1485 = vand.u32 %v1484, 4294901760
        %1486 = vmatprep.subr.mxu0 %v1485
        %v1487 = vand.u32 %v664, 4294901760
        %v1488 = vsub.f32 %v664, %v1487
        %v1489 = vand.u32 %v1488, 4294901760
        %v1490 = vsub.f32 %v1488, %v1489
        %v1491 = vand.u32 %v1490, 4294901760
        %1492 = vmatpush1.msra.mxu0 %v1491
        %v1493 = vand.u32 %v669, 4294901760
        %v1494 = vsub.f32 %v669, %v1493
        %v1495 = vand.u32 %v1494, 4294901760
        %v1496 = vsub.f32 %v1494, %v1495
        %v1497 = vand.u32 %v1496, 4294901760
        %1498 = vmatprep.subr.mxu0 %v1497
        %v1499 = vand.u32 %v668, 4294901760
        %v1500 = vsub.f32 %v668, %v1499
        %v1501 = vand.u32 %v1500, 4294901760
        %v1502 = vsub.f32 %v1500, %v1501
        %v1503 = vand.u32 %v1502, 4294901760
        %1504 = vmatpush1.msra.mxu0 %v1503
        %v1505 = vand.u32 %v673, 4294901760
        %v1506 = vsub.f32 %v673, %v1505
        %v1507 = vand.u32 %v1506, 4294901760
        %v1508 = vsub.f32 %v1506, %v1507
        %v1509 = vand.u32 %v1508, 4294901760
        %1510 = vmatprep.subr.mxu0 %v1509
        %v1511 = vand.u32 %v672, 4294901760
        %v1512 = vsub.f32 %v672, %v1511
        %v1513 = vand.u32 %v1512, 4294901760
        %v1514 = vsub.f32 %v1512, %v1513
        %v1515 = vand.u32 %v1514, 4294901760
        %1516 = vmatpush1.msra.mxu0 %v1515
        %v1517 = vand.u32 %v677, 4294901760
        %v1518 = vsub.f32 %v677, %v1517
        %v1519 = vand.u32 %v1518, 4294901760
        %v1520 = vsub.f32 %v1518, %v1519
        %v1521 = vand.u32 %v1520, 4294901760
        %1522 = vmatprep.subr.mxu0 %v1521
        %v1523 = vand.u32 %v676, 4294901760
        %v1524 = vsub.f32 %v676, %v1523
        %v1525 = vand.u32 %v1524, 4294901760
        %v1526 = vsub.f32 %v1524, %v1525
        %v1527 = vand.u32 %v1526, 4294901760
        %1528 = vmatpush1.msra.mxu0 %v1527
        %v1529 = vand.u32 %v681, 4294901760
        %v1530 = vsub.f32 %v681, %v1529
        %v1531 = vand.u32 %v1530, 4294901760
        %v1532 = vsub.f32 %v1530, %v1531
        %v1533 = vand.u32 %v1532, 4294901760
        %1534 = vmatprep.subr.mxu0 %v1533
        %v1535 = vand.u32 %v680, 4294901760
        %v1536 = vsub.f32 %v680, %v1535
        %v1537 = vand.u32 %v1536, 4294901760
        %v1538 = vsub.f32 %v1536, %v1537
        %v1539 = vand.u32 %v1538, 4294901760
        %1540 = vmatpush1.msra.mxu0 %v1539
        %v1541 = vand.u32 %v685, 4294901760
        %v1542 = vsub.f32 %v685, %v1541
        %v1543 = vand.u32 %v1542, 4294901760
        %v1544 = vsub.f32 %v1542, %v1543
        %v1545 = vand.u32 %v1544, 4294901760
        %1546 = vmatprep.subr.mxu0 %v1545
        %v1547 = vand.u32 %v684, 4294901760
        %v1548 = vsub.f32 %v684, %v1547
        %v1549 = vand.u32 %v1548, 4294901760
        %v1550 = vsub.f32 %v1548, %v1549
        %v1551 = vand.u32 %v1550, 4294901760
        %1552 = vmatpush1.msra.mxu0 %v1551
        %v1553 = vand.u32 %v689, 4294901760
        %v1554 = vsub.f32 %v689, %v1553
        %v1555 = vand.u32 %v1554, 4294901760
        %v1556 = vsub.f32 %v1554, %v1555
        %v1557 = vand.u32 %v1556, 4294901760
        %1558 = vmatprep.subr.mxu0 %v1557
        %v1559 = vand.u32 %v688, 4294901760
        %v1560 = vsub.f32 %v688, %v1559
        %v1561 = vand.u32 %v1560, 4294901760
        %v1562 = vsub.f32 %v1560, %v1561
        %v1563 = vand.u32 %v1562, 4294901760
        %1564 = vmatpush1.msra.mxu0 %v1563
        %v1565 = vand.u32 %v693, 4294901760
        %v1566 = vsub.f32 %v693, %v1565
        %v1567 = vand.u32 %v1566, 4294901760
        %v1568 = vsub.f32 %v1566, %v1567
        %v1569 = vand.u32 %v1568, 4294901760
        %1570 = vmatprep.subr.mxu0 %v1569
        %v1571 = vand.u32 %v692, 4294901760
        %v1572 = vsub.f32 %v692, %v1571
        %v1573 = vand.u32 %v1572, 4294901760
        %v1574 = vsub.f32 %v1572, %v1573
        %v1575 = vand.u32 %v1574, 4294901760
        %1576 = vmatpush1.msra.mxu0 %v1575
        %v1577 = vand.u32 %v697, 4294901760
        %v1578 = vsub.f32 %v697, %v1577
        %v1579 = vand.u32 %v1578, 4294901760
        %v1580 = vsub.f32 %v1578, %v1579
        %v1581 = vand.u32 %v1580, 4294901760
        %1582 = vmatprep.subr.mxu0 %v1581
        %v1583 = vand.u32 %v696, 4294901760
        %v1584 = vsub.f32 %v696, %v1583
        %v1585 = vand.u32 %v1584, 4294901760
        %v1586 = vsub.f32 %v1584, %v1585
        %v1587 = vand.u32 %v1586, 4294901760
        %1588 = vmatpush1.msra.mxu0 %v1587
        %v1589 = vand.u32 %v701, 4294901760
        %v1590 = vsub.f32 %v701, %v1589
        %v1591 = vand.u32 %v1590, 4294901760
        %v1592 = vsub.f32 %v1590, %v1591
        %v1593 = vand.u32 %v1592, 4294901760
        %1594 = vmatprep.subr.mxu0 %v1593
        %v1595 = vand.u32 %v700, 4294901760
        %v1596 = vsub.f32 %v700, %v1595
        %v1597 = vand.u32 %v1596, 4294901760
        %v1598 = vsub.f32 %v1596, %v1597
        %v1599 = vand.u32 %v1598, 4294901760
        %1600 = vmatpush1.msra.mxu0 %v1599
        %v1601 = vand.u32 %v705, 4294901760
        %v1602 = vsub.f32 %v705, %v1601
        %v1603 = vand.u32 %v1602, 4294901760
        %v1604 = vsub.f32 %v1602, %v1603
        %v1605 = vand.u32 %v1604, 4294901760
        %1606 = vmatprep.subr.mxu0 %v1605
        %v1607 = vand.u32 %v704, 4294901760
        %v1608 = vsub.f32 %v704, %v1607
        %v1609 = vand.u32 %v1608, 4294901760
        %v1610 = vsub.f32 %v1608, %v1609
        %v1611 = vand.u32 %v1610, 4294901760
        %1612 = vmatpush1.msra.mxu0 %v1611
        %v1613 = vand.u32 %v709, 4294901760
        %v1614 = vsub.f32 %v709, %v1613
        %v1615 = vand.u32 %v1614, 4294901760
        %v1616 = vsub.f32 %v1614, %v1615
        %v1617 = vand.u32 %v1616, 4294901760
        %1618 = vmatprep.subr.mxu0 %v1617
        %v1619 = vand.u32 %v708, 4294901760
        %v1620 = vsub.f32 %v708, %v1619
        %v1621 = vand.u32 %v1620, 4294901760
        %v1622 = vsub.f32 %v1620, %v1621
        %v1623 = vand.u32 %v1622, 4294901760
        %1624 = vmatpush1.msra.mxu0 %v1623
        %v1625 = vand.u32 %v713, 4294901760
        %v1626 = vsub.f32 %v713, %v1625
        %v1627 = vand.u32 %v1626, 4294901760
        %v1628 = vsub.f32 %v1626, %v1627
        %v1629 = vand.u32 %v1628, 4294901760
        %1630 = vmatprep.subr.mxu0 %v1629
        %v1631 = vand.u32 %v712, 4294901760
        %v1632 = vsub.f32 %v712, %v1631
        %v1633 = vand.u32 %v1632, 4294901760
        %v1634 = vsub.f32 %v1632, %v1633
        %v1635 = vand.u32 %v1634, 4294901760
        %1636 = vmatpush1.msra.mxu0 %v1635
        %v1637 = vand.u32 %v717, 4294901760
        %v1638 = vsub.f32 %v717, %v1637
        %v1639 = vand.u32 %v1638, 4294901760
        %v1640 = vsub.f32 %v1638, %v1639
        %v1641 = vand.u32 %v1640, 4294901760
        %1642 = vmatprep.subr.mxu0 %v1641
        %v1643 = vand.u32 %v716, 4294901760
        %v1644 = vsub.f32 %v716, %v1643
        %v1645 = vand.u32 %v1644, 4294901760
        %v1646 = vsub.f32 %v1644, %v1645
        %v1647 = vand.u32 %v1646, 4294901760
        %1648 = vmatpush1.msra.mxu0 %v1647
        %v1649 = vand.u32 %v721, 4294901760
        %v1650 = vsub.f32 %v721, %v1649
        %v1651 = vand.u32 %v1650, 4294901760
        %v1652 = vsub.f32 %v1650, %v1651
        %v1653 = vand.u32 %v1652, 4294901760
        %1654 = vmatprep.subr.mxu0 %v1653
        %v1655 = vand.u32 %v720, 4294901760
        %v1656 = vsub.f32 %v720, %v1655
        %v1657 = vand.u32 %v1656, 4294901760
        %v1658 = vsub.f32 %v1656, %v1657
        %v1659 = vand.u32 %v1658, 4294901760
        %1660 = vmatpush1.msra.mxu0 %v1659
        %v1661 = vand.u32 %v725, 4294901760
        %v1662 = vsub.f32 %v725, %v1661
        %v1663 = vand.u32 %v1662, 4294901760
        %v1664 = vsub.f32 %v1662, %v1663
        %v1665 = vand.u32 %v1664, 4294901760
        %1666 = vmatprep.subr.mxu0 %v1665
        %v1667 = vand.u32 %v724, 4294901760
        %v1668 = vsub.f32 %v724, %v1667
        %v1669 = vand.u32 %v1668, 4294901760
        %v1670 = vsub.f32 %v1668, %v1669
        %v1671 = vand.u32 %v1670, 4294901760
        %1672 = vmatpush1.msra.mxu0 %v1671
        %v1673 = vand.u32 %v729, 4294901760
        %v1674 = vsub.f32 %v729, %v1673
        %v1675 = vand.u32 %v1674, 4294901760
        %v1676 = vsub.f32 %v1674, %v1675
        %v1677 = vand.u32 %v1676, 4294901760
        %1678 = vmatprep.subr.mxu0 %v1677
        %v1679 = vand.u32 %v728, 4294901760
        %v1680 = vsub.f32 %v728, %v1679
        %v1681 = vand.u32 %v1680, 4294901760
        %v1682 = vsub.f32 %v1680, %v1681
        %v1683 = vand.u32 %v1682, 4294901760
        %1684 = vmatpush1.msra.mxu0 %v1683
        %v1685 = vand.u32 %v733, 4294901760
        %v1686 = vsub.f32 %v733, %v1685
        %v1687 = vand.u32 %v1686, 4294901760
        %v1688 = vsub.f32 %v1686, %v1687
        %v1689 = vand.u32 %v1688, 4294901760
        %1690 = vmatprep.subr.mxu0 %v1689
        %v1691 = vand.u32 %v732, 4294901760
        %v1692 = vsub.f32 %v732, %v1691
        %v1693 = vand.u32 %v1692, 4294901760
        %v1694 = vsub.f32 %v1692, %v1693
        %v1695 = vand.u32 %v1694, 4294901760
        %1696 = vmatpush1.msra.mxu0 %v1695
        %v1697 = vand.u32 %v737, 4294901760
        %v1698 = vsub.f32 %v737, %v1697
        %v1699 = vand.u32 %v1698, 4294901760
        %v1700 = vsub.f32 %v1698, %v1699
        %v1701 = vand.u32 %v1700, 4294901760
        %1702 = vmatprep.subr.mxu0 %v1701
        %v1703 = vand.u32 %v736, 4294901760
        %v1704 = vsub.f32 %v736, %v1703
        %v1705 = vand.u32 %v1704, 4294901760
        %v1706 = vsub.f32 %v1704, %v1705
        %v1707 = vand.u32 %v1706, 4294901760
        %1708 = vmatpush1.msra.mxu0 %v1707
        %v1709 = vand.u32 %v741, 4294901760
        %v1710 = vsub.f32 %v741, %v1709
        %v1711 = vand.u32 %v1710, 4294901760
        %v1712 = vsub.f32 %v1710, %v1711
        %v1713 = vand.u32 %v1712, 4294901760
        %1714 = vmatprep.subr.mxu0 %v1713
        %v1715 = vand.u32 %v740, 4294901760
        %v1716 = vsub.f32 %v740, %v1715
        %v1717 = vand.u32 %v1716, 4294901760
        %v1718 = vsub.f32 %v1716, %v1717
        %v1719 = vand.u32 %v1718, 4294901760
        %1720 = vmatpush1.msra.mxu0 %v1719
        %v1721 = vand.u32 %v745, 4294901760
        %v1722 = vsub.f32 %v745, %v1721
        %v1723 = vand.u32 %v1722, 4294901760
        %v1724 = vsub.f32 %v1722, %v1723
        %v1725 = vand.u32 %v1724, 4294901760
        %1726 = vmatprep.subr.mxu0 %v1725
        %v1727 = vand.u32 %v744, 4294901760
        %v1728 = vsub.f32 %v744, %v1727
        %v1729 = vand.u32 %v1728, 4294901760
        %v1730 = vsub.f32 %v1728, %v1729
        %v1731 = vand.u32 %v1730, 4294901760
        %1732 = vmatpush1.msra.mxu0 %v1731
        %v1733 = vand.u32 %v749, 4294901760
        %v1734 = vsub.f32 %v749, %v1733
        %v1735 = vand.u32 %v1734, 4294901760
        %v1736 = vsub.f32 %v1734, %v1735
        %v1737 = vand.u32 %v1736, 4294901760
        %1738 = vmatprep.subr.mxu0 %v1737
        %v1739 = vand.u32 %v748, 4294901760
        %v1740 = vsub.f32 %v748, %v1739
        %v1741 = vand.u32 %v1740, 4294901760
        %v1742 = vsub.f32 %v1740, %v1741
        %v1743 = vand.u32 %v1742, 4294901760
        %1744 = vmatpush1.msra.mxu0 %v1743
        %v1745 = vand.u32 %v753, 4294901760
        %v1746 = vsub.f32 %v753, %v1745
        %v1747 = vand.u32 %v1746, 4294901760
        %v1748 = vsub.f32 %v1746, %v1747
        %v1749 = vand.u32 %v1748, 4294901760
        %1750 = vmatprep.subr.mxu0 %v1749
        %v1751 = vand.u32 %v752, 4294901760
        %v1752 = vsub.f32 %v752, %v1751
        %v1753 = vand.u32 %v1752, 4294901760
        %v1754 = vsub.f32 %v1752, %v1753
        %v1755 = vand.u32 %v1754, 4294901760
        %1756 = vmatpush1.msra.mxu0 %v1755
        %v1757 = vand.u32 %v757, 4294901760
        %v1758 = vsub.f32 %v757, %v1757
        %v1759 = vand.u32 %v1758, 4294901760
        %v1760 = vsub.f32 %v1758, %v1759
        %v1761 = vand.u32 %v1760, 4294901760
        %1762 = vmatprep.subr.mxu0 %v1761
        %v1763 = vand.u32 %v756, 4294901760
        %v1764 = vsub.f32 %v756, %v1763
        %v1765 = vand.u32 %v1764, 4294901760
        %v1766 = vsub.f32 %v1764, %v1765
        %v1767 = vand.u32 %v1766, 4294901760
        %1768 = vmatpush1.msra.mxu0 %v1767
        %v1769 = vand.u32 %v761, 4294901760
        %v1770 = vsub.f32 %v761, %v1769
        %v1771 = vand.u32 %v1770, 4294901760
        %v1772 = vsub.f32 %v1770, %v1771
        %v1773 = vand.u32 %v1772, 4294901760
        %1774 = vmatprep.subr.mxu0 %v1773
        %v1775 = vand.u32 %v760, 4294901760
        %v1776 = vsub.f32 %v760, %v1775
        %v1777 = vand.u32 %v1776, 4294901760
        %v1778 = vsub.f32 %v1776, %v1777
        %v1779 = vand.u32 %v1778, 4294901760
        %1780 = vmatpush1.msra.mxu0 %v1779
        %v1781 = vand.u32 %v765, 4294901760
        %v1782 = vsub.f32 %v765, %v1781
        %v1783 = vand.u32 %v1782, 4294901760
        %v1784 = vsub.f32 %v1782, %v1783
        %v1785 = vand.u32 %v1784, 4294901760
        %1786 = vmatprep.subr.mxu0 %v1785
        %v1787 = vand.u32 %v764, 4294901760
        %v1788 = vsub.f32 %v764, %v1787
        %v1789 = vand.u32 %v1788, 4294901760
        %v1790 = vsub.f32 %v1788, %v1789
        %v1791 = vand.u32 %v1790, 4294901760
        %1792 = vmatpush1.msra.mxu0 %v1791
        %v1793 = vand.u32 %v577, 4294901760
        %1794 = vmatprep.mubr.f32.mxu0 %v1793
        %v1795 = vand.u32 %v576, 4294901760
        %1796 = vmatmul.mubr.f32.gmra.mrb[0].mxu0 %v1795
        %v1797 = vpop.f32.mrb[0].mxu0
        %v1798 = vadd.f32 %v909, %v1797
        %v1799 = vpop.f32.mrb[0].mxu0
        %v1800 = vadd.f32 %v911, %v1799
        %v1801 = vand.u32 %v579, 4294901760
        %1802 = vmatprep.mubr.f32.mxu0 %v1801
        %v1803 = vand.u32 %v578, 4294901760
        %1804 = vmatmul.mubr.f32.gmra.mrb[0].mxu0 %v1803
        %v1805 = vpop.f32.mrb[0].mxu0
        %v1806 = vadd.f32 %v925, %v1805
        %v1807 = vpop.f32.mrb[0].mxu0
        %v1808 = vadd.f32 %v927, %v1807
        %v1809 = vand.u32 %v581, 4294901760
        %1810 = vmatprep.mubr.f32.mxu0 %v1809
        %v1811 = vand.u32 %v580, 4294901760
        %1812 = vmatmul.mubr.f32.gmra.mrb[0].mxu0 %v1811
        %v1813 = vpop.f32.mrb[0].mxu0
        %v1814 = vadd.f32 %v941, %v1813
        %v1815 = vpop.f32.mrb[0].mxu0
        %v1816 = vadd.f32 %v943, %v1815
        %v1817 = vand.u32 %v583, 4294901760
        %1818 = vmatprep.mubr.f32.mxu0 %v1817
        %v1819 = vand.u32 %v582, 4294901760
        %1820 = vmatmul.mubr.f32.gmra.mrb[0].mxu0 %v1819
        %v1821 = vpop.f32.mrb[0].mxu0
        %v1822 = vadd.f32 %v957, %v1821
        %v1823 = vpop.f32.mrb[0].mxu0
        %v1824 = vadd.f32 %v959, %v1823
        %v1825 = vand.u32 %v585, 4294901760
        %1826 = vmatprep.mubr.f32.mxu0 %v1825
        %v1827 = vand.u32 %v584, 4294901760
        %1828 = vmatmul.mubr.f32.gmra.mrb[0].mxu0 %v1827
        %v1829 = vpop.f32.mrb[0].mxu0
        %v1830 = vadd.f32 %v973, %v1829
        %v1831 = vpop.f32.mrb[0].mxu0
        %v1832 = vadd.f32 %v975, %v1831
        %v1833 = vand.u32 %v587, 4294901760
        %1834 = vmatprep.mubr.f32.mxu0 %v1833
        %v1835 = vand.u32 %v586, 4294901760
        %1836 = vmatmul.mubr.f32.gmra.mrb[0].mxu0 %v1835
        %v1837 = vpop.f32.mrb[0].mxu0
        %v1838 = vadd.f32 %v989, %v1837
        %v1839 = vpop.f32.mrb[0].mxu0
        %v1840 = vadd.f32 %v991, %v1839
        %v1841 = vand.u32 %v589, 4294901760
        %1842 = vmatprep.mubr.f32.mxu0 %v1841
        %v1843 = vand.u32 %v588, 4294901760
        %1844 = vmatmul.mubr.f32.gmra.mrb[0].mxu0 %v1843
        %v1845 = vpop.f32.mrb[0].mxu0
        %v1846 = vadd.f32 %v1005, %v1845
        %v1847 = vpop.f32.mrb[0].mxu0
        %v1848 = vadd.f32 %v1007, %v1847
        %v1849 = vand.u32 %v591, 4294901760
        %1850 = vmatprep.mubr.f32.mxu0 %v1849
        %v1851 = vand.u32 %v590, 4294901760
        %1852 = vmatmul.mubr.f32.gmra.mrb[0].mxu0 %v1851
        %v1853 = vpop.f32.mrb[0].mxu0
        %v1854 = vadd.f32 %v1021, %v1853
        %v1855 = vpop.f32.mrb[0].mxu0
        %v1856 = vadd.f32 %v1023, %v1855
        %v1857 = vand.u32 %v593, 4294901760
        %1858 = vmatprep.mubr.f32.mxu0 %v1857
        %v1859 = vand.u32 %v592, 4294901760
        %1860 = vmatmul.mubr.f32.gmra.mrb[0].mxu0 %v1859
        %v1861 = vpop.f32.mrb[0].mxu0
        %v1862 = vadd.f32 %v1037, %v1861
        %v1863 = vpop.f32.mrb[0].mxu0
        %v1864 = vadd.f32 %v1039, %v1863
        %v1865 = vand.u32 %v595, 4294901760
        %1866 = vmatprep.mubr.f32.mxu0 %v1865
        %v1867 = vand.u32 %v594, 4294901760
        %1868 = vmatmul.mubr.f32.gmra.mrb[0].mxu0 %v1867
        %v1869 = vpop.f32.mrb[0].mxu0
        %v1870 = vadd.f32 %v1053, %v1869
        %v1871 = vpop.f32.mrb[0].mxu0
        %v1872 = vadd.f32 %v1055, %v1871
        %v1873 = vand.u32 %v597, 4294901760
        %1874 = vmatprep.mubr.f32.mxu0 %v1873
        %v1875 = vand.u32 %v596, 4294901760
        %1876 = vmatmul.mubr.f32.gmra.mrb[0].mxu0 %v1875
        %v1877 = vpop.f32.mrb[0].mxu0
        %v1878 = vadd.f32 %v1069, %v1877
        %v1879 = vpop.f32.mrb[0].mxu0
        %v1880 = vadd.f32 %v1071, %v1879
        %v1881 = vand.u32 %v599, 4294901760
        %1882 = vmatprep.mubr.f32.mxu0 %v1881
        %v1883 = vand.u32 %v598, 4294901760
        %1884 = vmatmul.mubr.f32.gmra.mrb[0].mxu0 %v1883
        %v1885 = vpop.f32.mrb[0].mxu0
        %v1886 = vadd.f32 %v1085, %v1885
        %v1887 = vpop.f32.mrb[0].mxu0
        %v1888 = vadd.f32 %v1087, %v1887
        %v1889 = vand.u32 %v601, 4294901760
        %1890 = vmatprep.mubr.f32.mxu0 %v1889
        %v1891 = vand.u32 %v600, 4294901760
        %1892 = vmatmul.mubr.f32.gmra.mrb[0].mxu0 %v1891
        %v1893 = vpop.f32.mrb[0].mxu0
        %v1894 = vadd.f32 %v1101, %v1893
        %v1895 = vpop.f32.mrb[0].mxu0
        %v1896 = vadd.f32 %v1103, %v1895
        %v1897 = vand.u32 %v603, 4294901760
        %1898 = vmatprep.mubr.f32.mxu0 %v1897
        %v1899 = vand.u32 %v602, 4294901760
        %1900 = vmatmul.mubr.f32.gmra.mrb[0].mxu0 %v1899
        %v1901 = vpop.f32.mrb[0].mxu0
        %v1902 = vadd.f32 %v1117, %v1901
        %v1903 = vpop.f32.mrb[0].mxu0
        %v1904 = vadd.f32 %v1119, %v1903
        %v1905 = vand.u32 %v605, 4294901760
        %1906 = vmatprep.mubr.f32.mxu0 %v1905
        %v1907 = vand.u32 %v604, 4294901760
        %1908 = vmatmul.mubr.f32.gmra.mrb[0].mxu0 %v1907
        %v1909 = vpop.f32.mrb[0].mxu0
        %v1910 = vadd.f32 %v1133, %v1909
        %v1911 = vpop.f32.mrb[0].mxu0
        %v1912 = vadd.f32 %v1135, %v1911
        %v1913 = vand.u32 %v607, 4294901760
        %1914 = vmatprep.mubr.f32.mxu0 %v1913
        %v1915 = vand.u32 %v606, 4294901760
        %1916 = vmatmul.mubr.f32.gmra.mrb[0].mxu0 %v1915
        %v1917 = vpop.f32.mrb[0].mxu0
        %v1918 = vadd.f32 %v1149, %v1917
        %v1919 = vpop.f32.mrb[0].mxu0
        %v1920 = vadd.f32 %v1151, %v1919
        %v1921 = vand.u32 %v609, 4294901760
        %1922 = vmatprep.mubr.f32.mxu0 %v1921
        %v1923 = vand.u32 %v608, 4294901760
        %1924 = vmatmul.mubr.f32.gmra.mrb[0].mxu0 %v1923
        %v1925 = vpop.f32.mrb[0].mxu0
        %v1926 = vadd.f32 %v1165, %v1925
        %v1927 = vpop.f32.mrb[0].mxu0
        %v1928 = vadd.f32 %v1167, %v1927
        %v1929 = vand.u32 %v611, 4294901760
        %1930 = vmatprep.mubr.f32.mxu0 %v1929
        %v1931 = vand.u32 %v610, 4294901760
        %1932 = vmatmul.mubr.f32.gmra.mrb[0].mxu0 %v1931
        %v1933 = vpop.f32.mrb[0].mxu0
        %v1934 = vadd.f32 %v1181, %v1933
        %v1935 = vpop.f32.mrb[0].mxu0
        %v1936 = vadd.f32 %v1183, %v1935
        %v1937 = vand.u32 %v613, 4294901760
        %1938 = vmatprep.mubr.f32.mxu0 %v1937
        %v1939 = vand.u32 %v612, 4294901760
        %1940 = vmatmul.mubr.f32.gmra.mrb[0].mxu0 %v1939
        %v1941 = vpop.f32.mrb[0].mxu0
        %v1942 = vadd.f32 %v1197, %v1941
        %v1943 = vpop.f32.mrb[0].mxu0
        %v1944 = vadd.f32 %v1199, %v1943
        %v1945 = vand.u32 %v615, 4294901760
        %1946 = vmatprep.mubr.f32.mxu0 %v1945
        %v1947 = vand.u32 %v614, 4294901760
        %1948 = vmatmul.mubr.f32.gmra.mrb[0].mxu0 %v1947
        %v1949 = vpop.f32.mrb[0].mxu0
        %v1950 = vadd.f32 %v1213, %v1949
        %v1951 = vpop.f32.mrb[0].mxu0
        %v1952 = vadd.f32 %v1215, %v1951
        %v1953 = vand.u32 %v617, 4294901760
        %1954 = vmatprep.mubr.f32.mxu0 %v1953
        %v1955 = vand.u32 %v616, 4294901760
        %1956 = vmatmul.mubr.f32.gmra.mrb[0].mxu0 %v1955
        %v1957 = vpop.f32.mrb[0].mxu0
        %v1958 = vadd.f32 %v1229, %v1957
        %v1959 = vpop.f32.mrb[0].mxu0
        %v1960 = vadd.f32 %v1231, %v1959
        %v1961 = vand.u32 %v619, 4294901760
        %1962 = vmatprep.mubr.f32.mxu0 %v1961
        %v1963 = vand.u32 %v618, 4294901760
        %1964 = vmatmul.mubr.f32.gmra.mrb[0].mxu0 %v1963
        %v1965 = vpop.f32.mrb[0].mxu0
        %v1966 = vadd.f32 %v1245, %v1965
        %v1967 = vpop.f32.mrb[0].mxu0
        %v1968 = vadd.f32 %v1247, %v1967
        %v1969 = vand.u32 %v621, 4294901760
        %1970 = vmatprep.mubr.f32.mxu0 %v1969
        %v1971 = vand.u32 %v620, 4294901760
        %1972 = vmatmul.mubr.f32.gmra.mrb[0].mxu0 %v1971
        %v1973 = vpop.f32.mrb[0].mxu0
        %v1974 = vadd.f32 %v1261, %v1973
        %v1975 = vpop.f32.mrb[0].mxu0
        %v1976 = vadd.f32 %v1263, %v1975
        %v1977 = vand.u32 %v623, 4294901760
        %1978 = vmatprep.mubr.f32.mxu0 %v1977
        %v1979 = vand.u32 %v622, 4294901760
        %1980 = vmatmul.mubr.f32.gmra.mrb[0].mxu0 %v1979
        %v1981 = vpop.f32.mrb[0].mxu0
        %v1982 = vadd.f32 %v1277, %v1981
        %v1983 = vpop.f32.mrb[0].mxu0
        %v1984 = vadd.f32 %v1279, %v1983
        %v1985 = vand.u32 %v625, 4294901760
        %1986 = vmatprep.mubr.f32.mxu0 %v1985
        %v1987 = vand.u32 %v624, 4294901760
        %1988 = vmatmul.mubr.f32.gmra.mrb[0].mxu0 %v1987
        %v1989 = vpop.f32.mrb[0].mxu0
        %v1990 = vadd.f32 %v1293, %v1989
        %v1991 = vpop.f32.mrb[0].mxu0
        %v1992 = vadd.f32 %v1295, %v1991
        %v1993 = vand.u32 %v627, 4294901760
        %1994 = vmatprep.mubr.f32.mxu0 %v1993
        %v1995 = vand.u32 %v626, 4294901760
        %1996 = vmatmul.mubr.f32.gmra.mrb[0].mxu0 %v1995
        %v1997 = vpop.f32.mrb[0].mxu0
        %v1998 = vadd.f32 %v1309, %v1997
        %v1999 = vpop.f32.mrb[0].mxu0
        %v2000 = vadd.f32 %v1311, %v1999
        %v2001 = vand.u32 %v629, 4294901760
        %2002 = vmatprep.mubr.f32.mxu0 %v2001
        %v2003 = vand.u32 %v628, 4294901760
        %2004 = vmatmul.mubr.f32.gmra.mrb[0].mxu0 %v2003
        %v2005 = vpop.f32.mrb[0].mxu0
        %v2006 = vadd.f32 %v1325, %v2005
        %v2007 = vpop.f32.mrb[0].mxu0
        %v2008 = vadd.f32 %v1327, %v2007
        %v2009 = vand.u32 %v631, 4294901760
        %2010 = vmatprep.mubr.f32.mxu0 %v2009
        %v2011 = vand.u32 %v630, 4294901760
        %2012 = vmatmul.mubr.f32.gmra.mrb[0].mxu0 %v2011
        %v2013 = vpop.f32.mrb[0].mxu0
        %v2014 = vadd.f32 %v1341, %v2013
        %v2015 = vpop.f32.mrb[0].mxu0
        %v2016 = vadd.f32 %v1343, %v2015
        %v2017 = vand.u32 %v633, 4294901760
        %2018 = vmatprep.mubr.f32.mxu0 %v2017
        %v2019 = vand.u32 %v632, 4294901760
        %2020 = vmatmul.mubr.f32.gmra.mrb[0].mxu0 %v2019
        %v2021 = vpop.f32.mrb[0].mxu0
        %v2022 = vadd.f32 %v1357, %v2021
        %v2023 = vpop.f32.mrb[0].mxu0
        %v2024 = vadd.f32 %v1359, %v2023
        %v2025 = vand.u32 %v635, 4294901760
        %2026 = vmatprep.mubr.f32.mxu0 %v2025
        %v2027 = vand.u32 %v634, 4294901760
        %2028 = vmatmul.mubr.f32.gmra.mrb[0].mxu0 %v2027
        %v2029 = vpop.f32.mrb[0].mxu0
        %v2030 = vadd.f32 %v1373, %v2029
        %v2031 = vpop.f32.mrb[0].mxu0
        %v2032 = vadd.f32 %v1375, %v2031
        %v2033 = vand.u32 %v637, 4294901760
        %2034 = vmatprep.mubr.f32.mxu0 %v2033
        %v2035 = vand.u32 %v636, 4294901760
        %2036 = vmatmul.mubr.f32.gmra.mrb[0].mxu0 %v2035
        %v2037 = vpop.f32.mrb[0].mxu0
        %v2038 = vadd.f32 %v1389, %v2037
        %v2039 = vpop.f32.mrb[0].mxu0
        %v2040 = vadd.f32 %v1391, %v2039
        %v2041 = vand.u32 %v639, 4294901760
        %2042 = vmatprep.mubr.f32.mxu0 %v2041
        %v2043 = vand.u32 %v638, 4294901760
        %2044 = vmatmul.mubr.f32.gmra.mrb[0].mxu0 %v2043
        %v2045 = vpop.f32.mrb[0].mxu0
        %v2046 = vadd.f32 %v1405, %v2045
        %v2047 = vpop.f32.mrb[0].mxu0
        %v2048 = vadd.f32 %v1407, %v2047
        %2049 = vdwg.mxu0
        %v2050 = vand.u32 %v641, 4294901760
        %v2051 = vsub.f32 %v641, %v2050
        %2052 = vmatprep.subr.mxu0 %v2051
        %v2053 = vand.u32 %v640, 4294901760
        %v2054 = vsub.f32 %v640, %v2053
        %2055 = vmatpush1.msra.mxu0 %v2054
        %v2056 = vand.u32 %v645, 4294901760
        %v2057 = vsub.f32 %v645, %v2056
        %2058 = vmatprep.subr.mxu0 %v2057
        %v2059 = vand.u32 %v644, 4294901760
        %v2060 = vsub.f32 %v644, %v2059
        %2061 = vmatpush1.msra.mxu0 %v2060
        %v2062 = vand.u32 %v649, 4294901760
        %v2063 = vsub.f32 %v649, %v2062
        %2064 = vmatprep.subr.mxu0 %v2063
        %v2065 = vand.u32 %v648, 4294901760
        %v2066 = vsub.f32 %v648, %v2065
        %2067 = vmatpush1.msra.mxu0 %v2066
        %v2068 = vand.u32 %v653, 4294901760
        %v2069 = vsub.f32 %v653, %v2068
        %2070 = vmatprep.subr.mxu0 %v2069
        %v2071 = vand.u32 %v652, 4294901760
        %v2072 = vsub.f32 %v652, %v2071
        %2073 = vmatpush1.msra.mxu0 %v2072
        %v2074 = vand.u32 %v657, 4294901760
        %v2075 = vsub.f32 %v657, %v2074
        %2076 = vmatprep.subr.mxu0 %v2075
        %v2077 = vand.u32 %v656, 4294901760
        %v2078 = vsub.f32 %v656, %v2077
        %2079 = vmatpush1.msra.mxu0 %v2078
        %v2080 = vand.u32 %v661, 4294901760
        %v2081 = vsub.f32 %v661, %v2080
        %2082 = vmatprep.subr.mxu0 %v2081
        %v2083 = vand.u32 %v660, 4294901760
        %v2084 = vsub.f32 %v660, %v2083
        %2085 = vmatpush1.msra.mxu0 %v2084
        %v2086 = vand.u32 %v665, 4294901760
        %v2087 = vsub.f32 %v665, %v2086
        %2088 = vmatprep.subr.mxu0 %v2087
        %v2089 = vand.u32 %v664, 4294901760
        %v2090 = vsub.f32 %v664, %v2089
        %2091 = vmatpush1.msra.mxu0 %v2090
        %v2092 = vand.u32 %v669, 4294901760
        %v2093 = vsub.f32 %v669, %v2092
        %2094 = vmatprep.subr.mxu0 %v2093
        %v2095 = vand.u32 %v668, 4294901760
        %v2096 = vsub.f32 %v668, %v2095
        %2097 = vmatpush1.msra.mxu0 %v2096
        %v2098 = vand.u32 %v673, 4294901760
        %v2099 = vsub.f32 %v673, %v2098
        %2100 = vmatprep.subr.mxu0 %v2099
        %v2101 = vand.u32 %v672, 4294901760
        %v2102 = vsub.f32 %v672, %v2101
        %2103 = vmatpush1.msra.mxu0 %v2102
        %v2104 = vand.u32 %v677, 4294901760
        %v2105 = vsub.f32 %v677, %v2104
        %2106 = vmatprep.subr.mxu0 %v2105
        %v2107 = vand.u32 %v676, 4294901760
        %v2108 = vsub.f32 %v676, %v2107
        %2109 = vmatpush1.msra.mxu0 %v2108
        %v2110 = vand.u32 %v681, 4294901760
        %v2111 = vsub.f32 %v681, %v2110
        %2112 = vmatprep.subr.mxu0 %v2111
        %v2113 = vand.u32 %v680, 4294901760
        %v2114 = vsub.f32 %v680, %v2113
        %2115 = vmatpush1.msra.mxu0 %v2114
        %v2116 = vand.u32 %v685, 4294901760
        %v2117 = vsub.f32 %v685, %v2116
        %2118 = vmatprep.subr.mxu0 %v2117
        %v2119 = vand.u32 %v684, 4294901760
        %v2120 = vsub.f32 %v684, %v2119
        %2121 = vmatpush1.msra.mxu0 %v2120
        %v2122 = vand.u32 %v689, 4294901760
        %v2123 = vsub.f32 %v689, %v2122
        %2124 = vmatprep.subr.mxu0 %v2123
        %v2125 = vand.u32 %v688, 4294901760
        %v2126 = vsub.f32 %v688, %v2125
        %2127 = vmatpush1.msra.mxu0 %v2126
        %v2128 = vand.u32 %v693, 4294901760
        %v2129 = vsub.f32 %v693, %v2128
        %2130 = vmatprep.subr.mxu0 %v2129
        %v2131 = vand.u32 %v692, 4294901760
        %v2132 = vsub.f32 %v692, %v2131
        %2133 = vmatpush1.msra.mxu0 %v2132
        %v2134 = vand.u32 %v697, 4294901760
        %v2135 = vsub.f32 %v697, %v2134
        %2136 = vmatprep.subr.mxu0 %v2135
        %v2137 = vand.u32 %v696, 4294901760
        %v2138 = vsub.f32 %v696, %v2137
        %2139 = vmatpush1.msra.mxu0 %v2138
        %v2140 = vand.u32 %v701, 4294901760
        %v2141 = vsub.f32 %v701, %v2140
        %2142 = vmatprep.subr.mxu0 %v2141
        %v2143 = vand.u32 %v700, 4294901760
        %v2144 = vsub.f32 %v700, %v2143
        %2145 = vmatpush1.msra.mxu0 %v2144
        %v2146 = vand.u32 %v705, 4294901760
        %v2147 = vsub.f32 %v705, %v2146
        %2148 = vmatprep.subr.mxu0 %v2147
        %v2149 = vand.u32 %v704, 4294901760
        %v2150 = vsub.f32 %v704, %v2149
        %2151 = vmatpush1.msra.mxu0 %v2150
        %v2152 = vand.u32 %v709, 4294901760
        %v2153 = vsub.f32 %v709, %v2152
        %2154 = vmatprep.subr.mxu0 %v2153
        %v2155 = vand.u32 %v708, 4294901760
        %v2156 = vsub.f32 %v708, %v2155
        %2157 = vmatpush1.msra.mxu0 %v2156
        %v2158 = vand.u32 %v713, 4294901760
        %v2159 = vsub.f32 %v713, %v2158
        %2160 = vmatprep.subr.mxu0 %v2159
        %v2161 = vand.u32 %v712, 4294901760
        %v2162 = vsub.f32 %v712, %v2161
        %2163 = vmatpush1.msra.mxu0 %v2162
        %v2164 = vand.u32 %v717, 4294901760
        %v2165 = vsub.f32 %v717, %v2164
        %2166 = vmatprep.subr.mxu0 %v2165
        %v2167 = vand.u32 %v716, 4294901760
        %v2168 = vsub.f32 %v716, %v2167
        %2169 = vmatpush1.msra.mxu0 %v2168
        %v2170 = vand.u32 %v721, 4294901760
        %v2171 = vsub.f32 %v721, %v2170
        %2172 = vmatprep.subr.mxu0 %v2171
        %v2173 = vand.u32 %v720, 4294901760
        %v2174 = vsub.f32 %v720, %v2173
        %2175 = vmatpush1.msra.mxu0 %v2174
        %v2176 = vand.u32 %v725, 4294901760
        %v2177 = vsub.f32 %v725, %v2176
        %2178 = vmatprep.subr.mxu0 %v2177
        %v2179 = vand.u32 %v724, 4294901760
        %v2180 = vsub.f32 %v724, %v2179
        %2181 = vmatpush1.msra.mxu0 %v2180
        %v2182 = vand.u32 %v729, 4294901760
        %v2183 = vsub.f32 %v729, %v2182
        %2184 = vmatprep.subr.mxu0 %v2183
        %v2185 = vand.u32 %v728, 4294901760
        %v2186 = vsub.f32 %v728, %v2185
        %2187 = vmatpush1.msra.mxu0 %v2186
        %v2188 = vand.u32 %v733, 4294901760
        %v2189 = vsub.f32 %v733, %v2188
        %2190 = vmatprep.subr.mxu0 %v2189
        %v2191 = vand.u32 %v732, 4294901760
        %v2192 = vsub.f32 %v732, %v2191
        %2193 = vmatpush1.msra.mxu0 %v2192
        %v2194 = vand.u32 %v737, 4294901760
        %v2195 = vsub.f32 %v737, %v2194
        %2196 = vmatprep.subr.mxu0 %v2195
        %v2197 = vand.u32 %v736, 4294901760
        %v2198 = vsub.f32 %v736, %v2197
        %2199 = vmatpush1.msra.mxu0 %v2198
        %v2200 = vand.u32 %v741, 4294901760
        %v2201 = vsub.f32 %v741, %v2200
        %2202 = vmatprep.subr.mxu0 %v2201
        %v2203 = vand.u32 %v740, 4294901760
        %v2204 = vsub.f32 %v740, %v2203
        %2205 = vmatpush1.msra.mxu0 %v2204
        %v2206 = vand.u32 %v745, 4294901760
        %v2207 = vsub.f32 %v745, %v2206
        %2208 = vmatprep.subr.mxu0 %v2207
        %v2209 = vand.u32 %v744, 4294901760
        %v2210 = vsub.f32 %v744, %v2209
        %2211 = vmatpush1.msra.mxu0 %v2210
        %v2212 = vand.u32 %v749, 4294901760
        %v2213 = vsub.f32 %v749, %v2212
        %2214 = vmatprep.subr.mxu0 %v2213
        %v2215 = vand.u32 %v748, 4294901760
        %v2216 = vsub.f32 %v748, %v2215
        %2217 = vmatpush1.msra.mxu0 %v2216
        %v2218 = vand.u32 %v753, 4294901760
        %v2219 = vsub.f32 %v753, %v2218
        %2220 = vmatprep.subr.mxu0 %v2219
        %v2221 = vand.u32 %v752, 4294901760
        %v2222 = vsub.f32 %v752, %v2221
        %2223 = vmatpush1.msra.mxu0 %v2222
        %v2224 = vand.u32 %v757, 4294901760
        %v2225 = vsub.f32 %v757, %v2224
        %2226 = vmatprep.subr.mxu0 %v2225
        %v2227 = vand.u32 %v756, 4294901760
        %v2228 = vsub.f32 %v756, %v2227
        %2229 = vmatpush1.msra.mxu0 %v2228
        %v2230 = vand.u32 %v761, 4294901760
        %v2231 = vsub.f32 %v761, %v2230
        %2232 = vmatprep.subr.mxu0 %v2231
        %v2233 = vand.u32 %v760, 4294901760
        %v2234 = vsub.f32 %v760, %v2233
        %2235 = vmatpush1.msra.mxu0 %v2234
        %v2236 = vand.u32 %v765, 4294901760
        %v2237 = vsub.f32 %v765, %v2236
        %2238 = vmatprep.subr.mxu0 %v2237
        %v2239 = vand.u32 %v764, 4294901760
        %v2240 = vsub.f32 %v764, %v2239
        %2241 = vmatpush1.msra.mxu0 %v2240
        %v2242 = vand.u32 %v577, 4294901760
        %v2243 = vsub.f32 %v577, %v2242
        %2244 = vmatprep.mubr.f32.mxu0 %v2243
        %v2245 = vand.u32 %v576, 4294901760
        %v2246 = vsub.f32 %v576, %v2245
        %2247 = vmatmul.mubr.f32.gmra.mrb[0].mxu0 %v2246
        %v2248 = vpop.f32.mrb[0].mxu0
        %v2249 = vadd.f32 %v1798, %v2248
        %v2250 = vpop.f32.mrb[0].mxu0
        %v2251 = vadd.f32 %v1800, %v2250
        %v2252 = vand.u32 %v579, 4294901760
        %v2253 = vsub.f32 %v579, %v2252
        %2254 = vmatprep.mubr.f32.mxu0 %v2253
        %v2255 = vand.u32 %v578, 4294901760
        %v2256 = vsub.f32 %v578, %v2255
        %2257 = vmatmul.mubr.f32.gmra.mrb[0].mxu0 %v2256
        %v2258 = vpop.f32.mrb[0].mxu0
        %v2259 = vadd.f32 %v1806, %v2258
        %v2260 = vpop.f32.mrb[0].mxu0
        %v2261 = vadd.f32 %v1808, %v2260
        %v2262 = vand.u32 %v581, 4294901760
        %v2263 = vsub.f32 %v581, %v2262
        %2264 = vmatprep.mubr.f32.mxu0 %v2263
        %v2265 = vand.u32 %v580, 4294901760
        %v2266 = vsub.f32 %v580, %v2265
        %2267 = vmatmul.mubr.f32.gmra.mrb[0].mxu0 %v2266
        %v2268 = vpop.f32.mrb[0].mxu0
        %v2269 = vadd.f32 %v1814, %v2268
        %v2270 = vpop.f32.mrb[0].mxu0
        %v2271 = vadd.f32 %v1816, %v2270
        %v2272 = vand.u32 %v583, 4294901760
        %v2273 = vsub.f32 %v583, %v2272
        %2274 = vmatprep.mubr.f32.mxu0 %v2273
        %v2275 = vand.u32 %v582, 4294901760
        %v2276 = vsub.f32 %v582, %v2275
        %2277 = vmatmul.mubr.f32.gmra.mrb[0].mxu0 %v2276
        %v2278 = vpop.f32.mrb[0].mxu0
        %v2279 = vadd.f32 %v1822, %v2278
        %v2280 = vpop.f32.mrb[0].mxu0
        %v2281 = vadd.f32 %v1824, %v2280
        %v2282 = vand.u32 %v585, 4294901760
        %v2283 = vsub.f32 %v585, %v2282
        %2284 = vmatprep.mubr.f32.mxu0 %v2283
        %v2285 = vand.u32 %v584, 4294901760
        %v2286 = vsub.f32 %v584, %v2285
        %2287 = vmatmul.mubr.f32.gmra.mrb[0].mxu0 %v2286
        %v2288 = vpop.f32.mrb[0].mxu0
        %v2289 = vadd.f32 %v1830, %v2288
        %v2290 = vpop.f32.mrb[0].mxu0
        %v2291 = vadd.f32 %v1832, %v2290
        %v2292 = vand.u32 %v587, 4294901760
        %v2293 = vsub.f32 %v587, %v2292
        %2294 = vmatprep.mubr.f32.mxu0 %v2293
        %v2295 = vand.u32 %v586, 4294901760
        %v2296 = vsub.f32 %v586, %v2295
        %2297 = vmatmul.mubr.f32.gmra.mrb[0].mxu0 %v2296
        %v2298 = vpop.f32.mrb[0].mxu0
        %v2299 = vadd.f32 %v1838, %v2298
        %v2300 = vpop.f32.mrb[0].mxu0
        %v2301 = vadd.f32 %v1840, %v2300
        %v2302 = vand.u32 %v589, 4294901760
        %v2303 = vsub.f32 %v589, %v2302
        %2304 = vmatprep.mubr.f32.mxu0 %v2303
        %v2305 = vand.u32 %v588, 4294901760
        %v2306 = vsub.f32 %v588, %v2305
        %2307 = vmatmul.mubr.f32.gmra.mrb[0].mxu0 %v2306
        %v2308 = vpop.f32.mrb[0].mxu0
        %v2309 = vadd.f32 %v1846, %v2308
        %v2310 = vpop.f32.mrb[0].mxu0
        %v2311 = vadd.f32 %v1848, %v2310
        %v2312 = vand.u32 %v591, 4294901760
        %v2313 = vsub.f32 %v591, %v2312
        %2314 = vmatprep.mubr.f32.mxu0 %v2313
        %v2315 = vand.u32 %v590, 4294901760
        %v2316 = vsub.f32 %v590, %v2315
        %2317 = vmatmul.mubr.f32.gmra.mrb[0].mxu0 %v2316
        %v2318 = vpop.f32.mrb[0].mxu0
        %v2319 = vadd.f32 %v1854, %v2318
        %v2320 = vpop.f32.mrb[0].mxu0
        %v2321 = vadd.f32 %v1856, %v2320
        %v2322 = vand.u32 %v593, 4294901760
        %v2323 = vsub.f32 %v593, %v2322
        %2324 = vmatprep.mubr.f32.mxu0 %v2323
        %v2325 = vand.u32 %v592, 4294901760
        %v2326 = vsub.f32 %v592, %v2325
        %2327 = vmatmul.mubr.f32.gmra.mrb[0].mxu0 %v2326
        %v2328 = vpop.f32.mrb[0].mxu0
        %v2329 = vadd.f32 %v1862, %v2328
        %v2330 = vpop.f32.mrb[0].mxu0
        %v2331 = vadd.f32 %v1864, %v2330
        %v2332 = vand.u32 %v595, 4294901760
        %v2333 = vsub.f32 %v595, %v2332
        %2334 = vmatprep.mubr.f32.mxu0 %v2333
        %v2335 = vand.u32 %v594, 4294901760
        %v2336 = vsub.f32 %v594, %v2335
        %2337 = vmatmul.mubr.f32.gmra.mrb[0].mxu0 %v2336
        %v2338 = vpop.f32.mrb[0].mxu0
        %v2339 = vadd.f32 %v1870, %v2338
        %v2340 = vpop.f32.mrb[0].mxu0
        %v2341 = vadd.f32 %v1872, %v2340
        %v2342 = vand.u32 %v597, 4294901760
        %v2343 = vsub.f32 %v597, %v2342
        %2344 = vmatprep.mubr.f32.mxu0 %v2343
        %v2345 = vand.u32 %v596, 4294901760
        %v2346 = vsub.f32 %v596, %v2345
        %2347 = vmatmul.mubr.f32.gmra.mrb[0].mxu0 %v2346
        %v2348 = vpop.f32.mrb[0].mxu0
        %v2349 = vadd.f32 %v1878, %v2348
        %v2350 = vpop.f32.mrb[0].mxu0
        %v2351 = vadd.f32 %v1880, %v2350
        %v2352 = vand.u32 %v599, 4294901760
        %v2353 = vsub.f32 %v599, %v2352
        %2354 = vmatprep.mubr.f32.mxu0 %v2353
        %v2355 = vand.u32 %v598, 4294901760
        %v2356 = vsub.f32 %v598, %v2355
        %2357 = vmatmul.mubr.f32.gmra.mrb[0].mxu0 %v2356
        %v2358 = vpop.f32.mrb[0].mxu0
        %v2359 = vadd.f32 %v1886, %v2358
        %v2360 = vpop.f32.mrb[0].mxu0
        %v2361 = vadd.f32 %v1888, %v2360
        %v2362 = vand.u32 %v601, 4294901760
        %v2363 = vsub.f32 %v601, %v2362
        %2364 = vmatprep.mubr.f32.mxu0 %v2363
        %v2365 = vand.u32 %v600, 4294901760
        %v2366 = vsub.f32 %v600, %v2365
        %2367 = vmatmul.mubr.f32.gmra.mrb[0].mxu0 %v2366
        %v2368 = vpop.f32.mrb[0].mxu0
        %v2369 = vadd.f32 %v1894, %v2368
        %v2370 = vpop.f32.mrb[0].mxu0
        %v2371 = vadd.f32 %v1896, %v2370
        %v2372 = vand.u32 %v603, 4294901760
        %v2373 = vsub.f32 %v603, %v2372
        %2374 = vmatprep.mubr.f32.mxu0 %v2373
        %v2375 = vand.u32 %v602, 4294901760
        %v2376 = vsub.f32 %v602, %v2375
        %2377 = vmatmul.mubr.f32.gmra.mrb[0].mxu0 %v2376
        %v2378 = vpop.f32.mrb[0].mxu0
        %v2379 = vadd.f32 %v1902, %v2378
        %v2380 = vpop.f32.mrb[0].mxu0
        %v2381 = vadd.f32 %v1904, %v2380
        %v2382 = vand.u32 %v605, 4294901760
        %v2383 = vsub.f32 %v605, %v2382
        %2384 = vmatprep.mubr.f32.mxu0 %v2383
        %v2385 = vand.u32 %v604, 4294901760
        %v2386 = vsub.f32 %v604, %v2385
        %2387 = vmatmul.mubr.f32.gmra.mrb[0].mxu0 %v2386
        %v2388 = vpop.f32.mrb[0].mxu0
        %v2389 = vadd.f32 %v1910, %v2388
        %v2390 = vpop.f32.mrb[0].mxu0
        %v2391 = vadd.f32 %v1912, %v2390
        %v2392 = vand.u32 %v607, 4294901760
        %v2393 = vsub.f32 %v607, %v2392
        %2394 = vmatprep.mubr.f32.mxu0 %v2393
        %v2395 = vand.u32 %v606, 4294901760
        %v2396 = vsub.f32 %v606, %v2395
        %2397 = vmatmul.mubr.f32.gmra.mrb[0].mxu0 %v2396
        %v2398 = vpop.f32.mrb[0].mxu0
        %v2399 = vadd.f32 %v1918, %v2398
        %v2400 = vpop.f32.mrb[0].mxu0
        %v2401 = vadd.f32 %v1920, %v2400
        %v2402 = vand.u32 %v609, 4294901760
        %v2403 = vsub.f32 %v609, %v2402
        %2404 = vmatprep.mubr.f32.mxu0 %v2403
        %v2405 = vand.u32 %v608, 4294901760
        %v2406 = vsub.f32 %v608, %v2405
        %2407 = vmatmul.mubr.f32.gmra.mrb[0].mxu0 %v2406
        %v2408 = vpop.f32.mrb[0].mxu0
        %v2409 = vadd.f32 %v1926, %v2408
        %v2410 = vpop.f32.mrb[0].mxu0
        %v2411 = vadd.f32 %v1928, %v2410
        %v2412 = vand.u32 %v611, 4294901760
        %v2413 = vsub.f32 %v611, %v2412
        %2414 = vmatprep.mubr.f32.mxu0 %v2413
        %v2415 = vand.u32 %v610, 4294901760
        %v2416 = vsub.f32 %v610, %v2415
        %2417 = vmatmul.mubr.f32.gmra.mrb[0].mxu0 %v2416
        %v2418 = vpop.f32.mrb[0].mxu0
        %v2419 = vadd.f32 %v1934, %v2418
        %v2420 = vpop.f32.mrb[0].mxu0
        %v2421 = vadd.f32 %v1936, %v2420
        %v2422 = vand.u32 %v613, 4294901760
        %v2423 = vsub.f32 %v613, %v2422
        %2424 = vmatprep.mubr.f32.mxu0 %v2423
        %v2425 = vand.u32 %v612, 4294901760
        %v2426 = vsub.f32 %v612, %v2425
        %2427 = vmatmul.mubr.f32.gmra.mrb[0].mxu0 %v2426
        %v2428 = vpop.f32.mrb[0].mxu0
        %v2429 = vadd.f32 %v1942, %v2428
        %v2430 = vpop.f32.mrb[0].mxu0
        %v2431 = vadd.f32 %v1944, %v2430
        %v2432 = vand.u32 %v615, 4294901760
        %v2433 = vsub.f32 %v615, %v2432
        %2434 = vmatprep.mubr.f32.mxu0 %v2433
        %v2435 = vand.u32 %v614, 4294901760
        %v2436 = vsub.f32 %v614, %v2435
        %2437 = vmatmul.mubr.f32.gmra.mrb[0].mxu0 %v2436
        %v2438 = vpop.f32.mrb[0].mxu0
        %v2439 = vadd.f32 %v1950, %v2438
        %v2440 = vpop.f32.mrb[0].mxu0
        %v2441 = vadd.f32 %v1952, %v2440
        %v2442 = vand.u32 %v617, 4294901760
        %v2443 = vsub.f32 %v617, %v2442
        %2444 = vmatprep.mubr.f32.mxu0 %v2443
        %v2445 = vand.u32 %v616, 4294901760
        %v2446 = vsub.f32 %v616, %v2445
        %2447 = vmatmul.mubr.f32.gmra.mrb[0].mxu0 %v2446
        %v2448 = vpop.f32.mrb[0].mxu0
        %v2449 = vadd.f32 %v1958, %v2448
        %v2450 = vpop.f32.mrb[0].mxu0
        %v2451 = vadd.f32 %v1960, %v2450
        %v2452 = vand.u32 %v619, 4294901760
        %v2453 = vsub.f32 %v619, %v2452
        %2454 = vmatprep.mubr.f32.mxu0 %v2453
        %v2455 = vand.u32 %v618, 4294901760
        %v2456 = vsub.f32 %v618, %v2455
        %2457 = vmatmul.mubr.f32.gmra.mrb[0].mxu0 %v2456
        %v2458 = vpop.f32.mrb[0].mxu0
        %v2459 = vadd.f32 %v1966, %v2458
        %v2460 = vpop.f32.mrb[0].mxu0
        %v2461 = vadd.f32 %v1968, %v2460
        %v2462 = vand.u32 %v621, 4294901760
        %v2463 = vsub.f32 %v621, %v2462
        %2464 = vmatprep.mubr.f32.mxu0 %v2463
        %v2465 = vand.u32 %v620, 4294901760
        %v2466 = vsub.f32 %v620, %v2465
        %2467 = vmatmul.mubr.f32.gmra.mrb[0].mxu0 %v2466
        %v2468 = vpop.f32.mrb[0].mxu0
        %v2469 = vadd.f32 %v1974, %v2468
        %v2470 = vpop.f32.mrb[0].mxu0
        %v2471 = vadd.f32 %v1976, %v2470
        %v2472 = vand.u32 %v623, 4294901760
        %v2473 = vsub.f32 %v623, %v2472
        %2474 = vmatprep.mubr.f32.mxu0 %v2473
        %v2475 = vand.u32 %v622, 4294901760
        %v2476 = vsub.f32 %v622, %v2475
        %2477 = vmatmul.mubr.f32.gmra.mrb[0].mxu0 %v2476
        %v2478 = vpop.f32.mrb[0].mxu0
        %v2479 = vadd.f32 %v1982, %v2478
        %v2480 = vpop.f32.mrb[0].mxu0
        %v2481 = vadd.f32 %v1984, %v2480
        %v2482 = vand.u32 %v625, 4294901760
        %v2483 = vsub.f32 %v625, %v2482
        %2484 = vmatprep.mubr.f32.mxu0 %v2483
        %v2485 = vand.u32 %v624, 4294901760
        %v2486 = vsub.f32 %v624, %v2485
        %2487 = vmatmul.mubr.f32.gmra.mrb[0].mxu0 %v2486
        %v2488 = vpop.f32.mrb[0].mxu0
        %v2489 = vadd.f32 %v1990, %v2488
        %v2490 = vpop.f32.mrb[0].mxu0
        %v2491 = vadd.f32 %v1992, %v2490
        %v2492 = vand.u32 %v627, 4294901760
        %v2493 = vsub.f32 %v627, %v2492
        %2494 = vmatprep.mubr.f32.mxu0 %v2493
        %v2495 = vand.u32 %v626, 4294901760
        %v2496 = vsub.f32 %v626, %v2495
        %2497 = vmatmul.mubr.f32.gmra.mrb[0].mxu0 %v2496
        %v2498 = vpop.f32.mrb[0].mxu0
        %v2499 = vadd.f32 %v1998, %v2498
        %v2500 = vpop.f32.mrb[0].mxu0
        %v2501 = vadd.f32 %v2000, %v2500
        %v2502 = vand.u32 %v629, 4294901760
        %v2503 = vsub.f32 %v629, %v2502
        %2504 = vmatprep.mubr.f32.mxu0 %v2503
        %v2505 = vand.u32 %v628, 4294901760
        %v2506 = vsub.f32 %v628, %v2505
        %2507 = vmatmul.mubr.f32.gmra.mrb[0].mxu0 %v2506
        %v2508 = vpop.f32.mrb[0].mxu0
        %v2509 = vadd.f32 %v2006, %v2508
        %v2510 = vpop.f32.mrb[0].mxu0
        %v2511 = vadd.f32 %v2008, %v2510
        %v2512 = vand.u32 %v631, 4294901760
        %v2513 = vsub.f32 %v631, %v2512
        %2514 = vmatprep.mubr.f32.mxu0 %v2513
        %v2515 = vand.u32 %v630, 4294901760
        %v2516 = vsub.f32 %v630, %v2515
        %2517 = vmatmul.mubr.f32.gmra.mrb[0].mxu0 %v2516
        %v2518 = vpop.f32.mrb[0].mxu0
        %v2519 = vadd.f32 %v2014, %v2518
        %v2520 = vpop.f32.mrb[0].mxu0
        %v2521 = vadd.f32 %v2016, %v2520
        %v2522 = vand.u32 %v633, 4294901760
        %v2523 = vsub.f32 %v633, %v2522
        %2524 = vmatprep.mubr.f32.mxu0 %v2523
        %v2525 = vand.u32 %v632, 4294901760
        %v2526 = vsub.f32 %v632, %v2525
        %2527 = vmatmul.mubr.f32.gmra.mrb[0].mxu0 %v2526
        %v2528 = vpop.f32.mrb[0].mxu0
        %v2529 = vadd.f32 %v2022, %v2528
        %v2530 = vpop.f32.mrb[0].mxu0
        %v2531 = vadd.f32 %v2024, %v2530
        %v2532 = vand.u32 %v635, 4294901760
        %v2533 = vsub.f32 %v635, %v2532
        %2534 = vmatprep.mubr.f32.mxu0 %v2533
        %v2535 = vand.u32 %v634, 4294901760
        %v2536 = vsub.f32 %v634, %v2535
        %2537 = vmatmul.mubr.f32.gmra.mrb[0].mxu0 %v2536
        %v2538 = vpop.f32.mrb[0].mxu0
        %v2539 = vadd.f32 %v2030, %v2538
        %v2540 = vpop.f32.mrb[0].mxu0
        %v2541 = vadd.f32 %v2032, %v2540
        %v2542 = vand.u32 %v637, 4294901760
        %v2543 = vsub.f32 %v637, %v2542
        %2544 = vmatprep.mubr.f32.mxu0 %v2543
        %v2545 = vand.u32 %v636, 4294901760
        %v2546 = vsub.f32 %v636, %v2545
        %2547 = vmatmul.mubr.f32.gmra.mrb[0].mxu0 %v2546
        %v2548 = vpop.f32.mrb[0].mxu0
        %v2549 = vadd.f32 %v2038, %v2548
        %v2550 = vpop.f32.mrb[0].mxu0
        %v2551 = vadd.f32 %v2040, %v2550
        %v2552 = vand.u32 %v639, 4294901760
        %v2553 = vsub.f32 %v639, %v2552
        %2554 = vmatprep.mubr.f32.mxu0 %v2553
        %v2555 = vand.u32 %v638, 4294901760
        %v2556 = vsub.f32 %v638, %v2555
        %2557 = vmatmul.mubr.f32.gmra.mrb[0].mxu0 %v2556
        %v2558 = vpop.f32.mrb[0].mxu0
        %v2559 = vadd.f32 %v2046, %v2558
        %v2560 = vpop.f32.mrb[0].mxu0
        %v2561 = vadd.f32 %v2048, %v2560
        %2562 = vdwg.mxu0
        %v2563 = vand.u32 %v641, 4294901760
        %2564 = vmatprep.subr.mxu0 %v2563
        %v2565 = vand.u32 %v640, 4294901760
        %2566 = vmatpush1.msra.mxu0 %v2565
        %v2567 = vand.u32 %v645, 4294901760
        %2568 = vmatprep.subr.mxu0 %v2567
        %v2569 = vand.u32 %v644, 4294901760
        %2570 = vmatpush1.msra.mxu0 %v2569
        %v2571 = vand.u32 %v649, 4294901760
        %2572 = vmatprep.subr.mxu0 %v2571
        %v2573 = vand.u32 %v648, 4294901760
        %2574 = vmatpush1.msra.mxu0 %v2573
        %v2575 = vand.u32 %v653, 4294901760
        %2576 = vmatprep.subr.mxu0 %v2575
        %v2577 = vand.u32 %v652, 4294901760
        %2578 = vmatpush1.msra.mxu0 %v2577
        %v2579 = vand.u32 %v657, 4294901760
        %2580 = vmatprep.subr.mxu0 %v2579
        %v2581 = vand.u32 %v656, 4294901760
        %2582 = vmatpush1.msra.mxu0 %v2581
        %v2583 = vand.u32 %v661, 4294901760
        %2584 = vmatprep.subr.mxu0 %v2583
        %v2585 = vand.u32 %v660, 4294901760
        %2586 = vmatpush1.msra.mxu0 %v2585
        %v2587 = vand.u32 %v665, 4294901760
        %2588 = vmatprep.subr.mxu0 %v2587
        %v2589 = vand.u32 %v664, 4294901760
        %2590 = vmatpush1.msra.mxu0 %v2589
        %v2591 = vand.u32 %v669, 4294901760
        %2592 = vmatprep.subr.mxu0 %v2591
        %v2593 = vand.u32 %v668, 4294901760
        %2594 = vmatpush1.msra.mxu0 %v2593
        %v2595 = vand.u32 %v673, 4294901760
        %2596 = vmatprep.subr.mxu0 %v2595
        %v2597 = vand.u32 %v672, 4294901760
        %2598 = vmatpush1.msra.mxu0 %v2597
        %v2599 = vand.u32 %v677, 4294901760
        %2600 = vmatprep.subr.mxu0 %v2599
        %v2601 = vand.u32 %v676, 4294901760
        %2602 = vmatpush1.msra.mxu0 %v2601
        %v2603 = vand.u32 %v681, 4294901760
        %2604 = vmatprep.subr.mxu0 %v2603
        %v2605 = vand.u32 %v680, 4294901760
        %2606 = vmatpush1.msra.mxu0 %v2605
        %v2607 = vand.u32 %v685, 4294901760
        %2608 = vmatprep.subr.mxu0 %v2607
        %v2609 = vand.u32 %v684, 4294901760
        %2610 = vmatpush1.msra.mxu0 %v2609
        %v2611 = vand.u32 %v689, 4294901760
        %2612 = vmatprep.subr.mxu0 %v2611
        %v2613 = vand.u32 %v688, 4294901760
        %2614 = vmatpush1.msra.mxu0 %v2613
        %v2615 = vand.u32 %v693, 4294901760
        %2616 = vmatprep.subr.mxu0 %v2615
        %v2617 = vand.u32 %v692, 4294901760
        %2618 = vmatpush1.msra.mxu0 %v2617
        %v2619 = vand.u32 %v697, 4294901760
        %2620 = vmatprep.subr.mxu0 %v2619
        %v2621 = vand.u32 %v696, 4294901760
        %2622 = vmatpush1.msra.mxu0 %v2621
        %v2623 = vand.u32 %v701, 4294901760
        %2624 = vmatprep.subr.mxu0 %v2623
        %v2625 = vand.u32 %v700, 4294901760
        %2626 = vmatpush1.msra.mxu0 %v2625
        %v2627 = vand.u32 %v705, 4294901760
        %2628 = vmatprep.subr.mxu0 %v2627
        %v2629 = vand.u32 %v704, 4294901760
        %2630 = vmatpush1.msra.mxu0 %v2629
        %v2631 = vand.u32 %v709, 4294901760
        %2632 = vmatprep.subr.mxu0 %v2631
        %v2633 = vand.u32 %v708, 4294901760
        %2634 = vmatpush1.msra.mxu0 %v2633
        %v2635 = vand.u32 %v713, 4294901760
        %2636 = vmatprep.subr.mxu0 %v2635
        %v2637 = vand.u32 %v712, 4294901760
        %2638 = vmatpush1.msra.mxu0 %v2637
        %v2639 = vand.u32 %v717, 4294901760
        %2640 = vmatprep.subr.mxu0 %v2639
        %v2641 = vand.u32 %v716, 4294901760
        %2642 = vmatpush1.msra.mxu0 %v2641
        %v2643 = vand.u32 %v721, 4294901760
        %2644 = vmatprep.subr.mxu0 %v2643
        %v2645 = vand.u32 %v720, 4294901760
        %2646 = vmatpush1.msra.mxu0 %v2645
        %v2647 = vand.u32 %v725, 4294901760
        %2648 = vmatprep.subr.mxu0 %v2647
        %v2649 = vand.u32 %v724, 4294901760
        %2650 = vmatpush1.msra.mxu0 %v2649
        %v2651 = vand.u32 %v729, 4294901760
        %2652 = vmatprep.subr.mxu0 %v2651
        %v2653 = vand.u32 %v728, 4294901760
        %2654 = vmatpush1.msra.mxu0 %v2653
        %v2655 = vand.u32 %v733, 4294901760
        %2656 = vmatprep.subr.mxu0 %v2655
        %v2657 = vand.u32 %v732, 4294901760
        %2658 = vmatpush1.msra.mxu0 %v2657
        %v2659 = vand.u32 %v737, 4294901760
        %2660 = vmatprep.subr.mxu0 %v2659
        %v2661 = vand.u32 %v736, 4294901760
        %2662 = vmatpush1.msra.mxu0 %v2661
        %v2663 = vand.u32 %v741, 4294901760
        %2664 = vmatprep.subr.mxu0 %v2663
        %v2665 = vand.u32 %v740, 4294901760
        %2666 = vmatpush1.msra.mxu0 %v2665
        %v2667 = vand.u32 %v745, 4294901760
        %2668 = vmatprep.subr.mxu0 %v2667
        %v2669 = vand.u32 %v744, 4294901760
        %2670 = vmatpush1.msra.mxu0 %v2669
        %v2671 = vand.u32 %v749, 4294901760
        %2672 = vmatprep.subr.mxu0 %v2671
        %v2673 = vand.u32 %v748, 4294901760
        %2674 = vmatpush1.msra.mxu0 %v2673
        %v2675 = vand.u32 %v753, 4294901760
        %2676 = vmatprep.subr.mxu0 %v2675
        %v2677 = vand.u32 %v752, 4294901760
        %2678 = vmatpush1.msra.mxu0 %v2677
        %v2679 = vand.u32 %v757, 4294901760
        %2680 = vmatprep.subr.mxu0 %v2679
        %v2681 = vand.u32 %v756, 4294901760
        %2682 = vmatpush1.msra.mxu0 %v2681
        %v2683 = vand.u32 %v761, 4294901760
        %2684 = vmatprep.subr.mxu0 %v2683
        %v2685 = vand.u32 %v760, 4294901760
        %2686 = vmatpush1.msra.mxu0 %v2685
        %v2687 = vand.u32 %v765, 4294901760
        %2688 = vmatprep.subr.mxu0 %v2687
        %v2689 = vand.u32 %v764, 4294901760
        %2690 = vmatpush1.msra.mxu0 %v2689
        %v2691 = vand.u32 %v577, 4294901760
        %v2692 = vsub.f32 %v577, %v2691
        %v2693 = vand.u32 %v2692, 4294901760
        %2694 = vmatprep.mubr.f32.mxu0 %v2693
        %v2695 = vand.u32 %v576, 4294901760
        %v2696 = vsub.f32 %v576, %v2695
        %v2697 = vand.u32 %v2696, 4294901760
        %2698 = vmatmul.mubr.f32.gmra.mrb[0].mxu0 %v2697
        %v2699 = vpop.f32.mrb[0].mxu0
        %v2700 = vadd.f32 %v2249, %v2699
        %v2701 = vpop.f32.mrb[0].mxu0
        %v2702 = vadd.f32 %v2251, %v2701
        %v2703 = vand.u32 %v579, 4294901760
        %v2704 = vsub.f32 %v579, %v2703
        %v2705 = vand.u32 %v2704, 4294901760
        %2706 = vmatprep.mubr.f32.mxu0 %v2705
        %v2707 = vand.u32 %v578, 4294901760
        %v2708 = vsub.f32 %v578, %v2707
        %v2709 = vand.u32 %v2708, 4294901760
        %2710 = vmatmul.mubr.f32.gmra.mrb[0].mxu0 %v2709
        %v2711 = vpop.f32.mrb[0].mxu0
        %v2712 = vadd.f32 %v2259, %v2711
        %v2713 = vpop.f32.mrb[0].mxu0
        %v2714 = vadd.f32 %v2261, %v2713
        %v2715 = vand.u32 %v581, 4294901760
        %v2716 = vsub.f32 %v581, %v2715
        %v2717 = vand.u32 %v2716, 4294901760
        %2718 = vmatprep.mubr.f32.mxu0 %v2717
        %v2719 = vand.u32 %v580, 4294901760
        %v2720 = vsub.f32 %v580, %v2719
        %v2721 = vand.u32 %v2720, 4294901760
        %2722 = vmatmul.mubr.f32.gmra.mrb[0].mxu0 %v2721
        %v2723 = vpop.f32.mrb[0].mxu0
        %v2724 = vadd.f32 %v2269, %v2723
        %v2725 = vpop.f32.mrb[0].mxu0
        %v2726 = vadd.f32 %v2271, %v2725
        %v2727 = vand.u32 %v583, 4294901760
        %v2728 = vsub.f32 %v583, %v2727
        %v2729 = vand.u32 %v2728, 4294901760
        %2730 = vmatprep.mubr.f32.mxu0 %v2729
        %v2731 = vand.u32 %v582, 4294901760
        %v2732 = vsub.f32 %v582, %v2731
        %v2733 = vand.u32 %v2732, 4294901760
        %2734 = vmatmul.mubr.f32.gmra.mrb[0].mxu0 %v2733
        %v2735 = vpop.f32.mrb[0].mxu0
        %v2736 = vadd.f32 %v2279, %v2735
        %v2737 = vpop.f32.mrb[0].mxu0
        %v2738 = vadd.f32 %v2281, %v2737
        %v2739 = vand.u32 %v585, 4294901760
        %v2740 = vsub.f32 %v585, %v2739
        %v2741 = vand.u32 %v2740, 4294901760
        %2742 = vmatprep.mubr.f32.mxu0 %v2741
        %v2743 = vand.u32 %v584, 4294901760
        %v2744 = vsub.f32 %v584, %v2743
        %v2745 = vand.u32 %v2744, 4294901760
        %2746 = vmatmul.mubr.f32.gmra.mrb[0].mxu0 %v2745
        %v2747 = vpop.f32.mrb[0].mxu0
        %v2748 = vadd.f32 %v2289, %v2747
        %v2749 = vpop.f32.mrb[0].mxu0
        %v2750 = vadd.f32 %v2291, %v2749
        %v2751 = vand.u32 %v587, 4294901760
        %v2752 = vsub.f32 %v587, %v2751
        %v2753 = vand.u32 %v2752, 4294901760
        %2754 = vmatprep.mubr.f32.mxu0 %v2753
        %v2755 = vand.u32 %v586, 4294901760
        %v2756 = vsub.f32 %v586, %v2755
        %v2757 = vand.u32 %v2756, 4294901760
        %2758 = vmatmul.mubr.f32.gmra.mrb[0].mxu0 %v2757
        %v2759 = vpop.f32.mrb[0].mxu0
        %v2760 = vadd.f32 %v2299, %v2759
        %v2761 = vpop.f32.mrb[0].mxu0
        %v2762 = vadd.f32 %v2301, %v2761
        %v2763 = vand.u32 %v589, 4294901760
        %v2764 = vsub.f32 %v589, %v2763
        %v2765 = vand.u32 %v2764, 4294901760
        %2766 = vmatprep.mubr.f32.mxu0 %v2765
        %v2767 = vand.u32 %v588, 4294901760
        %v2768 = vsub.f32 %v588, %v2767
        %v2769 = vand.u32 %v2768, 4294901760
        %2770 = vmatmul.mubr.f32.gmra.mrb[0].mxu0 %v2769
        %v2771 = vpop.f32.mrb[0].mxu0
        %v2772 = vadd.f32 %v2309, %v2771
        %v2773 = vpop.f32.mrb[0].mxu0
        %v2774 = vadd.f32 %v2311, %v2773
        %v2775 = vand.u32 %v591, 4294901760
        %v2776 = vsub.f32 %v591, %v2775
        %v2777 = vand.u32 %v2776, 4294901760
        %2778 = vmatprep.mubr.f32.mxu0 %v2777
        %v2779 = vand.u32 %v590, 4294901760
        %v2780 = vsub.f32 %v590, %v2779
        %v2781 = vand.u32 %v2780, 4294901760
        %2782 = vmatmul.mubr.f32.gmra.mrb[0].mxu0 %v2781
        %v2783 = vpop.f32.mrb[0].mxu0
        %v2784 = vadd.f32 %v2319, %v2783
        %v2785 = vpop.f32.mrb[0].mxu0
        %v2786 = vadd.f32 %v2321, %v2785
        %v2787 = vand.u32 %v593, 4294901760
        %v2788 = vsub.f32 %v593, %v2787
        %v2789 = vand.u32 %v2788, 4294901760
        %2790 = vmatprep.mubr.f32.mxu0 %v2789
        %v2791 = vand.u32 %v592, 4294901760
        %v2792 = vsub.f32 %v592, %v2791
        %v2793 = vand.u32 %v2792, 4294901760
        %2794 = vmatmul.mubr.f32.gmra.mrb[0].mxu0 %v2793
        %v2795 = vpop.f32.mrb[0].mxu0
        %v2796 = vadd.f32 %v2329, %v2795
        %v2797 = vpop.f32.mrb[0].mxu0
        %v2798 = vadd.f32 %v2331, %v2797
        %v2799 = vand.u32 %v595, 4294901760
        %v2800 = vsub.f32 %v595, %v2799
        %v2801 = vand.u32 %v2800, 4294901760
        %2802 = vmatprep.mubr.f32.mxu0 %v2801
        %v2803 = vand.u32 %v594, 4294901760
        %v2804 = vsub.f32 %v594, %v2803
        %v2805 = vand.u32 %v2804, 4294901760
        %2806 = vmatmul.mubr.f32.gmra.mrb[0].mxu0 %v2805
        %v2807 = vpop.f32.mrb[0].mxu0
        %v2808 = vadd.f32 %v2339, %v2807
        %v2809 = vpop.f32.mrb[0].mxu0
        %v2810 = vadd.f32 %v2341, %v2809
        %v2811 = vand.u32 %v597, 4294901760
        %v2812 = vsub.f32 %v597, %v2811
        %v2813 = vand.u32 %v2812, 4294901760
        %2814 = vmatprep.mubr.f32.mxu0 %v2813
        %v2815 = vand.u32 %v596, 4294901760
        %v2816 = vsub.f32 %v596, %v2815
        %v2817 = vand.u32 %v2816, 4294901760
        %2818 = vmatmul.mubr.f32.gmra.mrb[0].mxu0 %v2817
        %v2819 = vpop.f32.mrb[0].mxu0
        %v2820 = vadd.f32 %v2349, %v2819
        %v2821 = vpop.f32.mrb[0].mxu0
        %v2822 = vadd.f32 %v2351, %v2821
        %v2823 = vand.u32 %v599, 4294901760
        %v2824 = vsub.f32 %v599, %v2823
        %v2825 = vand.u32 %v2824, 4294901760
        %2826 = vmatprep.mubr.f32.mxu0 %v2825
        %v2827 = vand.u32 %v598, 4294901760
        %v2828 = vsub.f32 %v598, %v2827
        %v2829 = vand.u32 %v2828, 4294901760
        %2830 = vmatmul.mubr.f32.gmra.mrb[0].mxu0 %v2829
        %v2831 = vpop.f32.mrb[0].mxu0
        %v2832 = vadd.f32 %v2359, %v2831
        %v2833 = vpop.f32.mrb[0].mxu0
        %v2834 = vadd.f32 %v2361, %v2833
        %v2835 = vand.u32 %v601, 4294901760
        %v2836 = vsub.f32 %v601, %v2835
        %v2837 = vand.u32 %v2836, 4294901760
        %2838 = vmatprep.mubr.f32.mxu0 %v2837
        %v2839 = vand.u32 %v600, 4294901760
        %v2840 = vsub.f32 %v600, %v2839
        %v2841 = vand.u32 %v2840, 4294901760
        %2842 = vmatmul.mubr.f32.gmra.mrb[0].mxu0 %v2841
        %v2843 = vpop.f32.mrb[0].mxu0
        %v2844 = vadd.f32 %v2369, %v2843
        %v2845 = vpop.f32.mrb[0].mxu0
        %v2846 = vadd.f32 %v2371, %v2845
        %v2847 = vand.u32 %v603, 4294901760
        %v2848 = vsub.f32 %v603, %v2847
        %v2849 = vand.u32 %v2848, 4294901760
        %2850 = vmatprep.mubr.f32.mxu0 %v2849
        %v2851 = vand.u32 %v602, 4294901760
        %v2852 = vsub.f32 %v602, %v2851
        %v2853 = vand.u32 %v2852, 4294901760
        %2854 = vmatmul.mubr.f32.gmra.mrb[0].mxu0 %v2853
        %v2855 = vpop.f32.mrb[0].mxu0
        %v2856 = vadd.f32 %v2379, %v2855
        %v2857 = vpop.f32.mrb[0].mxu0
        %v2858 = vadd.f32 %v2381, %v2857
        %v2859 = vand.u32 %v605, 4294901760
        %v2860 = vsub.f32 %v605, %v2859
        %v2861 = vand.u32 %v2860, 4294901760
        %2862 = vmatprep.mubr.f32.mxu0 %v2861
        %v2863 = vand.u32 %v604, 4294901760
        %v2864 = vsub.f32 %v604, %v2863
        %v2865 = vand.u32 %v2864, 4294901760
        %2866 = vmatmul.mubr.f32.gmra.mrb[0].mxu0 %v2865
        %v2867 = vpop.f32.mrb[0].mxu0
        %v2868 = vadd.f32 %v2389, %v2867
        %v2869 = vpop.f32.mrb[0].mxu0
        %v2870 = vadd.f32 %v2391, %v2869
        %v2871 = vand.u32 %v607, 4294901760
        %v2872 = vsub.f32 %v607, %v2871
        %v2873 = vand.u32 %v2872, 4294901760
        %2874 = vmatprep.mubr.f32.mxu0 %v2873
        %v2875 = vand.u32 %v606, 4294901760
        %v2876 = vsub.f32 %v606, %v2875
        %v2877 = vand.u32 %v2876, 4294901760
        %2878 = vmatmul.mubr.f32.gmra.mrb[0].mxu0 %v2877
        %v2879 = vpop.f32.mrb[0].mxu0
        %v2880 = vadd.f32 %v2399, %v2879
        %v2881 = vpop.f32.mrb[0].mxu0
        %v2882 = vadd.f32 %v2401, %v2881
        %v2883 = vand.u32 %v609, 4294901760
        %v2884 = vsub.f32 %v609, %v2883
        %v2885 = vand.u32 %v2884, 4294901760
        %2886 = vmatprep.mubr.f32.mxu0 %v2885
        %v2887 = vand.u32 %v608, 4294901760
        %v2888 = vsub.f32 %v608, %v2887
        %v2889 = vand.u32 %v2888, 4294901760
        %2890 = vmatmul.mubr.f32.gmra.mrb[0].mxu0 %v2889
        %v2891 = vpop.f32.mrb[0].mxu0
        %v2892 = vadd.f32 %v2409, %v2891
        %v2893 = vpop.f32.mrb[0].mxu0
        %v2894 = vadd.f32 %v2411, %v2893
        %v2895 = vand.u32 %v611, 4294901760
        %v2896 = vsub.f32 %v611, %v2895
        %v2897 = vand.u32 %v2896, 4294901760
        %2898 = vmatprep.mubr.f32.mxu0 %v2897
        %v2899 = vand.u32 %v610, 4294901760
        %v2900 = vsub.f32 %v610, %v2899
        %v2901 = vand.u32 %v2900, 4294901760
        %2902 = vmatmul.mubr.f32.gmra.mrb[0].mxu0 %v2901
        %v2903 = vpop.f32.mrb[0].mxu0
        %v2904 = vadd.f32 %v2419, %v2903
        %v2905 = vpop.f32.mrb[0].mxu0
        %v2906 = vadd.f32 %v2421, %v2905
        %v2907 = vand.u32 %v613, 4294901760
        %v2908 = vsub.f32 %v613, %v2907
        %v2909 = vand.u32 %v2908, 4294901760
        %2910 = vmatprep.mubr.f32.mxu0 %v2909
        %v2911 = vand.u32 %v612, 4294901760
        %v2912 = vsub.f32 %v612, %v2911
        %v2913 = vand.u32 %v2912, 4294901760
        %2914 = vmatmul.mubr.f32.gmra.mrb[0].mxu0 %v2913
        %v2915 = vpop.f32.mrb[0].mxu0
        %v2916 = vadd.f32 %v2429, %v2915
        %v2917 = vpop.f32.mrb[0].mxu0
        %v2918 = vadd.f32 %v2431, %v2917
        %v2919 = vand.u32 %v615, 4294901760
        %v2920 = vsub.f32 %v615, %v2919
        %v2921 = vand.u32 %v2920, 4294901760
        %2922 = vmatprep.mubr.f32.mxu0 %v2921
        %v2923 = vand.u32 %v614, 4294901760
        %v2924 = vsub.f32 %v614, %v2923
        %v2925 = vand.u32 %v2924, 4294901760
        %2926 = vmatmul.mubr.f32.gmra.mrb[0].mxu0 %v2925
        %v2927 = vpop.f32.mrb[0].mxu0
        %v2928 = vadd.f32 %v2439, %v2927
        %v2929 = vpop.f32.mrb[0].mxu0
        %v2930 = vadd.f32 %v2441, %v2929
        %v2931 = vand.u32 %v617, 4294901760
        %v2932 = vsub.f32 %v617, %v2931
        %v2933 = vand.u32 %v2932, 4294901760
        %2934 = vmatprep.mubr.f32.mxu0 %v2933
        %v2935 = vand.u32 %v616, 4294901760
        %v2936 = vsub.f32 %v616, %v2935
        %v2937 = vand.u32 %v2936, 4294901760
        %2938 = vmatmul.mubr.f32.gmra.mrb[0].mxu0 %v2937
        %v2939 = vpop.f32.mrb[0].mxu0
        %v2940 = vadd.f32 %v2449, %v2939
        %v2941 = vpop.f32.mrb[0].mxu0
        %v2942 = vadd.f32 %v2451, %v2941
        %v2943 = vand.u32 %v619, 4294901760
        %v2944 = vsub.f32 %v619, %v2943
        %v2945 = vand.u32 %v2944, 4294901760
        %2946 = vmatprep.mubr.f32.mxu0 %v2945
        %v2947 = vand.u32 %v618, 4294901760
        %v2948 = vsub.f32 %v618, %v2947
        %v2949 = vand.u32 %v2948, 4294901760
        %2950 = vmatmul.mubr.f32.gmra.mrb[0].mxu0 %v2949
        %v2951 = vpop.f32.mrb[0].mxu0
        %v2952 = vadd.f32 %v2459, %v2951
        %v2953 = vpop.f32.mrb[0].mxu0
        %v2954 = vadd.f32 %v2461, %v2953
        %v2955 = vand.u32 %v621, 4294901760
        %v2956 = vsub.f32 %v621, %v2955
        %v2957 = vand.u32 %v2956, 4294901760
        %2958 = vmatprep.mubr.f32.mxu0 %v2957
        %v2959 = vand.u32 %v620, 4294901760
        %v2960 = vsub.f32 %v620, %v2959
        %v2961 = vand.u32 %v2960, 4294901760
        %2962 = vmatmul.mubr.f32.gmra.mrb[0].mxu0 %v2961
        %v2963 = vpop.f32.mrb[0].mxu0
        %v2964 = vadd.f32 %v2469, %v2963
        %v2965 = vpop.f32.mrb[0].mxu0
        %v2966 = vadd.f32 %v2471, %v2965
        %v2967 = vand.u32 %v623, 4294901760
        %v2968 = vsub.f32 %v623, %v2967
        %v2969 = vand.u32 %v2968, 4294901760
        %2970 = vmatprep.mubr.f32.mxu0 %v2969
        %v2971 = vand.u32 %v622, 4294901760
        %v2972 = vsub.f32 %v622, %v2971
        %v2973 = vand.u32 %v2972, 4294901760
        %2974 = vmatmul.mubr.f32.gmra.mrb[0].mxu0 %v2973
        %v2975 = vpop.f32.mrb[0].mxu0
        %v2976 = vadd.f32 %v2479, %v2975
        %v2977 = vpop.f32.mrb[0].mxu0
        %v2978 = vadd.f32 %v2481, %v2977
        %v2979 = vand.u32 %v625, 4294901760
        %v2980 = vsub.f32 %v625, %v2979
        %v2981 = vand.u32 %v2980, 4294901760
        %2982 = vmatprep.mubr.f32.mxu0 %v2981
        %v2983 = vand.u32 %v624, 4294901760
        %v2984 = vsub.f32 %v624, %v2983
        %v2985 = vand.u32 %v2984, 4294901760
        %2986 = vmatmul.mubr.f32.gmra.mrb[0].mxu0 %v2985
        %v2987 = vpop.f32.mrb[0].mxu0
        %v2988 = vadd.f32 %v2489, %v2987
        %v2989 = vpop.f32.mrb[0].mxu0
        %v2990 = vadd.f32 %v2491, %v2989
        %v2991 = vand.u32 %v627, 4294901760
        %v2992 = vsub.f32 %v627, %v2991
        %v2993 = vand.u32 %v2992, 4294901760
        %2994 = vmatprep.mubr.f32.mxu0 %v2993
        %v2995 = vand.u32 %v626, 4294901760
        %v2996 = vsub.f32 %v626, %v2995
        %v2997 = vand.u32 %v2996, 4294901760
        %2998 = vmatmul.mubr.f32.gmra.mrb[0].mxu0 %v2997
        %v2999 = vpop.f32.mrb[0].mxu0
        %v3000 = vadd.f32 %v2499, %v2999
        %v3001 = vpop.f32.mrb[0].mxu0
        %v3002 = vadd.f32 %v2501, %v3001
        %v3003 = vand.u32 %v629, 4294901760
        %v3004 = vsub.f32 %v629, %v3003
        %v3005 = vand.u32 %v3004, 4294901760
        %3006 = vmatprep.mubr.f32.mxu0 %v3005
        %v3007 = vand.u32 %v628, 4294901760
        %v3008 = vsub.f32 %v628, %v3007
        %v3009 = vand.u32 %v3008, 4294901760
        %3010 = vmatmul.mubr.f32.gmra.mrb[0].mxu0 %v3009
        %v3011 = vpop.f32.mrb[0].mxu0
        %v3012 = vadd.f32 %v2509, %v3011
        %v3013 = vpop.f32.mrb[0].mxu0
        %v3014 = vadd.f32 %v2511, %v3013
        %v3015 = vand.u32 %v631, 4294901760
        %v3016 = vsub.f32 %v631, %v3015
        %v3017 = vand.u32 %v3016, 4294901760
        %3018 = vmatprep.mubr.f32.mxu0 %v3017
        %v3019 = vand.u32 %v630, 4294901760
        %v3020 = vsub.f32 %v630, %v3019
        %v3021 = vand.u32 %v3020, 4294901760
        %3022 = vmatmul.mubr.f32.gmra.mrb[0].mxu0 %v3021
        %v3023 = vpop.f32.mrb[0].mxu0
        %v3024 = vadd.f32 %v2519, %v3023
        %v3025 = vpop.f32.mrb[0].mxu0
        %v3026 = vadd.f32 %v2521, %v3025
        %v3027 = vand.u32 %v633, 4294901760
        %v3028 = vsub.f32 %v633, %v3027
        %v3029 = vand.u32 %v3028, 4294901760
        %3030 = vmatprep.mubr.f32.mxu0 %v3029
        %v3031 = vand.u32 %v632, 4294901760
        %v3032 = vsub.f32 %v632, %v3031
        %v3033 = vand.u32 %v3032, 4294901760
        %3034 = vmatmul.mubr.f32.gmra.mrb[0].mxu0 %v3033
        %v3035 = vpop.f32.mrb[0].mxu0
        %v3036 = vadd.f32 %v2529, %v3035
        %v3037 = vpop.f32.mrb[0].mxu0
        %v3038 = vadd.f32 %v2531, %v3037
        %v3039 = vand.u32 %v635, 4294901760
        %v3040 = vsub.f32 %v635, %v3039
        %v3041 = vand.u32 %v3040, 4294901760
        %3042 = vmatprep.mubr.f32.mxu0 %v3041
        %v3043 = vand.u32 %v634, 4294901760
        %v3044 = vsub.f32 %v634, %v3043
        %v3045 = vand.u32 %v3044, 4294901760
        %3046 = vmatmul.mubr.f32.gmra.mrb[0].mxu0 %v3045
        %v3047 = vpop.f32.mrb[0].mxu0
        %v3048 = vadd.f32 %v2539, %v3047
        %v3049 = vpop.f32.mrb[0].mxu0
        %v3050 = vadd.f32 %v2541, %v3049
        %v3051 = vand.u32 %v637, 4294901760
        %v3052 = vsub.f32 %v637, %v3051
        %v3053 = vand.u32 %v3052, 4294901760
        %3054 = vmatprep.mubr.f32.mxu0 %v3053
        %v3055 = vand.u32 %v636, 4294901760
        %v3056 = vsub.f32 %v636, %v3055
        %v3057 = vand.u32 %v3056, 4294901760
        %3058 = vmatmul.mubr.f32.gmra.mrb[0].mxu0 %v3057
        %v3059 = vpop.f32.mrb[0].mxu0
        %v3060 = vadd.f32 %v2549, %v3059
        %v3061 = vpop.f32.mrb[0].mxu0
        %v3062 = vadd.f32 %v2551, %v3061
        %v3063 = vand.u32 %v639, 4294901760
        %v3064 = vsub.f32 %v639, %v3063
        %v3065 = vand.u32 %v3064, 4294901760
        %3066 = vmatprep.mubr.f32.mxu0 %v3065
        %v3067 = vand.u32 %v638, 4294901760
        %v3068 = vsub.f32 %v638, %v3067
        %v3069 = vand.u32 %v3068, 4294901760
        %3070 = vmatmul.mubr.f32.gmra.mrb[0].mxu0 %v3069
        %v3071 = vpop.f32.mrb[0].mxu0
        %v3072 = vadd.f32 %v2559, %v3071
        %v3073 = vpop.f32.mrb[0].mxu0
        %v3074 = vadd.f32 %v2561, %v3073
        %3075 = vdwg.mxu0
        %v3076 = vand.u32 %v641, 4294901760
        %v3077 = vsub.f32 %v641, %v3076
        %v3078 = vand.u32 %v3077, 4294901760
        %3079 = vmatprep.subr.mxu0 %v3078
        %v3080 = vand.u32 %v640, 4294901760
        %v3081 = vsub.f32 %v640, %v3080
        %v3082 = vand.u32 %v3081, 4294901760
        %3083 = vmatpush1.msra.mxu0 %v3082
        %v3084 = vand.u32 %v645, 4294901760
        %v3085 = vsub.f32 %v645, %v3084
        %v3086 = vand.u32 %v3085, 4294901760
        %3087 = vmatprep.subr.mxu0 %v3086
        %v3088 = vand.u32 %v644, 4294901760
        %v3089 = vsub.f32 %v644, %v3088
        %v3090 = vand.u32 %v3089, 4294901760
        %3091 = vmatpush1.msra.mxu0 %v3090
        %v3092 = vand.u32 %v649, 4294901760
        %v3093 = vsub.f32 %v649, %v3092
        %v3094 = vand.u32 %v3093, 4294901760
        %3095 = vmatprep.subr.mxu0 %v3094
        %v3096 = vand.u32 %v648, 4294901760
        %v3097 = vsub.f32 %v648, %v3096
        %v3098 = vand.u32 %v3097, 4294901760
        %3099 = vmatpush1.msra.mxu0 %v3098
        %v3100 = vand.u32 %v653, 4294901760
        %v3101 = vsub.f32 %v653, %v3100
        %v3102 = vand.u32 %v3101, 4294901760
        %3103 = vmatprep.subr.mxu0 %v3102
        %v3104 = vand.u32 %v652, 4294901760
        %v3105 = vsub.f32 %v652, %v3104
        %v3106 = vand.u32 %v3105, 4294901760
        %3107 = vmatpush1.msra.mxu0 %v3106
        %v3108 = vand.u32 %v657, 4294901760
        %v3109 = vsub.f32 %v657, %v3108
        %v3110 = vand.u32 %v3109, 4294901760
        %3111 = vmatprep.subr.mxu0 %v3110
        %v3112 = vand.u32 %v656, 4294901760
        %v3113 = vsub.f32 %v656, %v3112
        %v3114 = vand.u32 %v3113, 4294901760
        %3115 = vmatpush1.msra.mxu0 %v3114
        %v3116 = vand.u32 %v661, 4294901760
        %v3117 = vsub.f32 %v661, %v3116
        %v3118 = vand.u32 %v3117, 4294901760
        %3119 = vmatprep.subr.mxu0 %v3118
        %v3120 = vand.u32 %v660, 4294901760
        %v3121 = vsub.f32 %v660, %v3120
        %v3122 = vand.u32 %v3121, 4294901760
        %3123 = vmatpush1.msra.mxu0 %v3122
        %v3124 = vand.u32 %v665, 4294901760
        %v3125 = vsub.f32 %v665, %v3124
        %v3126 = vand.u32 %v3125, 4294901760
        %3127 = vmatprep.subr.mxu0 %v3126
        %v3128 = vand.u32 %v664, 4294901760
        %v3129 = vsub.f32 %v664, %v3128
        %v3130 = vand.u32 %v3129, 4294901760
        %3131 = vmatpush1.msra.mxu0 %v3130
        %v3132 = vand.u32 %v669, 4294901760
        %v3133 = vsub.f32 %v669, %v3132
        %v3134 = vand.u32 %v3133, 4294901760
        %3135 = vmatprep.subr.mxu0 %v3134
        %v3136 = vand.u32 %v668, 4294901760
        %v3137 = vsub.f32 %v668, %v3136
        %v3138 = vand.u32 %v3137, 4294901760
        %3139 = vmatpush1.msra.mxu0 %v3138
        %v3140 = vand.u32 %v673, 4294901760
        %v3141 = vsub.f32 %v673, %v3140
        %v3142 = vand.u32 %v3141, 4294901760
        %3143 = vmatprep.subr.mxu0 %v3142
        %v3144 = vand.u32 %v672, 4294901760
        %v3145 = vsub.f32 %v672, %v3144
        %v3146 = vand.u32 %v3145, 4294901760
        %3147 = vmatpush1.msra.mxu0 %v3146
        %v3148 = vand.u32 %v677, 4294901760
        %v3149 = vsub.f32 %v677, %v3148
        %v3150 = vand.u32 %v3149, 4294901760
        %3151 = vmatprep.subr.mxu0 %v3150
        %v3152 = vand.u32 %v676, 4294901760
        %v3153 = vsub.f32 %v676, %v3152
        %v3154 = vand.u32 %v3153, 4294901760
        %3155 = vmatpush1.msra.mxu0 %v3154
        %v3156 = vand.u32 %v681, 4294901760
        %v3157 = vsub.f32 %v681, %v3156
        %v3158 = vand.u32 %v3157, 4294901760
        %3159 = vmatprep.subr.mxu0 %v3158
        %v3160 = vand.u32 %v680, 4294901760
        %v3161 = vsub.f32 %v680, %v3160
        %v3162 = vand.u32 %v3161, 4294901760
        %3163 = vmatpush1.msra.mxu0 %v3162
        %v3164 = vand.u32 %v685, 4294901760
        %v3165 = vsub.f32 %v685, %v3164
        %v3166 = vand.u32 %v3165, 4294901760
        %3167 = vmatprep.subr.mxu0 %v3166
        %v3168 = vand.u32 %v684, 4294901760
        %v3169 = vsub.f32 %v684, %v3168
        %v3170 = vand.u32 %v3169, 4294901760
        %3171 = vmatpush1.msra.mxu0 %v3170
        %v3172 = vand.u32 %v689, 4294901760
        %v3173 = vsub.f32 %v689, %v3172
        %v3174 = vand.u32 %v3173, 4294901760
        %3175 = vmatprep.subr.mxu0 %v3174
        %v3176 = vand.u32 %v688, 4294901760
        %v3177 = vsub.f32 %v688, %v3176
        %v3178 = vand.u32 %v3177, 4294901760
        %3179 = vmatpush1.msra.mxu0 %v3178
        %v3180 = vand.u32 %v693, 4294901760
        %v3181 = vsub.f32 %v693, %v3180
        %v3182 = vand.u32 %v3181, 4294901760
        %3183 = vmatprep.subr.mxu0 %v3182
        %v3184 = vand.u32 %v692, 4294901760
        %v3185 = vsub.f32 %v692, %v3184
        %v3186 = vand.u32 %v3185, 4294901760
        %3187 = vmatpush1.msra.mxu0 %v3186
        %v3188 = vand.u32 %v697, 4294901760
        %v3189 = vsub.f32 %v697, %v3188
        %v3190 = vand.u32 %v3189, 4294901760
        %3191 = vmatprep.subr.mxu0 %v3190
        %v3192 = vand.u32 %v696, 4294901760
        %v3193 = vsub.f32 %v696, %v3192
        %v3194 = vand.u32 %v3193, 4294901760
        %3195 = vmatpush1.msra.mxu0 %v3194
        %v3196 = vand.u32 %v701, 4294901760
        %v3197 = vsub.f32 %v701, %v3196
        %v3198 = vand.u32 %v3197, 4294901760
        %3199 = vmatprep.subr.mxu0 %v3198
        %v3200 = vand.u32 %v700, 4294901760
        %v3201 = vsub.f32 %v700, %v3200
        %v3202 = vand.u32 %v3201, 4294901760
        %3203 = vmatpush1.msra.mxu0 %v3202
        %v3204 = vand.u32 %v705, 4294901760
        %v3205 = vsub.f32 %v705, %v3204
        %v3206 = vand.u32 %v3205, 4294901760
        %3207 = vmatprep.subr.mxu0 %v3206
        %v3208 = vand.u32 %v704, 4294901760
        %v3209 = vsub.f32 %v704, %v3208
        %v3210 = vand.u32 %v3209, 4294901760
        %3211 = vmatpush1.msra.mxu0 %v3210
        %v3212 = vand.u32 %v709, 4294901760
        %v3213 = vsub.f32 %v709, %v3212
        %v3214 = vand.u32 %v3213, 4294901760
        %3215 = vmatprep.subr.mxu0 %v3214
        %v3216 = vand.u32 %v708, 4294901760
        %v3217 = vsub.f32 %v708, %v3216
        %v3218 = vand.u32 %v3217, 4294901760
        %3219 = vmatpush1.msra.mxu0 %v3218
        %v3220 = vand.u32 %v713, 4294901760
        %v3221 = vsub.f32 %v713, %v3220
        %v3222 = vand.u32 %v3221, 4294901760
        %3223 = vmatprep.subr.mxu0 %v3222
        %v3224 = vand.u32 %v712, 4294901760
        %v3225 = vsub.f32 %v712, %v3224
        %v3226 = vand.u32 %v3225, 4294901760
        %3227 = vmatpush1.msra.mxu0 %v3226
        %v3228 = vand.u32 %v717, 4294901760
        %v3229 = vsub.f32 %v717, %v3228
        %v3230 = vand.u32 %v3229, 4294901760
        %3231 = vmatprep.subr.mxu0 %v3230
        %v3232 = vand.u32 %v716, 4294901760
        %v3233 = vsub.f32 %v716, %v3232
        %v3234 = vand.u32 %v3233, 4294901760
        %3235 = vmatpush1.msra.mxu0 %v3234
        %v3236 = vand.u32 %v721, 4294901760
        %v3237 = vsub.f32 %v721, %v3236
        %v3238 = vand.u32 %v3237, 4294901760
        %3239 = vmatprep.subr.mxu0 %v3238
        %v3240 = vand.u32 %v720, 4294901760
        %v3241 = vsub.f32 %v720, %v3240
        %v3242 = vand.u32 %v3241, 4294901760
        %3243 = vmatpush1.msra.mxu0 %v3242
        %v3244 = vand.u32 %v725, 4294901760
        %v3245 = vsub.f32 %v725, %v3244
        %v3246 = vand.u32 %v3245, 4294901760
        %3247 = vmatprep.subr.mxu0 %v3246
        %v3248 = vand.u32 %v724, 4294901760
        %v3249 = vsub.f32 %v724, %v3248
        %v3250 = vand.u32 %v3249, 4294901760
        %3251 = vmatpush1.msra.mxu0 %v3250
        %v3252 = vand.u32 %v729, 4294901760
        %v3253 = vsub.f32 %v729, %v3252
        %v3254 = vand.u32 %v3253, 4294901760
        %3255 = vmatprep.subr.mxu0 %v3254
        %v3256 = vand.u32 %v728, 4294901760
        %v3257 = vsub.f32 %v728, %v3256
        %v3258 = vand.u32 %v3257, 4294901760
        %3259 = vmatpush1.msra.mxu0 %v3258
        %v3260 = vand.u32 %v733, 4294901760
        %v3261 = vsub.f32 %v733, %v3260
        %v3262 = vand.u32 %v3261, 4294901760
        %3263 = vmatprep.subr.mxu0 %v3262
        %v3264 = vand.u32 %v732, 4294901760
        %v3265 = vsub.f32 %v732, %v3264
        %v3266 = vand.u32 %v3265, 4294901760
        %3267 = vmatpush1.msra.mxu0 %v3266
        %v3268 = vand.u32 %v737, 4294901760
        %v3269 = vsub.f32 %v737, %v3268
        %v3270 = vand.u32 %v3269, 4294901760
        %3271 = vmatprep.subr.mxu0 %v3270
        %v3272 = vand.u32 %v736, 4294901760
        %v3273 = vsub.f32 %v736, %v3272
        %v3274 = vand.u32 %v3273, 4294901760
        %3275 = vmatpush1.msra.mxu0 %v3274
        %v3276 = vand.u32 %v741, 4294901760
        %v3277 = vsub.f32 %v741, %v3276
        %v3278 = vand.u32 %v3277, 4294901760
        %3279 = vmatprep.subr.mxu0 %v3278
        %v3280 = vand.u32 %v740, 4294901760
        %v3281 = vsub.f32 %v740, %v3280
        %v3282 = vand.u32 %v3281, 4294901760
        %3283 = vmatpush1.msra.mxu0 %v3282
        %v3284 = vand.u32 %v745, 4294901760
        %v3285 = vsub.f32 %v745, %v3284
        %v3286 = vand.u32 %v3285, 4294901760
        %3287 = vmatprep.subr.mxu0 %v3286
        %v3288 = vand.u32 %v744, 4294901760
        %v3289 = vsub.f32 %v744, %v3288
        %v3290 = vand.u32 %v3289, 4294901760
        %3291 = vmatpush1.msra.mxu0 %v3290
        %v3292 = vand.u32 %v749, 4294901760
        %v3293 = vsub.f32 %v749, %v3292
        %v3294 = vand.u32 %v3293, 4294901760
        %3295 = vmatprep.subr.mxu0 %v3294
        %v3296 = vand.u32 %v748, 4294901760
        %v3297 = vsub.f32 %v748, %v3296
        %v3298 = vand.u32 %v3297, 4294901760
        %3299 = vmatpush1.msra.mxu0 %v3298
        %v3300 = vand.u32 %v753, 4294901760
        %v3301 = vsub.f32 %v753, %v3300
        %v3302 = vand.u32 %v3301, 4294901760
        %3303 = vmatprep.subr.mxu0 %v3302
        %v3304 = vand.u32 %v752, 4294901760
        %v3305 = vsub.f32 %v752, %v3304
        %v3306 = vand.u32 %v3305, 4294901760
        %3307 = vmatpush1.msra.mxu0 %v3306
        %v3308 = vand.u32 %v757, 4294901760
        %v3309 = vsub.f32 %v757, %v3308
        %v3310 = vand.u32 %v3309, 4294901760
        %3311 = vmatprep.subr.mxu0 %v3310
        %v3312 = vand.u32 %v756, 4294901760
        %v3313 = vsub.f32 %v756, %v3312
        %v3314 = vand.u32 %v3313, 4294901760
        %3315 = vmatpush1.msra.mxu0 %v3314
        %v3316 = vand.u32 %v761, 4294901760
        %v3317 = vsub.f32 %v761, %v3316
        %v3318 = vand.u32 %v3317, 4294901760
        %3319 = vmatprep.subr.mxu0 %v3318
        %v3320 = vand.u32 %v760, 4294901760
        %v3321 = vsub.f32 %v760, %v3320
        %v3322 = vand.u32 %v3321, 4294901760
        %3323 = vmatpush1.msra.mxu0 %v3322
        %v3324 = vand.u32 %v765, 4294901760
        %v3325 = vsub.f32 %v765, %v3324
        %v3326 = vand.u32 %v3325, 4294901760
        %3327 = vmatprep.subr.mxu0 %v3326
        %v3328 = vand.u32 %v764, 4294901760
        %v3329 = vsub.f32 %v764, %v3328
        %v3330 = vand.u32 %v3329, 4294901760
        %3331 = vmatpush1.msra.mxu0 %v3330
        %v3332 = vand.u32 %v577, 4294901760
        %3333 = vmatprep.mubr.f32.mxu0 %v3332
        %v3334 = vand.u32 %v576, 4294901760
        %3335 = vmatmul.mubr.f32.gmra.mrb[0].mxu0 %v3334
        %v3336 = vpop.f32.mrb[0].mxu0
        %v3337 = vadd.f32 %v2700, %v3336
        %v3338 = vpop.f32.mrb[0].mxu0
        %v3339 = vadd.f32 %v2702, %v3338
        %v3340 = vand.u32 %v579, 4294901760
        %3341 = vmatprep.mubr.f32.mxu0 %v3340
        %v3342 = vand.u32 %v578, 4294901760
        %3343 = vmatmul.mubr.f32.gmra.mrb[0].mxu0 %v3342
        %v3344 = vpop.f32.mrb[0].mxu0
        %v3345 = vadd.f32 %v2712, %v3344
        %v3346 = vpop.f32.mrb[0].mxu0
        %v3347 = vadd.f32 %v2714, %v3346
        %v3348 = vand.u32 %v581, 4294901760
        %3349 = vmatprep.mubr.f32.mxu0 %v3348
        %v3350 = vand.u32 %v580, 4294901760
        %3351 = vmatmul.mubr.f32.gmra.mrb[0].mxu0 %v3350
        %v3352 = vpop.f32.mrb[0].mxu0
        %v3353 = vadd.f32 %v2724, %v3352
        %v3354 = vpop.f32.mrb[0].mxu0
        %v3355 = vadd.f32 %v2726, %v3354
        %v3356 = vand.u32 %v583, 4294901760
        %3357 = vmatprep.mubr.f32.mxu0 %v3356
        %v3358 = vand.u32 %v582, 4294901760
        %3359 = vmatmul.mubr.f32.gmra.mrb[0].mxu0 %v3358
        %v3360 = vpop.f32.mrb[0].mxu0
        %v3361 = vadd.f32 %v2736, %v3360
        %v3362 = vpop.f32.mrb[0].mxu0
        %v3363 = vadd.f32 %v2738, %v3362
        %v3364 = vand.u32 %v585, 4294901760
        %3365 = vmatprep.mubr.f32.mxu0 %v3364
        %v3366 = vand.u32 %v584, 4294901760
        %3367 = vmatmul.mubr.f32.gmra.mrb[0].mxu0 %v3366
        %v3368 = vpop.f32.mrb[0].mxu0
        %v3369 = vadd.f32 %v2748, %v3368
        %v3370 = vpop.f32.mrb[0].mxu0
        %v3371 = vadd.f32 %v2750, %v3370
        %v3372 = vand.u32 %v587, 4294901760
        %3373 = vmatprep.mubr.f32.mxu0 %v3372
        %v3374 = vand.u32 %v586, 4294901760
        %3375 = vmatmul.mubr.f32.gmra.mrb[0].mxu0 %v3374
        %v3376 = vpop.f32.mrb[0].mxu0
        %v3377 = vadd.f32 %v2760, %v3376
        %v3378 = vpop.f32.mrb[0].mxu0
        %v3379 = vadd.f32 %v2762, %v3378
        %v3380 = vand.u32 %v589, 4294901760
        %3381 = vmatprep.mubr.f32.mxu0 %v3380
        %v3382 = vand.u32 %v588, 4294901760
        %3383 = vmatmul.mubr.f32.gmra.mrb[0].mxu0 %v3382
        %v3384 = vpop.f32.mrb[0].mxu0
        %v3385 = vadd.f32 %v2772, %v3384
        %v3386 = vpop.f32.mrb[0].mxu0
        %v3387 = vadd.f32 %v2774, %v3386
        %v3388 = vand.u32 %v591, 4294901760
        %3389 = vmatprep.mubr.f32.mxu0 %v3388
        %v3390 = vand.u32 %v590, 4294901760
        %3391 = vmatmul.mubr.f32.gmra.mrb[0].mxu0 %v3390
        %v3392 = vpop.f32.mrb[0].mxu0
        %v3393 = vadd.f32 %v2784, %v3392
        %v3394 = vpop.f32.mrb[0].mxu0
        %v3395 = vadd.f32 %v2786, %v3394
        %v3396 = vand.u32 %v593, 4294901760
        %3397 = vmatprep.mubr.f32.mxu0 %v3396
        %v3398 = vand.u32 %v592, 4294901760
        %3399 = vmatmul.mubr.f32.gmra.mrb[0].mxu0 %v3398
        %v3400 = vpop.f32.mrb[0].mxu0
        %v3401 = vadd.f32 %v2796, %v3400
        %v3402 = vpop.f32.mrb[0].mxu0
        %v3403 = vadd.f32 %v2798, %v3402
        %v3404 = vand.u32 %v595, 4294901760
        %3405 = vmatprep.mubr.f32.mxu0 %v3404
        %v3406 = vand.u32 %v594, 4294901760
        %3407 = vmatmul.mubr.f32.gmra.mrb[0].mxu0 %v3406
        %v3408 = vpop.f32.mrb[0].mxu0
        %v3409 = vadd.f32 %v2808, %v3408
        %v3410 = vpop.f32.mrb[0].mxu0
        %v3411 = vadd.f32 %v2810, %v3410
        %v3412 = vand.u32 %v597, 4294901760
        %3413 = vmatprep.mubr.f32.mxu0 %v3412
        %v3414 = vand.u32 %v596, 4294901760
        %3415 = vmatmul.mubr.f32.gmra.mrb[0].mxu0 %v3414
        %v3416 = vpop.f32.mrb[0].mxu0
        %v3417 = vadd.f32 %v2820, %v3416
        %v3418 = vpop.f32.mrb[0].mxu0
        %v3419 = vadd.f32 %v2822, %v3418
        %v3420 = vand.u32 %v599, 4294901760
        %3421 = vmatprep.mubr.f32.mxu0 %v3420
        %v3422 = vand.u32 %v598, 4294901760
        %3423 = vmatmul.mubr.f32.gmra.mrb[0].mxu0 %v3422
        %v3424 = vpop.f32.mrb[0].mxu0
        %v3425 = vadd.f32 %v2832, %v3424
        %v3426 = vpop.f32.mrb[0].mxu0
        %v3427 = vadd.f32 %v2834, %v3426
        %v3428 = vand.u32 %v601, 4294901760
        %3429 = vmatprep.mubr.f32.mxu0 %v3428
        %v3430 = vand.u32 %v600, 4294901760
        %3431 = vmatmul.mubr.f32.gmra.mrb[0].mxu0 %v3430
        %v3432 = vpop.f32.mrb[0].mxu0
        %v3433 = vadd.f32 %v2844, %v3432
        %v3434 = vpop.f32.mrb[0].mxu0
        %v3435 = vadd.f32 %v2846, %v3434
        %v3436 = vand.u32 %v603, 4294901760
        %3437 = vmatprep.mubr.f32.mxu0 %v3436
        %v3438 = vand.u32 %v602, 4294901760
        %3439 = vmatmul.mubr.f32.gmra.mrb[0].mxu0 %v3438
        %v3440 = vpop.f32.mrb[0].mxu0
        %v3441 = vadd.f32 %v2856, %v3440
        %v3442 = vpop.f32.mrb[0].mxu0
        %v3443 = vadd.f32 %v2858, %v3442
        %v3444 = vand.u32 %v605, 4294901760
        %3445 = vmatprep.mubr.f32.mxu0 %v3444
        %v3446 = vand.u32 %v604, 4294901760
        %3447 = vmatmul.mubr.f32.gmra.mrb[0].mxu0 %v3446
        %v3448 = vpop.f32.mrb[0].mxu0
        %v3449 = vadd.f32 %v2868, %v3448
        %v3450 = vpop.f32.mrb[0].mxu0
        %v3451 = vadd.f32 %v2870, %v3450
        %v3452 = vand.u32 %v607, 4294901760
        %3453 = vmatprep.mubr.f32.mxu0 %v3452
        %v3454 = vand.u32 %v606, 4294901760
        %3455 = vmatmul.mubr.f32.gmra.mrb[0].mxu0 %v3454
        %v3456 = vpop.f32.mrb[0].mxu0
        %v3457 = vadd.f32 %v2880, %v3456
        %v3458 = vpop.f32.mrb[0].mxu0
        %v3459 = vadd.f32 %v2882, %v3458
        %v3460 = vand.u32 %v609, 4294901760
        %3461 = vmatprep.mubr.f32.mxu0 %v3460
        %v3462 = vand.u32 %v608, 4294901760
        %3463 = vmatmul.mubr.f32.gmra.mrb[0].mxu0 %v3462
        %v3464 = vpop.f32.mrb[0].mxu0
        %v3465 = vadd.f32 %v2892, %v3464
        %v3466 = vpop.f32.mrb[0].mxu0
        %v3467 = vadd.f32 %v2894, %v3466
        %v3468 = vand.u32 %v611, 4294901760
        %3469 = vmatprep.mubr.f32.mxu0 %v3468
        %v3470 = vand.u32 %v610, 4294901760
        %3471 = vmatmul.mubr.f32.gmra.mrb[0].mxu0 %v3470
        %v3472 = vpop.f32.mrb[0].mxu0
        %v3473 = vadd.f32 %v2904, %v3472
        %v3474 = vpop.f32.mrb[0].mxu0
        %v3475 = vadd.f32 %v2906, %v3474
        %v3476 = vand.u32 %v613, 4294901760
        %3477 = vmatprep.mubr.f32.mxu0 %v3476
        %v3478 = vand.u32 %v612, 4294901760
        %3479 = vmatmul.mubr.f32.gmra.mrb[0].mxu0 %v3478
        %v3480 = vpop.f32.mrb[0].mxu0
        %v3481 = vadd.f32 %v2916, %v3480
        %v3482 = vpop.f32.mrb[0].mxu0
        %v3483 = vadd.f32 %v2918, %v3482
        %v3484 = vand.u32 %v615, 4294901760
        %3485 = vmatprep.mubr.f32.mxu0 %v3484
        %v3486 = vand.u32 %v614, 4294901760
        %3487 = vmatmul.mubr.f32.gmra.mrb[0].mxu0 %v3486
        %v3488 = vpop.f32.mrb[0].mxu0
        %v3489 = vadd.f32 %v2928, %v3488
        %v3490 = vpop.f32.mrb[0].mxu0
        %v3491 = vadd.f32 %v2930, %v3490
        %v3492 = vand.u32 %v617, 4294901760
        %3493 = vmatprep.mubr.f32.mxu0 %v3492
        %v3494 = vand.u32 %v616, 4294901760
        %3495 = vmatmul.mubr.f32.gmra.mrb[0].mxu0 %v3494
        %v3496 = vpop.f32.mrb[0].mxu0
        %v3497 = vadd.f32 %v2940, %v3496
        %v3498 = vpop.f32.mrb[0].mxu0
        %v3499 = vadd.f32 %v2942, %v3498
        %v3500 = vand.u32 %v619, 4294901760
        %3501 = vmatprep.mubr.f32.mxu0 %v3500
        %v3502 = vand.u32 %v618, 4294901760
        %3503 = vmatmul.mubr.f32.gmra.mrb[0].mxu0 %v3502
        %v3504 = vpop.f32.mrb[0].mxu0
        %v3505 = vadd.f32 %v2952, %v3504
        %v3506 = vpop.f32.mrb[0].mxu0
        %v3507 = vadd.f32 %v2954, %v3506
        %v3508 = vand.u32 %v621, 4294901760
        %3509 = vmatprep.mubr.f32.mxu0 %v3508
        %v3510 = vand.u32 %v620, 4294901760
        %3511 = vmatmul.mubr.f32.gmra.mrb[0].mxu0 %v3510
        %v3512 = vpop.f32.mrb[0].mxu0
        %v3513 = vadd.f32 %v2964, %v3512
        %v3514 = vpop.f32.mrb[0].mxu0
        %v3515 = vadd.f32 %v2966, %v3514
        %v3516 = vand.u32 %v623, 4294901760
        %3517 = vmatprep.mubr.f32.mxu0 %v3516
        %v3518 = vand.u32 %v622, 4294901760
        %3519 = vmatmul.mubr.f32.gmra.mrb[0].mxu0 %v3518
        %v3520 = vpop.f32.mrb[0].mxu0
        %v3521 = vadd.f32 %v2976, %v3520
        %v3522 = vpop.f32.mrb[0].mxu0
        %v3523 = vadd.f32 %v2978, %v3522
        %v3524 = vand.u32 %v625, 4294901760
        %3525 = vmatprep.mubr.f32.mxu0 %v3524
        %v3526 = vand.u32 %v624, 4294901760
        %3527 = vmatmul.mubr.f32.gmra.mrb[0].mxu0 %v3526
        %v3528 = vpop.f32.mrb[0].mxu0
        %v3529 = vadd.f32 %v2988, %v3528
        %v3530 = vpop.f32.mrb[0].mxu0
        %v3531 = vadd.f32 %v2990, %v3530
        %v3532 = vand.u32 %v627, 4294901760
        %3533 = vmatprep.mubr.f32.mxu0 %v3532
        %v3534 = vand.u32 %v626, 4294901760
        %3535 = vmatmul.mubr.f32.gmra.mrb[0].mxu0 %v3534
        %v3536 = vpop.f32.mrb[0].mxu0
        %v3537 = vadd.f32 %v3000, %v3536
        %v3538 = vpop.f32.mrb[0].mxu0
        %v3539 = vadd.f32 %v3002, %v3538
        %v3540 = vand.u32 %v629, 4294901760
        %3541 = vmatprep.mubr.f32.mxu0 %v3540
        %v3542 = vand.u32 %v628, 4294901760
        %3543 = vmatmul.mubr.f32.gmra.mrb[0].mxu0 %v3542
        %v3544 = vpop.f32.mrb[0].mxu0
        %v3545 = vadd.f32 %v3012, %v3544
        %v3546 = vpop.f32.mrb[0].mxu0
        %v3547 = vadd.f32 %v3014, %v3546
        %v3548 = vand.u32 %v631, 4294901760
        %3549 = vmatprep.mubr.f32.mxu0 %v3548
        %v3550 = vand.u32 %v630, 4294901760
        %3551 = vmatmul.mubr.f32.gmra.mrb[0].mxu0 %v3550
        %v3552 = vpop.f32.mrb[0].mxu0
        %v3553 = vadd.f32 %v3024, %v3552
        %v3554 = vpop.f32.mrb[0].mxu0
        %v3555 = vadd.f32 %v3026, %v3554
        %v3556 = vand.u32 %v633, 4294901760
        %3557 = vmatprep.mubr.f32.mxu0 %v3556
        %v3558 = vand.u32 %v632, 4294901760
        %3559 = vmatmul.mubr.f32.gmra.mrb[0].mxu0 %v3558
        %v3560 = vpop.f32.mrb[0].mxu0
        %v3561 = vadd.f32 %v3036, %v3560
        %v3562 = vpop.f32.mrb[0].mxu0
        %v3563 = vadd.f32 %v3038, %v3562
        %v3564 = vand.u32 %v635, 4294901760
        %3565 = vmatprep.mubr.f32.mxu0 %v3564
        %v3566 = vand.u32 %v634, 4294901760
        %3567 = vmatmul.mubr.f32.gmra.mrb[0].mxu0 %v3566
        %v3568 = vpop.f32.mrb[0].mxu0
        %v3569 = vadd.f32 %v3048, %v3568
        %v3570 = vpop.f32.mrb[0].mxu0
        %v3571 = vadd.f32 %v3050, %v3570
        %v3572 = vand.u32 %v637, 4294901760
        %3573 = vmatprep.mubr.f32.mxu0 %v3572
        %v3574 = vand.u32 %v636, 4294901760
        %3575 = vmatmul.mubr.f32.gmra.mrb[0].mxu0 %v3574
        %v3576 = vpop.f32.mrb[0].mxu0
        %v3577 = vadd.f32 %v3060, %v3576
        %v3578 = vpop.f32.mrb[0].mxu0
        %v3579 = vadd.f32 %v3062, %v3578
        %v3580 = vand.u32 %v639, 4294901760
        %3581 = vmatprep.mubr.f32.mxu0 %v3580
        %v3582 = vand.u32 %v638, 4294901760
        %3583 = vmatmul.mubr.f32.gmra.mrb[0].mxu0 %v3582
        %v3584 = vpop.f32.mrb[0].mxu0
        %v3585 = vadd.f32 %v3072, %v3584
        %v3586 = vpop.f32.mrb[0].mxu0
        %v3587 = vadd.f32 %v3074, %v3586
        %3588 = vdwg.mxu0
        %v3589 = vand.u32 %v641, 4294901760
        %3590 = vmatprep.subr.mxu0 %v3589
        %v3591 = vand.u32 %v640, 4294901760
        %3592 = vmatpush1.msra.mxu0 %v3591
        %v3593 = vand.u32 %v645, 4294901760
        %3594 = vmatprep.subr.mxu0 %v3593
        %v3595 = vand.u32 %v644, 4294901760
        %3596 = vmatpush1.msra.mxu0 %v3595
        %v3597 = vand.u32 %v649, 4294901760
        %3598 = vmatprep.subr.mxu0 %v3597
        %v3599 = vand.u32 %v648, 4294901760
        %3600 = vmatpush1.msra.mxu0 %v3599
        %v3601 = vand.u32 %v653, 4294901760
        %3602 = vmatprep.subr.mxu0 %v3601
        %v3603 = vand.u32 %v652, 4294901760
        %3604 = vmatpush1.msra.mxu0 %v3603
        %v3605 = vand.u32 %v657, 4294901760
        %3606 = vmatprep.subr.mxu0 %v3605
        %v3607 = vand.u32 %v656, 4294901760
        %3608 = vmatpush1.msra.mxu0 %v3607
        %v3609 = vand.u32 %v661, 4294901760
        %3610 = vmatprep.subr.mxu0 %v3609
        %v3611 = vand.u32 %v660, 4294901760
        %3612 = vmatpush1.msra.mxu0 %v3611
        %v3613 = vand.u32 %v665, 4294901760
        %3614 = vmatprep.subr.mxu0 %v3613
        %v3615 = vand.u32 %v664, 4294901760
        %3616 = vmatpush1.msra.mxu0 %v3615
        %v3617 = vand.u32 %v669, 4294901760
        %3618 = vmatprep.subr.mxu0 %v3617
        %v3619 = vand.u32 %v668, 4294901760
        %3620 = vmatpush1.msra.mxu0 %v3619
        %v3621 = vand.u32 %v673, 4294901760
        %3622 = vmatprep.subr.mxu0 %v3621
        %v3623 = vand.u32 %v672, 4294901760
        %3624 = vmatpush1.msra.mxu0 %v3623
        %v3625 = vand.u32 %v677, 4294901760
        %3626 = vmatprep.subr.mxu0 %v3625
        %v3627 = vand.u32 %v676, 4294901760
        %3628 = vmatpush1.msra.mxu0 %v3627
        %v3629 = vand.u32 %v681, 4294901760
        %3630 = vmatprep.subr.mxu0 %v3629
        %v3631 = vand.u32 %v680, 4294901760
        %3632 = vmatpush1.msra.mxu0 %v3631
        %v3633 = vand.u32 %v685, 4294901760
        %3634 = vmatprep.subr.mxu0 %v3633
        %v3635 = vand.u32 %v684, 4294901760
        %3636 = vmatpush1.msra.mxu0 %v3635
        %v3637 = vand.u32 %v689, 4294901760
        %3638 = vmatprep.subr.mxu0 %v3637
        %v3639 = vand.u32 %v688, 4294901760
        %3640 = vmatpush1.msra.mxu0 %v3639
        %v3641 = vand.u32 %v693, 4294901760
        %3642 = vmatprep.subr.mxu0 %v3641
        %v3643 = vand.u32 %v692, 4294901760
        %3644 = vmatpush1.msra.mxu0 %v3643
        %v3645 = vand.u32 %v697, 4294901760
        %3646 = vmatprep.subr.mxu0 %v3645
        %v3647 = vand.u32 %v696, 4294901760
        %3648 = vmatpush1.msra.mxu0 %v3647
        %v3649 = vand.u32 %v701, 4294901760
        %3650 = vmatprep.subr.mxu0 %v3649
        %v3651 = vand.u32 %v700, 4294901760
        %3652 = vmatpush1.msra.mxu0 %v3651
        %v3653 = vand.u32 %v705, 4294901760
        %3654 = vmatprep.subr.mxu0 %v3653
        %v3655 = vand.u32 %v704, 4294901760
        %3656 = vmatpush1.msra.mxu0 %v3655
        %v3657 = vand.u32 %v709, 4294901760
        %3658 = vmatprep.subr.mxu0 %v3657
        %v3659 = vand.u32 %v708, 4294901760
        %3660 = vmatpush1.msra.mxu0 %v3659
        %v3661 = vand.u32 %v713, 4294901760
        %3662 = vmatprep.subr.mxu0 %v3661
        %v3663 = vand.u32 %v712, 4294901760
        %3664 = vmatpush1.msra.mxu0 %v3663
        %v3665 = vand.u32 %v717, 4294901760
        %3666 = vmatprep.subr.mxu0 %v3665
        %v3667 = vand.u32 %v716, 4294901760
        %3668 = vmatpush1.msra.mxu0 %v3667
        %v3669 = vand.u32 %v721, 4294901760
        %3670 = vmatprep.subr.mxu0 %v3669
        %v3671 = vand.u32 %v720, 4294901760
        %3672 = vmatpush1.msra.mxu0 %v3671
        %v3673 = vand.u32 %v725, 4294901760
        %3674 = vmatprep.subr.mxu0 %v3673
        %v3675 = vand.u32 %v724, 4294901760
        %3676 = vmatpush1.msra.mxu0 %v3675
        %v3677 = vand.u32 %v729, 4294901760
        %3678 = vmatprep.subr.mxu0 %v3677
        %v3679 = vand.u32 %v728, 4294901760
        %3680 = vmatpush1.msra.mxu0 %v3679
        %v3681 = vand.u32 %v733, 4294901760
        %3682 = vmatprep.subr.mxu0 %v3681
        %v3683 = vand.u32 %v732, 4294901760
        %3684 = vmatpush1.msra.mxu0 %v3683
        %v3685 = vand.u32 %v737, 4294901760
        %3686 = vmatprep.subr.mxu0 %v3685
        %v3687 = vand.u32 %v736, 4294901760
        %3688 = vmatpush1.msra.mxu0 %v3687
        %v3689 = vand.u32 %v741, 4294901760
        %3690 = vmatprep.subr.mxu0 %v3689
        %v3691 = vand.u32 %v740, 4294901760
        %3692 = vmatpush1.msra.mxu0 %v3691
        %v3693 = vand.u32 %v745, 4294901760
        %3694 = vmatprep.subr.mxu0 %v3693
        %v3695 = vand.u32 %v744, 4294901760
        %3696 = vmatpush1.msra.mxu0 %v3695
        %v3697 = vand.u32 %v749, 4294901760
        %3698 = vmatprep.subr.mxu0 %v3697
        %v3699 = vand.u32 %v748, 4294901760
        %3700 = vmatpush1.msra.mxu0 %v3699
        %v3701 = vand.u32 %v753, 4294901760
        %3702 = vmatprep.subr.mxu0 %v3701
        %v3703 = vand.u32 %v752, 4294901760
        %3704 = vmatpush1.msra.mxu0 %v3703
        %v3705 = vand.u32 %v757, 4294901760
        %3706 = vmatprep.subr.mxu0 %v3705
        %v3707 = vand.u32 %v756, 4294901760
        %3708 = vmatpush1.msra.mxu0 %v3707
        %v3709 = vand.u32 %v761, 4294901760
        %3710 = vmatprep.subr.mxu0 %v3709
        %v3711 = vand.u32 %v760, 4294901760
        %3712 = vmatpush1.msra.mxu0 %v3711
        %v3713 = vand.u32 %v765, 4294901760
        %3714 = vmatprep.subr.mxu0 %v3713
        %v3715 = vand.u32 %v764, 4294901760
        %3716 = vmatpush1.msra.mxu0 %v3715
        %v3717 = vand.u32 %v577, 4294901760
        %3718 = vmatprep.mubr.f32.mxu0 %v3717
        %v3719 = vand.u32 %v576, 4294901760
        %3720 = vmatmul.mubr.f32.gmra.mrb[0].mxu0 %v3719
        %v3721 = vpop.f32.mrb[0].mxu0
        %v3722 = vadd.f32 %v3337, %v3721
        %v3723 = vpop.f32.mrb[0].mxu0
        %v3724 = vadd.f32 %v3339, %v3723
        %v3725 = vand.u32 %v579, 4294901760
        %3726 = vmatprep.mubr.f32.mxu0 %v3725
        %v3727 = vand.u32 %v578, 4294901760
        %3728 = vmatmul.mubr.f32.gmra.mrb[0].mxu0 %v3727
        %v3729 = vpop.f32.mrb[0].mxu0
        %v3730 = vadd.f32 %v3345, %v3729
        %v3731 = vpop.f32.mrb[0].mxu0
        %v3732 = vadd.f32 %v3347, %v3731
        %v3733 = vand.u32 %v581, 4294901760
        %3734 = vmatprep.mubr.f32.mxu0 %v3733
        %v3735 = vand.u32 %v580, 4294901760
        %3736 = vmatmul.mubr.f32.gmra.mrb[0].mxu0 %v3735
        %v3737 = vpop.f32.mrb[0].mxu0
        %v3738 = vadd.f32 %v3353, %v3737
        %v3739 = vpop.f32.mrb[0].mxu0
        %v3740 = vadd.f32 %v3355, %v3739
        %v3741 = vand.u32 %v583, 4294901760
        %3742 = vmatprep.mubr.f32.mxu0 %v3741
        %v3743 = vand.u32 %v582, 4294901760
        %3744 = vmatmul.mubr.f32.gmra.mrb[0].mxu0 %v3743
        %v3745 = vpop.f32.mrb[0].mxu0
        %v3746 = vadd.f32 %v3361, %v3745
        %v3747 = vpop.f32.mrb[0].mxu0
        %v3748 = vadd.f32 %v3363, %v3747
        %v3749 = vand.u32 %v585, 4294901760
        %3750 = vmatprep.mubr.f32.mxu0 %v3749
        %v3751 = vand.u32 %v584, 4294901760
        %3752 = vmatmul.mubr.f32.gmra.mrb[0].mxu0 %v3751
        %v3753 = vpop.f32.mrb[0].mxu0
        %v3754 = vadd.f32 %v3369, %v3753
        %v3755 = vpop.f32.mrb[0].mxu0
        %v3756 = vadd.f32 %v3371, %v3755
        %v3757 = vand.u32 %v587, 4294901760
        %3758 = vmatprep.mubr.f32.mxu0 %v3757
        %v3759 = vand.u32 %v586, 4294901760
        %3760 = vmatmul.mubr.f32.gmra.mrb[0].mxu0 %v3759
        %v3761 = vpop.f32.mrb[0].mxu0
        %v3762 = vadd.f32 %v3377, %v3761
        %v3763 = vpop.f32.mrb[0].mxu0
        %v3764 = vadd.f32 %v3379, %v3763
        %v3765 = vand.u32 %v589, 4294901760
        %3766 = vmatprep.mubr.f32.mxu0 %v3765
        %v3767 = vand.u32 %v588, 4294901760
        %3768 = vmatmul.mubr.f32.gmra.mrb[0].mxu0 %v3767
        %v3769 = vpop.f32.mrb[0].mxu0
        %v3770 = vadd.f32 %v3385, %v3769
        %v3771 = vpop.f32.mrb[0].mxu0
        %v3772 = vadd.f32 %v3387, %v3771
        %v3773 = vand.u32 %v591, 4294901760
        %3774 = vmatprep.mubr.f32.mxu0 %v3773
        %v3775 = vand.u32 %v590, 4294901760
        %3776 = vmatmul.mubr.f32.gmra.mrb[0].mxu0 %v3775
        %v3777 = vpop.f32.mrb[0].mxu0
        %v3778 = vadd.f32 %v3393, %v3777
        %v3779 = vpop.f32.mrb[0].mxu0
        %v3780 = vadd.f32 %v3395, %v3779
        %v3781 = vand.u32 %v593, 4294901760
        %3782 = vmatprep.mubr.f32.mxu0 %v3781
        %v3783 = vand.u32 %v592, 4294901760
        %3784 = vmatmul.mubr.f32.gmra.mrb[0].mxu0 %v3783
        %v3785 = vpop.f32.mrb[0].mxu0
        %v3786 = vadd.f32 %v3401, %v3785
        %v3787 = vpop.f32.mrb[0].mxu0
        %v3788 = vadd.f32 %v3403, %v3787
        %v3789 = vand.u32 %v595, 4294901760
        %3790 = vmatprep.mubr.f32.mxu0 %v3789
        %v3791 = vand.u32 %v594, 4294901760
        %3792 = vmatmul.mubr.f32.gmra.mrb[0].mxu0 %v3791
        %v3793 = vpop.f32.mrb[0].mxu0
        %v3794 = vadd.f32 %v3409, %v3793
        %v3795 = vpop.f32.mrb[0].mxu0
        %v3796 = vadd.f32 %v3411, %v3795
        %v3797 = vand.u32 %v597, 4294901760
        %3798 = vmatprep.mubr.f32.mxu0 %v3797
        %v3799 = vand.u32 %v596, 4294901760
        %3800 = vmatmul.mubr.f32.gmra.mrb[0].mxu0 %v3799
        %v3801 = vpop.f32.mrb[0].mxu0
        %v3802 = vadd.f32 %v3417, %v3801
        %v3803 = vpop.f32.mrb[0].mxu0
        %v3804 = vadd.f32 %v3419, %v3803
        %v3805 = vand.u32 %v599, 4294901760
        %3806 = vmatprep.mubr.f32.mxu0 %v3805
        %v3807 = vand.u32 %v598, 4294901760
        %3808 = vmatmul.mubr.f32.gmra.mrb[0].mxu0 %v3807
        %v3809 = vpop.f32.mrb[0].mxu0
        %v3810 = vadd.f32 %v3425, %v3809
        %v3811 = vpop.f32.mrb[0].mxu0
        %v3812 = vadd.f32 %v3427, %v3811
        %v3813 = vand.u32 %v601, 4294901760
        %3814 = vmatprep.mubr.f32.mxu0 %v3813
        %v3815 = vand.u32 %v600, 4294901760
        %3816 = vmatmul.mubr.f32.gmra.mrb[0].mxu0 %v3815
        %v3817 = vpop.f32.mrb[0].mxu0
        %v3818 = vadd.f32 %v3433, %v3817
        %v3819 = vpop.f32.mrb[0].mxu0
        %v3820 = vadd.f32 %v3435, %v3819
        %v3821 = vand.u32 %v603, 4294901760
        %3822 = vmatprep.mubr.f32.mxu0 %v3821
        %v3823 = vand.u32 %v602, 4294901760
        %3824 = vmatmul.mubr.f32.gmra.mrb[0].mxu0 %v3823
        %v3825 = vpop.f32.mrb[0].mxu0
        %v3826 = vadd.f32 %v3441, %v3825
        %v3827 = vpop.f32.mrb[0].mxu0
        %v3828 = vadd.f32 %v3443, %v3827
        %v3829 = vand.u32 %v605, 4294901760
        %3830 = vmatprep.mubr.f32.mxu0 %v3829
        %v3831 = vand.u32 %v604, 4294901760
        %3832 = vmatmul.mubr.f32.gmra.mrb[0].mxu0 %v3831
        %v3833 = vpop.f32.mrb[0].mxu0
        %v3834 = vadd.f32 %v3449, %v3833
        %v3835 = vpop.f32.mrb[0].mxu0
        %v3836 = vadd.f32 %v3451, %v3835
        %v3837 = vand.u32 %v607, 4294901760
        %3838 = vmatprep.mubr.f32.mxu0 %v3837
        %v3839 = vand.u32 %v606, 4294901760
        %3840 = vmatmul.mubr.f32.gmra.mrb[0].mxu0 %v3839
        %v3841 = vpop.f32.mrb[0].mxu0
        %v3842 = vadd.f32 %v3457, %v3841
        %v3843 = vpop.f32.mrb[0].mxu0
        %v3844 = vadd.f32 %v3459, %v3843
        %v3845 = vand.u32 %v609, 4294901760
        %3846 = vmatprep.mubr.f32.mxu0 %v3845
        %v3847 = vand.u32 %v608, 4294901760
        %3848 = vmatmul.mubr.f32.gmra.mrb[0].mxu0 %v3847
        %v3849 = vpop.f32.mrb[0].mxu0
        %v3850 = vadd.f32 %v3465, %v3849
        %v3851 = vpop.f32.mrb[0].mxu0
        %v3852 = vadd.f32 %v3467, %v3851
        %v3853 = vand.u32 %v611, 4294901760
        %3854 = vmatprep.mubr.f32.mxu0 %v3853
        %v3855 = vand.u32 %v610, 4294901760
        %3856 = vmatmul.mubr.f32.gmra.mrb[0].mxu0 %v3855
        %v3857 = vpop.f32.mrb[0].mxu0
        %v3858 = vadd.f32 %v3473, %v3857
        %v3859 = vpop.f32.mrb[0].mxu0
        %v3860 = vadd.f32 %v3475, %v3859
        %v3861 = vand.u32 %v613, 4294901760
        %3862 = vmatprep.mubr.f32.mxu0 %v3861
        %v3863 = vand.u32 %v612, 4294901760
        %3864 = vmatmul.mubr.f32.gmra.mrb[0].mxu0 %v3863
        %v3865 = vpop.f32.mrb[0].mxu0
        %v3866 = vadd.f32 %v3481, %v3865
        %v3867 = vpop.f32.mrb[0].mxu0
        %v3868 = vadd.f32 %v3483, %v3867
        %v3869 = vand.u32 %v615, 4294901760
        %3870 = vmatprep.mubr.f32.mxu0 %v3869
        %v3871 = vand.u32 %v614, 4294901760
        %3872 = vmatmul.mubr.f32.gmra.mrb[0].mxu0 %v3871
        %v3873 = vpop.f32.mrb[0].mxu0
        %v3874 = vadd.f32 %v3489, %v3873
        %v3875 = vpop.f32.mrb[0].mxu0
        %v3876 = vadd.f32 %v3491, %v3875
        %v3877 = vand.u32 %v617, 4294901760
        %3878 = vmatprep.mubr.f32.mxu0 %v3877
        %v3879 = vand.u32 %v616, 4294901760
        %3880 = vmatmul.mubr.f32.gmra.mrb[0].mxu0 %v3879
        %v3881 = vpop.f32.mrb[0].mxu0
        %v3882 = vadd.f32 %v3497, %v3881
        %v3883 = vpop.f32.mrb[0].mxu0
        %v3884 = vadd.f32 %v3499, %v3883
        %v3885 = vand.u32 %v619, 4294901760
        %3886 = vmatprep.mubr.f32.mxu0 %v3885
        %v3887 = vand.u32 %v618, 4294901760
        %3888 = vmatmul.mubr.f32.gmra.mrb[0].mxu0 %v3887
        %v3889 = vpop.f32.mrb[0].mxu0
        %v3890 = vadd.f32 %v3505, %v3889
        %v3891 = vpop.f32.mrb[0].mxu0
        %v3892 = vadd.f32 %v3507, %v3891
        %v3893 = vand.u32 %v621, 4294901760
        %3894 = vmatprep.mubr.f32.mxu0 %v3893
        %v3895 = vand.u32 %v620, 4294901760
        %3896 = vmatmul.mubr.f32.gmra.mrb[0].mxu0 %v3895
        %v3897 = vpop.f32.mrb[0].mxu0
        %v3898 = vadd.f32 %v3513, %v3897
        %v3899 = vpop.f32.mrb[0].mxu0
        %v3900 = vadd.f32 %v3515, %v3899
        %v3901 = vand.u32 %v623, 4294901760
        %3902 = vmatprep.mubr.f32.mxu0 %v3901
        %v3903 = vand.u32 %v622, 4294901760
        %3904 = vmatmul.mubr.f32.gmra.mrb[0].mxu0 %v3903
        %v3905 = vpop.f32.mrb[0].mxu0
        %v3906 = vadd.f32 %v3521, %v3905
        %v3907 = vpop.f32.mrb[0].mxu0
        %v3908 = vadd.f32 %v3523, %v3907
        %v3909 = vand.u32 %v625, 4294901760
        %3910 = vmatprep.mubr.f32.mxu0 %v3909
        %v3911 = vand.u32 %v624, 4294901760
        %3912 = vmatmul.mubr.f32.gmra.mrb[0].mxu0 %v3911
        %v3913 = vpop.f32.mrb[0].mxu0
        %v3914 = vadd.f32 %v3529, %v3913
        %v3915 = vpop.f32.mrb[0].mxu0
        %v3916 = vadd.f32 %v3531, %v3915
        %v3917 = vand.u32 %v627, 4294901760
        %3918 = vmatprep.mubr.f32.mxu0 %v3917
        %v3919 = vand.u32 %v626, 4294901760
        %3920 = vmatmul.mubr.f32.gmra.mrb[0].mxu0 %v3919
        %v3921 = vpop.f32.mrb[0].mxu0
        %v3922 = vadd.f32 %v3537, %v3921
        %v3923 = vpop.f32.mrb[0].mxu0
        %v3924 = vadd.f32 %v3539, %v3923
        %v3925 = vand.u32 %v629, 4294901760
        %3926 = vmatprep.mubr.f32.mxu0 %v3925
        %v3927 = vand.u32 %v628, 4294901760
        %3928 = vmatmul.mubr.f32.gmra.mrb[0].mxu0 %v3927
        %v3929 = vpop.f32.mrb[0].mxu0
        %v3930 = vadd.f32 %v3545, %v3929
        %v3931 = vpop.f32.mrb[0].mxu0
        %v3932 = vadd.f32 %v3547, %v3931
        %v3933 = vand.u32 %v631, 4294901760
        %3934 = vmatprep.mubr.f32.mxu0 %v3933
        %v3935 = vand.u32 %v630, 4294901760
        %3936 = vmatmul.mubr.f32.gmra.mrb[0].mxu0 %v3935
        %v3937 = vpop.f32.mrb[0].mxu0
        %v3938 = vadd.f32 %v3553, %v3937
        %v3939 = vpop.f32.mrb[0].mxu0
        %v3940 = vadd.f32 %v3555, %v3939
        %v3941 = vand.u32 %v633, 4294901760
        %3942 = vmatprep.mubr.f32.mxu0 %v3941
        %v3943 = vand.u32 %v632, 4294901760
        %3944 = vmatmul.mubr.f32.gmra.mrb[0].mxu0 %v3943
        %v3945 = vpop.f32.mrb[0].mxu0
        %v3946 = vadd.f32 %v3561, %v3945
        %v3947 = vpop.f32.mrb[0].mxu0
        %v3948 = vadd.f32 %v3563, %v3947
        %v3949 = vand.u32 %v635, 4294901760
        %3950 = vmatprep.mubr.f32.mxu0 %v3949
        %v3951 = vand.u32 %v634, 4294901760
        %3952 = vmatmul.mubr.f32.gmra.mrb[0].mxu0 %v3951
        %v3953 = vpop.f32.mrb[0].mxu0
        %v3954 = vadd.f32 %v3569, %v3953
        %v3955 = vpop.f32.mrb[0].mxu0
        %v3956 = vadd.f32 %v3571, %v3955
        %v3957 = vand.u32 %v637, 4294901760
        %3958 = vmatprep.mubr.f32.mxu0 %v3957
        %v3959 = vand.u32 %v636, 4294901760
        %3960 = vmatmul.mubr.f32.gmra.mrb[0].mxu0 %v3959
        %v3961 = vpop.f32.mrb[0].mxu0
        %v3962 = vadd.f32 %v3577, %v3961
        %v3963 = vpop.f32.mrb[0].mxu0
        %v3964 = vadd.f32 %v3579, %v3963
        %v3965 = vand.u32 %v639, 4294901760
        %3966 = vmatprep.mubr.f32.mxu0 %v3965
        %v3967 = vand.u32 %v638, 4294901760
        %3968 = vmatmul.mubr.f32.gmra.mrb[0].mxu0 %v3967
        %v3969 = vpop.f32.mrb[0].mxu0
        %v3970 = vadd.f32 %v3585, %v3969
        %v3971 = vpop.f32.mrb[0].mxu0
        %v3972 = vadd.f32 %v3587, %v3971
        %3973 = vdwg.mxu0
        %v3974 = vand.u32 %v643, 4294901760
        %3975 = vmatprep.subr.mxu0 %v3974
        %v3976 = vand.u32 %v642, 4294901760
        %3977 = vmatpush1.msra.mxu0 %v3976
        %v3978 = vand.u32 %v647, 4294901760
        %3979 = vmatprep.subr.mxu0 %v3978
        %v3980 = vand.u32 %v646, 4294901760
        %3981 = vmatpush1.msra.mxu0 %v3980
        %v3982 = vand.u32 %v651, 4294901760
        %3983 = vmatprep.subr.mxu0 %v3982
        %v3984 = vand.u32 %v650, 4294901760
        %3985 = vmatpush1.msra.mxu0 %v3984
        %v3986 = vand.u32 %v655, 4294901760
        %3987 = vmatprep.subr.mxu0 %v3986
        %v3988 = vand.u32 %v654, 4294901760
        %3989 = vmatpush1.msra.mxu0 %v3988
        %v3990 = vand.u32 %v659, 4294901760
        %3991 = vmatprep.subr.mxu0 %v3990
        %v3992 = vand.u32 %v658, 4294901760
        %3993 = vmatpush1.msra.mxu0 %v3992
        %v3994 = vand.u32 %v663, 4294901760
        %3995 = vmatprep.subr.mxu0 %v3994
        %v3996 = vand.u32 %v662, 4294901760
        %3997 = vmatpush1.msra.mxu0 %v3996
        %v3998 = vand.u32 %v667, 4294901760
        %3999 = vmatprep.subr.mxu0 %v3998
        %v4000 = vand.u32 %v666, 4294901760
        %4001 = vmatpush1.msra.mxu0 %v4000
        %v4002 = vand.u32 %v671, 4294901760
        %4003 = vmatprep.subr.mxu0 %v4002
        %v4004 = vand.u32 %v670, 4294901760
        %4005 = vmatpush1.msra.mxu0 %v4004
        %v4006 = vand.u32 %v675, 4294901760
        %4007 = vmatprep.subr.mxu0 %v4006
        %v4008 = vand.u32 %v674, 4294901760
        %4009 = vmatpush1.msra.mxu0 %v4008
        %v4010 = vand.u32 %v679, 4294901760
        %4011 = vmatprep.subr.mxu0 %v4010
        %v4012 = vand.u32 %v678, 4294901760
        %4013 = vmatpush1.msra.mxu0 %v4012
        %v4014 = vand.u32 %v683, 4294901760
        %4015 = vmatprep.subr.mxu0 %v4014
        %v4016 = vand.u32 %v682, 4294901760
        %4017 = vmatpush1.msra.mxu0 %v4016
        %v4018 = vand.u32 %v687, 4294901760
        %4019 = vmatprep.subr.mxu0 %v4018
        %v4020 = vand.u32 %v686, 4294901760
        %4021 = vmatpush1.msra.mxu0 %v4020
        %v4022 = vand.u32 %v691, 4294901760
        %4023 = vmatprep.subr.mxu0 %v4022
        %v4024 = vand.u32 %v690, 4294901760
        %4025 = vmatpush1.msra.mxu0 %v4024
        %v4026 = vand.u32 %v695, 4294901760
        %4027 = vmatprep.subr.mxu0 %v4026
        %v4028 = vand.u32 %v694, 4294901760
        %4029 = vmatpush1.msra.mxu0 %v4028
        %v4030 = vand.u32 %v699, 4294901760
        %4031 = vmatprep.subr.mxu0 %v4030
        %v4032 = vand.u32 %v698, 4294901760
        %4033 = vmatpush1.msra.mxu0 %v4032
        %v4034 = vand.u32 %v703, 4294901760
        %4035 = vmatprep.subr.mxu0 %v4034
        %v4036 = vand.u32 %v702, 4294901760
        %4037 = vmatpush1.msra.mxu0 %v4036
        %v4038 = vand.u32 %v707, 4294901760
        %4039 = vmatprep.subr.mxu0 %v4038
        %v4040 = vand.u32 %v706, 4294901760
        %4041 = vmatpush1.msra.mxu0 %v4040
        %v4042 = vand.u32 %v711, 4294901760
        %4043 = vmatprep.subr.mxu0 %v4042
        %v4044 = vand.u32 %v710, 4294901760
        %4045 = vmatpush1.msra.mxu0 %v4044
        %v4046 = vand.u32 %v715, 4294901760
        %4047 = vmatprep.subr.mxu0 %v4046
        %v4048 = vand.u32 %v714, 4294901760
        %4049 = vmatpush1.msra.mxu0 %v4048
        %v4050 = vand.u32 %v719, 4294901760
        %4051 = vmatprep.subr.mxu0 %v4050
        %v4052 = vand.u32 %v718, 4294901760
        %4053 = vmatpush1.msra.mxu0 %v4052
        %v4054 = vand.u32 %v723, 4294901760
        %4055 = vmatprep.subr.mxu0 %v4054
        %v4056 = vand.u32 %v722, 4294901760
        %4057 = vmatpush1.msra.mxu0 %v4056
        %v4058 = vand.u32 %v727, 4294901760
        %4059 = vmatprep.subr.mxu0 %v4058
        %v4060 = vand.u32 %v726, 4294901760
        %4061 = vmatpush1.msra.mxu0 %v4060
        %v4062 = vand.u32 %v731, 4294901760
        %4063 = vmatprep.subr.mxu0 %v4062
        %v4064 = vand.u32 %v730, 4294901760
        %4065 = vmatpush1.msra.mxu0 %v4064
        %v4066 = vand.u32 %v735, 4294901760
        %4067 = vmatprep.subr.mxu0 %v4066
        %v4068 = vand.u32 %v734, 4294901760
        %4069 = vmatpush1.msra.mxu0 %v4068
        %v4070 = vand.u32 %v739, 4294901760
        %4071 = vmatprep.subr.mxu0 %v4070
        %v4072 = vand.u32 %v738, 4294901760
        %4073 = vmatpush1.msra.mxu0 %v4072
        %v4074 = vand.u32 %v743, 4294901760
        %4075 = vmatprep.subr.mxu0 %v4074
        %v4076 = vand.u32 %v742, 4294901760
        %4077 = vmatpush1.msra.mxu0 %v4076
        %v4078 = vand.u32 %v747, 4294901760
        %4079 = vmatprep.subr.mxu0 %v4078
        %v4080 = vand.u32 %v746, 4294901760
        %4081 = vmatpush1.msra.mxu0 %v4080
        %v4082 = vand.u32 %v751, 4294901760
        %4083 = vmatprep.subr.mxu0 %v4082
        %v4084 = vand.u32 %v750, 4294901760
        %4085 = vmatpush1.msra.mxu0 %v4084
        %v4086 = vand.u32 %v755, 4294901760
        %4087 = vmatprep.subr.mxu0 %v4086
        %v4088 = vand.u32 %v754, 4294901760
        %4089 = vmatpush1.msra.mxu0 %v4088
        %v4090 = vand.u32 %v759, 4294901760
        %4091 = vmatprep.subr.mxu0 %v4090
        %v4092 = vand.u32 %v758, 4294901760
        %4093 = vmatpush1.msra.mxu0 %v4092
        %v4094 = vand.u32 %v763, 4294901760
        %4095 = vmatprep.subr.mxu0 %v4094
        %v4096 = vand.u32 %v762, 4294901760
        %4097 = vmatpush1.msra.mxu0 %v4096
        %v4098 = vand.u32 %v767, 4294901760
        %4099 = vmatprep.subr.mxu0 %v4098
        %v4100 = vand.u32 %v766, 4294901760
        %4101 = vmatpush1.msra.mxu0 %v4100
        %v4102 = vand.u32 %v577, 4294901760
        %v4103 = vsub.f32 %v577, %v4102
        %v4104 = vand.u32 %v4103, 4294901760
        %v4105 = vsub.f32 %v4103, %v4104
        %v4106 = vand.u32 %v4105, 4294901760
        %4107 = vmatprep.mubr.f32.mxu0 %v4106
        %v4108 = vand.u32 %v576, 4294901760
        %v4109 = vsub.f32 %v576, %v4108
        %v4110 = vand.u32 %v4109, 4294901760
        %v4111 = vsub.f32 %v4109, %v4110
        %v4112 = vand.u32 %v4111, 4294901760
        %4113 = vmatmul.mubr.f32.gmra.mrb[0].mxu0 %v4112
        %v4114 = vpop.f32.mrb[0].mxu0
        %v4115 = vadd.f32 0.0, %v4114
        %v4116 = vpop.f32.mrb[0].mxu0
        %v4117 = vadd.f32 0.0, %v4116
        %v4118 = vand.u32 %v579, 4294901760
        %v4119 = vsub.f32 %v579, %v4118
        %v4120 = vand.u32 %v4119, 4294901760
        %v4121 = vsub.f32 %v4119, %v4120
        %v4122 = vand.u32 %v4121, 4294901760
        %4123 = vmatprep.mubr.f32.mxu0 %v4122
        %v4124 = vand.u32 %v578, 4294901760
        %v4125 = vsub.f32 %v578, %v4124
        %v4126 = vand.u32 %v4125, 4294901760
        %v4127 = vsub.f32 %v4125, %v4126
        %v4128 = vand.u32 %v4127, 4294901760
        %4129 = vmatmul.mubr.f32.gmra.mrb[0].mxu0 %v4128
        %v4130 = vpop.f32.mrb[0].mxu0
        %v4131 = vadd.f32 0.0, %v4130
        %v4132 = vpop.f32.mrb[0].mxu0
        %v4133 = vadd.f32 0.0, %v4132
        %v4134 = vand.u32 %v581, 4294901760
        %v4135 = vsub.f32 %v581, %v4134
        %v4136 = vand.u32 %v4135, 4294901760
        %v4137 = vsub.f32 %v4135, %v4136
        %v4138 = vand.u32 %v4137, 4294901760
        %4139 = vmatprep.mubr.f32.mxu0 %v4138
        %v4140 = vand.u32 %v580, 4294901760
        %v4141 = vsub.f32 %v580, %v4140
        %v4142 = vand.u32 %v4141, 4294901760
        %v4143 = vsub.f32 %v4141, %v4142
        %v4144 = vand.u32 %v4143, 4294901760
        %4145 = vmatmul.mubr.f32.gmra.mrb[0].mxu0 %v4144
        %v4146 = vpop.f32.mrb[0].mxu0
        %v4147 = vadd.f32 0.0, %v4146
        %v4148 = vpop.f32.mrb[0].mxu0
        %v4149 = vadd.f32 0.0, %v4148
        %v4150 = vand.u32 %v583, 4294901760
        %v4151 = vsub.f32 %v583, %v4150
        %v4152 = vand.u32 %v4151, 4294901760
        %v4153 = vsub.f32 %v4151, %v4152
        %v4154 = vand.u32 %v4153, 4294901760
        %4155 = vmatprep.mubr.f32.mxu0 %v4154
        %v4156 = vand.u32 %v582, 4294901760
        %v4157 = vsub.f32 %v582, %v4156
        %v4158 = vand.u32 %v4157, 4294901760
        %v4159 = vsub.f32 %v4157, %v4158
        %v4160 = vand.u32 %v4159, 4294901760
        %4161 = vmatmul.mubr.f32.gmra.mrb[0].mxu0 %v4160
        %v4162 = vpop.f32.mrb[0].mxu0
        %v4163 = vadd.f32 0.0, %v4162
        %v4164 = vpop.f32.mrb[0].mxu0
        %v4165 = vadd.f32 0.0, %v4164
        %v4166 = vand.u32 %v585, 4294901760
        %v4167 = vsub.f32 %v585, %v4166
        %v4168 = vand.u32 %v4167, 4294901760
        %v4169 = vsub.f32 %v4167, %v4168
        %v4170 = vand.u32 %v4169, 4294901760
        %4171 = vmatprep.mubr.f32.mxu0 %v4170
        %v4172 = vand.u32 %v584, 4294901760
        %v4173 = vsub.f32 %v584, %v4172
        %v4174 = vand.u32 %v4173, 4294901760
        %v4175 = vsub.f32 %v4173, %v4174
        %v4176 = vand.u32 %v4175, 4294901760
        %4177 = vmatmul.mubr.f32.gmra.mrb[0].mxu0 %v4176
        %v4178 = vpop.f32.mrb[0].mxu0
        %v4179 = vadd.f32 0.0, %v4178
        %v4180 = vpop.f32.mrb[0].mxu0
        %v4181 = vadd.f32 0.0, %v4180
        %v4182 = vand.u32 %v587, 4294901760
        %v4183 = vsub.f32 %v587, %v4182
        %v4184 = vand.u32 %v4183, 4294901760
        %v4185 = vsub.f32 %v4183, %v4184
        %v4186 = vand.u32 %v4185, 4294901760
        %4187 = vmatprep.mubr.f32.mxu0 %v4186
        %v4188 = vand.u32 %v586, 4294901760
        %v4189 = vsub.f32 %v586, %v4188
        %v4190 = vand.u32 %v4189, 4294901760
        %v4191 = vsub.f32 %v4189, %v4190
        %v4192 = vand.u32 %v4191, 4294901760
        %4193 = vmatmul.mubr.f32.gmra.mrb[0].mxu0 %v4192
        %v4194 = vpop.f32.mrb[0].mxu0
        %v4195 = vadd.f32 0.0, %v4194
        %v4196 = vpop.f32.mrb[0].mxu0
        %v4197 = vadd.f32 0.0, %v4196
        %v4198 = vand.u32 %v589, 4294901760
        %v4199 = vsub.f32 %v589, %v4198
        %v4200 = vand.u32 %v4199, 4294901760
        %v4201 = vsub.f32 %v4199, %v4200
        %v4202 = vand.u32 %v4201, 4294901760
        %4203 = vmatprep.mubr.f32.mxu0 %v4202
        %v4204 = vand.u32 %v588, 4294901760
        %v4205 = vsub.f32 %v588, %v4204
        %v4206 = vand.u32 %v4205, 4294901760
        %v4207 = vsub.f32 %v4205, %v4206
        %v4208 = vand.u32 %v4207, 4294901760
        %4209 = vmatmul.mubr.f32.gmra.mrb[0].mxu0 %v4208
        %v4210 = vpop.f32.mrb[0].mxu0
        %v4211 = vadd.f32 0.0, %v4210
        %v4212 = vpop.f32.mrb[0].mxu0
        %v4213 = vadd.f32 0.0, %v4212
        %v4214 = vand.u32 %v591, 4294901760
        %v4215 = vsub.f32 %v591, %v4214
        %v4216 = vand.u32 %v4215, 4294901760
        %v4217 = vsub.f32 %v4215, %v4216
        %v4218 = vand.u32 %v4217, 4294901760
        %4219 = vmatprep.mubr.f32.mxu0 %v4218
        %v4220 = vand.u32 %v590, 4294901760
        %v4221 = vsub.f32 %v590, %v4220
        %v4222 = vand.u32 %v4221, 4294901760
        %v4223 = vsub.f32 %v4221, %v4222
        %v4224 = vand.u32 %v4223, 4294901760
        %4225 = vmatmul.mubr.f32.gmra.mrb[0].mxu0 %v4224
        %v4226 = vpop.f32.mrb[0].mxu0
        %v4227 = vadd.f32 0.0, %v4226
        %v4228 = vpop.f32.mrb[0].mxu0
        %v4229 = vadd.f32 0.0, %v4228
        %v4230 = vand.u32 %v593, 4294901760
        %v4231 = vsub.f32 %v593, %v4230
        %v4232 = vand.u32 %v4231, 4294901760
        %v4233 = vsub.f32 %v4231, %v4232
        %v4234 = vand.u32 %v4233, 4294901760
        %4235 = vmatprep.mubr.f32.mxu0 %v4234
        %v4236 = vand.u32 %v592, 4294901760
        %v4237 = vsub.f32 %v592, %v4236
        %v4238 = vand.u32 %v4237, 4294901760
        %v4239 = vsub.f32 %v4237, %v4238
        %v4240 = vand.u32 %v4239, 4294901760
        %4241 = vmatmul.mubr.f32.gmra.mrb[0].mxu0 %v4240
        %v4242 = vpop.f32.mrb[0].mxu0
        %v4243 = vadd.f32 0.0, %v4242
        %v4244 = vpop.f32.mrb[0].mxu0
        %v4245 = vadd.f32 0.0, %v4244
        %v4246 = vand.u32 %v595, 4294901760
        %v4247 = vsub.f32 %v595, %v4246
        %v4248 = vand.u32 %v4247, 4294901760
        %v4249 = vsub.f32 %v4247, %v4248
        %v4250 = vand.u32 %v4249, 4294901760
        %4251 = vmatprep.mubr.f32.mxu0 %v4250
        %v4252 = vand.u32 %v594, 4294901760
        %v4253 = vsub.f32 %v594, %v4252
        %v4254 = vand.u32 %v4253, 4294901760
        %v4255 = vsub.f32 %v4253, %v4254
        %v4256 = vand.u32 %v4255, 4294901760
        %4257 = vmatmul.mubr.f32.gmra.mrb[0].mxu0 %v4256
        %v4258 = vpop.f32.mrb[0].mxu0
        %v4259 = vadd.f32 0.0, %v4258
        %v4260 = vpop.f32.mrb[0].mxu0
        %v4261 = vadd.f32 0.0, %v4260
        %v4262 = vand.u32 %v597, 4294901760
        %v4263 = vsub.f32 %v597, %v4262
        %v4264 = vand.u32 %v4263, 4294901760
        %v4265 = vsub.f32 %v4263, %v4264
        %v4266 = vand.u32 %v4265, 4294901760
        %4267 = vmatprep.mubr.f32.mxu0 %v4266
        %v4268 = vand.u32 %v596, 4294901760
        %v4269 = vsub.f32 %v596, %v4268
        %v4270 = vand.u32 %v4269, 4294901760
        %v4271 = vsub.f32 %v4269, %v4270
        %v4272 = vand.u32 %v4271, 4294901760
        %4273 = vmatmul.mubr.f32.gmra.mrb[0].mxu0 %v4272
        %v4274 = vpop.f32.mrb[0].mxu0
        %v4275 = vadd.f32 0.0, %v4274
        %v4276 = vpop.f32.mrb[0].mxu0
        %v4277 = vadd.f32 0.0, %v4276
        %v4278 = vand.u32 %v599, 4294901760
        %v4279 = vsub.f32 %v599, %v4278
        %v4280 = vand.u32 %v4279, 4294901760
        %v4281 = vsub.f32 %v4279, %v4280
        %v4282 = vand.u32 %v4281, 4294901760
        %4283 = vmatprep.mubr.f32.mxu0 %v4282
        %v4284 = vand.u32 %v598, 4294901760
        %v4285 = vsub.f32 %v598, %v4284
        %v4286 = vand.u32 %v4285, 4294901760
        %v4287 = vsub.f32 %v4285, %v4286
        %v4288 = vand.u32 %v4287, 4294901760
        %4289 = vmatmul.mubr.f32.gmra.mrb[0].mxu0 %v4288
        %v4290 = vpop.f32.mrb[0].mxu0
        %v4291 = vadd.f32 0.0, %v4290
        %v4292 = vpop.f32.mrb[0].mxu0
        %v4293 = vadd.f32 0.0, %v4292
        %v4294 = vand.u32 %v601, 4294901760
        %v4295 = vsub.f32 %v601, %v4294
        %v4296 = vand.u32 %v4295, 4294901760
        %v4297 = vsub.f32 %v4295, %v4296
        %v4298 = vand.u32 %v4297, 4294901760
        %4299 = vmatprep.mubr.f32.mxu0 %v4298
        %v4300 = vand.u32 %v600, 4294901760
        %v4301 = vsub.f32 %v600, %v4300
        %v4302 = vand.u32 %v4301, 4294901760
        %v4303 = vsub.f32 %v4301, %v4302
        %v4304 = vand.u32 %v4303, 4294901760
        %4305 = vmatmul.mubr.f32.gmra.mrb[0].mxu0 %v4304
        %v4306 = vpop.f32.mrb[0].mxu0
        %v4307 = vadd.f32 0.0, %v4306
        %v4308 = vpop.f32.mrb[0].mxu0
        %v4309 = vadd.f32 0.0, %v4308
        %v4310 = vand.u32 %v603, 4294901760
        %v4311 = vsub.f32 %v603, %v4310
        %v4312 = vand.u32 %v4311, 4294901760
        %v4313 = vsub.f32 %v4311, %v4312
        %v4314 = vand.u32 %v4313, 4294901760
        %4315 = vmatprep.mubr.f32.mxu0 %v4314
        %v4316 = vand.u32 %v602, 4294901760
        %v4317 = vsub.f32 %v602, %v4316
        %v4318 = vand.u32 %v4317, 4294901760
        %v4319 = vsub.f32 %v4317, %v4318
        %v4320 = vand.u32 %v4319, 4294901760
        %4321 = vmatmul.mubr.f32.gmra.mrb[0].mxu0 %v4320
        %v4322 = vpop.f32.mrb[0].mxu0
        %v4323 = vadd.f32 0.0, %v4322
        %v4324 = vpop.f32.mrb[0].mxu0
        %v4325 = vadd.f32 0.0, %v4324
        %v4326 = vand.u32 %v605, 4294901760
        %v4327 = vsub.f32 %v605, %v4326
        %v4328 = vand.u32 %v4327, 4294901760
        %v4329 = vsub.f32 %v4327, %v4328
        %v4330 = vand.u32 %v4329, 4294901760
        %4331 = vmatprep.mubr.f32.mxu0 %v4330
        %v4332 = vand.u32 %v604, 4294901760
        %v4333 = vsub.f32 %v604, %v4332
        %v4334 = vand.u32 %v4333, 4294901760
        %v4335 = vsub.f32 %v4333, %v4334
        %v4336 = vand.u32 %v4335, 4294901760
        %4337 = vmatmul.mubr.f32.gmra.mrb[0].mxu0 %v4336
        %v4338 = vpop.f32.mrb[0].mxu0
        %v4339 = vadd.f32 0.0, %v4338
        %v4340 = vpop.f32.mrb[0].mxu0
        %v4341 = vadd.f32 0.0, %v4340
        %v4342 = vand.u32 %v607, 4294901760
        %v4343 = vsub.f32 %v607, %v4342
        %v4344 = vand.u32 %v4343, 4294901760
        %v4345 = vsub.f32 %v4343, %v4344
        %v4346 = vand.u32 %v4345, 4294901760
        %4347 = vmatprep.mubr.f32.mxu0 %v4346
        %v4348 = vand.u32 %v606, 4294901760
        %v4349 = vsub.f32 %v606, %v4348
        %v4350 = vand.u32 %v4349, 4294901760
        %v4351 = vsub.f32 %v4349, %v4350
        %v4352 = vand.u32 %v4351, 4294901760
        %4353 = vmatmul.mubr.f32.gmra.mrb[0].mxu0 %v4352
        %v4354 = vpop.f32.mrb[0].mxu0
        %v4355 = vadd.f32 0.0, %v4354
        %v4356 = vpop.f32.mrb[0].mxu0
        %v4357 = vadd.f32 0.0, %v4356
        %v4358 = vand.u32 %v609, 4294901760
        %v4359 = vsub.f32 %v609, %v4358
        %v4360 = vand.u32 %v4359, 4294901760
        %v4361 = vsub.f32 %v4359, %v4360
        %v4362 = vand.u32 %v4361, 4294901760
        %4363 = vmatprep.mubr.f32.mxu0 %v4362
        %v4364 = vand.u32 %v608, 4294901760
        %v4365 = vsub.f32 %v608, %v4364
        %v4366 = vand.u32 %v4365, 4294901760
        %v4367 = vsub.f32 %v4365, %v4366
        %v4368 = vand.u32 %v4367, 4294901760
        %4369 = vmatmul.mubr.f32.gmra.mrb[0].mxu0 %v4368
        %v4370 = vpop.f32.mrb[0].mxu0
        %v4371 = vadd.f32 0.0, %v4370
        %v4372 = vpop.f32.mrb[0].mxu0
        %v4373 = vadd.f32 0.0, %v4372
        %v4374 = vand.u32 %v611, 4294901760
        %v4375 = vsub.f32 %v611, %v4374
        %v4376 = vand.u32 %v4375, 4294901760
        %v4377 = vsub.f32 %v4375, %v4376
        %v4378 = vand.u32 %v4377, 4294901760
        %4379 = vmatprep.mubr.f32.mxu0 %v4378
        %v4380 = vand.u32 %v610, 4294901760
        %v4381 = vsub.f32 %v610, %v4380
        %v4382 = vand.u32 %v4381, 4294901760
        %v4383 = vsub.f32 %v4381, %v4382
        %v4384 = vand.u32 %v4383, 4294901760
        %4385 = vmatmul.mubr.f32.gmra.mrb[0].mxu0 %v4384
        %v4386 = vpop.f32.mrb[0].mxu0
        %v4387 = vadd.f32 0.0, %v4386
        %v4388 = vpop.f32.mrb[0].mxu0
        %v4389 = vadd.f32 0.0, %v4388
        %v4390 = vand.u32 %v613, 4294901760
        %v4391 = vsub.f32 %v613, %v4390
        %v4392 = vand.u32 %v4391, 4294901760
        %v4393 = vsub.f32 %v4391, %v4392
        %v4394 = vand.u32 %v4393, 4294901760
        %4395 = vmatprep.mubr.f32.mxu0 %v4394
        %v4396 = vand.u32 %v612, 4294901760
        %v4397 = vsub.f32 %v612, %v4396
        %v4398 = vand.u32 %v4397, 4294901760
        %v4399 = vsub.f32 %v4397, %v4398
        %v4400 = vand.u32 %v4399, 4294901760
        %4401 = vmatmul.mubr.f32.gmra.mrb[0].mxu0 %v4400
        %v4402 = vpop.f32.mrb[0].mxu0
        %v4403 = vadd.f32 0.0, %v4402
        %v4404 = vpop.f32.mrb[0].mxu0
        %v4405 = vadd.f32 0.0, %v4404
        %v4406 = vand.u32 %v615, 4294901760
        %v4407 = vsub.f32 %v615, %v4406
        %v4408 = vand.u32 %v4407, 4294901760
        %v4409 = vsub.f32 %v4407, %v4408
        %v4410 = vand.u32 %v4409, 4294901760
        %4411 = vmatprep.mubr.f32.mxu0 %v4410
        %v4412 = vand.u32 %v614, 4294901760
        %v4413 = vsub.f32 %v614, %v4412
        %v4414 = vand.u32 %v4413, 4294901760
        %v4415 = vsub.f32 %v4413, %v4414
        %v4416 = vand.u32 %v4415, 4294901760
        %4417 = vmatmul.mubr.f32.gmra.mrb[0].mxu0 %v4416
        %v4418 = vpop.f32.mrb[0].mxu0
        %v4419 = vadd.f32 0.0, %v4418
        %v4420 = vpop.f32.mrb[0].mxu0
        %v4421 = vadd.f32 0.0, %v4420
        %v4422 = vand.u32 %v617, 4294901760
        %v4423 = vsub.f32 %v617, %v4422
        %v4424 = vand.u32 %v4423, 4294901760
        %v4425 = vsub.f32 %v4423, %v4424
        %v4426 = vand.u32 %v4425, 4294901760
        %4427 = vmatprep.mubr.f32.mxu0 %v4426
        %v4428 = vand.u32 %v616, 4294901760
        %v4429 = vsub.f32 %v616, %v4428
        %v4430 = vand.u32 %v4429, 4294901760
        %v4431 = vsub.f32 %v4429, %v4430
        %v4432 = vand.u32 %v4431, 4294901760
        %4433 = vmatmul.mubr.f32.gmra.mrb[0].mxu0 %v4432
        %v4434 = vpop.f32.mrb[0].mxu0
        %v4435 = vadd.f32 0.0, %v4434
        %v4436 = vpop.f32.mrb[0].mxu0
        %v4437 = vadd.f32 0.0, %v4436
        %v4438 = vand.u32 %v619, 4294901760
        %v4439 = vsub.f32 %v619, %v4438
        %v4440 = vand.u32 %v4439, 4294901760
        %v4441 = vsub.f32 %v4439, %v4440
        %v4442 = vand.u32 %v4441, 4294901760
        %4443 = vmatprep.mubr.f32.mxu0 %v4442
        %v4444 = vand.u32 %v618, 4294901760
        %v4445 = vsub.f32 %v618, %v4444
        %v4446 = vand.u32 %v4445, 4294901760
        %v4447 = vsub.f32 %v4445, %v4446
        %v4448 = vand.u32 %v4447, 4294901760
        %4449 = vmatmul.mubr.f32.gmra.mrb[0].mxu0 %v4448
        %v4450 = vpop.f32.mrb[0].mxu0
        %v4451 = vadd.f32 0.0, %v4450
        %v4452 = vpop.f32.mrb[0].mxu0
        %v4453 = vadd.f32 0.0, %v4452
        %v4454 = vand.u32 %v621, 4294901760
        %v4455 = vsub.f32 %v621, %v4454
        %v4456 = vand.u32 %v4455, 4294901760
        %v4457 = vsub.f32 %v4455, %v4456
        %v4458 = vand.u32 %v4457, 4294901760
        %4459 = vmatprep.mubr.f32.mxu0 %v4458
        %v4460 = vand.u32 %v620, 4294901760
        %v4461 = vsub.f32 %v620, %v4460
        %v4462 = vand.u32 %v4461, 4294901760
        %v4463 = vsub.f32 %v4461, %v4462
        %v4464 = vand.u32 %v4463, 4294901760
        %4465 = vmatmul.mubr.f32.gmra.mrb[0].mxu0 %v4464
        %v4466 = vpop.f32.mrb[0].mxu0
        %v4467 = vadd.f32 0.0, %v4466
        %v4468 = vpop.f32.mrb[0].mxu0
        %v4469 = vadd.f32 0.0, %v4468
        %v4470 = vand.u32 %v623, 4294901760
        %v4471 = vsub.f32 %v623, %v4470
        %v4472 = vand.u32 %v4471, 4294901760
        %v4473 = vsub.f32 %v4471, %v4472
        %v4474 = vand.u32 %v4473, 4294901760
        %4475 = vmatprep.mubr.f32.mxu0 %v4474
        %v4476 = vand.u32 %v622, 4294901760
        %v4477 = vsub.f32 %v622, %v4476
        %v4478 = vand.u32 %v4477, 4294901760
        %v4479 = vsub.f32 %v4477, %v4478
        %v4480 = vand.u32 %v4479, 4294901760
        %4481 = vmatmul.mubr.f32.gmra.mrb[0].mxu0 %v4480
        %v4482 = vpop.f32.mrb[0].mxu0
        %v4483 = vadd.f32 0.0, %v4482
        %v4484 = vpop.f32.mrb[0].mxu0
        %v4485 = vadd.f32 0.0, %v4484
        %v4486 = vand.u32 %v625, 4294901760
        %v4487 = vsub.f32 %v625, %v4486
        %v4488 = vand.u32 %v4487, 4294901760
        %v4489 = vsub.f32 %v4487, %v4488
        %v4490 = vand.u32 %v4489, 4294901760
        %4491 = vmatprep.mubr.f32.mxu0 %v4490
        %v4492 = vand.u32 %v624, 4294901760
        %v4493 = vsub.f32 %v624, %v4492
        %v4494 = vand.u32 %v4493, 4294901760
        %v4495 = vsub.f32 %v4493, %v4494
        %v4496 = vand.u32 %v4495, 4294901760
        %4497 = vmatmul.mubr.f32.gmra.mrb[0].mxu0 %v4496
        %v4498 = vpop.f32.mrb[0].mxu0
        %v4499 = vadd.f32 0.0, %v4498
        %v4500 = vpop.f32.mrb[0].mxu0
        %v4501 = vadd.f32 0.0, %v4500
        %v4502 = vand.u32 %v627, 4294901760
        %v4503 = vsub.f32 %v627, %v4502
        %v4504 = vand.u32 %v4503, 4294901760
        %v4505 = vsub.f32 %v4503, %v4504
        %v4506 = vand.u32 %v4505, 4294901760
        %4507 = vmatprep.mubr.f32.mxu0 %v4506
        %v4508 = vand.u32 %v626, 4294901760
        %v4509 = vsub.f32 %v626, %v4508
        %v4510 = vand.u32 %v4509, 4294901760
        %v4511 = vsub.f32 %v4509, %v4510
        %v4512 = vand.u32 %v4511, 4294901760
        %4513 = vmatmul.mubr.f32.gmra.mrb[0].mxu0 %v4512
        %v4514 = vpop.f32.mrb[0].mxu0
        %v4515 = vadd.f32 0.0, %v4514
        %v4516 = vpop.f32.mrb[0].mxu0
        %v4517 = vadd.f32 0.0, %v4516
        %v4518 = vand.u32 %v629, 4294901760
        %v4519 = vsub.f32 %v629, %v4518
        %v4520 = vand.u32 %v4519, 4294901760
        %v4521 = vsub.f32 %v4519, %v4520
        %v4522 = vand.u32 %v4521, 4294901760
        %4523 = vmatprep.mubr.f32.mxu0 %v4522
        %v4524 = vand.u32 %v628, 4294901760
        %v4525 = vsub.f32 %v628, %v4524
        %v4526 = vand.u32 %v4525, 4294901760
        %v4527 = vsub.f32 %v4525, %v4526
        %v4528 = vand.u32 %v4527, 4294901760
        %4529 = vmatmul.mubr.f32.gmra.mrb[0].mxu0 %v4528
        %v4530 = vpop.f32.mrb[0].mxu0
        %v4531 = vadd.f32 0.0, %v4530
        %v4532 = vpop.f32.mrb[0].mxu0
        %v4533 = vadd.f32 0.0, %v4532
        %v4534 = vand.u32 %v631, 4294901760
        %v4535 = vsub.f32 %v631, %v4534
        %v4536 = vand.u32 %v4535, 4294901760
        %v4537 = vsub.f32 %v4535, %v4536
        %v4538 = vand.u32 %v4537, 4294901760
        %4539 = vmatprep.mubr.f32.mxu0 %v4538
        %v4540 = vand.u32 %v630, 4294901760
        %v4541 = vsub.f32 %v630, %v4540
        %v4542 = vand.u32 %v4541, 4294901760
        %v4543 = vsub.f32 %v4541, %v4542
        %v4544 = vand.u32 %v4543, 4294901760
        %4545 = vmatmul.mubr.f32.gmra.mrb[0].mxu0 %v4544
        %v4546 = vpop.f32.mrb[0].mxu0
        %v4547 = vadd.f32 0.0, %v4546
        %v4548 = vpop.f32.mrb[0].mxu0
        %v4549 = vadd.f32 0.0, %v4548
        %v4550 = vand.u32 %v633, 4294901760
        %v4551 = vsub.f32 %v633, %v4550
        %v4552 = vand.u32 %v4551, 4294901760
        %v4553 = vsub.f32 %v4551, %v4552
        %v4554 = vand.u32 %v4553, 4294901760
        %4555 = vmatprep.mubr.f32.mxu0 %v4554
        %v4556 = vand.u32 %v632, 4294901760
        %v4557 = vsub.f32 %v632, %v4556
        %v4558 = vand.u32 %v4557, 4294901760
        %v4559 = vsub.f32 %v4557, %v4558
        %v4560 = vand.u32 %v4559, 4294901760
        %4561 = vmatmul.mubr.f32.gmra.mrb[0].mxu0 %v4560
        %v4562 = vpop.f32.mrb[0].mxu0
        %v4563 = vadd.f32 0.0, %v4562
        %v4564 = vpop.f32.mrb[0].mxu0
        %v4565 = vadd.f32 0.0, %v4564
        %v4566 = vand.u32 %v635, 4294901760
        %v4567 = vsub.f32 %v635, %v4566
        %v4568 = vand.u32 %v4567, 4294901760
        %v4569 = vsub.f32 %v4567, %v4568
        %v4570 = vand.u32 %v4569, 4294901760
        %4571 = vmatprep.mubr.f32.mxu0 %v4570
        %v4572 = vand.u32 %v634, 4294901760
        %v4573 = vsub.f32 %v634, %v4572
        %v4574 = vand.u32 %v4573, 4294901760
        %v4575 = vsub.f32 %v4573, %v4574
        %v4576 = vand.u32 %v4575, 4294901760
        %4577 = vmatmul.mubr.f32.gmra.mrb[0].mxu0 %v4576
        %v4578 = vpop.f32.mrb[0].mxu0
        %v4579 = vadd.f32 0.0, %v4578
        %v4580 = vpop.f32.mrb[0].mxu0
        %v4581 = vadd.f32 0.0, %v4580
        %v4582 = vand.u32 %v637, 4294901760
        %v4583 = vsub.f32 %v637, %v4582
        %v4584 = vand.u32 %v4583, 4294901760
        %v4585 = vsub.f32 %v4583, %v4584
        %v4586 = vand.u32 %v4585, 4294901760
        %4587 = vmatprep.mubr.f32.mxu0 %v4586
        %v4588 = vand.u32 %v636, 4294901760
        %v4589 = vsub.f32 %v636, %v4588
        %v4590 = vand.u32 %v4589, 4294901760
        %v4591 = vsub.f32 %v4589, %v4590
        %v4592 = vand.u32 %v4591, 4294901760
        %4593 = vmatmul.mubr.f32.gmra.mrb[0].mxu0 %v4592
        %v4594 = vpop.f32.mrb[0].mxu0
        %v4595 = vadd.f32 0.0, %v4594
        %v4596 = vpop.f32.mrb[0].mxu0
        %v4597 = vadd.f32 0.0, %v4596
        %v4598 = vand.u32 %v639, 4294901760
        %v4599 = vsub.f32 %v639, %v4598
        %v4600 = vand.u32 %v4599, 4294901760
        %v4601 = vsub.f32 %v4599, %v4600
        %v4602 = vand.u32 %v4601, 4294901760
        %4603 = vmatprep.mubr.f32.mxu0 %v4602
        %v4604 = vand.u32 %v638, 4294901760
        %v4605 = vsub.f32 %v638, %v4604
        %v4606 = vand.u32 %v4605, 4294901760
        %v4607 = vsub.f32 %v4605, %v4606
        %v4608 = vand.u32 %v4607, 4294901760
        %4609 = vmatmul.mubr.f32.gmra.mrb[0].mxu0 %v4608
        %v4610 = vpop.f32.mrb[0].mxu0
        %v4611 = vadd.f32 0.0, %v4610
        %v4612 = vpop.f32.mrb[0].mxu0
        %v4613 = vadd.f32 0.0, %v4612
        %4614 = vdwg.mxu0
        %v4615 = vand.u32 %v643, 4294901760
        %v4616 = vsub.f32 %v643, %v4615
        %v4617 = vand.u32 %v4616, 4294901760
        %v4618 = vsub.f32 %v4616, %v4617
        %v4619 = vand.u32 %v4618, 4294901760
        %4620 = vmatprep.subr.mxu0 %v4619
        %v4621 = vand.u32 %v642, 4294901760
        %v4622 = vsub.f32 %v642, %v4621
        %v4623 = vand.u32 %v4622, 4294901760
        %v4624 = vsub.f32 %v4622, %v4623
        %v4625 = vand.u32 %v4624, 4294901760
        %4626 = vmatpush1.msra.mxu0 %v4625
        %v4627 = vand.u32 %v647, 4294901760
        %v4628 = vsub.f32 %v647, %v4627
        %v4629 = vand.u32 %v4628, 4294901760
        %v4630 = vsub.f32 %v4628, %v4629
        %v4631 = vand.u32 %v4630, 4294901760
        %4632 = vmatprep.subr.mxu0 %v4631
        %v4633 = vand.u32 %v646, 4294901760
        %v4634 = vsub.f32 %v646, %v4633
        %v4635 = vand.u32 %v4634, 4294901760
        %v4636 = vsub.f32 %v4634, %v4635
        %v4637 = vand.u32 %v4636, 4294901760
        %4638 = vmatpush1.msra.mxu0 %v4637
        %v4639 = vand.u32 %v651, 4294901760
        %v4640 = vsub.f32 %v651, %v4639
        %v4641 = vand.u32 %v4640, 4294901760
        %v4642 = vsub.f32 %v4640, %v4641
        %v4643 = vand.u32 %v4642, 4294901760
        %4644 = vmatprep.subr.mxu0 %v4643
        %v4645 = vand.u32 %v650, 4294901760
        %v4646 = vsub.f32 %v650, %v4645
        %v4647 = vand.u32 %v4646, 4294901760
        %v4648 = vsub.f32 %v4646, %v4647
        %v4649 = vand.u32 %v4648, 4294901760
        %4650 = vmatpush1.msra.mxu0 %v4649
        %v4651 = vand.u32 %v655, 4294901760
        %v4652 = vsub.f32 %v655, %v4651
        %v4653 = vand.u32 %v4652, 4294901760
        %v4654 = vsub.f32 %v4652, %v4653
        %v4655 = vand.u32 %v4654, 4294901760
        %4656 = vmatprep.subr.mxu0 %v4655
        %v4657 = vand.u32 %v654, 4294901760
        %v4658 = vsub.f32 %v654, %v4657
        %v4659 = vand.u32 %v4658, 4294901760
        %v4660 = vsub.f32 %v4658, %v4659
        %v4661 = vand.u32 %v4660, 4294901760
        %4662 = vmatpush1.msra.mxu0 %v4661
        %v4663 = vand.u32 %v659, 4294901760
        %v4664 = vsub.f32 %v659, %v4663
        %v4665 = vand.u32 %v4664, 4294901760
        %v4666 = vsub.f32 %v4664, %v4665
        %v4667 = vand.u32 %v4666, 4294901760
        %4668 = vmatprep.subr.mxu0 %v4667
        %v4669 = vand.u32 %v658, 4294901760
        %v4670 = vsub.f32 %v658, %v4669
        %v4671 = vand.u32 %v4670, 4294901760
        %v4672 = vsub.f32 %v4670, %v4671
        %v4673 = vand.u32 %v4672, 4294901760
        %4674 = vmatpush1.msra.mxu0 %v4673
        %v4675 = vand.u32 %v663, 4294901760
        %v4676 = vsub.f32 %v663, %v4675
        %v4677 = vand.u32 %v4676, 4294901760
        %v4678 = vsub.f32 %v4676, %v4677
        %v4679 = vand.u32 %v4678, 4294901760
        %4680 = vmatprep.subr.mxu0 %v4679
        %v4681 = vand.u32 %v662, 4294901760
        %v4682 = vsub.f32 %v662, %v4681
        %v4683 = vand.u32 %v4682, 4294901760
        %v4684 = vsub.f32 %v4682, %v4683
        %v4685 = vand.u32 %v4684, 4294901760
        %4686 = vmatpush1.msra.mxu0 %v4685
        %v4687 = vand.u32 %v667, 4294901760
        %v4688 = vsub.f32 %v667, %v4687
        %v4689 = vand.u32 %v4688, 4294901760
        %v4690 = vsub.f32 %v4688, %v4689
        %v4691 = vand.u32 %v4690, 4294901760
        %4692 = vmatprep.subr.mxu0 %v4691
        %v4693 = vand.u32 %v666, 4294901760
        %v4694 = vsub.f32 %v666, %v4693
        %v4695 = vand.u32 %v4694, 4294901760
        %v4696 = vsub.f32 %v4694, %v4695
        %v4697 = vand.u32 %v4696, 4294901760
        %4698 = vmatpush1.msra.mxu0 %v4697
        %v4699 = vand.u32 %v671, 4294901760
        %v4700 = vsub.f32 %v671, %v4699
        %v4701 = vand.u32 %v4700, 4294901760
        %v4702 = vsub.f32 %v4700, %v4701
        %v4703 = vand.u32 %v4702, 4294901760
        %4704 = vmatprep.subr.mxu0 %v4703
        %v4705 = vand.u32 %v670, 4294901760
        %v4706 = vsub.f32 %v670, %v4705
        %v4707 = vand.u32 %v4706, 4294901760
        %v4708 = vsub.f32 %v4706, %v4707
        %v4709 = vand.u32 %v4708, 4294901760
        %4710 = vmatpush1.msra.mxu0 %v4709
        %v4711 = vand.u32 %v675, 4294901760
        %v4712 = vsub.f32 %v675, %v4711
        %v4713 = vand.u32 %v4712, 4294901760
        %v4714 = vsub.f32 %v4712, %v4713
        %v4715 = vand.u32 %v4714, 4294901760
        %4716 = vmatprep.subr.mxu0 %v4715
        %v4717 = vand.u32 %v674, 4294901760
        %v4718 = vsub.f32 %v674, %v4717
        %v4719 = vand.u32 %v4718, 4294901760
        %v4720 = vsub.f32 %v4718, %v4719
        %v4721 = vand.u32 %v4720, 4294901760
        %4722 = vmatpush1.msra.mxu0 %v4721
        %v4723 = vand.u32 %v679, 4294901760
        %v4724 = vsub.f32 %v679, %v4723
        %v4725 = vand.u32 %v4724, 4294901760
        %v4726 = vsub.f32 %v4724, %v4725
        %v4727 = vand.u32 %v4726, 4294901760
        %4728 = vmatprep.subr.mxu0 %v4727
        %v4729 = vand.u32 %v678, 4294901760
        %v4730 = vsub.f32 %v678, %v4729
        %v4731 = vand.u32 %v4730, 4294901760
        %v4732 = vsub.f32 %v4730, %v4731
        %v4733 = vand.u32 %v4732, 4294901760
        %4734 = vmatpush1.msra.mxu0 %v4733
        %v4735 = vand.u32 %v683, 4294901760
        %v4736 = vsub.f32 %v683, %v4735
        %v4737 = vand.u32 %v4736, 4294901760
        %v4738 = vsub.f32 %v4736, %v4737
        %v4739 = vand.u32 %v4738, 4294901760
        %4740 = vmatprep.subr.mxu0 %v4739
        %v4741 = vand.u32 %v682, 4294901760
        %v4742 = vsub.f32 %v682, %v4741
        %v4743 = vand.u32 %v4742, 4294901760
        %v4744 = vsub.f32 %v4742, %v4743
        %v4745 = vand.u32 %v4744, 4294901760
        %4746 = vmatpush1.msra.mxu0 %v4745
        %v4747 = vand.u32 %v687, 4294901760
        %v4748 = vsub.f32 %v687, %v4747
        %v4749 = vand.u32 %v4748, 4294901760
        %v4750 = vsub.f32 %v4748, %v4749
        %v4751 = vand.u32 %v4750, 4294901760
        %4752 = vmatprep.subr.mxu0 %v4751
        %v4753 = vand.u32 %v686, 4294901760
        %v4754 = vsub.f32 %v686, %v4753
        %v4755 = vand.u32 %v4754, 4294901760
        %v4756 = vsub.f32 %v4754, %v4755
        %v4757 = vand.u32 %v4756, 4294901760
        %4758 = vmatpush1.msra.mxu0 %v4757
        %v4759 = vand.u32 %v691, 4294901760
        %v4760 = vsub.f32 %v691, %v4759
        %v4761 = vand.u32 %v4760, 4294901760
        %v4762 = vsub.f32 %v4760, %v4761
        %v4763 = vand.u32 %v4762, 4294901760
        %4764 = vmatprep.subr.mxu0 %v4763
        %v4765 = vand.u32 %v690, 4294901760
        %v4766 = vsub.f32 %v690, %v4765
        %v4767 = vand.u32 %v4766, 4294901760
        %v4768 = vsub.f32 %v4766, %v4767
        %v4769 = vand.u32 %v4768, 4294901760
        %4770 = vmatpush1.msra.mxu0 %v4769
        %v4771 = vand.u32 %v695, 4294901760
        %v4772 = vsub.f32 %v695, %v4771
        %v4773 = vand.u32 %v4772, 4294901760
        %v4774 = vsub.f32 %v4772, %v4773
        %v4775 = vand.u32 %v4774, 4294901760
        %4776 = vmatprep.subr.mxu0 %v4775
        %v4777 = vand.u32 %v694, 4294901760
        %v4778 = vsub.f32 %v694, %v4777
        %v4779 = vand.u32 %v4778, 4294901760
        %v4780 = vsub.f32 %v4778, %v4779
        %v4781 = vand.u32 %v4780, 4294901760
        %4782 = vmatpush1.msra.mxu0 %v4781
        %v4783 = vand.u32 %v699, 4294901760
        %v4784 = vsub.f32 %v699, %v4783
        %v4785 = vand.u32 %v4784, 4294901760
        %v4786 = vsub.f32 %v4784, %v4785
        %v4787 = vand.u32 %v4786, 4294901760
        %4788 = vmatprep.subr.mxu0 %v4787
        %v4789 = vand.u32 %v698, 4294901760
        %v4790 = vsub.f32 %v698, %v4789
        %v4791 = vand.u32 %v4790, 4294901760
        %v4792 = vsub.f32 %v4790, %v4791
        %v4793 = vand.u32 %v4792, 4294901760
        %4794 = vmatpush1.msra.mxu0 %v4793
        %v4795 = vand.u32 %v703, 4294901760
        %v4796 = vsub.f32 %v703, %v4795
        %v4797 = vand.u32 %v4796, 4294901760
        %v4798 = vsub.f32 %v4796, %v4797
        %v4799 = vand.u32 %v4798, 4294901760
        %4800 = vmatprep.subr.mxu0 %v4799
        %v4801 = vand.u32 %v702, 4294901760
        %v4802 = vsub.f32 %v702, %v4801
        %v4803 = vand.u32 %v4802, 4294901760
        %v4804 = vsub.f32 %v4802, %v4803
        %v4805 = vand.u32 %v4804, 4294901760
        %4806 = vmatpush1.msra.mxu0 %v4805
        %v4807 = vand.u32 %v707, 4294901760
        %v4808 = vsub.f32 %v707, %v4807
        %v4809 = vand.u32 %v4808, 4294901760
        %v4810 = vsub.f32 %v4808, %v4809
        %v4811 = vand.u32 %v4810, 4294901760
        %4812 = vmatprep.subr.mxu0 %v4811
        %v4813 = vand.u32 %v706, 4294901760
        %v4814 = vsub.f32 %v706, %v4813
        %v4815 = vand.u32 %v4814, 4294901760
        %v4816 = vsub.f32 %v4814, %v4815
        %v4817 = vand.u32 %v4816, 4294901760
        %4818 = vmatpush1.msra.mxu0 %v4817
        %v4819 = vand.u32 %v711, 4294901760
        %v4820 = vsub.f32 %v711, %v4819
        %v4821 = vand.u32 %v4820, 4294901760
        %v4822 = vsub.f32 %v4820, %v4821
        %v4823 = vand.u32 %v4822, 4294901760
        %4824 = vmatprep.subr.mxu0 %v4823
        %v4825 = vand.u32 %v710, 4294901760
        %v4826 = vsub.f32 %v710, %v4825
        %v4827 = vand.u32 %v4826, 4294901760
        %v4828 = vsub.f32 %v4826, %v4827
        %v4829 = vand.u32 %v4828, 4294901760
        %4830 = vmatpush1.msra.mxu0 %v4829
        %v4831 = vand.u32 %v715, 4294901760
        %v4832 = vsub.f32 %v715, %v4831
        %v4833 = vand.u32 %v4832, 4294901760
        %v4834 = vsub.f32 %v4832, %v4833
        %v4835 = vand.u32 %v4834, 4294901760
        %4836 = vmatprep.subr.mxu0 %v4835
        %v4837 = vand.u32 %v714, 4294901760
        %v4838 = vsub.f32 %v714, %v4837
        %v4839 = vand.u32 %v4838, 4294901760
        %v4840 = vsub.f32 %v4838, %v4839
        %v4841 = vand.u32 %v4840, 4294901760
        %4842 = vmatpush1.msra.mxu0 %v4841
        %v4843 = vand.u32 %v719, 4294901760
        %v4844 = vsub.f32 %v719, %v4843
        %v4845 = vand.u32 %v4844, 4294901760
        %v4846 = vsub.f32 %v4844, %v4845
        %v4847 = vand.u32 %v4846, 4294901760
        %4848 = vmatprep.subr.mxu0 %v4847
        %v4849 = vand.u32 %v718, 4294901760
        %v4850 = vsub.f32 %v718, %v4849
        %v4851 = vand.u32 %v4850, 4294901760
        %v4852 = vsub.f32 %v4850, %v4851
        %v4853 = vand.u32 %v4852, 4294901760
        %4854 = vmatpush1.msra.mxu0 %v4853
        %v4855 = vand.u32 %v723, 4294901760
        %v4856 = vsub.f32 %v723, %v4855
        %v4857 = vand.u32 %v4856, 4294901760
        %v4858 = vsub.f32 %v4856, %v4857
        %v4859 = vand.u32 %v4858, 4294901760
        %4860 = vmatprep.subr.mxu0 %v4859
        %v4861 = vand.u32 %v722, 4294901760
        %v4862 = vsub.f32 %v722, %v4861
        %v4863 = vand.u32 %v4862, 4294901760
        %v4864 = vsub.f32 %v4862, %v4863
        %v4865 = vand.u32 %v4864, 4294901760
        %4866 = vmatpush1.msra.mxu0 %v4865
        %v4867 = vand.u32 %v727, 4294901760
        %v4868 = vsub.f32 %v727, %v4867
        %v4869 = vand.u32 %v4868, 4294901760
        %v4870 = vsub.f32 %v4868, %v4869
        %v4871 = vand.u32 %v4870, 4294901760
        %4872 = vmatprep.subr.mxu0 %v4871
        %v4873 = vand.u32 %v726, 4294901760
        %v4874 = vsub.f32 %v726, %v4873
        %v4875 = vand.u32 %v4874, 4294901760
        %v4876 = vsub.f32 %v4874, %v4875
        %v4877 = vand.u32 %v4876, 4294901760
        %4878 = vmatpush1.msra.mxu0 %v4877
        %v4879 = vand.u32 %v731, 4294901760
        %v4880 = vsub.f32 %v731, %v4879
        %v4881 = vand.u32 %v4880, 4294901760
        %v4882 = vsub.f32 %v4880, %v4881
        %v4883 = vand.u32 %v4882, 4294901760
        %4884 = vmatprep.subr.mxu0 %v4883
        %v4885 = vand.u32 %v730, 4294901760
        %v4886 = vsub.f32 %v730, %v4885
        %v4887 = vand.u32 %v4886, 4294901760
        %v4888 = vsub.f32 %v4886, %v4887
        %v4889 = vand.u32 %v4888, 4294901760
        %4890 = vmatpush1.msra.mxu0 %v4889
        %v4891 = vand.u32 %v735, 4294901760
        %v4892 = vsub.f32 %v735, %v4891
        %v4893 = vand.u32 %v4892, 4294901760
        %v4894 = vsub.f32 %v4892, %v4893
        %v4895 = vand.u32 %v4894, 4294901760
        %4896 = vmatprep.subr.mxu0 %v4895
        %v4897 = vand.u32 %v734, 4294901760
        %v4898 = vsub.f32 %v734, %v4897
        %v4899 = vand.u32 %v4898, 4294901760
        %v4900 = vsub.f32 %v4898, %v4899
        %v4901 = vand.u32 %v4900, 4294901760
        %4902 = vmatpush1.msra.mxu0 %v4901
        %v4903 = vand.u32 %v739, 4294901760
        %v4904 = vsub.f32 %v739, %v4903
        %v4905 = vand.u32 %v4904, 4294901760
        %v4906 = vsub.f32 %v4904, %v4905
        %v4907 = vand.u32 %v4906, 4294901760
        %4908 = vmatprep.subr.mxu0 %v4907
        %v4909 = vand.u32 %v738, 4294901760
        %v4910 = vsub.f32 %v738, %v4909
        %v4911 = vand.u32 %v4910, 4294901760
        %v4912 = vsub.f32 %v4910, %v4911
        %v4913 = vand.u32 %v4912, 4294901760
        %4914 = vmatpush1.msra.mxu0 %v4913
        %v4915 = vand.u32 %v743, 4294901760
        %v4916 = vsub.f32 %v743, %v4915
        %v4917 = vand.u32 %v4916, 4294901760
        %v4918 = vsub.f32 %v4916, %v4917
        %v4919 = vand.u32 %v4918, 4294901760
        %4920 = vmatprep.subr.mxu0 %v4919
        %v4921 = vand.u32 %v742, 4294901760
        %v4922 = vsub.f32 %v742, %v4921
        %v4923 = vand.u32 %v4922, 4294901760
        %v4924 = vsub.f32 %v4922, %v4923
        %v4925 = vand.u32 %v4924, 4294901760
        %4926 = vmatpush1.msra.mxu0 %v4925
        %v4927 = vand.u32 %v747, 4294901760
        %v4928 = vsub.f32 %v747, %v4927
        %v4929 = vand.u32 %v4928, 4294901760
        %v4930 = vsub.f32 %v4928, %v4929
        %v4931 = vand.u32 %v4930, 4294901760
        %4932 = vmatprep.subr.mxu0 %v4931
        %v4933 = vand.u32 %v746, 4294901760
        %v4934 = vsub.f32 %v746, %v4933
        %v4935 = vand.u32 %v4934, 4294901760
        %v4936 = vsub.f32 %v4934, %v4935
        %v4937 = vand.u32 %v4936, 4294901760
        %4938 = vmatpush1.msra.mxu0 %v4937
        %v4939 = vand.u32 %v751, 4294901760
        %v4940 = vsub.f32 %v751, %v4939
        %v4941 = vand.u32 %v4940, 4294901760
        %v4942 = vsub.f32 %v4940, %v4941
        %v4943 = vand.u32 %v4942, 4294901760
        %4944 = vmatprep.subr.mxu0 %v4943
        %v4945 = vand.u32 %v750, 4294901760
        %v4946 = vsub.f32 %v750, %v4945
        %v4947 = vand.u32 %v4946, 4294901760
        %v4948 = vsub.f32 %v4946, %v4947
        %v4949 = vand.u32 %v4948, 4294901760
        %4950 = vmatpush1.msra.mxu0 %v4949
        %v4951 = vand.u32 %v755, 4294901760
        %v4952 = vsub.f32 %v755, %v4951
        %v4953 = vand.u32 %v4952, 4294901760
        %v4954 = vsub.f32 %v4952, %v4953
        %v4955 = vand.u32 %v4954, 4294901760
        %4956 = vmatprep.subr.mxu0 %v4955
        %v4957 = vand.u32 %v754, 4294901760
        %v4958 = vsub.f32 %v754, %v4957
        %v4959 = vand.u32 %v4958, 4294901760
        %v4960 = vsub.f32 %v4958, %v4959
        %v4961 = vand.u32 %v4960, 4294901760
        %4962 = vmatpush1.msra.mxu0 %v4961
        %v4963 = vand.u32 %v759, 4294901760
        %v4964 = vsub.f32 %v759, %v4963
        %v4965 = vand.u32 %v4964, 4294901760
        %v4966 = vsub.f32 %v4964, %v4965
        %v4967 = vand.u32 %v4966, 4294901760
        %4968 = vmatprep.subr.mxu0 %v4967
        %v4969 = vand.u32 %v758, 4294901760
        %v4970 = vsub.f32 %v758, %v4969
        %v4971 = vand.u32 %v4970, 4294901760
        %v4972 = vsub.f32 %v4970, %v4971
        %v4973 = vand.u32 %v4972, 4294901760
        %4974 = vmatpush1.msra.mxu0 %v4973
        %v4975 = vand.u32 %v763, 4294901760
        %v4976 = vsub.f32 %v763, %v4975
        %v4977 = vand.u32 %v4976, 4294901760
        %v4978 = vsub.f32 %v4976, %v4977
        %v4979 = vand.u32 %v4978, 4294901760
        %4980 = vmatprep.subr.mxu0 %v4979
        %v4981 = vand.u32 %v762, 4294901760
        %v4982 = vsub.f32 %v762, %v4981
        %v4983 = vand.u32 %v4982, 4294901760
        %v4984 = vsub.f32 %v4982, %v4983
        %v4985 = vand.u32 %v4984, 4294901760
        %4986 = vmatpush1.msra.mxu0 %v4985
        %v4987 = vand.u32 %v767, 4294901760
        %v4988 = vsub.f32 %v767, %v4987
        %v4989 = vand.u32 %v4988, 4294901760
        %v4990 = vsub.f32 %v4988, %v4989
        %v4991 = vand.u32 %v4990, 4294901760
        %4992 = vmatprep.subr.mxu0 %v4991
        %v4993 = vand.u32 %v766, 4294901760
        %v4994 = vsub.f32 %v766, %v4993
        %v4995 = vand.u32 %v4994, 4294901760
        %v4996 = vsub.f32 %v4994, %v4995
        %v4997 = vand.u32 %v4996, 4294901760
        %4998 = vmatpush1.msra.mxu0 %v4997
        %v4999 = vand.u32 %v577, 4294901760
        %5000 = vmatprep.mubr.f32.mxu0 %v4999
        %v5001 = vand.u32 %v576, 4294901760
        %5002 = vmatmul.mubr.f32.gmra.mrb[0].mxu0 %v5001
        %v5003 = vpop.f32.mrb[0].mxu0
        %v5004 = vadd.f32 %v4115, %v5003
        %v5005 = vpop.f32.mrb[0].mxu0
        %v5006 = vadd.f32 %v4117, %v5005
        %v5007 = vand.u32 %v579, 4294901760
        %5008 = vmatprep.mubr.f32.mxu0 %v5007
        %v5009 = vand.u32 %v578, 4294901760
        %5010 = vmatmul.mubr.f32.gmra.mrb[0].mxu0 %v5009
        %v5011 = vpop.f32.mrb[0].mxu0
        %v5012 = vadd.f32 %v4131, %v5011
        %v5013 = vpop.f32.mrb[0].mxu0
        %v5014 = vadd.f32 %v4133, %v5013
        %v5015 = vand.u32 %v581, 4294901760
        %5016 = vmatprep.mubr.f32.mxu0 %v5015
        %v5017 = vand.u32 %v580, 4294901760
        %5018 = vmatmul.mubr.f32.gmra.mrb[0].mxu0 %v5017
        %v5019 = vpop.f32.mrb[0].mxu0
        %v5020 = vadd.f32 %v4147, %v5019
        %v5021 = vpop.f32.mrb[0].mxu0
        %v5022 = vadd.f32 %v4149, %v5021
        %v5023 = vand.u32 %v583, 4294901760
        %5024 = vmatprep.mubr.f32.mxu0 %v5023
        %v5025 = vand.u32 %v582, 4294901760
        %5026 = vmatmul.mubr.f32.gmra.mrb[0].mxu0 %v5025
        %v5027 = vpop.f32.mrb[0].mxu0
        %v5028 = vadd.f32 %v4163, %v5027
        %v5029 = vpop.f32.mrb[0].mxu0
        %v5030 = vadd.f32 %v4165, %v5029
        %v5031 = vand.u32 %v585, 4294901760
        %5032 = vmatprep.mubr.f32.mxu0 %v5031
        %v5033 = vand.u32 %v584, 4294901760
        %5034 = vmatmul.mubr.f32.gmra.mrb[0].mxu0 %v5033
        %v5035 = vpop.f32.mrb[0].mxu0
        %v5036 = vadd.f32 %v4179, %v5035
        %v5037 = vpop.f32.mrb[0].mxu0
        %v5038 = vadd.f32 %v4181, %v5037
        %v5039 = vand.u32 %v587, 4294901760
        %5040 = vmatprep.mubr.f32.mxu0 %v5039
        %v5041 = vand.u32 %v586, 4294901760
        %5042 = vmatmul.mubr.f32.gmra.mrb[0].mxu0 %v5041
        %v5043 = vpop.f32.mrb[0].mxu0
        %v5044 = vadd.f32 %v4195, %v5043
        %v5045 = vpop.f32.mrb[0].mxu0
        %v5046 = vadd.f32 %v4197, %v5045
        %v5047 = vand.u32 %v589, 4294901760
        %5048 = vmatprep.mubr.f32.mxu0 %v5047
        %v5049 = vand.u32 %v588, 4294901760
        %5050 = vmatmul.mubr.f32.gmra.mrb[0].mxu0 %v5049
        %v5051 = vpop.f32.mrb[0].mxu0
        %v5052 = vadd.f32 %v4211, %v5051
        %v5053 = vpop.f32.mrb[0].mxu0
        %v5054 = vadd.f32 %v4213, %v5053
        %v5055 = vand.u32 %v591, 4294901760
        %5056 = vmatprep.mubr.f32.mxu0 %v5055
        %v5057 = vand.u32 %v590, 4294901760
        %5058 = vmatmul.mubr.f32.gmra.mrb[0].mxu0 %v5057
        %v5059 = vpop.f32.mrb[0].mxu0
        %v5060 = vadd.f32 %v4227, %v5059
        %v5061 = vpop.f32.mrb[0].mxu0
        %v5062 = vadd.f32 %v4229, %v5061
        %v5063 = vand.u32 %v593, 4294901760
        %5064 = vmatprep.mubr.f32.mxu0 %v5063
        %v5065 = vand.u32 %v592, 4294901760
        %5066 = vmatmul.mubr.f32.gmra.mrb[0].mxu0 %v5065
        %v5067 = vpop.f32.mrb[0].mxu0
        %v5068 = vadd.f32 %v4243, %v5067
        %v5069 = vpop.f32.mrb[0].mxu0
        %v5070 = vadd.f32 %v4245, %v5069
        %v5071 = vand.u32 %v595, 4294901760
        %5072 = vmatprep.mubr.f32.mxu0 %v5071
        %v5073 = vand.u32 %v594, 4294901760
        %5074 = vmatmul.mubr.f32.gmra.mrb[0].mxu0 %v5073
        %v5075 = vpop.f32.mrb[0].mxu0
        %v5076 = vadd.f32 %v4259, %v5075
        %v5077 = vpop.f32.mrb[0].mxu0
        %v5078 = vadd.f32 %v4261, %v5077
        %v5079 = vand.u32 %v597, 4294901760
        %5080 = vmatprep.mubr.f32.mxu0 %v5079
        %v5081 = vand.u32 %v596, 4294901760
        %5082 = vmatmul.mubr.f32.gmra.mrb[0].mxu0 %v5081
        %v5083 = vpop.f32.mrb[0].mxu0
        %v5084 = vadd.f32 %v4275, %v5083
        %v5085 = vpop.f32.mrb[0].mxu0
        %v5086 = vadd.f32 %v4277, %v5085
        %v5087 = vand.u32 %v599, 4294901760
        %5088 = vmatprep.mubr.f32.mxu0 %v5087
        %v5089 = vand.u32 %v598, 4294901760
        %5090 = vmatmul.mubr.f32.gmra.mrb[0].mxu0 %v5089
        %v5091 = vpop.f32.mrb[0].mxu0
        %v5092 = vadd.f32 %v4291, %v5091
        %v5093 = vpop.f32.mrb[0].mxu0
        %v5094 = vadd.f32 %v4293, %v5093
        %v5095 = vand.u32 %v601, 4294901760
        %5096 = vmatprep.mubr.f32.mxu0 %v5095
        %v5097 = vand.u32 %v600, 4294901760
        %5098 = vmatmul.mubr.f32.gmra.mrb[0].mxu0 %v5097
        %v5099 = vpop.f32.mrb[0].mxu0
        %v5100 = vadd.f32 %v4307, %v5099
        %v5101 = vpop.f32.mrb[0].mxu0
        %v5102 = vadd.f32 %v4309, %v5101
        %v5103 = vand.u32 %v603, 4294901760
        %5104 = vmatprep.mubr.f32.mxu0 %v5103
        %v5105 = vand.u32 %v602, 4294901760
        %5106 = vmatmul.mubr.f32.gmra.mrb[0].mxu0 %v5105
        %v5107 = vpop.f32.mrb[0].mxu0
        %v5108 = vadd.f32 %v4323, %v5107
        %v5109 = vpop.f32.mrb[0].mxu0
        %v5110 = vadd.f32 %v4325, %v5109
        %v5111 = vand.u32 %v605, 4294901760
        %5112 = vmatprep.mubr.f32.mxu0 %v5111
        %v5113 = vand.u32 %v604, 4294901760
        %5114 = vmatmul.mubr.f32.gmra.mrb[0].mxu0 %v5113
        %v5115 = vpop.f32.mrb[0].mxu0
        %v5116 = vadd.f32 %v4339, %v5115
        %v5117 = vpop.f32.mrb[0].mxu0
        %v5118 = vadd.f32 %v4341, %v5117
        %v5119 = vand.u32 %v607, 4294901760
        %5120 = vmatprep.mubr.f32.mxu0 %v5119
        %v5121 = vand.u32 %v606, 4294901760
        %5122 = vmatmul.mubr.f32.gmra.mrb[0].mxu0 %v5121
        %v5123 = vpop.f32.mrb[0].mxu0
        %v5124 = vadd.f32 %v4355, %v5123
        %v5125 = vpop.f32.mrb[0].mxu0
        %v5126 = vadd.f32 %v4357, %v5125
        %v5127 = vand.u32 %v609, 4294901760
        %5128 = vmatprep.mubr.f32.mxu0 %v5127
        %v5129 = vand.u32 %v608, 4294901760
        %5130 = vmatmul.mubr.f32.gmra.mrb[0].mxu0 %v5129
        %v5131 = vpop.f32.mrb[0].mxu0
        %v5132 = vadd.f32 %v4371, %v5131
        %v5133 = vpop.f32.mrb[0].mxu0
        %v5134 = vadd.f32 %v4373, %v5133
        %v5135 = vand.u32 %v611, 4294901760
        %5136 = vmatprep.mubr.f32.mxu0 %v5135
        %v5137 = vand.u32 %v610, 4294901760
        %5138 = vmatmul.mubr.f32.gmra.mrb[0].mxu0 %v5137
        %v5139 = vpop.f32.mrb[0].mxu0
        %v5140 = vadd.f32 %v4387, %v5139
        %v5141 = vpop.f32.mrb[0].mxu0
        %v5142 = vadd.f32 %v4389, %v5141
        %v5143 = vand.u32 %v613, 4294901760
        %5144 = vmatprep.mubr.f32.mxu0 %v5143
        %v5145 = vand.u32 %v612, 4294901760
        %5146 = vmatmul.mubr.f32.gmra.mrb[0].mxu0 %v5145
        %v5147 = vpop.f32.mrb[0].mxu0
        %v5148 = vadd.f32 %v4403, %v5147
        %v5149 = vpop.f32.mrb[0].mxu0
        %v5150 = vadd.f32 %v4405, %v5149
        %v5151 = vand.u32 %v615, 4294901760
        %5152 = vmatprep.mubr.f32.mxu0 %v5151
        %v5153 = vand.u32 %v614, 4294901760
        %5154 = vmatmul.mubr.f32.gmra.mrb[0].mxu0 %v5153
        %v5155 = vpop.f32.mrb[0].mxu0
        %v5156 = vadd.f32 %v4419, %v5155
        %v5157 = vpop.f32.mrb[0].mxu0
        %v5158 = vadd.f32 %v4421, %v5157
        %v5159 = vand.u32 %v617, 4294901760
        %5160 = vmatprep.mubr.f32.mxu0 %v5159
        %v5161 = vand.u32 %v616, 4294901760
        %5162 = vmatmul.mubr.f32.gmra.mrb[0].mxu0 %v5161
        %v5163 = vpop.f32.mrb[0].mxu0
        %v5164 = vadd.f32 %v4435, %v5163
        %v5165 = vpop.f32.mrb[0].mxu0
        %v5166 = vadd.f32 %v4437, %v5165
        %v5167 = vand.u32 %v619, 4294901760
        %5168 = vmatprep.mubr.f32.mxu0 %v5167
        %v5169 = vand.u32 %v618, 4294901760
        %5170 = vmatmul.mubr.f32.gmra.mrb[0].mxu0 %v5169
        %v5171 = vpop.f32.mrb[0].mxu0
        %v5172 = vadd.f32 %v4451, %v5171
        %v5173 = vpop.f32.mrb[0].mxu0
        %v5174 = vadd.f32 %v4453, %v5173
        %v5175 = vand.u32 %v621, 4294901760
        %5176 = vmatprep.mubr.f32.mxu0 %v5175
        %v5177 = vand.u32 %v620, 4294901760
        %5178 = vmatmul.mubr.f32.gmra.mrb[0].mxu0 %v5177
        %v5179 = vpop.f32.mrb[0].mxu0
        %v5180 = vadd.f32 %v4467, %v5179
        %v5181 = vpop.f32.mrb[0].mxu0
        %v5182 = vadd.f32 %v4469, %v5181
        %v5183 = vand.u32 %v623, 4294901760
        %5184 = vmatprep.mubr.f32.mxu0 %v5183
        %v5185 = vand.u32 %v622, 4294901760
        %5186 = vmatmul.mubr.f32.gmra.mrb[0].mxu0 %v5185
        %v5187 = vpop.f32.mrb[0].mxu0
        %v5188 = vadd.f32 %v4483, %v5187
        %v5189 = vpop.f32.mrb[0].mxu0
        %v5190 = vadd.f32 %v4485, %v5189
        %v5191 = vand.u32 %v625, 4294901760
        %5192 = vmatprep.mubr.f32.mxu0 %v5191
        %v5193 = vand.u32 %v624, 4294901760
        %5194 = vmatmul.mubr.f32.gmra.mrb[0].mxu0 %v5193
        %v5195 = vpop.f32.mrb[0].mxu0
        %v5196 = vadd.f32 %v4499, %v5195
        %v5197 = vpop.f32.mrb[0].mxu0
        %v5198 = vadd.f32 %v4501, %v5197
        %v5199 = vand.u32 %v627, 4294901760
        %5200 = vmatprep.mubr.f32.mxu0 %v5199
        %v5201 = vand.u32 %v626, 4294901760
        %5202 = vmatmul.mubr.f32.gmra.mrb[0].mxu0 %v5201
        %v5203 = vpop.f32.mrb[0].mxu0
        %v5204 = vadd.f32 %v4515, %v5203
        %v5205 = vpop.f32.mrb[0].mxu0
        %v5206 = vadd.f32 %v4517, %v5205
        %v5207 = vand.u32 %v629, 4294901760
        %5208 = vmatprep.mubr.f32.mxu0 %v5207
        %v5209 = vand.u32 %v628, 4294901760
        %5210 = vmatmul.mubr.f32.gmra.mrb[0].mxu0 %v5209
        %v5211 = vpop.f32.mrb[0].mxu0
        %v5212 = vadd.f32 %v4531, %v5211
        %v5213 = vpop.f32.mrb[0].mxu0
        %v5214 = vadd.f32 %v4533, %v5213
        %v5215 = vand.u32 %v631, 4294901760
        %5216 = vmatprep.mubr.f32.mxu0 %v5215
        %v5217 = vand.u32 %v630, 4294901760
        %5218 = vmatmul.mubr.f32.gmra.mrb[0].mxu0 %v5217
        %v5219 = vpop.f32.mrb[0].mxu0
        %v5220 = vadd.f32 %v4547, %v5219
        %v5221 = vpop.f32.mrb[0].mxu0
        %v5222 = vadd.f32 %v4549, %v5221
        %v5223 = vand.u32 %v633, 4294901760
        %5224 = vmatprep.mubr.f32.mxu0 %v5223
        %v5225 = vand.u32 %v632, 4294901760
        %5226 = vmatmul.mubr.f32.gmra.mrb[0].mxu0 %v5225
        %v5227 = vpop.f32.mrb[0].mxu0
        %v5228 = vadd.f32 %v4563, %v5227
        %v5229 = vpop.f32.mrb[0].mxu0
        %v5230 = vadd.f32 %v4565, %v5229
        %v5231 = vand.u32 %v635, 4294901760
        %5232 = vmatprep.mubr.f32.mxu0 %v5231
        %v5233 = vand.u32 %v634, 4294901760
        %5234 = vmatmul.mubr.f32.gmra.mrb[0].mxu0 %v5233
        %v5235 = vpop.f32.mrb[0].mxu0
        %v5236 = vadd.f32 %v4579, %v5235
        %v5237 = vpop.f32.mrb[0].mxu0
        %v5238 = vadd.f32 %v4581, %v5237
        %v5239 = vand.u32 %v637, 4294901760
        %5240 = vmatprep.mubr.f32.mxu0 %v5239
        %v5241 = vand.u32 %v636, 4294901760
        %5242 = vmatmul.mubr.f32.gmra.mrb[0].mxu0 %v5241
        %v5243 = vpop.f32.mrb[0].mxu0
        %v5244 = vadd.f32 %v4595, %v5243
        %v5245 = vpop.f32.mrb[0].mxu0
        %v5246 = vadd.f32 %v4597, %v5245
        %v5247 = vand.u32 %v639, 4294901760
        %5248 = vmatprep.mubr.f32.mxu0 %v5247
        %v5249 = vand.u32 %v638, 4294901760
        %5250 = vmatmul.mubr.f32.gmra.mrb[0].mxu0 %v5249
        %v5251 = vpop.f32.mrb[0].mxu0
        %v5252 = vadd.f32 %v4611, %v5251
        %v5253 = vpop.f32.mrb[0].mxu0
        %v5254 = vadd.f32 %v4613, %v5253
        %5255 = vdwg.mxu0
        %v5256 = vand.u32 %v643, 4294901760
        %v5257 = vsub.f32 %v643, %v5256
        %5258 = vmatprep.subr.mxu0 %v5257
        %v5259 = vand.u32 %v642, 4294901760
        %v5260 = vsub.f32 %v642, %v5259
        %5261 = vmatpush1.msra.mxu0 %v5260
        %v5262 = vand.u32 %v647, 4294901760
        %v5263 = vsub.f32 %v647, %v5262
        %5264 = vmatprep.subr.mxu0 %v5263
        %v5265 = vand.u32 %v646, 4294901760
        %v5266 = vsub.f32 %v646, %v5265
        %5267 = vmatpush1.msra.mxu0 %v5266
        %v5268 = vand.u32 %v651, 4294901760
        %v5269 = vsub.f32 %v651, %v5268
        %5270 = vmatprep.subr.mxu0 %v5269
        %v5271 = vand.u32 %v650, 4294901760
        %v5272 = vsub.f32 %v650, %v5271
        %5273 = vmatpush1.msra.mxu0 %v5272
        %v5274 = vand.u32 %v655, 4294901760
        %v5275 = vsub.f32 %v655, %v5274
        %5276 = vmatprep.subr.mxu0 %v5275
        %v5277 = vand.u32 %v654, 4294901760
        %v5278 = vsub.f32 %v654, %v5277
        %5279 = vmatpush1.msra.mxu0 %v5278
        %v5280 = vand.u32 %v659, 4294901760
        %v5281 = vsub.f32 %v659, %v5280
        %5282 = vmatprep.subr.mxu0 %v5281
        %v5283 = vand.u32 %v658, 4294901760
        %v5284 = vsub.f32 %v658, %v5283
        %5285 = vmatpush1.msra.mxu0 %v5284
        %v5286 = vand.u32 %v663, 4294901760
        %v5287 = vsub.f32 %v663, %v5286
        %5288 = vmatprep.subr.mxu0 %v5287
        %v5289 = vand.u32 %v662, 4294901760
        %v5290 = vsub.f32 %v662, %v5289
        %5291 = vmatpush1.msra.mxu0 %v5290
        %v5292 = vand.u32 %v667, 4294901760
        %v5293 = vsub.f32 %v667, %v5292
        %5294 = vmatprep.subr.mxu0 %v5293
        %v5295 = vand.u32 %v666, 4294901760
        %v5296 = vsub.f32 %v666, %v5295
        %5297 = vmatpush1.msra.mxu0 %v5296
        %v5298 = vand.u32 %v671, 4294901760
        %v5299 = vsub.f32 %v671, %v5298
        %5300 = vmatprep.subr.mxu0 %v5299
        %v5301 = vand.u32 %v670, 4294901760
        %v5302 = vsub.f32 %v670, %v5301
        %5303 = vmatpush1.msra.mxu0 %v5302
        %v5304 = vand.u32 %v675, 4294901760
        %v5305 = vsub.f32 %v675, %v5304
        %5306 = vmatprep.subr.mxu0 %v5305
        %v5307 = vand.u32 %v674, 4294901760
        %v5308 = vsub.f32 %v674, %v5307
        %5309 = vmatpush1.msra.mxu0 %v5308
        %v5310 = vand.u32 %v679, 4294901760
        %v5311 = vsub.f32 %v679, %v5310
        %5312 = vmatprep.subr.mxu0 %v5311
        %v5313 = vand.u32 %v678, 4294901760
        %v5314 = vsub.f32 %v678, %v5313
        %5315 = vmatpush1.msra.mxu0 %v5314
        %v5316 = vand.u32 %v683, 4294901760
        %v5317 = vsub.f32 %v683, %v5316
        %5318 = vmatprep.subr.mxu0 %v5317
        %v5319 = vand.u32 %v682, 4294901760
        %v5320 = vsub.f32 %v682, %v5319
        %5321 = vmatpush1.msra.mxu0 %v5320
        %v5322 = vand.u32 %v687, 4294901760
        %v5323 = vsub.f32 %v687, %v5322
        %5324 = vmatprep.subr.mxu0 %v5323
        %v5325 = vand.u32 %v686, 4294901760
        %v5326 = vsub.f32 %v686, %v5325
        %5327 = vmatpush1.msra.mxu0 %v5326
        %v5328 = vand.u32 %v691, 4294901760
        %v5329 = vsub.f32 %v691, %v5328
        %5330 = vmatprep.subr.mxu0 %v5329
        %v5331 = vand.u32 %v690, 4294901760
        %v5332 = vsub.f32 %v690, %v5331
        %5333 = vmatpush1.msra.mxu0 %v5332
        %v5334 = vand.u32 %v695, 4294901760
        %v5335 = vsub.f32 %v695, %v5334
        %5336 = vmatprep.subr.mxu0 %v5335
        %v5337 = vand.u32 %v694, 4294901760
        %v5338 = vsub.f32 %v694, %v5337
        %5339 = vmatpush1.msra.mxu0 %v5338
        %v5340 = vand.u32 %v699, 4294901760
        %v5341 = vsub.f32 %v699, %v5340
        %5342 = vmatprep.subr.mxu0 %v5341
        %v5343 = vand.u32 %v698, 4294901760
        %v5344 = vsub.f32 %v698, %v5343
        %5345 = vmatpush1.msra.mxu0 %v5344
        %v5346 = vand.u32 %v703, 4294901760
        %v5347 = vsub.f32 %v703, %v5346
        %5348 = vmatprep.subr.mxu0 %v5347
        %v5349 = vand.u32 %v702, 4294901760
        %v5350 = vsub.f32 %v702, %v5349
        %5351 = vmatpush1.msra.mxu0 %v5350
        %v5352 = vand.u32 %v707, 4294901760
        %v5353 = vsub.f32 %v707, %v5352
        %5354 = vmatprep.subr.mxu0 %v5353
        %v5355 = vand.u32 %v706, 4294901760
        %v5356 = vsub.f32 %v706, %v5355
        %5357 = vmatpush1.msra.mxu0 %v5356
        %v5358 = vand.u32 %v711, 4294901760
        %v5359 = vsub.f32 %v711, %v5358
        %5360 = vmatprep.subr.mxu0 %v5359
        %v5361 = vand.u32 %v710, 4294901760
        %v5362 = vsub.f32 %v710, %v5361
        %5363 = vmatpush1.msra.mxu0 %v5362
        %v5364 = vand.u32 %v715, 4294901760
        %v5365 = vsub.f32 %v715, %v5364
        %5366 = vmatprep.subr.mxu0 %v5365
        %v5367 = vand.u32 %v714, 4294901760
        %v5368 = vsub.f32 %v714, %v5367
        %5369 = vmatpush1.msra.mxu0 %v5368
        %v5370 = vand.u32 %v719, 4294901760
        %v5371 = vsub.f32 %v719, %v5370
        %5372 = vmatprep.subr.mxu0 %v5371
        %v5373 = vand.u32 %v718, 4294901760
        %v5374 = vsub.f32 %v718, %v5373
        %5375 = vmatpush1.msra.mxu0 %v5374
        %v5376 = vand.u32 %v723, 4294901760
        %v5377 = vsub.f32 %v723, %v5376
        %5378 = vmatprep.subr.mxu0 %v5377
        %v5379 = vand.u32 %v722, 4294901760
        %v5380 = vsub.f32 %v722, %v5379
        %5381 = vmatpush1.msra.mxu0 %v5380
        %v5382 = vand.u32 %v727, 4294901760
        %v5383 = vsub.f32 %v727, %v5382
        %5384 = vmatprep.subr.mxu0 %v5383
        %v5385 = vand.u32 %v726, 4294901760
        %v5386 = vsub.f32 %v726, %v5385
        %5387 = vmatpush1.msra.mxu0 %v5386
        %v5388 = vand.u32 %v731, 4294901760
        %v5389 = vsub.f32 %v731, %v5388
        %5390 = vmatprep.subr.mxu0 %v5389
        %v5391 = vand.u32 %v730, 4294901760
        %v5392 = vsub.f32 %v730, %v5391
        %5393 = vmatpush1.msra.mxu0 %v5392
        %v5394 = vand.u32 %v735, 4294901760
        %v5395 = vsub.f32 %v735, %v5394
        %5396 = vmatprep.subr.mxu0 %v5395
        %v5397 = vand.u32 %v734, 4294901760
        %v5398 = vsub.f32 %v734, %v5397
        %5399 = vmatpush1.msra.mxu0 %v5398
        %v5400 = vand.u32 %v739, 4294901760
        %v5401 = vsub.f32 %v739, %v5400
        %5402 = vmatprep.subr.mxu0 %v5401
        %v5403 = vand.u32 %v738, 4294901760
        %v5404 = vsub.f32 %v738, %v5403
        %5405 = vmatpush1.msra.mxu0 %v5404
        %v5406 = vand.u32 %v743, 4294901760
        %v5407 = vsub.f32 %v743, %v5406
        %5408 = vmatprep.subr.mxu0 %v5407
        %v5409 = vand.u32 %v742, 4294901760
        %v5410 = vsub.f32 %v742, %v5409
        %5411 = vmatpush1.msra.mxu0 %v5410
        %v5412 = vand.u32 %v747, 4294901760
        %v5413 = vsub.f32 %v747, %v5412
        %5414 = vmatprep.subr.mxu0 %v5413
        %v5415 = vand.u32 %v746, 4294901760
        %v5416 = vsub.f32 %v746, %v5415
        %5417 = vmatpush1.msra.mxu0 %v5416
        %v5418 = vand.u32 %v751, 4294901760
        %v5419 = vsub.f32 %v751, %v5418
        %5420 = vmatprep.subr.mxu0 %v5419
        %v5421 = vand.u32 %v750, 4294901760
        %v5422 = vsub.f32 %v750, %v5421
        %5423 = vmatpush1.msra.mxu0 %v5422
        %v5424 = vand.u32 %v755, 4294901760
        %v5425 = vsub.f32 %v755, %v5424
        %5426 = vmatprep.subr.mxu0 %v5425
        %v5427 = vand.u32 %v754, 4294901760
        %v5428 = vsub.f32 %v754, %v5427
        %5429 = vmatpush1.msra.mxu0 %v5428
        %v5430 = vand.u32 %v759, 4294901760
        %v5431 = vsub.f32 %v759, %v5430
        %5432 = vmatprep.subr.mxu0 %v5431
        %v5433 = vand.u32 %v758, 4294901760
        %v5434 = vsub.f32 %v758, %v5433
        %5435 = vmatpush1.msra.mxu0 %v5434
        %v5436 = vand.u32 %v763, 4294901760
        %v5437 = vsub.f32 %v763, %v5436
        %5438 = vmatprep.subr.mxu0 %v5437
        %v5439 = vand.u32 %v762, 4294901760
        %v5440 = vsub.f32 %v762, %v5439
        %5441 = vmatpush1.msra.mxu0 %v5440
        %v5442 = vand.u32 %v767, 4294901760
        %v5443 = vsub.f32 %v767, %v5442
        %5444 = vmatprep.subr.mxu0 %v5443
        %v5445 = vand.u32 %v766, 4294901760
        %v5446 = vsub.f32 %v766, %v5445
        %5447 = vmatpush1.msra.mxu0 %v5446
        %v5448 = vand.u32 %v577, 4294901760
        %v5449 = vsub.f32 %v577, %v5448
        %5450 = vmatprep.mubr.f32.mxu0 %v5449
        %v5451 = vand.u32 %v576, 4294901760
        %v5452 = vsub.f32 %v576, %v5451
        %5453 = vmatmul.mubr.f32.gmra.mrb[0].mxu0 %v5452
        %v5454 = vpop.f32.mrb[0].mxu0
        %v5455 = vadd.f32 %v5004, %v5454
        %v5456 = vpop.f32.mrb[0].mxu0
        %v5457 = vadd.f32 %v5006, %v5456
        %v5458 = vand.u32 %v579, 4294901760
        %v5459 = vsub.f32 %v579, %v5458
        %5460 = vmatprep.mubr.f32.mxu0 %v5459
        %v5461 = vand.u32 %v578, 4294901760
        %v5462 = vsub.f32 %v578, %v5461
        %5463 = vmatmul.mubr.f32.gmra.mrb[0].mxu0 %v5462
        %v5464 = vpop.f32.mrb[0].mxu0
        %v5465 = vadd.f32 %v5012, %v5464
        %v5466 = vpop.f32.mrb[0].mxu0
        %v5467 = vadd.f32 %v5014, %v5466
        %v5468 = vand.u32 %v581, 4294901760
        %v5469 = vsub.f32 %v581, %v5468
        %5470 = vmatprep.mubr.f32.mxu0 %v5469
        %v5471 = vand.u32 %v580, 4294901760
        %v5472 = vsub.f32 %v580, %v5471
        %5473 = vmatmul.mubr.f32.gmra.mrb[0].mxu0 %v5472
        %v5474 = vpop.f32.mrb[0].mxu0
        %v5475 = vadd.f32 %v5020, %v5474
        %v5476 = vpop.f32.mrb[0].mxu0
        %v5477 = vadd.f32 %v5022, %v5476
        %v5478 = vand.u32 %v583, 4294901760
        %v5479 = vsub.f32 %v583, %v5478
        %5480 = vmatprep.mubr.f32.mxu0 %v5479
        %v5481 = vand.u32 %v582, 4294901760
        %v5482 = vsub.f32 %v582, %v5481
        %5483 = vmatmul.mubr.f32.gmra.mrb[0].mxu0 %v5482
        %v5484 = vpop.f32.mrb[0].mxu0
        %v5485 = vadd.f32 %v5028, %v5484
        %v5486 = vpop.f32.mrb[0].mxu0
        %v5487 = vadd.f32 %v5030, %v5486
        %v5488 = vand.u32 %v585, 4294901760
        %v5489 = vsub.f32 %v585, %v5488
        %5490 = vmatprep.mubr.f32.mxu0 %v5489
        %v5491 = vand.u32 %v584, 4294901760
        %v5492 = vsub.f32 %v584, %v5491
        %5493 = vmatmul.mubr.f32.gmra.mrb[0].mxu0 %v5492
        %v5494 = vpop.f32.mrb[0].mxu0
        %v5495 = vadd.f32 %v5036, %v5494
        %v5496 = vpop.f32.mrb[0].mxu0
        %v5497 = vadd.f32 %v5038, %v5496
        %v5498 = vand.u32 %v587, 4294901760
        %v5499 = vsub.f32 %v587, %v5498
        %5500 = vmatprep.mubr.f32.mxu0 %v5499
        %v5501 = vand.u32 %v586, 4294901760
        %v5502 = vsub.f32 %v586, %v5501
        %5503 = vmatmul.mubr.f32.gmra.mrb[0].mxu0 %v5502
        %v5504 = vpop.f32.mrb[0].mxu0
        %v5505 = vadd.f32 %v5044, %v5504
        %v5506 = vpop.f32.mrb[0].mxu0
        %v5507 = vadd.f32 %v5046, %v5506
        %v5508 = vand.u32 %v589, 4294901760
        %v5509 = vsub.f32 %v589, %v5508
        %5510 = vmatprep.mubr.f32.mxu0 %v5509
        %v5511 = vand.u32 %v588, 4294901760
        %v5512 = vsub.f32 %v588, %v5511
        %5513 = vmatmul.mubr.f32.gmra.mrb[0].mxu0 %v5512
        %v5514 = vpop.f32.mrb[0].mxu0
        %v5515 = vadd.f32 %v5052, %v5514
        %v5516 = vpop.f32.mrb[0].mxu0
        %v5517 = vadd.f32 %v5054, %v5516
        %v5518 = vand.u32 %v591, 4294901760
        %v5519 = vsub.f32 %v591, %v5518
        %5520 = vmatprep.mubr.f32.mxu0 %v5519
        %v5521 = vand.u32 %v590, 4294901760
        %v5522 = vsub.f32 %v590, %v5521
        %5523 = vmatmul.mubr.f32.gmra.mrb[0].mxu0 %v5522
        %v5524 = vpop.f32.mrb[0].mxu0
        %v5525 = vadd.f32 %v5060, %v5524
        %v5526 = vpop.f32.mrb[0].mxu0
        %v5527 = vadd.f32 %v5062, %v5526
        %v5528 = vand.u32 %v593, 4294901760
        %v5529 = vsub.f32 %v593, %v5528
        %5530 = vmatprep.mubr.f32.mxu0 %v5529
        %v5531 = vand.u32 %v592, 4294901760
        %v5532 = vsub.f32 %v592, %v5531
        %5533 = vmatmul.mubr.f32.gmra.mrb[0].mxu0 %v5532
        %v5534 = vpop.f32.mrb[0].mxu0
        %v5535 = vadd.f32 %v5068, %v5534
        %v5536 = vpop.f32.mrb[0].mxu0
        %v5537 = vadd.f32 %v5070, %v5536
        %v5538 = vand.u32 %v595, 4294901760
        %v5539 = vsub.f32 %v595, %v5538
        %5540 = vmatprep.mubr.f32.mxu0 %v5539
        %v5541 = vand.u32 %v594, 4294901760
        %v5542 = vsub.f32 %v594, %v5541
        %5543 = vmatmul.mubr.f32.gmra.mrb[0].mxu0 %v5542
        %v5544 = vpop.f32.mrb[0].mxu0
        %v5545 = vadd.f32 %v5076, %v5544
        %v5546 = vpop.f32.mrb[0].mxu0
        %v5547 = vadd.f32 %v5078, %v5546
        %v5548 = vand.u32 %v597, 4294901760
        %v5549 = vsub.f32 %v597, %v5548
        %5550 = vmatprep.mubr.f32.mxu0 %v5549
        %v5551 = vand.u32 %v596, 4294901760
        %v5552 = vsub.f32 %v596, %v5551
        %5553 = vmatmul.mubr.f32.gmra.mrb[0].mxu0 %v5552
        %v5554 = vpop.f32.mrb[0].mxu0
        %v5555 = vadd.f32 %v5084, %v5554
        %v5556 = vpop.f32.mrb[0].mxu0
        %v5557 = vadd.f32 %v5086, %v5556
        %v5558 = vand.u32 %v599, 4294901760
        %v5559 = vsub.f32 %v599, %v5558
        %5560 = vmatprep.mubr.f32.mxu0 %v5559
        %v5561 = vand.u32 %v598, 4294901760
        %v5562 = vsub.f32 %v598, %v5561
        %5563 = vmatmul.mubr.f32.gmra.mrb[0].mxu0 %v5562
        %v5564 = vpop.f32.mrb[0].mxu0
        %v5565 = vadd.f32 %v5092, %v5564
        %v5566 = vpop.f32.mrb[0].mxu0
        %v5567 = vadd.f32 %v5094, %v5566
        %v5568 = vand.u32 %v601, 4294901760
        %v5569 = vsub.f32 %v601, %v5568
        %5570 = vmatprep.mubr.f32.mxu0 %v5569
        %v5571 = vand.u32 %v600, 4294901760
        %v5572 = vsub.f32 %v600, %v5571
        %5573 = vmatmul.mubr.f32.gmra.mrb[0].mxu0 %v5572
        %v5574 = vpop.f32.mrb[0].mxu0
        %v5575 = vadd.f32 %v5100, %v5574
        %v5576 = vpop.f32.mrb[0].mxu0
        %v5577 = vadd.f32 %v5102, %v5576
        %v5578 = vand.u32 %v603, 4294901760
        %v5579 = vsub.f32 %v603, %v5578
        %5580 = vmatprep.mubr.f32.mxu0 %v5579
        %v5581 = vand.u32 %v602, 4294901760
        %v5582 = vsub.f32 %v602, %v5581
        %5583 = vmatmul.mubr.f32.gmra.mrb[0].mxu0 %v5582
        %v5584 = vpop.f32.mrb[0].mxu0
        %v5585 = vadd.f32 %v5108, %v5584
        %v5586 = vpop.f32.mrb[0].mxu0
        %v5587 = vadd.f32 %v5110, %v5586
        %v5588 = vand.u32 %v605, 4294901760
        %v5589 = vsub.f32 %v605, %v5588
        %5590 = vmatprep.mubr.f32.mxu0 %v5589
        %v5591 = vand.u32 %v604, 4294901760
        %v5592 = vsub.f32 %v604, %v5591
        %5593 = vmatmul.mubr.f32.gmra.mrb[0].mxu0 %v5592
        %v5594 = vpop.f32.mrb[0].mxu0
        %v5595 = vadd.f32 %v5116, %v5594
        %v5596 = vpop.f32.mrb[0].mxu0
        %v5597 = vadd.f32 %v5118, %v5596
        %v5598 = vand.u32 %v607, 4294901760
        %v5599 = vsub.f32 %v607, %v5598
        %5600 = vmatprep.mubr.f32.mxu0 %v5599
        %v5601 = vand.u32 %v606, 4294901760
        %v5602 = vsub.f32 %v606, %v5601
        %5603 = vmatmul.mubr.f32.gmra.mrb[0].mxu0 %v5602
        %v5604 = vpop.f32.mrb[0].mxu0
        %v5605 = vadd.f32 %v5124, %v5604
        %v5606 = vpop.f32.mrb[0].mxu0
        %v5607 = vadd.f32 %v5126, %v5606
        %v5608 = vand.u32 %v609, 4294901760
        %v5609 = vsub.f32 %v609, %v5608
        %5610 = vmatprep.mubr.f32.mxu0 %v5609
        %v5611 = vand.u32 %v608, 4294901760
        %v5612 = vsub.f32 %v608, %v5611
        %5613 = vmatmul.mubr.f32.gmra.mrb[0].mxu0 %v5612
        %v5614 = vpop.f32.mrb[0].mxu0
        %v5615 = vadd.f32 %v5132, %v5614
        %v5616 = vpop.f32.mrb[0].mxu0
        %v5617 = vadd.f32 %v5134, %v5616
        %v5618 = vand.u32 %v611, 4294901760
        %v5619 = vsub.f32 %v611, %v5618
        %5620 = vmatprep.mubr.f32.mxu0 %v5619
        %v5621 = vand.u32 %v610, 4294901760
        %v5622 = vsub.f32 %v610, %v5621
        %5623 = vmatmul.mubr.f32.gmra.mrb[0].mxu0 %v5622
        %v5624 = vpop.f32.mrb[0].mxu0
        %v5625 = vadd.f32 %v5140, %v5624
        %v5626 = vpop.f32.mrb[0].mxu0
        %v5627 = vadd.f32 %v5142, %v5626
        %v5628 = vand.u32 %v613, 4294901760
        %v5629 = vsub.f32 %v613, %v5628
        %5630 = vmatprep.mubr.f32.mxu0 %v5629
        %v5631 = vand.u32 %v612, 4294901760
        %v5632 = vsub.f32 %v612, %v5631
        %5633 = vmatmul.mubr.f32.gmra.mrb[0].mxu0 %v5632
        %v5634 = vpop.f32.mrb[0].mxu0
        %v5635 = vadd.f32 %v5148, %v5634
        %v5636 = vpop.f32.mrb[0].mxu0
        %v5637 = vadd.f32 %v5150, %v5636
        %v5638 = vand.u32 %v615, 4294901760
        %v5639 = vsub.f32 %v615, %v5638
        %5640 = vmatprep.mubr.f32.mxu0 %v5639
        %v5641 = vand.u32 %v614, 4294901760
        %v5642 = vsub.f32 %v614, %v5641
        %5643 = vmatmul.mubr.f32.gmra.mrb[0].mxu0 %v5642
        %v5644 = vpop.f32.mrb[0].mxu0
        %v5645 = vadd.f32 %v5156, %v5644
        %v5646 = vpop.f32.mrb[0].mxu0
        %v5647 = vadd.f32 %v5158, %v5646
        %v5648 = vand.u32 %v617, 4294901760
        %v5649 = vsub.f32 %v617, %v5648
        %5650 = vmatprep.mubr.f32.mxu0 %v5649
        %v5651 = vand.u32 %v616, 4294901760
        %v5652 = vsub.f32 %v616, %v5651
        %5653 = vmatmul.mubr.f32.gmra.mrb[0].mxu0 %v5652
        %v5654 = vpop.f32.mrb[0].mxu0
        %v5655 = vadd.f32 %v5164, %v5654
        %v5656 = vpop.f32.mrb[0].mxu0
        %v5657 = vadd.f32 %v5166, %v5656
        %v5658 = vand.u32 %v619, 4294901760
        %v5659 = vsub.f32 %v619, %v5658
        %5660 = vmatprep.mubr.f32.mxu0 %v5659
        %v5661 = vand.u32 %v618, 4294901760
        %v5662 = vsub.f32 %v618, %v5661
        %5663 = vmatmul.mubr.f32.gmra.mrb[0].mxu0 %v5662
        %v5664 = vpop.f32.mrb[0].mxu0
        %v5665 = vadd.f32 %v5172, %v5664
        %v5666 = vpop.f32.mrb[0].mxu0
        %v5667 = vadd.f32 %v5174, %v5666
        %v5668 = vand.u32 %v621, 4294901760
        %v5669 = vsub.f32 %v621, %v5668
        %5670 = vmatprep.mubr.f32.mxu0 %v5669
        %v5671 = vand.u32 %v620, 4294901760
        %v5672 = vsub.f32 %v620, %v5671
        %5673 = vmatmul.mubr.f32.gmra.mrb[0].mxu0 %v5672
        %v5674 = vpop.f32.mrb[0].mxu0
        %v5675 = vadd.f32 %v5180, %v5674
        %v5676 = vpop.f32.mrb[0].mxu0
        %v5677 = vadd.f32 %v5182, %v5676
        %v5678 = vand.u32 %v623, 4294901760
        %v5679 = vsub.f32 %v623, %v5678
        %5680 = vmatprep.mubr.f32.mxu0 %v5679
        %v5681 = vand.u32 %v622, 4294901760
        %v5682 = vsub.f32 %v622, %v5681
        %5683 = vmatmul.mubr.f32.gmra.mrb[0].mxu0 %v5682
        %v5684 = vpop.f32.mrb[0].mxu0
        %v5685 = vadd.f32 %v5188, %v5684
        %v5686 = vpop.f32.mrb[0].mxu0
        %v5687 = vadd.f32 %v5190, %v5686
        %v5688 = vand.u32 %v625, 4294901760
        %v5689 = vsub.f32 %v625, %v5688
        %5690 = vmatprep.mubr.f32.mxu0 %v5689
        %v5691 = vand.u32 %v624, 4294901760
        %v5692 = vsub.f32 %v624, %v5691
        %5693 = vmatmul.mubr.f32.gmra.mrb[0].mxu0 %v5692
        %v5694 = vpop.f32.mrb[0].mxu0
        %v5695 = vadd.f32 %v5196, %v5694
        %v5696 = vpop.f32.mrb[0].mxu0
        %v5697 = vadd.f32 %v5198, %v5696
        %v5698 = vand.u32 %v627, 4294901760
        %v5699 = vsub.f32 %v627, %v5698
        %5700 = vmatprep.mubr.f32.mxu0 %v5699
        %v5701 = vand.u32 %v626, 4294901760
        %v5702 = vsub.f32 %v626, %v5701
        %5703 = vmatmul.mubr.f32.gmra.mrb[0].mxu0 %v5702
        %v5704 = vpop.f32.mrb[0].mxu0
        %v5705 = vadd.f32 %v5204, %v5704
        %v5706 = vpop.f32.mrb[0].mxu0
        %v5707 = vadd.f32 %v5206, %v5706
        %v5708 = vand.u32 %v629, 4294901760
        %v5709 = vsub.f32 %v629, %v5708
        %5710 = vmatprep.mubr.f32.mxu0 %v5709
        %v5711 = vand.u32 %v628, 4294901760
        %v5712 = vsub.f32 %v628, %v5711
        %5713 = vmatmul.mubr.f32.gmra.mrb[0].mxu0 %v5712
        %v5714 = vpop.f32.mrb[0].mxu0
        %v5715 = vadd.f32 %v5212, %v5714
        %v5716 = vpop.f32.mrb[0].mxu0
        %v5717 = vadd.f32 %v5214, %v5716
        %v5718 = vand.u32 %v631, 4294901760
        %v5719 = vsub.f32 %v631, %v5718
        %5720 = vmatprep.mubr.f32.mxu0 %v5719
        %v5721 = vand.u32 %v630, 4294901760
        %v5722 = vsub.f32 %v630, %v5721
        %5723 = vmatmul.mubr.f32.gmra.mrb[0].mxu0 %v5722
        %v5724 = vpop.f32.mrb[0].mxu0
        %v5725 = vadd.f32 %v5220, %v5724
        %v5726 = vpop.f32.mrb[0].mxu0
        %v5727 = vadd.f32 %v5222, %v5726
        %v5728 = vand.u32 %v633, 4294901760
        %v5729 = vsub.f32 %v633, %v5728
        %5730 = vmatprep.mubr.f32.mxu0 %v5729
        %v5731 = vand.u32 %v632, 4294901760
        %v5732 = vsub.f32 %v632, %v5731
        %5733 = vmatmul.mubr.f32.gmra.mrb[0].mxu0 %v5732
        %v5734 = vpop.f32.mrb[0].mxu0
        %v5735 = vadd.f32 %v5228, %v5734
        %v5736 = vpop.f32.mrb[0].mxu0
        %v5737 = vadd.f32 %v5230, %v5736
        %v5738 = vand.u32 %v635, 4294901760
        %v5739 = vsub.f32 %v635, %v5738
        %5740 = vmatprep.mubr.f32.mxu0 %v5739
        %v5741 = vand.u32 %v634, 4294901760
        %v5742 = vsub.f32 %v634, %v5741
        %5743 = vmatmul.mubr.f32.gmra.mrb[0].mxu0 %v5742
        %v5744 = vpop.f32.mrb[0].mxu0
        %v5745 = vadd.f32 %v5236, %v5744
        %v5746 = vpop.f32.mrb[0].mxu0
        %v5747 = vadd.f32 %v5238, %v5746
        %v5748 = vand.u32 %v637, 4294901760
        %v5749 = vsub.f32 %v637, %v5748
        %5750 = vmatprep.mubr.f32.mxu0 %v5749
        %v5751 = vand.u32 %v636, 4294901760
        %v5752 = vsub.f32 %v636, %v5751
        %5753 = vmatmul.mubr.f32.gmra.mrb[0].mxu0 %v5752
        %v5754 = vpop.f32.mrb[0].mxu0
        %v5755 = vadd.f32 %v5244, %v5754
        %v5756 = vpop.f32.mrb[0].mxu0
        %v5757 = vadd.f32 %v5246, %v5756
        %v5758 = vand.u32 %v639, 4294901760
        %v5759 = vsub.f32 %v639, %v5758
        %5760 = vmatprep.mubr.f32.mxu0 %v5759
        %v5761 = vand.u32 %v638, 4294901760
        %v5762 = vsub.f32 %v638, %v5761
        %5763 = vmatmul.mubr.f32.gmra.mrb[0].mxu0 %v5762
        %v5764 = vpop.f32.mrb[0].mxu0
        %v5765 = vadd.f32 %v5252, %v5764
        %v5766 = vpop.f32.mrb[0].mxu0
        %v5767 = vadd.f32 %v5254, %v5766
        %5768 = vdwg.mxu0
        %v5769 = vand.u32 %v643, 4294901760
        %5770 = vmatprep.subr.mxu0 %v5769
        %v5771 = vand.u32 %v642, 4294901760
        %5772 = vmatpush1.msra.mxu0 %v5771
        %v5773 = vand.u32 %v647, 4294901760
        %5774 = vmatprep.subr.mxu0 %v5773
        %v5775 = vand.u32 %v646, 4294901760
        %5776 = vmatpush1.msra.mxu0 %v5775
        %v5777 = vand.u32 %v651, 4294901760
        %5778 = vmatprep.subr.mxu0 %v5777
        %v5779 = vand.u32 %v650, 4294901760
        %5780 = vmatpush1.msra.mxu0 %v5779
        %v5781 = vand.u32 %v655, 4294901760
        %5782 = vmatprep.subr.mxu0 %v5781
        %v5783 = vand.u32 %v654, 4294901760
        %5784 = vmatpush1.msra.mxu0 %v5783
        %v5785 = vand.u32 %v659, 4294901760
        %5786 = vmatprep.subr.mxu0 %v5785
        %v5787 = vand.u32 %v658, 4294901760
        %5788 = vmatpush1.msra.mxu0 %v5787
        %v5789 = vand.u32 %v663, 4294901760
        %5790 = vmatprep.subr.mxu0 %v5789
        %v5791 = vand.u32 %v662, 4294901760
        %5792 = vmatpush1.msra.mxu0 %v5791
        %v5793 = vand.u32 %v667, 4294901760
        %5794 = vmatprep.subr.mxu0 %v5793
        %v5795 = vand.u32 %v666, 4294901760
        %5796 = vmatpush1.msra.mxu0 %v5795
        %v5797 = vand.u32 %v671, 4294901760
        %5798 = vmatprep.subr.mxu0 %v5797
        %v5799 = vand.u32 %v670, 4294901760
        %5800 = vmatpush1.msra.mxu0 %v5799
        %v5801 = vand.u32 %v675, 4294901760
        %5802 = vmatprep.subr.mxu0 %v5801
        %v5803 = vand.u32 %v674, 4294901760
        %5804 = vmatpush1.msra.mxu0 %v5803
        %v5805 = vand.u32 %v679, 4294901760
        %5806 = vmatprep.subr.mxu0 %v5805
        %v5807 = vand.u32 %v678, 4294901760
        %5808 = vmatpush1.msra.mxu0 %v5807
        %v5809 = vand.u32 %v683, 4294901760
        %5810 = vmatprep.subr.mxu0 %v5809
        %v5811 = vand.u32 %v682, 4294901760
        %5812 = vmatpush1.msra.mxu0 %v5811
        %v5813 = vand.u32 %v687, 4294901760
        %5814 = vmatprep.subr.mxu0 %v5813
        %v5815 = vand.u32 %v686, 4294901760
        %5816 = vmatpush1.msra.mxu0 %v5815
        %v5817 = vand.u32 %v691, 4294901760
        %5818 = vmatprep.subr.mxu0 %v5817
        %v5819 = vand.u32 %v690, 4294901760
        %5820 = vmatpush1.msra.mxu0 %v5819
        %v5821 = vand.u32 %v695, 4294901760
        %5822 = vmatprep.subr.mxu0 %v5821
        %v5823 = vand.u32 %v694, 4294901760
        %5824 = vmatpush1.msra.mxu0 %v5823
        %v5825 = vand.u32 %v699, 4294901760
        %5826 = vmatprep.subr.mxu0 %v5825
        %v5827 = vand.u32 %v698, 4294901760
        %5828 = vmatpush1.msra.mxu0 %v5827
        %v5829 = vand.u32 %v703, 4294901760
        %5830 = vmatprep.subr.mxu0 %v5829
        %v5831 = vand.u32 %v702, 4294901760
        %5832 = vmatpush1.msra.mxu0 %v5831
        %v5833 = vand.u32 %v707, 4294901760
        %5834 = vmatprep.subr.mxu0 %v5833
        %v5835 = vand.u32 %v706, 4294901760
        %5836 = vmatpush1.msra.mxu0 %v5835
        %v5837 = vand.u32 %v711, 4294901760
        %5838 = vmatprep.subr.mxu0 %v5837
        %v5839 = vand.u32 %v710, 4294901760
        %5840 = vmatpush1.msra.mxu0 %v5839
        %v5841 = vand.u32 %v715, 4294901760
        %5842 = vmatprep.subr.mxu0 %v5841
        %v5843 = vand.u32 %v714, 4294901760
        %5844 = vmatpush1.msra.mxu0 %v5843
        %v5845 = vand.u32 %v719, 4294901760
        %5846 = vmatprep.subr.mxu0 %v5845
        %v5847 = vand.u32 %v718, 4294901760
        %5848 = vmatpush1.msra.mxu0 %v5847
        %v5849 = vand.u32 %v723, 4294901760
        %5850 = vmatprep.subr.mxu0 %v5849
        %v5851 = vand.u32 %v722, 4294901760
        %5852 = vmatpush1.msra.mxu0 %v5851
        %v5853 = vand.u32 %v727, 4294901760
        %5854 = vmatprep.subr.mxu0 %v5853
        %v5855 = vand.u32 %v726, 4294901760
        %5856 = vmatpush1.msra.mxu0 %v5855
        %v5857 = vand.u32 %v731, 4294901760
        %5858 = vmatprep.subr.mxu0 %v5857
        %v5859 = vand.u32 %v730, 4294901760
        %5860 = vmatpush1.msra.mxu0 %v5859
        %v5861 = vand.u32 %v735, 4294901760
        %5862 = vmatprep.subr.mxu0 %v5861
        %v5863 = vand.u32 %v734, 4294901760
        %5864 = vmatpush1.msra.mxu0 %v5863
        %v5865 = vand.u32 %v739, 4294901760
        %5866 = vmatprep.subr.mxu0 %v5865
        %v5867 = vand.u32 %v738, 4294901760
        %5868 = vmatpush1.msra.mxu0 %v5867
        %v5869 = vand.u32 %v743, 4294901760
        %5870 = vmatprep.subr.mxu0 %v5869
        %v5871 = vand.u32 %v742, 4294901760
        %5872 = vmatpush1.msra.mxu0 %v5871
        %v5873 = vand.u32 %v747, 4294901760
        %5874 = vmatprep.subr.mxu0 %v5873
        %v5875 = vand.u32 %v746, 4294901760
        %5876 = vmatpush1.msra.mxu0 %v5875
        %v5877 = vand.u32 %v751, 4294901760
        %5878 = vmatprep.subr.mxu0 %v5877
        %v5879 = vand.u32 %v750, 4294901760
        %5880 = vmatpush1.msra.mxu0 %v5879
        %v5881 = vand.u32 %v755, 4294901760
        %5882 = vmatprep.subr.mxu0 %v5881
        %v5883 = vand.u32 %v754, 4294901760
        %5884 = vmatpush1.msra.mxu0 %v5883
        %v5885 = vand.u32 %v759, 4294901760
        %5886 = vmatprep.subr.mxu0 %v5885
        %v5887 = vand.u32 %v758, 4294901760
        %5888 = vmatpush1.msra.mxu0 %v5887
        %v5889 = vand.u32 %v763, 4294901760
        %5890 = vmatprep.subr.mxu0 %v5889
        %v5891 = vand.u32 %v762, 4294901760
        %5892 = vmatpush1.msra.mxu0 %v5891
        %v5893 = vand.u32 %v767, 4294901760
        %5894 = vmatprep.subr.mxu0 %v5893
        %v5895 = vand.u32 %v766, 4294901760
        %5896 = vmatpush1.msra.mxu0 %v5895
        %v5897 = vand.u32 %v577, 4294901760
        %v5898 = vsub.f32 %v577, %v5897
        %v5899 = vand.u32 %v5898, 4294901760
        %5900 = vmatprep.mubr.f32.mxu0 %v5899
        %v5901 = vand.u32 %v576, 4294901760
        %v5902 = vsub.f32 %v576, %v5901
        %v5903 = vand.u32 %v5902, 4294901760
        %5904 = vmatmul.mubr.f32.gmra.mrb[0].mxu0 %v5903
        %v5905 = vpop.f32.mrb[0].mxu0
        %v5906 = vadd.f32 %v5455, %v5905
        %v5907 = vpop.f32.mrb[0].mxu0
        %v5908 = vadd.f32 %v5457, %v5907
        %v5909 = vand.u32 %v579, 4294901760
        %v5910 = vsub.f32 %v579, %v5909
        %v5911 = vand.u32 %v5910, 4294901760
        %5912 = vmatprep.mubr.f32.mxu0 %v5911
        %v5913 = vand.u32 %v578, 4294901760
        %v5914 = vsub.f32 %v578, %v5913
        %v5915 = vand.u32 %v5914, 4294901760
        %5916 = vmatmul.mubr.f32.gmra.mrb[0].mxu0 %v5915
        %v5917 = vpop.f32.mrb[0].mxu0
        %v5918 = vadd.f32 %v5465, %v5917
        %v5919 = vpop.f32.mrb[0].mxu0
        %v5920 = vadd.f32 %v5467, %v5919
        %v5921 = vand.u32 %v581, 4294901760
        %v5922 = vsub.f32 %v581, %v5921
        %v5923 = vand.u32 %v5922, 4294901760
        %5924 = vmatprep.mubr.f32.mxu0 %v5923
        %v5925 = vand.u32 %v580, 4294901760
        %v5926 = vsub.f32 %v580, %v5925
        %v5927 = vand.u32 %v5926, 4294901760
        %5928 = vmatmul.mubr.f32.gmra.mrb[0].mxu0 %v5927
        %v5929 = vpop.f32.mrb[0].mxu0
        %v5930 = vadd.f32 %v5475, %v5929
        %v5931 = vpop.f32.mrb[0].mxu0
        %v5932 = vadd.f32 %v5477, %v5931
        %v5933 = vand.u32 %v583, 4294901760
        %v5934 = vsub.f32 %v583, %v5933
        %v5935 = vand.u32 %v5934, 4294901760
        %5936 = vmatprep.mubr.f32.mxu0 %v5935
        %v5937 = vand.u32 %v582, 4294901760
        %v5938 = vsub.f32 %v582, %v5937
        %v5939 = vand.u32 %v5938, 4294901760
        %5940 = vmatmul.mubr.f32.gmra.mrb[0].mxu0 %v5939
        %v5941 = vpop.f32.mrb[0].mxu0
        %v5942 = vadd.f32 %v5485, %v5941
        %v5943 = vpop.f32.mrb[0].mxu0
        %v5944 = vadd.f32 %v5487, %v5943
        %v5945 = vand.u32 %v585, 4294901760
        %v5946 = vsub.f32 %v585, %v5945
        %v5947 = vand.u32 %v5946, 4294901760
        %5948 = vmatprep.mubr.f32.mxu0 %v5947
        %v5949 = vand.u32 %v584, 4294901760
        %v5950 = vsub.f32 %v584, %v5949
        %v5951 = vand.u32 %v5950, 4294901760
        %5952 = vmatmul.mubr.f32.gmra.mrb[0].mxu0 %v5951
        %v5953 = vpop.f32.mrb[0].mxu0
        %v5954 = vadd.f32 %v5495, %v5953
        %v5955 = vpop.f32.mrb[0].mxu0
        %v5956 = vadd.f32 %v5497, %v5955
        %v5957 = vand.u32 %v587, 4294901760
        %v5958 = vsub.f32 %v587, %v5957
        %v5959 = vand.u32 %v5958, 4294901760
        %5960 = vmatprep.mubr.f32.mxu0 %v5959
        %v5961 = vand.u32 %v586, 4294901760
        %v5962 = vsub.f32 %v586, %v5961
        %v5963 = vand.u32 %v5962, 4294901760
        %5964 = vmatmul.mubr.f32.gmra.mrb[0].mxu0 %v5963
        %v5965 = vpop.f32.mrb[0].mxu0
        %v5966 = vadd.f32 %v5505, %v5965
        %v5967 = vpop.f32.mrb[0].mxu0
        %v5968 = vadd.f32 %v5507, %v5967
        %v5969 = vand.u32 %v589, 4294901760
        %v5970 = vsub.f32 %v589, %v5969
        %v5971 = vand.u32 %v5970, 4294901760
        %5972 = vmatprep.mubr.f32.mxu0 %v5971
        %v5973 = vand.u32 %v588, 4294901760
        %v5974 = vsub.f32 %v588, %v5973
        %v5975 = vand.u32 %v5974, 4294901760
        %5976 = vmatmul.mubr.f32.gmra.mrb[0].mxu0 %v5975
        %v5977 = vpop.f32.mrb[0].mxu0
        %v5978 = vadd.f32 %v5515, %v5977
        %v5979 = vpop.f32.mrb[0].mxu0
        %v5980 = vadd.f32 %v5517, %v5979
        %v5981 = vand.u32 %v591, 4294901760
        %v5982 = vsub.f32 %v591, %v5981
        %v5983 = vand.u32 %v5982, 4294901760
        %5984 = vmatprep.mubr.f32.mxu0 %v5983
        %v5985 = vand.u32 %v590, 4294901760
        %v5986 = vsub.f32 %v590, %v5985
        %v5987 = vand.u32 %v5986, 4294901760
        %5988 = vmatmul.mubr.f32.gmra.mrb[0].mxu0 %v5987
        %v5989 = vpop.f32.mrb[0].mxu0
        %v5990 = vadd.f32 %v5525, %v5989
        %v5991 = vpop.f32.mrb[0].mxu0
        %v5992 = vadd.f32 %v5527, %v5991
        %v5993 = vand.u32 %v593, 4294901760
        %v5994 = vsub.f32 %v593, %v5993
        %v5995 = vand.u32 %v5994, 4294901760
        %5996 = vmatprep.mubr.f32.mxu0 %v5995
        %v5997 = vand.u32 %v592, 4294901760
        %v5998 = vsub.f32 %v592, %v5997
        %v5999 = vand.u32 %v5998, 4294901760
        %6000 = vmatmul.mubr.f32.gmra.mrb[0].mxu0 %v5999
        %v6001 = vpop.f32.mrb[0].mxu0
        %v6002 = vadd.f32 %v5535, %v6001
        %v6003 = vpop.f32.mrb[0].mxu0
        %v6004 = vadd.f32 %v5537, %v6003
        %v6005 = vand.u32 %v595, 4294901760
        %v6006 = vsub.f32 %v595, %v6005
        %v6007 = vand.u32 %v6006, 4294901760
        %6008 = vmatprep.mubr.f32.mxu0 %v6007
        %v6009 = vand.u32 %v594, 4294901760
        %v6010 = vsub.f32 %v594, %v6009
        %v6011 = vand.u32 %v6010, 4294901760
        %6012 = vmatmul.mubr.f32.gmra.mrb[0].mxu0 %v6011
        %v6013 = vpop.f32.mrb[0].mxu0
        %v6014 = vadd.f32 %v5545, %v6013
        %v6015 = vpop.f32.mrb[0].mxu0
        %v6016 = vadd.f32 %v5547, %v6015
        %v6017 = vand.u32 %v597, 4294901760
        %v6018 = vsub.f32 %v597, %v6017
        %v6019 = vand.u32 %v6018, 4294901760
        %6020 = vmatprep.mubr.f32.mxu0 %v6019
        %v6021 = vand.u32 %v596, 4294901760
        %v6022 = vsub.f32 %v596, %v6021
        %v6023 = vand.u32 %v6022, 4294901760
        %6024 = vmatmul.mubr.f32.gmra.mrb[0].mxu0 %v6023
        %v6025 = vpop.f32.mrb[0].mxu0
        %v6026 = vadd.f32 %v5555, %v6025
        %v6027 = vpop.f32.mrb[0].mxu0
        %v6028 = vadd.f32 %v5557, %v6027
        %v6029 = vand.u32 %v599, 4294901760
        %v6030 = vsub.f32 %v599, %v6029
        %v6031 = vand.u32 %v6030, 4294901760
        %6032 = vmatprep.mubr.f32.mxu0 %v6031
        %v6033 = vand.u32 %v598, 4294901760
        %v6034 = vsub.f32 %v598, %v6033
        %v6035 = vand.u32 %v6034, 4294901760
        %6036 = vmatmul.mubr.f32.gmra.mrb[0].mxu0 %v6035
        %v6037 = vpop.f32.mrb[0].mxu0
        %v6038 = vadd.f32 %v5565, %v6037
        %v6039 = vpop.f32.mrb[0].mxu0
        %v6040 = vadd.f32 %v5567, %v6039
        %v6041 = vand.u32 %v601, 4294901760
        %v6042 = vsub.f32 %v601, %v6041
        %v6043 = vand.u32 %v6042, 4294901760
        %6044 = vmatprep.mubr.f32.mxu0 %v6043
        %v6045 = vand.u32 %v600, 4294901760
        %v6046 = vsub.f32 %v600, %v6045
        %v6047 = vand.u32 %v6046, 4294901760
        %6048 = vmatmul.mubr.f32.gmra.mrb[0].mxu0 %v6047
        %v6049 = vpop.f32.mrb[0].mxu0
        %v6050 = vadd.f32 %v5575, %v6049
        %v6051 = vpop.f32.mrb[0].mxu0
        %v6052 = vadd.f32 %v5577, %v6051
        %v6053 = vand.u32 %v603, 4294901760
        %v6054 = vsub.f32 %v603, %v6053
        %v6055 = vand.u32 %v6054, 4294901760
        %6056 = vmatprep.mubr.f32.mxu0 %v6055
        %v6057 = vand.u32 %v602, 4294901760
        %v6058 = vsub.f32 %v602, %v6057
        %v6059 = vand.u32 %v6058, 4294901760
        %6060 = vmatmul.mubr.f32.gmra.mrb[0].mxu0 %v6059
        %v6061 = vpop.f32.mrb[0].mxu0
        %v6062 = vadd.f32 %v5585, %v6061
        %v6063 = vpop.f32.mrb[0].mxu0
        %v6064 = vadd.f32 %v5587, %v6063
        %v6065 = vand.u32 %v605, 4294901760
        %v6066 = vsub.f32 %v605, %v6065
        %v6067 = vand.u32 %v6066, 4294901760
        %6068 = vmatprep.mubr.f32.mxu0 %v6067
        %v6069 = vand.u32 %v604, 4294901760
        %v6070 = vsub.f32 %v604, %v6069
        %v6071 = vand.u32 %v6070, 4294901760
        %6072 = vmatmul.mubr.f32.gmra.mrb[0].mxu0 %v6071
        %v6073 = vpop.f32.mrb[0].mxu0
        %v6074 = vadd.f32 %v5595, %v6073
        %v6075 = vpop.f32.mrb[0].mxu0
        %v6076 = vadd.f32 %v5597, %v6075
        %v6077 = vand.u32 %v607, 4294901760
        %v6078 = vsub.f32 %v607, %v6077
        %v6079 = vand.u32 %v6078, 4294901760
        %6080 = vmatprep.mubr.f32.mxu0 %v6079
        %v6081 = vand.u32 %v606, 4294901760
        %v6082 = vsub.f32 %v606, %v6081
        %v6083 = vand.u32 %v6082, 4294901760
        %6084 = vmatmul.mubr.f32.gmra.mrb[0].mxu0 %v6083
        %v6085 = vpop.f32.mrb[0].mxu0
        %v6086 = vadd.f32 %v5605, %v6085
        %v6087 = vpop.f32.mrb[0].mxu0
        %v6088 = vadd.f32 %v5607, %v6087
        %v6089 = vand.u32 %v609, 4294901760
        %v6090 = vsub.f32 %v609, %v6089
        %v6091 = vand.u32 %v6090, 4294901760
        %6092 = vmatprep.mubr.f32.mxu0 %v6091
        %v6093 = vand.u32 %v608, 4294901760
        %v6094 = vsub.f32 %v608, %v6093
        %v6095 = vand.u32 %v6094, 4294901760
        %6096 = vmatmul.mubr.f32.gmra.mrb[0].mxu0 %v6095
        %v6097 = vpop.f32.mrb[0].mxu0
        %v6098 = vadd.f32 %v5615, %v6097
        %v6099 = vpop.f32.mrb[0].mxu0
        %v6100 = vadd.f32 %v5617, %v6099
        %v6101 = vand.u32 %v611, 4294901760
        %v6102 = vsub.f32 %v611, %v6101
        %v6103 = vand.u32 %v6102, 4294901760
        %6104 = vmatprep.mubr.f32.mxu0 %v6103
        %v6105 = vand.u32 %v610, 4294901760
        %v6106 = vsub.f32 %v610, %v6105
        %v6107 = vand.u32 %v6106, 4294901760
        %6108 = vmatmul.mubr.f32.gmra.mrb[0].mxu0 %v6107
        %v6109 = vpop.f32.mrb[0].mxu0
        %v6110 = vadd.f32 %v5625, %v6109
        %v6111 = vpop.f32.mrb[0].mxu0
        %v6112 = vadd.f32 %v5627, %v6111
        %v6113 = vand.u32 %v613, 4294901760
        %v6114 = vsub.f32 %v613, %v6113
        %v6115 = vand.u32 %v6114, 4294901760
        %6116 = vmatprep.mubr.f32.mxu0 %v6115
        %v6117 = vand.u32 %v612, 4294901760
        %v6118 = vsub.f32 %v612, %v6117
        %v6119 = vand.u32 %v6118, 4294901760
        %6120 = vmatmul.mubr.f32.gmra.mrb[0].mxu0 %v6119
        %v6121 = vpop.f32.mrb[0].mxu0
        %v6122 = vadd.f32 %v5635, %v6121
        %v6123 = vpop.f32.mrb[0].mxu0
        %v6124 = vadd.f32 %v5637, %v6123
        %v6125 = vand.u32 %v615, 4294901760
        %v6126 = vsub.f32 %v615, %v6125
        %v6127 = vand.u32 %v6126, 4294901760
        %6128 = vmatprep.mubr.f32.mxu0 %v6127
        %v6129 = vand.u32 %v614, 4294901760
        %v6130 = vsub.f32 %v614, %v6129
        %v6131 = vand.u32 %v6130, 4294901760
        %6132 = vmatmul.mubr.f32.gmra.mrb[0].mxu0 %v6131
        %v6133 = vpop.f32.mrb[0].mxu0
        %v6134 = vadd.f32 %v5645, %v6133
        %v6135 = vpop.f32.mrb[0].mxu0
        %v6136 = vadd.f32 %v5647, %v6135
        %v6137 = vand.u32 %v617, 4294901760
        %v6138 = vsub.f32 %v617, %v6137
        %v6139 = vand.u32 %v6138, 4294901760
        %6140 = vmatprep.mubr.f32.mxu0 %v6139
        %v6141 = vand.u32 %v616, 4294901760
        %v6142 = vsub.f32 %v616, %v6141
        %v6143 = vand.u32 %v6142, 4294901760
        %6144 = vmatmul.mubr.f32.gmra.mrb[0].mxu0 %v6143
        %v6145 = vpop.f32.mrb[0].mxu0
        %v6146 = vadd.f32 %v5655, %v6145
        %v6147 = vpop.f32.mrb[0].mxu0
        %v6148 = vadd.f32 %v5657, %v6147
        %v6149 = vand.u32 %v619, 4294901760
        %v6150 = vsub.f32 %v619, %v6149
        %v6151 = vand.u32 %v6150, 4294901760
        %6152 = vmatprep.mubr.f32.mxu0 %v6151
        %v6153 = vand.u32 %v618, 4294901760
        %v6154 = vsub.f32 %v618, %v6153
        %v6155 = vand.u32 %v6154, 4294901760
        %6156 = vmatmul.mubr.f32.gmra.mrb[0].mxu0 %v6155
        %v6157 = vpop.f32.mrb[0].mxu0
        %v6158 = vadd.f32 %v5665, %v6157
        %v6159 = vpop.f32.mrb[0].mxu0
        %v6160 = vadd.f32 %v5667, %v6159
        %v6161 = vand.u32 %v621, 4294901760
        %v6162 = vsub.f32 %v621, %v6161
        %v6163 = vand.u32 %v6162, 4294901760
        %6164 = vmatprep.mubr.f32.mxu0 %v6163
        %v6165 = vand.u32 %v620, 4294901760
        %v6166 = vsub.f32 %v620, %v6165
        %v6167 = vand.u32 %v6166, 4294901760
        %6168 = vmatmul.mubr.f32.gmra.mrb[0].mxu0 %v6167
        %v6169 = vpop.f32.mrb[0].mxu0
        %v6170 = vadd.f32 %v5675, %v6169
        %v6171 = vpop.f32.mrb[0].mxu0
        %v6172 = vadd.f32 %v5677, %v6171
        %v6173 = vand.u32 %v623, 4294901760
        %v6174 = vsub.f32 %v623, %v6173
        %v6175 = vand.u32 %v6174, 4294901760
        %6176 = vmatprep.mubr.f32.mxu0 %v6175
        %v6177 = vand.u32 %v622, 4294901760
        %v6178 = vsub.f32 %v622, %v6177
        %v6179 = vand.u32 %v6178, 4294901760
        %6180 = vmatmul.mubr.f32.gmra.mrb[0].mxu0 %v6179
        %v6181 = vpop.f32.mrb[0].mxu0
        %v6182 = vadd.f32 %v5685, %v6181
        %v6183 = vpop.f32.mrb[0].mxu0
        %v6184 = vadd.f32 %v5687, %v6183
        %v6185 = vand.u32 %v625, 4294901760
        %v6186 = vsub.f32 %v625, %v6185
        %v6187 = vand.u32 %v6186, 4294901760
        %6188 = vmatprep.mubr.f32.mxu0 %v6187
        %v6189 = vand.u32 %v624, 4294901760
        %v6190 = vsub.f32 %v624, %v6189
        %v6191 = vand.u32 %v6190, 4294901760
        %6192 = vmatmul.mubr.f32.gmra.mrb[0].mxu0 %v6191
        %v6193 = vpop.f32.mrb[0].mxu0
        %v6194 = vadd.f32 %v5695, %v6193
        %v6195 = vpop.f32.mrb[0].mxu0
        %v6196 = vadd.f32 %v5697, %v6195
        %v6197 = vand.u32 %v627, 4294901760
        %v6198 = vsub.f32 %v627, %v6197
        %v6199 = vand.u32 %v6198, 4294901760
        %6200 = vmatprep.mubr.f32.mxu0 %v6199
        %v6201 = vand.u32 %v626, 4294901760
        %v6202 = vsub.f32 %v626, %v6201
        %v6203 = vand.u32 %v6202, 4294901760
        %6204 = vmatmul.mubr.f32.gmra.mrb[0].mxu0 %v6203
        %v6205 = vpop.f32.mrb[0].mxu0
        %v6206 = vadd.f32 %v5705, %v6205
        %v6207 = vpop.f32.mrb[0].mxu0
        %v6208 = vadd.f32 %v5707, %v6207
        %v6209 = vand.u32 %v629, 4294901760
        %v6210 = vsub.f32 %v629, %v6209
        %v6211 = vand.u32 %v6210, 4294901760
        %6212 = vmatprep.mubr.f32.mxu0 %v6211
        %v6213 = vand.u32 %v628, 4294901760
        %v6214 = vsub.f32 %v628, %v6213
        %v6215 = vand.u32 %v6214, 4294901760
        %6216 = vmatmul.mubr.f32.gmra.mrb[0].mxu0 %v6215
        %v6217 = vpop.f32.mrb[0].mxu0
        %v6218 = vadd.f32 %v5715, %v6217
        %v6219 = vpop.f32.mrb[0].mxu0
        %v6220 = vadd.f32 %v5717, %v6219
        %v6221 = vand.u32 %v631, 4294901760
        %v6222 = vsub.f32 %v631, %v6221
        %v6223 = vand.u32 %v6222, 4294901760
        %6224 = vmatprep.mubr.f32.mxu0 %v6223
        %v6225 = vand.u32 %v630, 4294901760
        %v6226 = vsub.f32 %v630, %v6225
        %v6227 = vand.u32 %v6226, 4294901760
        %6228 = vmatmul.mubr.f32.gmra.mrb[0].mxu0 %v6227
        %v6229 = vpop.f32.mrb[0].mxu0
        %v6230 = vadd.f32 %v5725, %v6229
        %v6231 = vpop.f32.mrb[0].mxu0
        %v6232 = vadd.f32 %v5727, %v6231
        %v6233 = vand.u32 %v633, 4294901760
        %v6234 = vsub.f32 %v633, %v6233
        %v6235 = vand.u32 %v6234, 4294901760
        %6236 = vmatprep.mubr.f32.mxu0 %v6235
        %v6237 = vand.u32 %v632, 4294901760
        %v6238 = vsub.f32 %v632, %v6237
        %v6239 = vand.u32 %v6238, 4294901760
        %6240 = vmatmul.mubr.f32.gmra.mrb[0].mxu0 %v6239
        %v6241 = vpop.f32.mrb[0].mxu0
        %v6242 = vadd.f32 %v5735, %v6241
        %v6243 = vpop.f32.mrb[0].mxu0
        %v6244 = vadd.f32 %v5737, %v6243
        %v6245 = vand.u32 %v635, 4294901760
        %v6246 = vsub.f32 %v635, %v6245
        %v6247 = vand.u32 %v6246, 4294901760
        %6248 = vmatprep.mubr.f32.mxu0 %v6247
        %v6249 = vand.u32 %v634, 4294901760
        %v6250 = vsub.f32 %v634, %v6249
        %v6251 = vand.u32 %v6250, 4294901760
        %6252 = vmatmul.mubr.f32.gmra.mrb[0].mxu0 %v6251
        %v6253 = vpop.f32.mrb[0].mxu0
        %v6254 = vadd.f32 %v5745, %v6253
        %v6255 = vpop.f32.mrb[0].mxu0
        %v6256 = vadd.f32 %v5747, %v6255
        %v6257 = vand.u32 %v637, 4294901760
        %v6258 = vsub.f32 %v637, %v6257
        %v6259 = vand.u32 %v6258, 4294901760
        %6260 = vmatprep.mubr.f32.mxu0 %v6259
        %v6261 = vand.u32 %v636, 4294901760
        %v6262 = vsub.f32 %v636, %v6261
        %v6263 = vand.u32 %v6262, 4294901760
        %6264 = vmatmul.mubr.f32.gmra.mrb[0].mxu0 %v6263
        %v6265 = vpop.f32.mrb[0].mxu0
        %v6266 = vadd.f32 %v5755, %v6265
        %v6267 = vpop.f32.mrb[0].mxu0
        %v6268 = vadd.f32 %v5757, %v6267
        %v6269 = vand.u32 %v639, 4294901760
        %v6270 = vsub.f32 %v639, %v6269
        %v6271 = vand.u32 %v6270, 4294901760
        %6272 = vmatprep.mubr.f32.mxu0 %v6271
        %v6273 = vand.u32 %v638, 4294901760
        %v6274 = vsub.f32 %v638, %v6273
        %v6275 = vand.u32 %v6274, 4294901760
        %6276 = vmatmul.mubr.f32.gmra.mrb[0].mxu0 %v6275
        %v6277 = vpop.f32.mrb[0].mxu0
        %v6278 = vadd.f32 %v5765, %v6277
        %v6279 = vpop.f32.mrb[0].mxu0
        %v6280 = vadd.f32 %v5767, %v6279
        %6281 = vdwg.mxu0
        %v6282 = vand.u32 %v643, 4294901760
        %v6283 = vsub.f32 %v643, %v6282
        %v6284 = vand.u32 %v6283, 4294901760
        %6285 = vmatprep.subr.mxu0 %v6284
        %v6286 = vand.u32 %v642, 4294901760
        %v6287 = vsub.f32 %v642, %v6286
        %v6288 = vand.u32 %v6287, 4294901760
        %6289 = vmatpush1.msra.mxu0 %v6288
        %v6290 = vand.u32 %v647, 4294901760
        %v6291 = vsub.f32 %v647, %v6290
        %v6292 = vand.u32 %v6291, 4294901760
        %6293 = vmatprep.subr.mxu0 %v6292
        %v6294 = vand.u32 %v646, 4294901760
        %v6295 = vsub.f32 %v646, %v6294
        %v6296 = vand.u32 %v6295, 4294901760
        %6297 = vmatpush1.msra.mxu0 %v6296
        %v6298 = vand.u32 %v651, 4294901760
        %v6299 = vsub.f32 %v651, %v6298
        %v6300 = vand.u32 %v6299, 4294901760
        %6301 = vmatprep.subr.mxu0 %v6300
        %v6302 = vand.u32 %v650, 4294901760
        %v6303 = vsub.f32 %v650, %v6302
        %v6304 = vand.u32 %v6303, 4294901760
        %6305 = vmatpush1.msra.mxu0 %v6304
        %v6306 = vand.u32 %v655, 4294901760
        %v6307 = vsub.f32 %v655, %v6306
        %v6308 = vand.u32 %v6307, 4294901760
        %6309 = vmatprep.subr.mxu0 %v6308
        %v6310 = vand.u32 %v654, 4294901760
        %v6311 = vsub.f32 %v654, %v6310
        %v6312 = vand.u32 %v6311, 4294901760
        %6313 = vmatpush1.msra.mxu0 %v6312
        %v6314 = vand.u32 %v659, 4294901760
        %v6315 = vsub.f32 %v659, %v6314
        %v6316 = vand.u32 %v6315, 4294901760
        %6317 = vmatprep.subr.mxu0 %v6316
        %v6318 = vand.u32 %v658, 4294901760
        %v6319 = vsub.f32 %v658, %v6318
        %v6320 = vand.u32 %v6319, 4294901760
        %6321 = vmatpush1.msra.mxu0 %v6320
        %v6322 = vand.u32 %v663, 4294901760
        %v6323 = vsub.f32 %v663, %v6322
        %v6324 = vand.u32 %v6323, 4294901760
        %6325 = vmatprep.subr.mxu0 %v6324
        %v6326 = vand.u32 %v662, 4294901760
        %v6327 = vsub.f32 %v662, %v6326
        %v6328 = vand.u32 %v6327, 4294901760
        %6329 = vmatpush1.msra.mxu0 %v6328
        %v6330 = vand.u32 %v667, 4294901760
        %v6331 = vsub.f32 %v667, %v6330
        %v6332 = vand.u32 %v6331, 4294901760
        %6333 = vmatprep.subr.mxu0 %v6332
        %v6334 = vand.u32 %v666, 4294901760
        %v6335 = vsub.f32 %v666, %v6334
        %v6336 = vand.u32 %v6335, 4294901760
        %6337 = vmatpush1.msra.mxu0 %v6336
        %v6338 = vand.u32 %v671, 4294901760
        %v6339 = vsub.f32 %v671, %v6338
        %v6340 = vand.u32 %v6339, 4294901760
        %6341 = vmatprep.subr.mxu0 %v6340
        %v6342 = vand.u32 %v670, 4294901760
        %v6343 = vsub.f32 %v670, %v6342
        %v6344 = vand.u32 %v6343, 4294901760
        %6345 = vmatpush1.msra.mxu0 %v6344
        %v6346 = vand.u32 %v675, 4294901760
        %v6347 = vsub.f32 %v675, %v6346
        %v6348 = vand.u32 %v6347, 4294901760
        %6349 = vmatprep.subr.mxu0 %v6348
        %v6350 = vand.u32 %v674, 4294901760
        %v6351 = vsub.f32 %v674, %v6350
        %v6352 = vand.u32 %v6351, 4294901760
        %6353 = vmatpush1.msra.mxu0 %v6352
        %v6354 = vand.u32 %v679, 4294901760
        %v6355 = vsub.f32 %v679, %v6354
        %v6356 = vand.u32 %v6355, 4294901760
        %6357 = vmatprep.subr.mxu0 %v6356
        %v6358 = vand.u32 %v678, 4294901760
        %v6359 = vsub.f32 %v678, %v6358
        %v6360 = vand.u32 %v6359, 4294901760
        %6361 = vmatpush1.msra.mxu0 %v6360
        %v6362 = vand.u32 %v683, 4294901760
        %v6363 = vsub.f32 %v683, %v6362
        %v6364 = vand.u32 %v6363, 4294901760
        %6365 = vmatprep.subr.mxu0 %v6364
        %v6366 = vand.u32 %v682, 4294901760
        %v6367 = vsub.f32 %v682, %v6366
        %v6368 = vand.u32 %v6367, 4294901760
        %6369 = vmatpush1.msra.mxu0 %v6368
        %v6370 = vand.u32 %v687, 4294901760
        %v6371 = vsub.f32 %v687, %v6370
        %v6372 = vand.u32 %v6371, 4294901760
        %6373 = vmatprep.subr.mxu0 %v6372
        %v6374 = vand.u32 %v686, 4294901760
        %v6375 = vsub.f32 %v686, %v6374
        %v6376 = vand.u32 %v6375, 4294901760
        %6377 = vmatpush1.msra.mxu0 %v6376
        %v6378 = vand.u32 %v691, 4294901760
        %v6379 = vsub.f32 %v691, %v6378
        %v6380 = vand.u32 %v6379, 4294901760
        %6381 = vmatprep.subr.mxu0 %v6380
        %v6382 = vand.u32 %v690, 4294901760
        %v6383 = vsub.f32 %v690, %v6382
        %v6384 = vand.u32 %v6383, 4294901760
        %6385 = vmatpush1.msra.mxu0 %v6384
        %v6386 = vand.u32 %v695, 4294901760
        %v6387 = vsub.f32 %v695, %v6386
        %v6388 = vand.u32 %v6387, 4294901760
        %6389 = vmatprep.subr.mxu0 %v6388
        %v6390 = vand.u32 %v694, 4294901760
        %v6391 = vsub.f32 %v694, %v6390
        %v6392 = vand.u32 %v6391, 4294901760
        %6393 = vmatpush1.msra.mxu0 %v6392
        %v6394 = vand.u32 %v699, 4294901760
        %v6395 = vsub.f32 %v699, %v6394
        %v6396 = vand.u32 %v6395, 4294901760
        %6397 = vmatprep.subr.mxu0 %v6396
        %v6398 = vand.u32 %v698, 4294901760
        %v6399 = vsub.f32 %v698, %v6398
        %v6400 = vand.u32 %v6399, 4294901760
        %6401 = vmatpush1.msra.mxu0 %v6400
        %v6402 = vand.u32 %v703, 4294901760
        %v6403 = vsub.f32 %v703, %v6402
        %v6404 = vand.u32 %v6403, 4294901760
        %6405 = vmatprep.subr.mxu0 %v6404
        %v6406 = vand.u32 %v702, 4294901760
        %v6407 = vsub.f32 %v702, %v6406
        %v6408 = vand.u32 %v6407, 4294901760
        %6409 = vmatpush1.msra.mxu0 %v6408
        %v6410 = vand.u32 %v707, 4294901760
        %v6411 = vsub.f32 %v707, %v6410
        %v6412 = vand.u32 %v6411, 4294901760
        %6413 = vmatprep.subr.mxu0 %v6412
        %v6414 = vand.u32 %v706, 4294901760
        %v6415 = vsub.f32 %v706, %v6414
        %v6416 = vand.u32 %v6415, 4294901760
        %6417 = vmatpush1.msra.mxu0 %v6416
        %v6418 = vand.u32 %v711, 4294901760
        %v6419 = vsub.f32 %v711, %v6418
        %v6420 = vand.u32 %v6419, 4294901760
        %6421 = vmatprep.subr.mxu0 %v6420
        %v6422 = vand.u32 %v710, 4294901760
        %v6423 = vsub.f32 %v710, %v6422
        %v6424 = vand.u32 %v6423, 4294901760
        %6425 = vmatpush1.msra.mxu0 %v6424
        %v6426 = vand.u32 %v715, 4294901760
        %v6427 = vsub.f32 %v715, %v6426
        %v6428 = vand.u32 %v6427, 4294901760
        %6429 = vmatprep.subr.mxu0 %v6428
        %v6430 = vand.u32 %v714, 4294901760
        %v6431 = vsub.f32 %v714, %v6430
        %v6432 = vand.u32 %v6431, 4294901760
        %6433 = vmatpush1.msra.mxu0 %v6432
        %v6434 = vand.u32 %v719, 4294901760
        %v6435 = vsub.f32 %v719, %v6434
        %v6436 = vand.u32 %v6435, 4294901760
        %6437 = vmatprep.subr.mxu0 %v6436
        %v6438 = vand.u32 %v718, 4294901760
        %v6439 = vsub.f32 %v718, %v6438
        %v6440 = vand.u32 %v6439, 4294901760
        %6441 = vmatpush1.msra.mxu0 %v6440
        %v6442 = vand.u32 %v723, 4294901760
        %v6443 = vsub.f32 %v723, %v6442
        %v6444 = vand.u32 %v6443, 4294901760
        %6445 = vmatprep.subr.mxu0 %v6444
        %v6446 = vand.u32 %v722, 4294901760
        %v6447 = vsub.f32 %v722, %v6446
        %v6448 = vand.u32 %v6447, 4294901760
        %6449 = vmatpush1.msra.mxu0 %v6448
        %v6450 = vand.u32 %v727, 4294901760
        %v6451 = vsub.f32 %v727, %v6450
        %v6452 = vand.u32 %v6451, 4294901760
        %6453 = vmatprep.subr.mxu0 %v6452
        %v6454 = vand.u32 %v726, 4294901760
        %v6455 = vsub.f32 %v726, %v6454
        %v6456 = vand.u32 %v6455, 4294901760
        %6457 = vmatpush1.msra.mxu0 %v6456
        %v6458 = vand.u32 %v731, 4294901760
        %v6459 = vsub.f32 %v731, %v6458
        %v6460 = vand.u32 %v6459, 4294901760
        %6461 = vmatprep.subr.mxu0 %v6460
        %v6462 = vand.u32 %v730, 4294901760
        %v6463 = vsub.f32 %v730, %v6462
        %v6464 = vand.u32 %v6463, 4294901760
        %6465 = vmatpush1.msra.mxu0 %v6464
        %v6466 = vand.u32 %v735, 4294901760
        %v6467 = vsub.f32 %v735, %v6466
        %v6468 = vand.u32 %v6467, 4294901760
        %6469 = vmatprep.subr.mxu0 %v6468
        %v6470 = vand.u32 %v734, 4294901760
        %v6471 = vsub.f32 %v734, %v6470
        %v6472 = vand.u32 %v6471, 4294901760
        %6473 = vmatpush1.msra.mxu0 %v6472
        %v6474 = vand.u32 %v739, 4294901760
        %v6475 = vsub.f32 %v739, %v6474
        %v6476 = vand.u32 %v6475, 4294901760
        %6477 = vmatprep.subr.mxu0 %v6476
        %v6478 = vand.u32 %v738, 4294901760
        %v6479 = vsub.f32 %v738, %v6478
        %v6480 = vand.u32 %v6479, 4294901760
        %6481 = vmatpush1.msra.mxu0 %v6480
        %v6482 = vand.u32 %v743, 4294901760
        %v6483 = vsub.f32 %v743, %v6482
        %v6484 = vand.u32 %v6483, 4294901760
        %6485 = vmatprep.subr.mxu0 %v6484
        %v6486 = vand.u32 %v742, 4294901760
        %v6487 = vsub.f32 %v742, %v6486
        %v6488 = vand.u32 %v6487, 4294901760
        %6489 = vmatpush1.msra.mxu0 %v6488
        %v6490 = vand.u32 %v747, 4294901760
        %v6491 = vsub.f32 %v747, %v6490
        %v6492 = vand.u32 %v6491, 4294901760
        %6493 = vmatprep.subr.mxu0 %v6492
        %v6494 = vand.u32 %v746, 4294901760
        %v6495 = vsub.f32 %v746, %v6494
        %v6496 = vand.u32 %v6495, 4294901760
        %6497 = vmatpush1.msra.mxu0 %v6496
        %v6498 = vand.u32 %v751, 4294901760
        %v6499 = vsub.f32 %v751, %v6498
        %v6500 = vand.u32 %v6499, 4294901760
        %6501 = vmatprep.subr.mxu0 %v6500
        %v6502 = vand.u32 %v750, 4294901760
        %v6503 = vsub.f32 %v750, %v6502
        %v6504 = vand.u32 %v6503, 4294901760
        %6505 = vmatpush1.msra.mxu0 %v6504
        %v6506 = vand.u32 %v755, 4294901760
        %v6507 = vsub.f32 %v755, %v6506
        %v6508 = vand.u32 %v6507, 4294901760
        %6509 = vmatprep.subr.mxu0 %v6508
        %v6510 = vand.u32 %v754, 4294901760
        %v6511 = vsub.f32 %v754, %v6510
        %v6512 = vand.u32 %v6511, 4294901760
        %6513 = vmatpush1.msra.mxu0 %v6512
        %v6514 = vand.u32 %v759, 4294901760
        %v6515 = vsub.f32 %v759, %v6514
        %v6516 = vand.u32 %v6515, 4294901760
        %6517 = vmatprep.subr.mxu0 %v6516
        %v6518 = vand.u32 %v758, 4294901760
        %v6519 = vsub.f32 %v758, %v6518
        %v6520 = vand.u32 %v6519, 4294901760
        %6521 = vmatpush1.msra.mxu0 %v6520
        %v6522 = vand.u32 %v763, 4294901760
        %v6523 = vsub.f32 %v763, %v6522
        %v6524 = vand.u32 %v6523, 4294901760
        %6525 = vmatprep.subr.mxu0 %v6524
        %v6526 = vand.u32 %v762, 4294901760
        %v6527 = vsub.f32 %v762, %v6526
        %v6528 = vand.u32 %v6527, 4294901760
        %6529 = vmatpush1.msra.mxu0 %v6528
        %v6530 = vand.u32 %v767, 4294901760
        %v6531 = vsub.f32 %v767, %v6530
        %v6532 = vand.u32 %v6531, 4294901760
        %6533 = vmatprep.subr.mxu0 %v6532
        %v6534 = vand.u32 %v766, 4294901760
        %v6535 = vsub.f32 %v766, %v6534
        %v6536 = vand.u32 %v6535, 4294901760
        %6537 = vmatpush1.msra.mxu0 %v6536
        %v6538 = vand.u32 %v577, 4294901760
        %6539 = vmatprep.mubr.f32.mxu0 %v6538
        %v6540 = vand.u32 %v576, 4294901760
        %6541 = vmatmul.mubr.f32.gmra.mrb[0].mxu0 %v6540
        %v6542 = vpop.f32.mrb[0].mxu0
        %v6543 = vadd.f32 %v5906, %v6542
        %v6544 = vpop.f32.mrb[0].mxu0
        %v6545 = vadd.f32 %v5908, %v6544
        %v6546 = vand.u32 %v579, 4294901760
        %6547 = vmatprep.mubr.f32.mxu0 %v6546
        %v6548 = vand.u32 %v578, 4294901760
        %6549 = vmatmul.mubr.f32.gmra.mrb[0].mxu0 %v6548
        %v6550 = vpop.f32.mrb[0].mxu0
        %v6551 = vadd.f32 %v5918, %v6550
        %v6552 = vpop.f32.mrb[0].mxu0
        %v6553 = vadd.f32 %v5920, %v6552
        %v6554 = vand.u32 %v581, 4294901760
        %6555 = vmatprep.mubr.f32.mxu0 %v6554
        %v6556 = vand.u32 %v580, 4294901760
        %6557 = vmatmul.mubr.f32.gmra.mrb[0].mxu0 %v6556
        %v6558 = vpop.f32.mrb[0].mxu0
        %v6559 = vadd.f32 %v5930, %v6558
        %v6560 = vpop.f32.mrb[0].mxu0
        %v6561 = vadd.f32 %v5932, %v6560
        %v6562 = vand.u32 %v583, 4294901760
        %6563 = vmatprep.mubr.f32.mxu0 %v6562
        %v6564 = vand.u32 %v582, 4294901760
        %6565 = vmatmul.mubr.f32.gmra.mrb[0].mxu0 %v6564
        %v6566 = vpop.f32.mrb[0].mxu0
        %v6567 = vadd.f32 %v5942, %v6566
        %v6568 = vpop.f32.mrb[0].mxu0
        %v6569 = vadd.f32 %v5944, %v6568
        %v6570 = vand.u32 %v585, 4294901760
        %6571 = vmatprep.mubr.f32.mxu0 %v6570
        %v6572 = vand.u32 %v584, 4294901760
        %6573 = vmatmul.mubr.f32.gmra.mrb[0].mxu0 %v6572
        %v6574 = vpop.f32.mrb[0].mxu0
        %v6575 = vadd.f32 %v5954, %v6574
        %v6576 = vpop.f32.mrb[0].mxu0
        %v6577 = vadd.f32 %v5956, %v6576
        %v6578 = vand.u32 %v587, 4294901760
        %6579 = vmatprep.mubr.f32.mxu0 %v6578
        %v6580 = vand.u32 %v586, 4294901760
        %6581 = vmatmul.mubr.f32.gmra.mrb[0].mxu0 %v6580
        %v6582 = vpop.f32.mrb[0].mxu0
        %v6583 = vadd.f32 %v5966, %v6582
        %v6584 = vpop.f32.mrb[0].mxu0
        %v6585 = vadd.f32 %v5968, %v6584
        %v6586 = vand.u32 %v589, 4294901760
        %6587 = vmatprep.mubr.f32.mxu0 %v6586
        %v6588 = vand.u32 %v588, 4294901760
        %6589 = vmatmul.mubr.f32.gmra.mrb[0].mxu0 %v6588
        %v6590 = vpop.f32.mrb[0].mxu0
        %v6591 = vadd.f32 %v5978, %v6590
        %v6592 = vpop.f32.mrb[0].mxu0
        %v6593 = vadd.f32 %v5980, %v6592
        %v6594 = vand.u32 %v591, 4294901760
        %6595 = vmatprep.mubr.f32.mxu0 %v6594
        %v6596 = vand.u32 %v590, 4294901760
        %6597 = vmatmul.mubr.f32.gmra.mrb[0].mxu0 %v6596
        %v6598 = vpop.f32.mrb[0].mxu0
        %v6599 = vadd.f32 %v5990, %v6598
        %v6600 = vpop.f32.mrb[0].mxu0
        %v6601 = vadd.f32 %v5992, %v6600
        %v6602 = vand.u32 %v593, 4294901760
        %6603 = vmatprep.mubr.f32.mxu0 %v6602
        %v6604 = vand.u32 %v592, 4294901760
        %6605 = vmatmul.mubr.f32.gmra.mrb[0].mxu0 %v6604
        %v6606 = vpop.f32.mrb[0].mxu0
        %v6607 = vadd.f32 %v6002, %v6606
        %v6608 = vpop.f32.mrb[0].mxu0
        %v6609 = vadd.f32 %v6004, %v6608
        %v6610 = vand.u32 %v595, 4294901760
        %6611 = vmatprep.mubr.f32.mxu0 %v6610
        %v6612 = vand.u32 %v594, 4294901760
        %6613 = vmatmul.mubr.f32.gmra.mrb[0].mxu0 %v6612
        %v6614 = vpop.f32.mrb[0].mxu0
        %v6615 = vadd.f32 %v6014, %v6614
        %v6616 = vpop.f32.mrb[0].mxu0
        %v6617 = vadd.f32 %v6016, %v6616
        %v6618 = vand.u32 %v597, 4294901760
        %6619 = vmatprep.mubr.f32.mxu0 %v6618
        %v6620 = vand.u32 %v596, 4294901760
        %6621 = vmatmul.mubr.f32.gmra.mrb[0].mxu0 %v6620
        %v6622 = vpop.f32.mrb[0].mxu0
        %v6623 = vadd.f32 %v6026, %v6622
        %v6624 = vpop.f32.mrb[0].mxu0
        %v6625 = vadd.f32 %v6028, %v6624
        %v6626 = vand.u32 %v599, 4294901760
        %6627 = vmatprep.mubr.f32.mxu0 %v6626
        %v6628 = vand.u32 %v598, 4294901760
        %6629 = vmatmul.mubr.f32.gmra.mrb[0].mxu0 %v6628
        %v6630 = vpop.f32.mrb[0].mxu0
        %v6631 = vadd.f32 %v6038, %v6630
        %v6632 = vpop.f32.mrb[0].mxu0
        %v6633 = vadd.f32 %v6040, %v6632
        %v6634 = vand.u32 %v601, 4294901760
        %6635 = vmatprep.mubr.f32.mxu0 %v6634
        %v6636 = vand.u32 %v600, 4294901760
        %6637 = vmatmul.mubr.f32.gmra.mrb[0].mxu0 %v6636
        %v6638 = vpop.f32.mrb[0].mxu0
        %v6639 = vadd.f32 %v6050, %v6638
        %v6640 = vpop.f32.mrb[0].mxu0
        %v6641 = vadd.f32 %v6052, %v6640
        %v6642 = vand.u32 %v603, 4294901760
        %6643 = vmatprep.mubr.f32.mxu0 %v6642
        %v6644 = vand.u32 %v602, 4294901760
        %6645 = vmatmul.mubr.f32.gmra.mrb[0].mxu0 %v6644
        %v6646 = vpop.f32.mrb[0].mxu0
        %v6647 = vadd.f32 %v6062, %v6646
        %v6648 = vpop.f32.mrb[0].mxu0
        %v6649 = vadd.f32 %v6064, %v6648
        %v6650 = vand.u32 %v605, 4294901760
        %6651 = vmatprep.mubr.f32.mxu0 %v6650
        %v6652 = vand.u32 %v604, 4294901760
        %6653 = vmatmul.mubr.f32.gmra.mrb[0].mxu0 %v6652
        %v6654 = vpop.f32.mrb[0].mxu0
        %v6655 = vadd.f32 %v6074, %v6654
        %v6656 = vpop.f32.mrb[0].mxu0
        %v6657 = vadd.f32 %v6076, %v6656
        %v6658 = vand.u32 %v607, 4294901760
        %6659 = vmatprep.mubr.f32.mxu0 %v6658
        %v6660 = vand.u32 %v606, 4294901760
        %6661 = vmatmul.mubr.f32.gmra.mrb[0].mxu0 %v6660
        %v6662 = vpop.f32.mrb[0].mxu0
        %v6663 = vadd.f32 %v6086, %v6662
        %v6664 = vpop.f32.mrb[0].mxu0
        %v6665 = vadd.f32 %v6088, %v6664
        %v6666 = vand.u32 %v609, 4294901760
        %6667 = vmatprep.mubr.f32.mxu0 %v6666
        %v6668 = vand.u32 %v608, 4294901760
        %6669 = vmatmul.mubr.f32.gmra.mrb[0].mxu0 %v6668
        %v6670 = vpop.f32.mrb[0].mxu0
        %v6671 = vadd.f32 %v6098, %v6670
        %v6672 = vpop.f32.mrb[0].mxu0
        %v6673 = vadd.f32 %v6100, %v6672
        %v6674 = vand.u32 %v611, 4294901760
        %6675 = vmatprep.mubr.f32.mxu0 %v6674
        %v6676 = vand.u32 %v610, 4294901760
        %6677 = vmatmul.mubr.f32.gmra.mrb[0].mxu0 %v6676
        %v6678 = vpop.f32.mrb[0].mxu0
        %v6679 = vadd.f32 %v6110, %v6678
        %v6680 = vpop.f32.mrb[0].mxu0
        %v6681 = vadd.f32 %v6112, %v6680
        %v6682 = vand.u32 %v613, 4294901760
        %6683 = vmatprep.mubr.f32.mxu0 %v6682
        %v6684 = vand.u32 %v612, 4294901760
        %6685 = vmatmul.mubr.f32.gmra.mrb[0].mxu0 %v6684
        %v6686 = vpop.f32.mrb[0].mxu0
        %v6687 = vadd.f32 %v6122, %v6686
        %v6688 = vpop.f32.mrb[0].mxu0
        %v6689 = vadd.f32 %v6124, %v6688
        %v6690 = vand.u32 %v615, 4294901760
        %6691 = vmatprep.mubr.f32.mxu0 %v6690
        %v6692 = vand.u32 %v614, 4294901760
        %6693 = vmatmul.mubr.f32.gmra.mrb[0].mxu0 %v6692
        %v6694 = vpop.f32.mrb[0].mxu0
        %v6695 = vadd.f32 %v6134, %v6694
        %v6696 = vpop.f32.mrb[0].mxu0
        %v6697 = vadd.f32 %v6136, %v6696
        %v6698 = vand.u32 %v617, 4294901760
        %6699 = vmatprep.mubr.f32.mxu0 %v6698
        %v6700 = vand.u32 %v616, 4294901760
        %6701 = vmatmul.mubr.f32.gmra.mrb[0].mxu0 %v6700
        %v6702 = vpop.f32.mrb[0].mxu0
        %v6703 = vadd.f32 %v6146, %v6702
        %v6704 = vpop.f32.mrb[0].mxu0
        %v6705 = vadd.f32 %v6148, %v6704
        %v6706 = vand.u32 %v619, 4294901760
        %6707 = vmatprep.mubr.f32.mxu0 %v6706
        %v6708 = vand.u32 %v618, 4294901760
        %6709 = vmatmul.mubr.f32.gmra.mrb[0].mxu0 %v6708
        %v6710 = vpop.f32.mrb[0].mxu0
        %v6711 = vadd.f32 %v6158, %v6710
        %v6712 = vpop.f32.mrb[0].mxu0
        %v6713 = vadd.f32 %v6160, %v6712
        %v6714 = vand.u32 %v621, 4294901760
        %6715 = vmatprep.mubr.f32.mxu0 %v6714
        %v6716 = vand.u32 %v620, 4294901760
        %6717 = vmatmul.mubr.f32.gmra.mrb[0].mxu0 %v6716
        %v6718 = vpop.f32.mrb[0].mxu0
        %v6719 = vadd.f32 %v6170, %v6718
        %v6720 = vpop.f32.mrb[0].mxu0
        %v6721 = vadd.f32 %v6172, %v6720
        %v6722 = vand.u32 %v623, 4294901760
        %6723 = vmatprep.mubr.f32.mxu0 %v6722
        %v6724 = vand.u32 %v622, 4294901760
        %6725 = vmatmul.mubr.f32.gmra.mrb[0].mxu0 %v6724
        %v6726 = vpop.f32.mrb[0].mxu0
        %v6727 = vadd.f32 %v6182, %v6726
        %v6728 = vpop.f32.mrb[0].mxu0
        %v6729 = vadd.f32 %v6184, %v6728
        %v6730 = vand.u32 %v625, 4294901760
        %6731 = vmatprep.mubr.f32.mxu0 %v6730
        %v6732 = vand.u32 %v624, 4294901760
        %6733 = vmatmul.mubr.f32.gmra.mrb[0].mxu0 %v6732
        %v6734 = vpop.f32.mrb[0].mxu0
        %v6735 = vadd.f32 %v6194, %v6734
        %v6736 = vpop.f32.mrb[0].mxu0
        %v6737 = vadd.f32 %v6196, %v6736
        %v6738 = vand.u32 %v627, 4294901760
        %6739 = vmatprep.mubr.f32.mxu0 %v6738
        %v6740 = vand.u32 %v626, 4294901760
        %6741 = vmatmul.mubr.f32.gmra.mrb[0].mxu0 %v6740
        %v6742 = vpop.f32.mrb[0].mxu0
        %v6743 = vadd.f32 %v6206, %v6742
        %v6744 = vpop.f32.mrb[0].mxu0
        %v6745 = vadd.f32 %v6208, %v6744
        %v6746 = vand.u32 %v629, 4294901760
        %6747 = vmatprep.mubr.f32.mxu0 %v6746
        %v6748 = vand.u32 %v628, 4294901760
        %6749 = vmatmul.mubr.f32.gmra.mrb[0].mxu0 %v6748
        %v6750 = vpop.f32.mrb[0].mxu0
        %v6751 = vadd.f32 %v6218, %v6750
        %v6752 = vpop.f32.mrb[0].mxu0
        %v6753 = vadd.f32 %v6220, %v6752
        %v6754 = vand.u32 %v631, 4294901760
        %6755 = vmatprep.mubr.f32.mxu0 %v6754
        %v6756 = vand.u32 %v630, 4294901760
        %6757 = vmatmul.mubr.f32.gmra.mrb[0].mxu0 %v6756
        %v6758 = vpop.f32.mrb[0].mxu0
        %v6759 = vadd.f32 %v6230, %v6758
        %v6760 = vpop.f32.mrb[0].mxu0
        %v6761 = vadd.f32 %v6232, %v6760
        %v6762 = vand.u32 %v633, 4294901760
        %6763 = vmatprep.mubr.f32.mxu0 %v6762
        %v6764 = vand.u32 %v632, 4294901760
        %6765 = vmatmul.mubr.f32.gmra.mrb[0].mxu0 %v6764
        %v6766 = vpop.f32.mrb[0].mxu0
        %v6767 = vadd.f32 %v6242, %v6766
        %v6768 = vpop.f32.mrb[0].mxu0
        %v6769 = vadd.f32 %v6244, %v6768
        %v6770 = vand.u32 %v635, 4294901760
        %6771 = vmatprep.mubr.f32.mxu0 %v6770
        %v6772 = vand.u32 %v634, 4294901760
        %6773 = vmatmul.mubr.f32.gmra.mrb[0].mxu0 %v6772
        %v6774 = vpop.f32.mrb[0].mxu0
        %v6775 = vadd.f32 %v6254, %v6774
        %v6776 = vpop.f32.mrb[0].mxu0
        %v6777 = vadd.f32 %v6256, %v6776
        %v6778 = vand.u32 %v637, 4294901760
        %6779 = vmatprep.mubr.f32.mxu0 %v6778
        %v6780 = vand.u32 %v636, 4294901760
        %6781 = vmatmul.mubr.f32.gmra.mrb[0].mxu0 %v6780
        %v6782 = vpop.f32.mrb[0].mxu0
        %v6783 = vadd.f32 %v6266, %v6782
        %v6784 = vpop.f32.mrb[0].mxu0
        %v6785 = vadd.f32 %v6268, %v6784
        %v6786 = vand.u32 %v639, 4294901760
        %6787 = vmatprep.mubr.f32.mxu0 %v6786
        %v6788 = vand.u32 %v638, 4294901760
        %6789 = vmatmul.mubr.f32.gmra.mrb[0].mxu0 %v6788
        %v6790 = vpop.f32.mrb[0].mxu0
        %v6791 = vadd.f32 %v6278, %v6790
        %v6792 = vpop.f32.mrb[0].mxu0
        %v6793 = vadd.f32 %v6280, %v6792
        %6794 = vdwg.mxu0
        %v6795 = vand.u32 %v643, 4294901760
        %6796 = vmatprep.subr.mxu0 %v6795
        %v6797 = vand.u32 %v642, 4294901760
        %6798 = vmatpush1.msra.mxu0 %v6797
        %v6799 = vand.u32 %v647, 4294901760
        %6800 = vmatprep.subr.mxu0 %v6799
        %v6801 = vand.u32 %v646, 4294901760
        %6802 = vmatpush1.msra.mxu0 %v6801
        %v6803 = vand.u32 %v651, 4294901760
        %6804 = vmatprep.subr.mxu0 %v6803
        %v6805 = vand.u32 %v650, 4294901760
        %6806 = vmatpush1.msra.mxu0 %v6805
        %v6807 = vand.u32 %v655, 4294901760
        %6808 = vmatprep.subr.mxu0 %v6807
        %v6809 = vand.u32 %v654, 4294901760
        %6810 = vmatpush1.msra.mxu0 %v6809
        %v6811 = vand.u32 %v659, 4294901760
        %6812 = vmatprep.subr.mxu0 %v6811
        %v6813 = vand.u32 %v658, 4294901760
        %6814 = vmatpush1.msra.mxu0 %v6813
        %v6815 = vand.u32 %v663, 4294901760
        %6816 = vmatprep.subr.mxu0 %v6815
        %v6817 = vand.u32 %v662, 4294901760
        %6818 = vmatpush1.msra.mxu0 %v6817
        %v6819 = vand.u32 %v667, 4294901760
        %6820 = vmatprep.subr.mxu0 %v6819
        %v6821 = vand.u32 %v666, 4294901760
        %6822 = vmatpush1.msra.mxu0 %v6821
        %v6823 = vand.u32 %v671, 4294901760
        %6824 = vmatprep.subr.mxu0 %v6823
        %v6825 = vand.u32 %v670, 4294901760
        %6826 = vmatpush1.msra.mxu0 %v6825
        %v6827 = vand.u32 %v675, 4294901760
        %6828 = vmatprep.subr.mxu0 %v6827
        %v6829 = vand.u32 %v674, 4294901760
        %6830 = vmatpush1.msra.mxu0 %v6829
        %v6831 = vand.u32 %v679, 4294901760
        %6832 = vmatprep.subr.mxu0 %v6831
        %v6833 = vand.u32 %v678, 4294901760
        %6834 = vmatpush1.msra.mxu0 %v6833
        %v6835 = vand.u32 %v683, 4294901760
        %6836 = vmatprep.subr.mxu0 %v6835
        %v6837 = vand.u32 %v682, 4294901760
        %6838 = vmatpush1.msra.mxu0 %v6837
        %v6839 = vand.u32 %v687, 4294901760
        %6840 = vmatprep.subr.mxu0 %v6839
        %v6841 = vand.u32 %v686, 4294901760
        %6842 = vmatpush1.msra.mxu0 %v6841
        %v6843 = vand.u32 %v691, 4294901760
        %6844 = vmatprep.subr.mxu0 %v6843
        %v6845 = vand.u32 %v690, 4294901760
        %6846 = vmatpush1.msra.mxu0 %v6845
        %v6847 = vand.u32 %v695, 4294901760
        %6848 = vmatprep.subr.mxu0 %v6847
        %v6849 = vand.u32 %v694, 4294901760
        %6850 = vmatpush1.msra.mxu0 %v6849
        %v6851 = vand.u32 %v699, 4294901760
        %6852 = vmatprep.subr.mxu0 %v6851
        %v6853 = vand.u32 %v698, 4294901760
        %6854 = vmatpush1.msra.mxu0 %v6853
        %v6855 = vand.u32 %v703, 4294901760
        %6856 = vmatprep.subr.mxu0 %v6855
        %v6857 = vand.u32 %v702, 4294901760
        %6858 = vmatpush1.msra.mxu0 %v6857
        %v6859 = vand.u32 %v707, 4294901760
        %6860 = vmatprep.subr.mxu0 %v6859
        %v6861 = vand.u32 %v706, 4294901760
        %6862 = vmatpush1.msra.mxu0 %v6861
        %v6863 = vand.u32 %v711, 4294901760
        %6864 = vmatprep.subr.mxu0 %v6863
        %v6865 = vand.u32 %v710, 4294901760
        %6866 = vmatpush1.msra.mxu0 %v6865
        %v6867 = vand.u32 %v715, 4294901760
        %6868 = vmatprep.subr.mxu0 %v6867
        %v6869 = vand.u32 %v714, 4294901760
        %6870 = vmatpush1.msra.mxu0 %v6869
        %v6871 = vand.u32 %v719, 4294901760
        %6872 = vmatprep.subr.mxu0 %v6871
        %v6873 = vand.u32 %v718, 4294901760
        %6874 = vmatpush1.msra.mxu0 %v6873
        %v6875 = vand.u32 %v723, 4294901760
        %6876 = vmatprep.subr.mxu0 %v6875
        %v6877 = vand.u32 %v722, 4294901760
        %6878 = vmatpush1.msra.mxu0 %v6877
        %v6879 = vand.u32 %v727, 4294901760
        %6880 = vmatprep.subr.mxu0 %v6879
        %v6881 = vand.u32 %v726, 4294901760
        %6882 = vmatpush1.msra.mxu0 %v6881
        %v6883 = vand.u32 %v731, 4294901760
        %6884 = vmatprep.subr.mxu0 %v6883
        %v6885 = vand.u32 %v730, 4294901760
        %6886 = vmatpush1.msra.mxu0 %v6885
        %v6887 = vand.u32 %v735, 4294901760
        %6888 = vmatprep.subr.mxu0 %v6887
        %v6889 = vand.u32 %v734, 4294901760
        %6890 = vmatpush1.msra.mxu0 %v6889
        %v6891 = vand.u32 %v739, 4294901760
        %6892 = vmatprep.subr.mxu0 %v6891
        %v6893 = vand.u32 %v738, 4294901760
        %6894 = vmatpush1.msra.mxu0 %v6893
        %v6895 = vand.u32 %v743, 4294901760
        %6896 = vmatprep.subr.mxu0 %v6895
        %v6897 = vand.u32 %v742, 4294901760
        %6898 = vmatpush1.msra.mxu0 %v6897
        %v6899 = vand.u32 %v747, 4294901760
        %6900 = vmatprep.subr.mxu0 %v6899
        %v6901 = vand.u32 %v746, 4294901760
        %6902 = vmatpush1.msra.mxu0 %v6901
        %v6903 = vand.u32 %v751, 4294901760
        %6904 = vmatprep.subr.mxu0 %v6903
        %v6905 = vand.u32 %v750, 4294901760
        %6906 = vmatpush1.msra.mxu0 %v6905
        %v6907 = vand.u32 %v755, 4294901760
        %6908 = vmatprep.subr.mxu0 %v6907
        %v6909 = vand.u32 %v754, 4294901760
        %6910 = vmatpush1.msra.mxu0 %v6909
        %v6911 = vand.u32 %v759, 4294901760
        %6912 = vmatprep.subr.mxu0 %v6911
        %v6913 = vand.u32 %v758, 4294901760
        %6914 = vmatpush1.msra.mxu0 %v6913
        %v6915 = vand.u32 %v763, 4294901760
        %6916 = vmatprep.subr.mxu0 %v6915
        %v6917 = vand.u32 %v762, 4294901760
        %6918 = vmatpush1.msra.mxu0 %v6917
        %v6919 = vand.u32 %v767, 4294901760
        %6920 = vmatprep.subr.mxu0 %v6919
        %v6921 = vand.u32 %v766, 4294901760
        %6922 = vmatpush1.msra.mxu0 %v6921
        %v6923 = vand.u32 %v577, 4294901760
        %6924 = vmatprep.mubr.f32.mxu0 %v6923
        %v6925 = vand.u32 %v576, 4294901760
        %6926 = vmatmul.mubr.f32.gmra.mrb[0].mxu0 %v6925
        %v6927 = vpop.f32.mrb[0].mxu0
        %v6928 = vadd.f32 %v6543, %v6927
        %v6929 = vpop.f32.mrb[0].mxu0
        %v6930 = vadd.f32 %v6545, %v6929
        %v6931 = vand.u32 %v579, 4294901760
        %6932 = vmatprep.mubr.f32.mxu0 %v6931
        %v6933 = vand.u32 %v578, 4294901760
        %6934 = vmatmul.mubr.f32.gmra.mrb[0].mxu0 %v6933
        %v6935 = vpop.f32.mrb[0].mxu0
        %v6936 = vadd.f32 %v6551, %v6935
        %v6937 = vpop.f32.mrb[0].mxu0
        %v6938 = vadd.f32 %v6553, %v6937
        %v6939 = vand.u32 %v581, 4294901760
        %6940 = vmatprep.mubr.f32.mxu0 %v6939
        %v6941 = vand.u32 %v580, 4294901760
        %6942 = vmatmul.mubr.f32.gmra.mrb[0].mxu0 %v6941
        %v6943 = vpop.f32.mrb[0].mxu0
        %v6944 = vadd.f32 %v6559, %v6943
        %v6945 = vpop.f32.mrb[0].mxu0
        %v6946 = vadd.f32 %v6561, %v6945
        %v6947 = vand.u32 %v583, 4294901760
        %6948 = vmatprep.mubr.f32.mxu0 %v6947
        %v6949 = vand.u32 %v582, 4294901760
        %6950 = vmatmul.mubr.f32.gmra.mrb[0].mxu0 %v6949
        %v6951 = vpop.f32.mrb[0].mxu0
        %v6952 = vadd.f32 %v6567, %v6951
        %v6953 = vpop.f32.mrb[0].mxu0
        %v6954 = vadd.f32 %v6569, %v6953
        %v6955 = vand.u32 %v585, 4294901760
        %6956 = vmatprep.mubr.f32.mxu0 %v6955
        %v6957 = vand.u32 %v584, 4294901760
        %6958 = vmatmul.mubr.f32.gmra.mrb[0].mxu0 %v6957
        %v6959 = vpop.f32.mrb[0].mxu0
        %v6960 = vadd.f32 %v6575, %v6959
        %v6961 = vpop.f32.mrb[0].mxu0
        %v6962 = vadd.f32 %v6577, %v6961
        %v6963 = vand.u32 %v587, 4294901760
        %6964 = vmatprep.mubr.f32.mxu0 %v6963
        %v6965 = vand.u32 %v586, 4294901760
        %6966 = vmatmul.mubr.f32.gmra.mrb[0].mxu0 %v6965
        %v6967 = vpop.f32.mrb[0].mxu0
        %v6968 = vadd.f32 %v6583, %v6967
        %v6969 = vpop.f32.mrb[0].mxu0
        %v6970 = vadd.f32 %v6585, %v6969
        %v6971 = vand.u32 %v589, 4294901760
        %6972 = vmatprep.mubr.f32.mxu0 %v6971
        %v6973 = vand.u32 %v588, 4294901760
        %6974 = vmatmul.mubr.f32.gmra.mrb[0].mxu0 %v6973
        %v6975 = vpop.f32.mrb[0].mxu0
        %v6976 = vadd.f32 %v6591, %v6975
        %v6977 = vpop.f32.mrb[0].mxu0
        %v6978 = vadd.f32 %v6593, %v6977
        %v6979 = vand.u32 %v591, 4294901760
        %6980 = vmatprep.mubr.f32.mxu0 %v6979
        %v6981 = vand.u32 %v590, 4294901760
        %6982 = vmatmul.mubr.f32.gmra.mrb[0].mxu0 %v6981
        %v6983 = vpop.f32.mrb[0].mxu0
        %v6984 = vadd.f32 %v6599, %v6983
        %v6985 = vpop.f32.mrb[0].mxu0
        %v6986 = vadd.f32 %v6601, %v6985
        %v6987 = vand.u32 %v593, 4294901760
        %6988 = vmatprep.mubr.f32.mxu0 %v6987
        %v6989 = vand.u32 %v592, 4294901760
        %6990 = vmatmul.mubr.f32.gmra.mrb[0].mxu0 %v6989
        %v6991 = vpop.f32.mrb[0].mxu0
        %v6992 = vadd.f32 %v6607, %v6991
        %v6993 = vpop.f32.mrb[0].mxu0
        %v6994 = vadd.f32 %v6609, %v6993
        %v6995 = vand.u32 %v595, 4294901760
        %6996 = vmatprep.mubr.f32.mxu0 %v6995
        %v6997 = vand.u32 %v594, 4294901760
        %6998 = vmatmul.mubr.f32.gmra.mrb[0].mxu0 %v6997
        %v6999 = vpop.f32.mrb[0].mxu0
        %v7000 = vadd.f32 %v6615, %v6999
        %v7001 = vpop.f32.mrb[0].mxu0
        %v7002 = vadd.f32 %v6617, %v7001
        %v7003 = vand.u32 %v597, 4294901760
        %7004 = vmatprep.mubr.f32.mxu0 %v7003
        %v7005 = vand.u32 %v596, 4294901760
        %7006 = vmatmul.mubr.f32.gmra.mrb[0].mxu0 %v7005
        %v7007 = vpop.f32.mrb[0].mxu0
        %v7008 = vadd.f32 %v6623, %v7007
        %v7009 = vpop.f32.mrb[0].mxu0
        %v7010 = vadd.f32 %v6625, %v7009
        %v7011 = vand.u32 %v599, 4294901760
        %7012 = vmatprep.mubr.f32.mxu0 %v7011
        %v7013 = vand.u32 %v598, 4294901760
        %7014 = vmatmul.mubr.f32.gmra.mrb[0].mxu0 %v7013
        %v7015 = vpop.f32.mrb[0].mxu0
        %v7016 = vadd.f32 %v6631, %v7015
        %v7017 = vpop.f32.mrb[0].mxu0
        %v7018 = vadd.f32 %v6633, %v7017
        %v7019 = vand.u32 %v601, 4294901760
        %7020 = vmatprep.mubr.f32.mxu0 %v7019
        %v7021 = vand.u32 %v600, 4294901760
        %7022 = vmatmul.mubr.f32.gmra.mrb[0].mxu0 %v7021
        %v7023 = vpop.f32.mrb[0].mxu0
        %v7024 = vadd.f32 %v6639, %v7023
        %v7025 = vpop.f32.mrb[0].mxu0
        %v7026 = vadd.f32 %v6641, %v7025
        %v7027 = vand.u32 %v603, 4294901760
        %7028 = vmatprep.mubr.f32.mxu0 %v7027
        %v7029 = vand.u32 %v602, 4294901760
        %7030 = vmatmul.mubr.f32.gmra.mrb[0].mxu0 %v7029
        %v7031 = vpop.f32.mrb[0].mxu0
        %v7032 = vadd.f32 %v6647, %v7031
        %v7033 = vpop.f32.mrb[0].mxu0
        %v7034 = vadd.f32 %v6649, %v7033
        %v7035 = vand.u32 %v605, 4294901760
        %7036 = vmatprep.mubr.f32.mxu0 %v7035
        %v7037 = vand.u32 %v604, 4294901760
        %7038 = vmatmul.mubr.f32.gmra.mrb[0].mxu0 %v7037
        %v7039 = vpop.f32.mrb[0].mxu0
        %v7040 = vadd.f32 %v6655, %v7039
        %v7041 = vpop.f32.mrb[0].mxu0
        %v7042 = vadd.f32 %v6657, %v7041
        %v7043 = vand.u32 %v607, 4294901760
        %7044 = vmatprep.mubr.f32.mxu0 %v7043
        %v7045 = vand.u32 %v606, 4294901760
        %7046 = vmatmul.mubr.f32.gmra.mrb[0].mxu0 %v7045
        %v7047 = vpop.f32.mrb[0].mxu0
        %v7048 = vadd.f32 %v6663, %v7047
        %v7049 = vpop.f32.mrb[0].mxu0
        %v7050 = vadd.f32 %v6665, %v7049
        %v7051 = vand.u32 %v609, 4294901760
        %7052 = vmatprep.mubr.f32.mxu0 %v7051
        %v7053 = vand.u32 %v608, 4294901760
        %7054 = vmatmul.mubr.f32.gmra.mrb[0].mxu0 %v7053
        %v7055 = vpop.f32.mrb[0].mxu0
        %v7056 = vadd.f32 %v6671, %v7055
        %v7057 = vpop.f32.mrb[0].mxu0
        %v7058 = vadd.f32 %v6673, %v7057
        %v7059 = vand.u32 %v611, 4294901760
        %7060 = vmatprep.mubr.f32.mxu0 %v7059
        %v7061 = vand.u32 %v610, 4294901760
        %7062 = vmatmul.mubr.f32.gmra.mrb[0].mxu0 %v7061
        %v7063 = vpop.f32.mrb[0].mxu0
        %v7064 = vadd.f32 %v6679, %v7063
        %v7065 = vpop.f32.mrb[0].mxu0
        %v7066 = vadd.f32 %v6681, %v7065
        %v7067 = vand.u32 %v613, 4294901760
        %7068 = vmatprep.mubr.f32.mxu0 %v7067
        %v7069 = vand.u32 %v612, 4294901760
        %7070 = vmatmul.mubr.f32.gmra.mrb[0].mxu0 %v7069
        %v7071 = vpop.f32.mrb[0].mxu0
        %v7072 = vadd.f32 %v6687, %v7071
        %v7073 = vpop.f32.mrb[0].mxu0
        %v7074 = vadd.f32 %v6689, %v7073
        %v7075 = vand.u32 %v615, 4294901760
        %7076 = vmatprep.mubr.f32.mxu0 %v7075
        %v7077 = vand.u32 %v614, 4294901760
        %7078 = vmatmul.mubr.f32.gmra.mrb[0].mxu0 %v7077
        %v7079 = vpop.f32.mrb[0].mxu0
        %v7080 = vadd.f32 %v6695, %v7079
        %v7081 = vpop.f32.mrb[0].mxu0
        %v7082 = vadd.f32 %v6697, %v7081
        %v7083 = vand.u32 %v617, 4294901760
        %7084 = vmatprep.mubr.f32.mxu0 %v7083
        %v7085 = vand.u32 %v616, 4294901760
        %7086 = vmatmul.mubr.f32.gmra.mrb[0].mxu0 %v7085
        %v7087 = vpop.f32.mrb[0].mxu0
        %v7088 = vadd.f32 %v6703, %v7087
        %v7089 = vpop.f32.mrb[0].mxu0
        %v7090 = vadd.f32 %v6705, %v7089
        %v7091 = vand.u32 %v619, 4294901760
        %7092 = vmatprep.mubr.f32.mxu0 %v7091
        %v7093 = vand.u32 %v618, 4294901760
        %7094 = vmatmul.mubr.f32.gmra.mrb[0].mxu0 %v7093
        %v7095 = vpop.f32.mrb[0].mxu0
        %v7096 = vadd.f32 %v6711, %v7095
        %v7097 = vpop.f32.mrb[0].mxu0
        %v7098 = vadd.f32 %v6713, %v7097
        %v7099 = vand.u32 %v621, 4294901760
        %7100 = vmatprep.mubr.f32.mxu0 %v7099
        %v7101 = vand.u32 %v620, 4294901760
        %7102 = vmatmul.mubr.f32.gmra.mrb[0].mxu0 %v7101
        %v7103 = vpop.f32.mrb[0].mxu0
        %v7104 = vadd.f32 %v6719, %v7103
        %v7105 = vpop.f32.mrb[0].mxu0
        %v7106 = vadd.f32 %v6721, %v7105
        %v7107 = vand.u32 %v623, 4294901760
        %7108 = vmatprep.mubr.f32.mxu0 %v7107
        %v7109 = vand.u32 %v622, 4294901760
        %7110 = vmatmul.mubr.f32.gmra.mrb[0].mxu0 %v7109
        %v7111 = vpop.f32.mrb[0].mxu0
        %v7112 = vadd.f32 %v6727, %v7111
        %v7113 = vpop.f32.mrb[0].mxu0
        %v7114 = vadd.f32 %v6729, %v7113
        %v7115 = vand.u32 %v625, 4294901760
        %7116 = vmatprep.mubr.f32.mxu0 %v7115
        %v7117 = vand.u32 %v624, 4294901760
        %7118 = vmatmul.mubr.f32.gmra.mrb[0].mxu0 %v7117
        %v7119 = vpop.f32.mrb[0].mxu0
        %v7120 = vadd.f32 %v6735, %v7119
        %v7121 = vpop.f32.mrb[0].mxu0
        %v7122 = vadd.f32 %v6737, %v7121
        %v7123 = vand.u32 %v627, 4294901760
        %7124 = vmatprep.mubr.f32.mxu0 %v7123
        %v7125 = vand.u32 %v626, 4294901760
        %7126 = vmatmul.mubr.f32.gmra.mrb[0].mxu0 %v7125
        %v7127 = vpop.f32.mrb[0].mxu0
        %v7128 = vadd.f32 %v6743, %v7127
        %v7129 = vpop.f32.mrb[0].mxu0
        %v7130 = vadd.f32 %v6745, %v7129
        %v7131 = vand.u32 %v629, 4294901760
        %7132 = vmatprep.mubr.f32.mxu0 %v7131
        %v7133 = vand.u32 %v628, 4294901760
        %7134 = vmatmul.mubr.f32.gmra.mrb[0].mxu0 %v7133
        %v7135 = vpop.f32.mrb[0].mxu0
        %v7136 = vadd.f32 %v6751, %v7135
        %v7137 = vpop.f32.mrb[0].mxu0
        %v7138 = vadd.f32 %v6753, %v7137
        %v7139 = vand.u32 %v631, 4294901760
        %7140 = vmatprep.mubr.f32.mxu0 %v7139
        %v7141 = vand.u32 %v630, 4294901760
        %7142 = vmatmul.mubr.f32.gmra.mrb[0].mxu0 %v7141
        %v7143 = vpop.f32.mrb[0].mxu0
        %v7144 = vadd.f32 %v6759, %v7143
        %v7145 = vpop.f32.mrb[0].mxu0
        %v7146 = vadd.f32 %v6761, %v7145
        %v7147 = vand.u32 %v633, 4294901760
        %7148 = vmatprep.mubr.f32.mxu0 %v7147
        %v7149 = vand.u32 %v632, 4294901760
        %7150 = vmatmul.mubr.f32.gmra.mrb[0].mxu0 %v7149
        %v7151 = vpop.f32.mrb[0].mxu0
        %v7152 = vadd.f32 %v6767, %v7151
        %v7153 = vpop.f32.mrb[0].mxu0
        %v7154 = vadd.f32 %v6769, %v7153
        %v7155 = vand.u32 %v635, 4294901760
        %7156 = vmatprep.mubr.f32.mxu0 %v7155
        %v7157 = vand.u32 %v634, 4294901760
        %7158 = vmatmul.mubr.f32.gmra.mrb[0].mxu0 %v7157
        %v7159 = vpop.f32.mrb[0].mxu0
        %v7160 = vadd.f32 %v6775, %v7159
        %v7161 = vpop.f32.mrb[0].mxu0
        %v7162 = vadd.f32 %v6777, %v7161
        %v7163 = vand.u32 %v637, 4294901760
        %7164 = vmatprep.mubr.f32.mxu0 %v7163
        %v7165 = vand.u32 %v636, 4294901760
        %7166 = vmatmul.mubr.f32.gmra.mrb[0].mxu0 %v7165
        %v7167 = vpop.f32.mrb[0].mxu0
        %v7168 = vadd.f32 %v6783, %v7167
        %v7169 = vpop.f32.mrb[0].mxu0
        %v7170 = vadd.f32 %v6785, %v7169
        %v7171 = vand.u32 %v639, 4294901760
        %7172 = vmatprep.mubr.f32.mxu0 %v7171
        %v7173 = vand.u32 %v638, 4294901760
        %7174 = vmatmul.mubr.f32.gmra.mrb[0].mxu0 %v7173
        %v7175 = vpop.f32.mrb[0].mxu0
        %v7176 = vadd.f32 %v6791, %v7175
        %v7177 = vpop.f32.mrb[0].mxu0
        %v7178 = vadd.f32 %v6793, %v7177
        %7179 = vdwg.mxu0
        %v7180 = vadd.f32 %v448, %v3722
        %v7181 = vadd.f32 %v449, %v3724
        %v7182 = vadd.f32 %v450, %v6928
        %v7183 = vadd.f32 %v451, %v6930
        %v7184 = vadd.f32 %v452, %v3730
        %v7185 = vadd.f32 %v453, %v3732
        %v7186 = vadd.f32 %v454, %v6936
        %v7187 = vadd.f32 %v455, %v6938
        %v7188 = vadd.f32 %v456, %v3738
        %v7189 = vadd.f32 %v457, %v3740
        %v7190 = vadd.f32 %v458, %v6944
        %v7191 = vadd.f32 %v459, %v6946
        %v7192 = vadd.f32 %v460, %v3746
        %v7193 = vadd.f32 %v461, %v3748
        %v7194 = vadd.f32 %v462, %v6952
        %v7195 = vadd.f32 %v463, %v6954
        %v7196 = vadd.f32 %v464, %v3754
        %v7197 = vadd.f32 %v465, %v3756
        %v7198 = vadd.f32 %v466, %v6960
        %v7199 = vadd.f32 %v467, %v6962
        %v7200 = vadd.f32 %v468, %v3762
        %v7201 = vadd.f32 %v469, %v3764
        %v7202 = vadd.f32 %v470, %v6968
        %v7203 = vadd.f32 %v471, %v6970
        %v7204 = vadd.f32 %v472, %v3770
        %v7205 = vadd.f32 %v473, %v3772
        %v7206 = vadd.f32 %v474, %v6976
        %v7207 = vadd.f32 %v475, %v6978
        %v7208 = vadd.f32 %v476, %v3778
        %v7209 = vadd.f32 %v477, %v3780
        %v7210 = vadd.f32 %v478, %v6984
        %v7211 = vadd.f32 %v479, %v6986
        %v7212 = vadd.f32 %v480, %v3786
        %v7213 = vadd.f32 %v481, %v3788
        %v7214 = vadd.f32 %v482, %v6992
        %v7215 = vadd.f32 %v483, %v6994
        %v7216 = vadd.f32 %v484, %v3794
        %v7217 = vadd.f32 %v485, %v3796
        %v7218 = vadd.f32 %v486, %v7000
        %v7219 = vadd.f32 %v487, %v7002
        %v7220 = vadd.f32 %v488, %v3802
        %v7221 = vadd.f32 %v489, %v3804
        %v7222 = vadd.f32 %v490, %v7008
        %v7223 = vadd.f32 %v491, %v7010
        %v7224 = vadd.f32 %v492, %v3810
        %v7225 = vadd.f32 %v493, %v3812
        %v7226 = vadd.f32 %v494, %v7016
        %v7227 = vadd.f32 %v495, %v7018
        %v7228 = vadd.f32 %v496, %v3818
        %v7229 = vadd.f32 %v497, %v3820
        %v7230 = vadd.f32 %v498, %v7024
        %v7231 = vadd.f32 %v499, %v7026
        %v7232 = vadd.f32 %v500, %v3826
        %v7233 = vadd.f32 %v501, %v3828
        %v7234 = vadd.f32 %v502, %v7032
        %v7235 = vadd.f32 %v503, %v7034
        %v7236 = vadd.f32 %v504, %v3834
        %v7237 = vadd.f32 %v505, %v3836
        %v7238 = vadd.f32 %v506, %v7040
        %v7239 = vadd.f32 %v507, %v7042
        %v7240 = vadd.f32 %v508, %v3842
        %v7241 = vadd.f32 %v509, %v3844
        %v7242 = vadd.f32 %v510, %v7048
        %v7243 = vadd.f32 %v511, %v7050
        %v7244 = vadd.f32 %v512, %v3850
        %v7245 = vadd.f32 %v513, %v3852
        %v7246 = vadd.f32 %v514, %v7056
        %v7247 = vadd.f32 %v515, %v7058
        %v7248 = vadd.f32 %v516, %v3858
        %v7249 = vadd.f32 %v517, %v3860
        %v7250 = vadd.f32 %v518, %v7064
        %v7251 = vadd.f32 %v519, %v7066
        %v7252 = vadd.f32 %v520, %v3866
        %v7253 = vadd.f32 %v521, %v3868
        %v7254 = vadd.f32 %v522, %v7072
        %v7255 = vadd.f32 %v523, %v7074
        %v7256 = vadd.f32 %v524, %v3874
        %v7257 = vadd.f32 %v525, %v3876
        %v7258 = vadd.f32 %v526, %v7080
        %v7259 = vadd.f32 %v527, %v7082
        %v7260 = vadd.f32 %v528, %v3882
        %v7261 = vadd.f32 %v529, %v3884
        %v7262 = vadd.f32 %v530, %v7088
        %v7263 = vadd.f32 %v531, %v7090
        %v7264 = vadd.f32 %v532, %v3890
        %v7265 = vadd.f32 %v533, %v3892
        %v7266 = vadd.f32 %v534, %v7096
        %v7267 = vadd.f32 %v535, %v7098
        %v7268 = vadd.f32 %v536, %v3898
        %v7269 = vadd.f32 %v537, %v3900
        %v7270 = vadd.f32 %v538, %v7104
        %v7271 = vadd.f32 %v539, %v7106
        %v7272 = vadd.f32 %v540, %v3906
        %v7273 = vadd.f32 %v541, %v3908
        %v7274 = vadd.f32 %v542, %v7112
        %v7275 = vadd.f32 %v543, %v7114
        %v7276 = vadd.f32 %v544, %v3914
        %v7277 = vadd.f32 %v545, %v3916
        %v7278 = vadd.f32 %v546, %v7120
        %v7279 = vadd.f32 %v547, %v7122
        %v7280 = vadd.f32 %v548, %v3922
        %v7281 = vadd.f32 %v549, %v3924
        %v7282 = vadd.f32 %v550, %v7128
        %v7283 = vadd.f32 %v551, %v7130
        %v7284 = vadd.f32 %v552, %v3930
        %v7285 = vadd.f32 %v553, %v3932
        %v7286 = vadd.f32 %v554, %v7136
        %v7287 = vadd.f32 %v555, %v7138
        %v7288 = vadd.f32 %v556, %v3938
        %v7289 = vadd.f32 %v557, %v3940
        %v7290 = vadd.f32 %v558, %v7144
        %v7291 = vadd.f32 %v559, %v7146
        %v7292 = vadd.f32 %v560, %v3946
        %v7293 = vadd.f32 %v561, %v3948
        %v7294 = vadd.f32 %v562, %v7152
        %v7295 = vadd.f32 %v563, %v7154
        %v7296 = vadd.f32 %v564, %v3954
        %v7297 = vadd.f32 %v565, %v3956
        %v7298 = vadd.f32 %v566, %v7160
        %v7299 = vadd.f32 %v567, %v7162
        %v7300 = vadd.f32 %v568, %v3962
        %v7301 = vadd.f32 %v569, %v3964
        %v7302 = vadd.f32 %v570, %v7168
        %v7303 = vadd.f32 %v571, %v7170
        %v7304 = vadd.f32 %v572, %v3970
        %v7305 = vadd.f32 %v573, %v3972
        %v7306 = vadd.f32 %v574, %v7176
        %v7307 = vadd.f32 %v575, %v7178
        %7308 = vst [vmem:[#allocation2] sm:$0xff] %v7180
        %7309 = vst [vmem:[#allocation2 + $0x8] sm:$0xff] %v7181
        %7310 = vst [vmem:[#allocation2 + $0x10] sm:$0xff] %v7182
        %7311 = vst [vmem:[#allocation2 + $0x18] sm:$0xff] %v7183
        %7312 = vst [vmem:[#allocation2 + $0x20] sm:$0xff] %v7184
        %7313 = vst [vmem:[#allocation2 + $0x28] sm:$0xff] %v7185
        %7314 = vst [vmem:[#allocation2 + $0x30] sm:$0xff] %v7186
        %7315 = vst [vmem:[#allocation2 + $0x38] sm:$0xff] %v7187
        %7316 = vst [vmem:[#allocation2 + $0x40] sm:$0xff] %v7188
        %7317 = vst [vmem:[#allocation2 + $0x48] sm:$0xff] %v7189
        %7318 = vst [vmem:[#allocation2 + $0x50] sm:$0xff] %v7190
        %7319 = vst [vmem:[#allocation2 + $0x58] sm:$0xff] %v7191
        %7320 = vst [vmem:[#allocation2 + $0x60] sm:$0xff] %v7192
        %7321 = vst [vmem:[#allocation2 + $0x68] sm:$0xff] %v7193
        %7322 = vst [vmem:[#allocation2 + $0x70] sm:$0xff] %v7194
        %7323 = vst [vmem:[#allocation2 + $0x78] sm:$0xff] %v7195
        %7324 = vst [vmem:[#allocation2 + $0x80] sm:$0xff] %v7196
        %7325 = vst [vmem:[#allocation2 + $0x88] sm:$0xff] %v7197
        %7326 = vst [vmem:[#allocation2 + $0x90] sm:$0xff] %v7198
        %7327 = vst [vmem:[#allocation2 + $0x98] sm:$0xff] %v7199
        %7328 = vst [vmem:[#allocation2 + $0xa0] sm:$0xff] %v7200
        %7329 = vst [vmem:[#allocation2 + $0xa8] sm:$0xff] %v7201
        %7330 = vst [vmem:[#allocation2 + $0xb0] sm:$0xff] %v7202
        %7331 = vst [vmem:[#allocation2 + $0xb8] sm:$0xff] %v7203
        %7332 = vst [vmem:[#allocation2 + $0xc0] sm:$0xff] %v7204
        %7333 = vst [vmem:[#allocation2 + $0xc8] sm:$0xff] %v7205
        %7334 = vst [vmem:[#allocation2 + $0xd0] sm:$0xff] %v7206
        %7335 = vst [vmem:[#allocation2 + $0xd8] sm:$0xff] %v7207
        %7336 = vst [vmem:[#allocation2 + $0xe0] sm:$0xff] %v7208
        %7337 = vst [vmem:[#allocation2 + $0xe8] sm:$0xff] %v7209
        %7338 = vst [vmem:[#allocation2 + $0xf0] sm:$0xff] %v7210
        %7339 = vst [vmem:[#allocation2 + $0xf8] sm:$0xff] %v7211
        %7340 = vst [vmem:[#allocation2 + $0x100] sm:$0xff] %v7212
        %7341 = vst [vmem:[#allocation2 + $0x108] sm:$0xff] %v7213
        %7342 = vst [vmem:[#allocation2 + $0x110] sm:$0xff] %v7214
        %7343 = vst [vmem:[#allocation2 + $0x118] sm:$0xff] %v7215
        %7344 = vst [vmem:[#allocation2 + $0x120] sm:$0xff] %v7216
        %7345 = vst [vmem:[#allocation2 + $0x128] sm:$0xff] %v7217
        %7346 = vst [vmem:[#allocation2 + $0x130] sm:$0xff] %v7218
        %7347 = vst [vmem:[#allocation2 + $0x138] sm:$0xff] %v7219
        %7348 = vst [vmem:[#allocation2 + $0x140] sm:$0xff] %v7220
        %7349 = vst [vmem:[#allocation2 + $0x148] sm:$0xff] %v7221
        %7350 = vst [vmem:[#allocation2 + $0x150] sm:$0xff] %v7222
        %7351 = vst [vmem:[#allocation2 + $0x158] sm:$0xff] %v7223
        %7352 = vst [vmem:[#allocation2 + $0x160] sm:$0xff] %v7224
        %7353 = vst [vmem:[#allocation2 + $0x168] sm:$0xff] %v7225
        %7354 = vst [vmem:[#allocation2 + $0x170] sm:$0xff] %v7226
        %7355 = vst [vmem:[#allocation2 + $0x178] sm:$0xff] %v7227
        %7356 = vst [vmem:[#allocation2 + $0x180] sm:$0xff] %v7228
        %7357 = vst [vmem:[#allocation2 + $0x188] sm:$0xff] %v7229
        %7358 = vst [vmem:[#allocation2 + $0x190] sm:$0xff] %v7230
        %7359 = vst [vmem:[#allocation2 + $0x198] sm:$0xff] %v7231
        %7360 = vst [vmem:[#allocation2 + $0x1a0] sm:$0xff] %v7232
        %7361 = vst [vmem:[#allocation2 + $0x1a8] sm:$0xff] %v7233
        %7362 = vst [vmem:[#allocation2 + $0x1b0] sm:$0xff] %v7234
        %7363 = vst [vmem:[#allocation2 + $0x1b8] sm:$0xff] %v7235
        %7364 = vst [vmem:[#allocation2 + $0x1c0] sm:$0xff] %v7236
        %7365 = vst [vmem:[#allocation2 + $0x1c8] sm:$0xff] %v7237
        %7366 = vst [vmem:[#allocation2 + $0x1d0] sm:$0xff] %v7238
        %7367 = vst [vmem:[#allocation2 + $0x1d8] sm:$0xff] %v7239
        %7368 = vst [vmem:[#allocation2 + $0x1e0] sm:$0xff] %v7240
        %7369 = vst [vmem:[#allocation2 + $0x1e8] sm:$0xff] %v7241
        %7370 = vst [vmem:[#allocation2 + $0x1f0] sm:$0xff] %v7242
        %7371 = vst [vmem:[#allocation2 + $0x1f8] sm:$0xff] %v7243
        %7372 = vst [vmem:[#allocation2 + $0x200] sm:$0xff] %v7244
        %7373 = vst [vmem:[#allocation2 + $0x208] sm:$0xff] %v7245
        %7374 = vst [vmem:[#allocation2 + $0x210] sm:$0xff] %v7246
        %7375 = vst [vmem:[#allocation2 + $0x218] sm:$0xff] %v7247
        %7376 = vst [vmem:[#allocation2 + $0x220] sm:$0xff] %v7248
        %7377 = vst [vmem:[#allocation2 + $0x228] sm:$0xff] %v7249
        %7378 = vst [vmem:[#allocation2 + $0x230] sm:$0xff] %v7250
        %7379 = vst [vmem:[#allocation2 + $0x238] sm:$0xff] %v7251
        %7380 = vst [vmem:[#allocation2 + $0x240] sm:$0xff] %v7252
        %7381 = vst [vmem:[#allocation2 + $0x248] sm:$0xff] %v7253
        %7382 = vst [vmem:[#allocation2 + $0x250] sm:$0xff] %v7254
        %7383 = vst [vmem:[#allocation2 + $0x258] sm:$0xff] %v7255
        %7384 = vst [vmem:[#allocation2 + $0x260] sm:$0xff] %v7256
        %7385 = vst [vmem:[#allocation2 + $0x268] sm:$0xff] %v7257
        %7386 = vst [vmem:[#allocation2 + $0x270] sm:$0xff] %v7258
        %7387 = vst [vmem:[#allocation2 + $0x278] sm:$0xff] %v7259
        %7388 = vst [vmem:[#allocation2 + $0x280] sm:$0xff] %v7260
        %7389 = vst [vmem:[#allocation2 + $0x288] sm:$0xff] %v7261
        %7390 = vst [vmem:[#allocation2 + $0x290] sm:$0xff] %v7262
        %7391 = vst [vmem:[#allocation2 + $0x298] sm:$0xff] %v7263
        %7392 = vst [vmem:[#allocation2 + $0x2a0] sm:$0xff] %v7264
        %7393 = vst [vmem:[#allocation2 + $0x2a8] sm:$0xff] %v7265
        %7394 = vst [vmem:[#allocation2 + $0x2b0] sm:$0xff] %v7266
        %7395 = vst [vmem:[#allocation2 + $0x2b8] sm:$0xff] %v7267
        %7396 = vst [vmem:[#allocation2 + $0x2c0] sm:$0xff] %v7268
        %7397 = vst [vmem:[#allocation2 + $0x2c8] sm:$0xff] %v7269
        %7398 = vst [vmem:[#allocation2 + $0x2d0] sm:$0xff] %v7270
        %7399 = vst [vmem:[#allocation2 + $0x2d8] sm:$0xff] %v7271
        %7400 = vst [vmem:[#allocation2 + $0x2e0] sm:$0xff] %v7272
        %7401 = vst [vmem:[#allocation2 + $0x2e8] sm:$0xff] %v7273
        %7402 = vst [vmem:[#allocation2 + $0x2f0] sm:$0xff] %v7274
        %7403 = vst [vmem:[#allocation2 + $0x2f8] sm:$0xff] %v7275
        %7404 = vst [vmem:[#allocation2 + $0x300] sm:$0xff] %v7276
        %7405 = vst [vmem:[#allocation2 + $0x308] sm:$0xff] %v7277
        %7406 = vst [vmem:[#allocation2 + $0x310] sm:$0xff] %v7278
        %7407 = vst [vmem:[#allocation2 + $0x318] sm:$0xff] %v7279
        %7408 = vst [vmem:[#allocation2 + $0x320] sm:$0xff] %v7280
        %7409 = vst [vmem:[#allocation2 + $0x328] sm:$0xff] %v7281
        %7410 = vst [vmem:[#allocation2 + $0x330] sm:$0xff] %v7282
        %7411 = vst [vmem:[#allocation2 + $0x338] sm:$0xff] %v7283
        %7412 = vst [vmem:[#allocation2 + $0x340] sm:$0xff] %v7284
        %7413 = vst [vmem:[#allocation2 + $0x348] sm:$0xff] %v7285
        %7414 = vst [vmem:[#allocation2 + $0x350] sm:$0xff] %v7286
        %7415 = vst [vmem:[#allocation2 + $0x358] sm:$0xff] %v7287
        %7416 = vst [vmem:[#allocation2 + $0x360] sm:$0xff] %v7288
        %7417 = vst [vmem:[#allocation2 + $0x368] sm:$0xff] %v7289
        %7418 = vst [vmem:[#allocation2 + $0x370] sm:$0xff] %v7290
        %7419 = vst [vmem:[#allocation2 + $0x378] sm:$0xff] %v7291
        %7420 = vst [vmem:[#allocation2 + $0x380] sm:$0xff] %v7292
        %7421 = vst [vmem:[#allocation2 + $0x388] sm:$0xff] %v7293
        %7422 = vst [vmem:[#allocation2 + $0x390] sm:$0xff] %v7294
        %7423 = vst [vmem:[#allocation2 + $0x398] sm:$0xff] %v7295
        %7424 = vst [vmem:[#allocation2 + $0x3a0] sm:$0xff] %v7296
        %7425 = vst [vmem:[#allocation2 + $0x3a8] sm:$0xff] %v7297
        %7426 = vst [vmem:[#allocation2 + $0x3b0] sm:$0xff] %v7298
        %7427 = vst [vmem:[#allocation2 + $0x3b8] sm:$0xff] %v7299
        %7428 = vst [vmem:[#allocation2 + $0x3c0] sm:$0xff] %v7300
        %7429 = vst [vmem:[#allocation2 + $0x3c8] sm:$0xff] %v7301
        %7430 = vst [vmem:[#allocation2 + $0x3d0] sm:$0xff] %v7302
        %7431 = vst [vmem:[#allocation2 + $0x3d8] sm:$0xff] %v7303
        %7432 = vst [vmem:[#allocation2 + $0x3e0] sm:$0xff] %v7304
        %7433 = vst [vmem:[#allocation2 + $0x3e8] sm:$0xff] %v7305
        %7434 = vst [vmem:[#allocation2 + $0x3f0] sm:$0xff] %v7306
        %7435 = vst [vmem:[#allocation2 + $0x3f8] sm:$0xff] %v7307
        %p7436 = scmp.eq.s32.totalorder %s29, 1
        // Predicated region
        $region53: #{tpu_custom_call.1} parent=35 // pred_check
          %p7437 = pneg %p7436
        $region54: #{tpu_custom_call.1} parent=35 // pred_check_branch
          %7439 = sbr.rel (%p7437) target = $region56
        $region55: #{tpu_custom_call.1} parent=35 // pred_region
          %v7440 = vld [vmem:[#allocation2] sm:$0xff]
          %v7441 = vld [vmem:[#allocation2 + $0x8] sm:$0xff]
          %v7442 = vld [vmem:[#allocation2 + $0x10] sm:$0xff]
          %v7443 = vld [vmem:[#allocation2 + $0x18] sm:$0xff]
          %v7444 = vld [vmem:[#allocation2 + $0x20] sm:$0xff]
          %v7445 = vld [vmem:[#allocation2 + $0x28] sm:$0xff]
          %v7446 = vld [vmem:[#allocation2 + $0x30] sm:$0xff]
          %v7447 = vld [vmem:[#allocation2 + $0x38] sm:$0xff]
          %v7448 = vld [vmem:[#allocation2 + $0x40] sm:$0xff]
          %v7449 = vld [vmem:[#allocation2 + $0x48] sm:$0xff]
          %v7450 = vld [vmem:[#allocation2 + $0x50] sm:$0xff]
          %v7451 = vld [vmem:[#allocation2 + $0x58] sm:$0xff]
          %v7452 = vld [vmem:[#allocation2 + $0x60] sm:$0xff]
          %v7453 = vld [vmem:[#allocation2 + $0x68] sm:$0xff]
          %v7454 = vld [vmem:[#allocation2 + $0x70] sm:$0xff]
          %v7455 = vld [vmem:[#allocation2 + $0x78] sm:$0xff]
          %v7456 = vld [vmem:[#allocation2 + $0x80] sm:$0xff]
          %v7457 = vld [vmem:[#allocation2 + $0x88] sm:$0xff]
          %v7458 = vld [vmem:[#allocation2 + $0x90] sm:$0xff]
          %v7459 = vld [vmem:[#allocation2 + $0x98] sm:$0xff]
          %v7460 = vld [vmem:[#allocation2 + $0xa0] sm:$0xff]
          %v7461 = vld [vmem:[#allocation2 + $0xa8] sm:$0xff]
          %v7462 = vld [vmem:[#allocation2 + $0xb0] sm:$0xff]
          %v7463 = vld [vmem:[#allocation2 + $0xb8] sm:$0xff]
          %v7464 = vld [vmem:[#allocation2 + $0xc0] sm:$0xff]
          %v7465 = vld [vmem:[#allocation2 + $0xc8] sm:$0xff]
          %v7466 = vld [vmem:[#allocation2 + $0xd0] sm:$0xff]
          %v7467 = vld [vmem:[#allocation2 + $0xd8] sm:$0xff]
          %v7468 = vld [vmem:[#allocation2 + $0xe0] sm:$0xff]
          %v7469 = vld [vmem:[#allocation2 + $0xe8] sm:$0xff]
          %v7470 = vld [vmem:[#allocation2 + $0xf0] sm:$0xff]
          %v7471 = vld [vmem:[#allocation2 + $0xf8] sm:$0xff]
          %v7472 = vld [vmem:[#allocation2 + $0x100] sm:$0xff]
          %v7473 = vld [vmem:[#allocation2 + $0x108] sm:$0xff]
          %v7474 = vld [vmem:[#allocation2 + $0x110] sm:$0xff]
          %v7475 = vld [vmem:[#allocation2 + $0x118] sm:$0xff]
          %v7476 = vld [vmem:[#allocation2 + $0x120] sm:$0xff]
          %v7477 = vld [vmem:[#allocation2 + $0x128] sm:$0xff]
          %v7478 = vld [vmem:[#allocation2 + $0x130] sm:$0xff]
          %v7479 = vld [vmem:[#allocation2 + $0x138] sm:$0xff]
          %v7480 = vld [vmem:[#allocation2 + $0x140] sm:$0xff]
          %v7481 = vld [vmem:[#allocation2 + $0x148] sm:$0xff]
          %v7482 = vld [vmem:[#allocation2 + $0x150] sm:$0xff]
          %v7483 = vld [vmem:[#allocation2 + $0x158] sm:$0xff]
          %v7484 = vld [vmem:[#allocation2 + $0x160] sm:$0xff]
          %v7485 = vld [vmem:[#allocation2 + $0x168] sm:$0xff]
          %v7486 = vld [vmem:[#allocation2 + $0x170] sm:$0xff]
          %v7487 = vld [vmem:[#allocation2 + $0x178] sm:$0xff]
          %v7488 = vld [vmem:[#allocation2 + $0x180] sm:$0xff]
          %v7489 = vld [vmem:[#allocation2 + $0x188] sm:$0xff]
          %v7490 = vld [vmem:[#allocation2 + $0x190] sm:$0xff]
          %v7491 = vld [vmem:[#allocation2 + $0x198] sm:$0xff]
          %v7492 = vld [vmem:[#allocation2 + $0x1a0] sm:$0xff]
          %v7493 = vld [vmem:[#allocation2 + $0x1a8] sm:$0xff]
          %v7494 = vld [vmem:[#allocation2 + $0x1b0] sm:$0xff]
          %v7495 = vld [vmem:[#allocation2 + $0x1b8] sm:$0xff]
          %v7496 = vld [vmem:[#allocation2 + $0x1c0] sm:$0xff]
          %v7497 = vld [vmem:[#allocation2 + $0x1c8] sm:$0xff]
          %v7498 = vld [vmem:[#allocation2 + $0x1d0] sm:$0xff]
          %v7499 = vld [vmem:[#allocation2 + $0x1d8] sm:$0xff]
          %v7500 = vld [vmem:[#allocation2 + $0x1e0] sm:$0xff]
          %v7501 = vld [vmem:[#allocation2 + $0x1e8] sm:$0xff]
          %v7502 = vld [vmem:[#allocation2 + $0x1f0] sm:$0xff]
          %v7503 = vld [vmem:[#allocation2 + $0x1f8] sm:$0xff]
          %v7504 = vld [vmem:[#allocation2 + $0x200] sm:$0xff]
          %v7505 = vld [vmem:[#allocation2 + $0x208] sm:$0xff]
          %v7506 = vld [vmem:[#allocation2 + $0x210] sm:$0xff]
          %v7507 = vld [vmem:[#allocation2 + $0x218] sm:$0xff]
          %v7508 = vld [vmem:[#allocation2 + $0x220] sm:$0xff]
          %v7509 = vld [vmem:[#allocation2 + $0x228] sm:$0xff]
          %v7510 = vld [vmem:[#allocation2 + $0x230] sm:$0xff]
          %v7511 = vld [vmem:[#allocation2 + $0x238] sm:$0xff]
          %v7512 = vld [vmem:[#allocation2 + $0x240] sm:$0xff]
          %v7513 = vld [vmem:[#allocation2 + $0x248] sm:$0xff]
          %v7514 = vld [vmem:[#allocation2 + $0x250] sm:$0xff]
          %v7515 = vld [vmem:[#allocation2 + $0x258] sm:$0xff]
          %v7516 = vld [vmem:[#allocation2 + $0x260] sm:$0xff]
          %v7517 = vld [vmem:[#allocation2 + $0x268] sm:$0xff]
          %v7518 = vld [vmem:[#allocation2 + $0x270] sm:$0xff]
          %v7519 = vld [vmem:[#allocation2 + $0x278] sm:$0xff]
          %v7520 = vld [vmem:[#allocation2 + $0x280] sm:$0xff]
          %v7521 = vld [vmem:[#allocation2 + $0x288] sm:$0xff]
          %v7522 = vld [vmem:[#allocation2 + $0x290] sm:$0xff]
          %v7523 = vld [vmem:[#allocation2 + $0x298] sm:$0xff]
          %v7524 = vld [vmem:[#allocation2 + $0x2a0] sm:$0xff]
          %v7525 = vld [vmem:[#allocation2 + $0x2a8] sm:$0xff]
          %v7526 = vld [vmem:[#allocation2 + $0x2b0] sm:$0xff]
          %v7527 = vld [vmem:[#allocation2 + $0x2b8] sm:$0xff]
          %v7528 = vld [vmem:[#allocation2 + $0x2c0] sm:$0xff]
          %v7529 = vld [vmem:[#allocation2 + $0x2c8] sm:$0xff]
          %v7530 = vld [vmem:[#allocation2 + $0x2d0] sm:$0xff]
          %v7531 = vld [vmem:[#allocation2 + $0x2d8] sm:$0xff]
          %v7532 = vld [vmem:[#allocation2 + $0x2e0] sm:$0xff]
          %v7533 = vld [vmem:[#allocation2 + $0x2e8] sm:$0xff]
          %v7534 = vld [vmem:[#allocation2 + $0x2f0] sm:$0xff]
          %v7535 = vld [vmem:[#allocation2 + $0x2f8] sm:$0xff]
          %v7536 = vld [vmem:[#allocation2 + $0x300] sm:$0xff]
          %v7537 = vld [vmem:[#allocation2 + $0x308] sm:$0xff]
          %v7538 = vld [vmem:[#allocation2 + $0x310] sm:$0xff]
          %v7539 = vld [vmem:[#allocation2 + $0x318] sm:$0xff]
          %v7540 = vld [vmem:[#allocation2 + $0x320] sm:$0xff]
          %v7541 = vld [vmem:[#allocation2 + $0x328] sm:$0xff]
          %v7542 = vld [vmem:[#allocation2 + $0x330] sm:$0xff]
          %v7543 = vld [vmem:[#allocation2 + $0x338] sm:$0xff]
          %v7544 = vld [vmem:[#allocation2 + $0x340] sm:$0xff]
          %v7545 = vld [vmem:[#allocation2 + $0x348] sm:$0xff]
          %v7546 = vld [vmem:[#allocation2 + $0x350] sm:$0xff]
          %v7547 = vld [vmem:[#allocation2 + $0x358] sm:$0xff]
          %v7548 = vld [vmem:[#allocation2 + $0x360] sm:$0xff]
          %v7549 = vld [vmem:[#allocation2 + $0x368] sm:$0xff]
          %v7550 = vld [vmem:[#allocation2 + $0x370] sm:$0xff]
          %v7551 = vld [vmem:[#allocation2 + $0x378] sm:$0xff]
          %v7552 = vld [vmem:[#allocation2 + $0x380] sm:$0xff]
          %v7553 = vld [vmem:[#allocation2 + $0x388] sm:$0xff]
          %v7554 = vld [vmem:[#allocation2 + $0x390] sm:$0xff]
          %v7555 = vld [vmem:[#allocation2 + $0x398] sm:$0xff]
          %v7556 = vld [vmem:[#allocation2 + $0x3a0] sm:$0xff]
          %v7557 = vld [vmem:[#allocation2 + $0x3a8] sm:$0xff]
          %v7558 = vld [vmem:[#allocation2 + $0x3b0] sm:$0xff]
          %v7559 = vld [vmem:[#allocation2 + $0x3b8] sm:$0xff]
          %v7560 = vld [vmem:[#allocation2 + $0x3c0] sm:$0xff]
          %v7561 = vld [vmem:[#allocation2 + $0x3c8] sm:$0xff]
          %v7562 = vld [vmem:[#allocation2 + $0x3d0] sm:$0xff]
          %v7563 = vld [vmem:[#allocation2 + $0x3d8] sm:$0xff]
          %v7564 = vld [vmem:[#allocation2 + $0x3e0] sm:$0xff]
          %v7565 = vld [vmem:[#allocation2 + $0x3e8] sm:$0xff]
          %v7566 = vld [vmem:[#allocation2 + $0x3f0] sm:$0xff]
          %v7567 = vld [vmem:[#allocation2 + $0x3f8] sm:$0xff]
          %v7568 = vld [vmem:[%s2] sm:$0xf]
          %v7570 = vlaneseq
          %v7571 = vshrl.u32 %v7570, 7
          %v7572 = vsub.s32 0, %v7571
          %v7573 = vrot.slane %v7568, %v7572
          %v7574 = vlaneseq
          %v7575 = vshrl.u32 %v7574, 7
          %v7576 = vsub.s32 1, %v7575
          %v7577 = vrot.slane %v7568, %v7576
          %v7578 = vlaneseq
          %v7579 = vshrl.u32 %v7578, 7
          %v7580 = vsub.s32 2, %v7579
          %v7581 = vrot.slane %v7568, %v7580
          %v7582 = vlaneseq
          %v7583 = vshrl.u32 %v7582, 7
          %v7584 = vsub.s32 3, %v7583
          %v7585 = vrot.slane %v7568, %v7584
          %v7590 = vadd.f32 %v7440, %v7573
          %v7591 = vadd.f32 %v7441, %v7577
          %v7592 = vadd.f32 %v7442, %v7581
          %v7593 = vadd.f32 %v7443, %v7585
          %v7594 = vadd.f32 %v7444, %v7573
          %v7595 = vadd.f32 %v7445, %v7577
          %v7596 = vadd.f32 %v7446, %v7581
          %v7597 = vadd.f32 %v7447, %v7585
          %v7598 = vadd.f32 %v7448, %v7573
          %v7599 = vadd.f32 %v7449, %v7577
          %v7600 = vadd.f32 %v7450, %v7581
          %v7601 = vadd.f32 %v7451, %v7585
          %v7602 = vadd.f32 %v7452, %v7573
          %v7603 = vadd.f32 %v7453, %v7577
          %v7604 = vadd.f32 %v7454, %v7581
          %v7605 = vadd.f32 %v7455, %v7585
          %v7606 = vadd.f32 %v7456, %v7573
          %v7607 = vadd.f32 %v7457, %v7577
          %v7608 = vadd.f32 %v7458, %v7581
          %v7609 = vadd.f32 %v7459, %v7585
          %v7610 = vadd.f32 %v7460, %v7573
          %v7611 = vadd.f32 %v7461, %v7577
          %v7612 = vadd.f32 %v7462, %v7581
          %v7613 = vadd.f32 %v7463, %v7585
          %v7614 = vadd.f32 %v7464, %v7573
          %v7615 = vadd.f32 %v7465, %v7577
          %v7616 = vadd.f32 %v7466, %v7581
          %v7617 = vadd.f32 %v7467, %v7585
          %v7618 = vadd.f32 %v7468, %v7573
          %v7619 = vadd.f32 %v7469, %v7577
          %v7620 = vadd.f32 %v7470, %v7581
          %v7621 = vadd.f32 %v7471, %v7585
          %v7622 = vadd.f32 %v7472, %v7573
          %v7623 = vadd.f32 %v7473, %v7577
          %v7624 = vadd.f32 %v7474, %v7581
          %v7625 = vadd.f32 %v7475, %v7585
          %v7626 = vadd.f32 %v7476, %v7573
          %v7627 = vadd.f32 %v7477, %v7577
          %v7628 = vadd.f32 %v7478, %v7581
          %v7629 = vadd.f32 %v7479, %v7585
          %v7630 = vadd.f32 %v7480, %v7573
          %v7631 = vadd.f32 %v7481, %v7577
          %v7632 = vadd.f32 %v7482, %v7581
          %v7633 = vadd.f32 %v7483, %v7585
          %v7634 = vadd.f32 %v7484, %v7573
          %v7635 = vadd.f32 %v7485, %v7577
          %v7636 = vadd.f32 %v7486, %v7581
          %v7637 = vadd.f32 %v7487, %v7585
          %v7638 = vadd.f32 %v7488, %v7573
          %v7639 = vadd.f32 %v7489, %v7577
          %v7640 = vadd.f32 %v7490, %v7581
          %v7641 = vadd.f32 %v7491, %v7585
          %v7642 = vadd.f32 %v7492, %v7573
          %v7643 = vadd.f32 %v7493, %v7577
          %v7644 = vadd.f32 %v7494, %v7581
          %v7645 = vadd.f32 %v7495, %v7585
          %v7646 = vadd.f32 %v7496, %v7573
          %v7647 = vadd.f32 %v7497, %v7577
          %v7648 = vadd.f32 %v7498, %v7581
          %v7649 = vadd.f32 %v7499, %v7585
          %v7650 = vadd.f32 %v7500, %v7573
          %v7651 = vadd.f32 %v7501, %v7577
          %v7652 = vadd.f32 %v7502, %v7581
          %v7653 = vadd.f32 %v7503, %v7585
          %v7654 = vadd.f32 %v7504, %v7573
          %v7655 = vadd.f32 %v7505, %v7577
          %v7656 = vadd.f32 %v7506, %v7581
          %v7657 = vadd.f32 %v7507, %v7585
          %v7658 = vadd.f32 %v7508, %v7573
          %v7659 = vadd.f32 %v7509, %v7577
          %v7660 = vadd.f32 %v7510, %v7581
          %v7661 = vadd.f32 %v7511, %v7585
          %v7662 = vadd.f32 %v7512, %v7573
          %v7663 = vadd.f32 %v7513, %v7577
          %v7664 = vadd.f32 %v7514, %v7581
          %v7665 = vadd.f32 %v7515, %v7585
          %v7666 = vadd.f32 %v7516, %v7573
          %v7667 = vadd.f32 %v7517, %v7577
          %v7668 = vadd.f32 %v7518, %v7581
          %v7669 = vadd.f32 %v7519, %v7585
          %v7670 = vadd.f32 %v7520, %v7573
          %v7671 = vadd.f32 %v7521, %v7577
          %v7672 = vadd.f32 %v7522, %v7581
          %v7673 = vadd.f32 %v7523, %v7585
          %v7674 = vadd.f32 %v7524, %v7573
          %v7675 = vadd.f32 %v7525, %v7577
          %v7676 = vadd.f32 %v7526, %v7581
          %v7677 = vadd.f32 %v7527, %v7585
          %v7678 = vadd.f32 %v7528, %v7573
          %v7679 = vadd.f32 %v7529, %v7577
          %v7680 = vadd.f32 %v7530, %v7581
          %v7681 = vadd.f32 %v7531, %v7585
          %v7682 = vadd.f32 %v7532, %v7573
          %v7683 = vadd.f32 %v7533, %v7577
          %v7684 = vadd.f32 %v7534, %v7581
          %v7685 = vadd.f32 %v7535, %v7585
          %v7686 = vadd.f32 %v7536, %v7573
          %v7687 = vadd.f32 %v7537, %v7577
          %v7688 = vadd.f32 %v7538, %v7581
          %v7689 = vadd.f32 %v7539, %v7585
          %v7690 = vadd.f32 %v7540, %v7573
          %v7691 = vadd.f32 %v7541, %v7577
          %v7692 = vadd.f32 %v7542, %v7581
          %v7693 = vadd.f32 %v7543, %v7585
          %v7694 = vadd.f32 %v7544, %v7573
          %v7695 = vadd.f32 %v7545, %v7577
          %v7696 = vadd.f32 %v7546, %v7581
          %v7697 = vadd.f32 %v7547, %v7585
          %v7698 = vadd.f32 %v7548, %v7573
          %v7699 = vadd.f32 %v7549, %v7577
          %v7700 = vadd.f32 %v7550, %v7581
          %v7701 = vadd.f32 %v7551, %v7585
          %v7702 = vadd.f32 %v7552, %v7573
          %v7703 = vadd.f32 %v7553, %v7577
          %v7704 = vadd.f32 %v7554, %v7581
          %v7705 = vadd.f32 %v7555, %v7585
          %v7706 = vadd.f32 %v7556, %v7573
          %v7707 = vadd.f32 %v7557, %v7577
          %v7708 = vadd.f32 %v7558, %v7581
          %v7709 = vadd.f32 %v7559, %v7585
          %v7710 = vadd.f32 %v7560, %v7573
          %v7711 = vadd.f32 %v7561, %v7577
          %v7712 = vadd.f32 %v7562, %v7581
          %v7713 = vadd.f32 %v7563, %v7585
          %v7714 = vadd.f32 %v7564, %v7573
          %v7715 = vadd.f32 %v7565, %v7577
          %v7716 = vadd.f32 %v7566, %v7581
          %v7717 = vadd.f32 %v7567, %v7585
          %v7718 = vld [vmem:[%s277] sm:$0xff]
          %v7719 = vld [vmem:[%s277 + $0x8] sm:$0xff]
          %v7720 = vld [vmem:[%s277 + $0x10] sm:$0xff]
          %v7721 = vld [vmem:[%s277 + $0x18] sm:$0xff]
          %v7722 = vld [vmem:[%s277 + $0x20] sm:$0xff]
          %v7723 = vld [vmem:[%s277 + $0x28] sm:$0xff]
          %v7724 = vld [vmem:[%s277 + $0x30] sm:$0xff]
          %v7725 = vld [vmem:[%s277 + $0x38] sm:$0xff]
          %v7726 = vld [vmem:[%s277 + $0x40] sm:$0xff]
          %v7727 = vld [vmem:[%s277 + $0x48] sm:$0xff]
          %v7728 = vld [vmem:[%s277 + $0x50] sm:$0xff]
          %v7729 = vld [vmem:[%s277 + $0x58] sm:$0xff]
          %v7730 = vld [vmem:[%s277 + $0x60] sm:$0xff]
          %v7731 = vld [vmem:[%s277 + $0x68] sm:$0xff]
          %v7732 = vld [vmem:[%s277 + $0x70] sm:$0xff]
          %v7733 = vld [vmem:[%s277 + $0x78] sm:$0xff]
          %v7734 = vld [vmem:[%s277 + $0x80] sm:$0xff]
          %v7735 = vld [vmem:[%s277 + $0x88] sm:$0xff]
          %v7736 = vld [vmem:[%s277 + $0x90] sm:$0xff]
          %v7737 = vld [vmem:[%s277 + $0x98] sm:$0xff]
          %v7738 = vld [vmem:[%s277 + $0xa0] sm:$0xff]
          %v7739 = vld [vmem:[%s277 + $0xa8] sm:$0xff]
          %v7740 = vld [vmem:[%s277 + $0xb0] sm:$0xff]
          %v7741 = vld [vmem:[%s277 + $0xb8] sm:$0xff]
          %v7742 = vld [vmem:[%s277 + $0xc0] sm:$0xff]
          %v7743 = vld [vmem:[%s277 + $0xc8] sm:$0xff]
          %v7744 = vld [vmem:[%s277 + $0xd0] sm:$0xff]
          %v7745 = vld [vmem:[%s277 + $0xd8] sm:$0xff]
          %v7746 = vld [vmem:[%s277 + $0xe0] sm:$0xff]
          %v7747 = vld [vmem:[%s277 + $0xe8] sm:$0xff]
          %v7748 = vld [vmem:[%s277 + $0xf0] sm:$0xff]
          %v7749 = vld [vmem:[%s277 + $0xf8] sm:$0xff]
          %v7750 = vld [vmem:[%s277 + $0x100] sm:$0xff]
          %v7751 = vld [vmem:[%s277 + $0x108] sm:$0xff]
          %v7752 = vld [vmem:[%s277 + $0x110] sm:$0xff]
          %v7753 = vld [vmem:[%s277 + $0x118] sm:$0xff]
          %v7754 = vld [vmem:[%s277 + $0x120] sm:$0xff]
          %v7755 = vld [vmem:[%s277 + $0x128] sm:$0xff]
          %v7756 = vld [vmem:[%s277 + $0x130] sm:$0xff]
          %v7757 = vld [vmem:[%s277 + $0x138] sm:$0xff]
          %v7758 = vld [vmem:[%s277 + $0x140] sm:$0xff]
          %v7759 = vld [vmem:[%s277 + $0x148] sm:$0xff]
          %v7760 = vld [vmem:[%s277 + $0x150] sm:$0xff]
          %v7761 = vld [vmem:[%s277 + $0x158] sm:$0xff]
          %v7762 = vld [vmem:[%s277 + $0x160] sm:$0xff]
          %v7763 = vld [vmem:[%s277 + $0x168] sm:$0xff]
          %v7764 = vld [vmem:[%s277 + $0x170] sm:$0xff]
          %v7765 = vld [vmem:[%s277 + $0x178] sm:$0xff]
          %v7766 = vld [vmem:[%s277 + $0x180] sm:$0xff]
          %v7767 = vld [vmem:[%s277 + $0x188] sm:$0xff]
          %v7768 = vld [vmem:[%s277 + $0x190] sm:$0xff]
          %v7769 = vld [vmem:[%s277 + $0x198] sm:$0xff]
          %v7770 = vld [vmem:[%s277 + $0x1a0] sm:$0xff]
          %v7771 = vld [vmem:[%s277 + $0x1a8] sm:$0xff]
          %v7772 = vld [vmem:[%s277 + $0x1b0] sm:$0xff]
          %v7773 = vld [vmem:[%s277 + $0x1b8] sm:$0xff]
          %v7774 = vld [vmem:[%s277 + $0x1c0] sm:$0xff]
          %v7775 = vld [vmem:[%s277 + $0x1c8] sm:$0xff]
          %v7776 = vld [vmem:[%s277 + $0x1d0] sm:$0xff]
          %v7777 = vld [vmem:[%s277 + $0x1d8] sm:$0xff]
          %v7778 = vld [vmem:[%s277 + $0x1e0] sm:$0xff]
          %v7779 = vld [vmem:[%s277 + $0x1e8] sm:$0xff]
          %v7780 = vld [vmem:[%s277 + $0x1f0] sm:$0xff]
          %v7781 = vld [vmem:[%s277 + $0x1f8] sm:$0xff]
          %v7782 = vld [vmem:[%s277 + $0x200] sm:$0xff]
          %v7783 = vld [vmem:[%s277 + $0x208] sm:$0xff]
          %v7784 = vld [vmem:[%s277 + $0x210] sm:$0xff]
          %v7785 = vld [vmem:[%s277 + $0x218] sm:$0xff]
          %v7786 = vld [vmem:[%s277 + $0x220] sm:$0xff]
          %v7787 = vld [vmem:[%s277 + $0x228] sm:$0xff]
          %v7788 = vld [vmem:[%s277 + $0x230] sm:$0xff]
          %v7789 = vld [vmem:[%s277 + $0x238] sm:$0xff]
          %v7790 = vld [vmem:[%s277 + $0x240] sm:$0xff]
          %v7791 = vld [vmem:[%s277 + $0x248] sm:$0xff]
          %v7792 = vld [vmem:[%s277 + $0x250] sm:$0xff]
          %v7793 = vld [vmem:[%s277 + $0x258] sm:$0xff]
          %v7794 = vld [vmem:[%s277 + $0x260] sm:$0xff]
          %v7795 = vld [vmem:[%s277 + $0x268] sm:$0xff]
          %v7796 = vld [vmem:[%s277 + $0x270] sm:$0xff]
          %v7797 = vld [vmem:[%s277 + $0x278] sm:$0xff]
          %v7798 = vld [vmem:[%s277 + $0x280] sm:$0xff]
          %v7799 = vld [vmem:[%s277 + $0x288] sm:$0xff]
          %v7800 = vld [vmem:[%s277 + $0x290] sm:$0xff]
          %v7801 = vld [vmem:[%s277 + $0x298] sm:$0xff]
          %v7802 = vld [vmem:[%s277 + $0x2a0] sm:$0xff]
          %v7803 = vld [vmem:[%s277 + $0x2a8] sm:$0xff]
          %v7804 = vld [vmem:[%s277 + $0x2b0] sm:$0xff]
          %v7805 = vld [vmem:[%s277 + $0x2b8] sm:$0xff]
          %v7806 = vld [vmem:[%s277 + $0x2c0] sm:$0xff]
          %v7807 = vld [vmem:[%s277 + $0x2c8] sm:$0xff]
          %v7808 = vld [vmem:[%s277 + $0x2d0] sm:$0xff]
          %v7809 = vld [vmem:[%s277 + $0x2d8] sm:$0xff]
          %v7810 = vld [vmem:[%s277 + $0x2e0] sm:$0xff]
          %v7811 = vld [vmem:[%s277 + $0x2e8] sm:$0xff]
          %v7812 = vld [vmem:[%s277 + $0x2f0] sm:$0xff]
          %v7813 = vld [vmem:[%s277 + $0x2f8] sm:$0xff]
          %v7814 = vld [vmem:[%s277 + $0x300] sm:$0xff]
          %v7815 = vld [vmem:[%s277 + $0x308] sm:$0xff]
          %v7816 = vld [vmem:[%s277 + $0x310] sm:$0xff]
          %v7817 = vld [vmem:[%s277 + $0x318] sm:$0xff]
          %v7818 = vld [vmem:[%s277 + $0x320] sm:$0xff]
          %v7819 = vld [vmem:[%s277 + $0x328] sm:$0xff]
          %v7820 = vld [vmem:[%s277 + $0x330] sm:$0xff]
          %v7821 = vld [vmem:[%s277 + $0x338] sm:$0xff]
          %v7822 = vld [vmem:[%s277 + $0x340] sm:$0xff]
          %v7823 = vld [vmem:[%s277 + $0x348] sm:$0xff]
          %v7824 = vld [vmem:[%s277 + $0x350] sm:$0xff]
          %v7825 = vld [vmem:[%s277 + $0x358] sm:$0xff]
          %v7826 = vld [vmem:[%s277 + $0x360] sm:$0xff]
          %v7827 = vld [vmem:[%s277 + $0x368] sm:$0xff]
          %v7828 = vld [vmem:[%s277 + $0x370] sm:$0xff]
          %v7829 = vld [vmem:[%s277 + $0x378] sm:$0xff]
          %v7830 = vld [vmem:[%s277 + $0x380] sm:$0xff]
          %v7831 = vld [vmem:[%s277 + $0x388] sm:$0xff]
          %v7832 = vld [vmem:[%s277 + $0x390] sm:$0xff]
          %v7833 = vld [vmem:[%s277 + $0x398] sm:$0xff]
          %v7834 = vld [vmem:[%s277 + $0x3a0] sm:$0xff]
          %v7835 = vld [vmem:[%s277 + $0x3a8] sm:$0xff]
          %v7836 = vld [vmem:[%s277 + $0x3b0] sm:$0xff]
          %v7837 = vld [vmem:[%s277 + $0x3b8] sm:$0xff]
          %v7838 = vld [vmem:[%s277 + $0x3c0] sm:$0xff]
          %v7839 = vld [vmem:[%s277 + $0x3c8] sm:$0xff]
          %v7840 = vld [vmem:[%s277 + $0x3d0] sm:$0xff]
          %v7841 = vld [vmem:[%s277 + $0x3d8] sm:$0xff]
          %v7842 = vld [vmem:[%s277 + $0x3e0] sm:$0xff]
          %v7843 = vld [vmem:[%s277 + $0x3e8] sm:$0xff]
          %v7844 = vld [vmem:[%s277 + $0x3f0] sm:$0xff]
          %v7845 = vld [vmem:[%s277 + $0x3f8] sm:$0xff]
          %v7846 = vsub.f32 %v7590, %v7718
          %v7847 = vsub.f32 %v7591, %v7719
          %v7848 = vsub.f32 %v7592, %v7720
          %v7849 = vsub.f32 %v7593, %v7721
          %v7850 = vsub.f32 %v7594, %v7722
          %v7851 = vsub.f32 %v7595, %v7723
          %v7852 = vsub.f32 %v7596, %v7724
          %v7853 = vsub.f32 %v7597, %v7725
          %v7854 = vsub.f32 %v7598, %v7726
          %v7855 = vsub.f32 %v7599, %v7727
          %v7856 = vsub.f32 %v7600, %v7728
          %v7857 = vsub.f32 %v7601, %v7729
          %v7858 = vsub.f32 %v7602, %v7730
          %v7859 = vsub.f32 %v7603, %v7731
          %v7860 = vsub.f32 %v7604, %v7732
          %v7861 = vsub.f32 %v7605, %v7733
          %v7862 = vsub.f32 %v7606, %v7734
          %v7863 = vsub.f32 %v7607, %v7735
          %v7864 = vsub.f32 %v7608, %v7736
          %v7865 = vsub.f32 %v7609, %v7737
          %v7866 = vsub.f32 %v7610, %v7738
          %v7867 = vsub.f32 %v7611, %v7739
          %v7868 = vsub.f32 %v7612, %v7740
          %v7869 = vsub.f32 %v7613, %v7741
          %v7870 = vsub.f32 %v7614, %v7742
          %v7871 = vsub.f32 %v7615, %v7743
          %v7872 = vsub.f32 %v7616, %v7744
          %v7873 = vsub.f32 %v7617, %v7745
          %v7874 = vsub.f32 %v7618, %v7746
          %v7875 = vsub.f32 %v7619, %v7747
          %v7876 = vsub.f32 %v7620, %v7748
          %v7877 = vsub.f32 %v7621, %v7749
          %v7878 = vsub.f32 %v7622, %v7750
          %v7879 = vsub.f32 %v7623, %v7751
          %v7880 = vsub.f32 %v7624, %v7752
          %v7881 = vsub.f32 %v7625, %v7753
          %v7882 = vsub.f32 %v7626, %v7754
          %v7883 = vsub.f32 %v7627, %v7755
          %v7884 = vsub.f32 %v7628, %v7756
          %v7885 = vsub.f32 %v7629, %v7757
          %v7886 = vsub.f32 %v7630, %v7758
          %v7887 = vsub.f32 %v7631, %v7759
          %v7888 = vsub.f32 %v7632, %v7760
          %v7889 = vsub.f32 %v7633, %v7761
          %v7890 = vsub.f32 %v7634, %v7762
          %v7891 = vsub.f32 %v7635, %v7763
          %v7892 = vsub.f32 %v7636, %v7764
          %v7893 = vsub.f32 %v7637, %v7765
          %v7894 = vsub.f32 %v7638, %v7766
          %v7895 = vsub.f32 %v7639, %v7767
          %v7896 = vsub.f32 %v7640, %v7768
          %v7897 = vsub.f32 %v7641, %v7769
          %v7898 = vsub.f32 %v7642, %v7770
          %v7899 = vsub.f32 %v7643, %v7771
          %v7900 = vsub.f32 %v7644, %v7772
          %v7901 = vsub.f32 %v7645, %v7773
          %v7902 = vsub.f32 %v7646, %v7774
          %v7903 = vsub.f32 %v7647, %v7775
          %v7904 = vsub.f32 %v7648, %v7776
          %v7905 = vsub.f32 %v7649, %v7777
          %v7906 = vsub.f32 %v7650, %v7778
          %v7907 = vsub.f32 %v7651, %v7779
          %v7908 = vsub.f32 %v7652, %v7780
          %v7909 = vsub.f32 %v7653, %v7781
          %v7910 = vsub.f32 %v7654, %v7782
          %v7911 = vsub.f32 %v7655, %v7783
          %v7912 = vsub.f32 %v7656, %v7784
          %v7913 = vsub.f32 %v7657, %v7785
          %v7914 = vsub.f32 %v7658, %v7786
          %v7915 = vsub.f32 %v7659, %v7787
          %v7916 = vsub.f32 %v7660, %v7788
          %v7917 = vsub.f32 %v7661, %v7789
          %v7918 = vsub.f32 %v7662, %v7790
          %v7919 = vsub.f32 %v7663, %v7791
          %v7920 = vsub.f32 %v7664, %v7792
          %v7921 = vsub.f32 %v7665, %v7793
          %v7922 = vsub.f32 %v7666, %v7794
          %v7923 = vsub.f32 %v7667, %v7795
          %v7924 = vsub.f32 %v7668, %v7796
          %v7925 = vsub.f32 %v7669, %v7797
          %v7926 = vsub.f32 %v7670, %v7798
          %v7927 = vsub.f32 %v7671, %v7799
          %v7928 = vsub.f32 %v7672, %v7800
          %v7929 = vsub.f32 %v7673, %v7801
          %v7930 = vsub.f32 %v7674, %v7802
          %v7931 = vsub.f32 %v7675, %v7803
          %v7932 = vsub.f32 %v7676, %v7804
          %v7933 = vsub.f32 %v7677, %v7805
          %v7934 = vsub.f32 %v7678, %v7806
          %v7935 = vsub.f32 %v7679, %v7807
          %v7936 = vsub.f32 %v7680, %v7808
          %v7937 = vsub.f32 %v7681, %v7809
          %v7938 = vsub.f32 %v7682, %v7810
          %v7939 = vsub.f32 %v7683, %v7811
          %v7940 = vsub.f32 %v7684, %v7812
          %v7941 = vsub.f32 %v7685, %v7813
          %v7942 = vsub.f32 %v7686, %v7814
          %v7943 = vsub.f32 %v7687, %v7815
          %v7944 = vsub.f32 %v7688, %v7816
          %v7945 = vsub.f32 %v7689, %v7817
          %v7946 = vsub.f32 %v7690, %v7818
          %v7947 = vsub.f32 %v7691, %v7819
          %v7948 = vsub.f32 %v7692, %v7820
          %v7949 = vsub.f32 %v7693, %v7821
          %v7950 = vsub.f32 %v7694, %v7822
          %v7951 = vsub.f32 %v7695, %v7823
          %v7952 = vsub.f32 %v7696, %v7824
          %v7953 = vsub.f32 %v7697, %v7825
          %v7954 = vsub.f32 %v7698, %v7826
          %v7955 = vsub.f32 %v7699, %v7827
          %v7956 = vsub.f32 %v7700, %v7828
          %v7957 = vsub.f32 %v7701, %v7829
          %v7958 = vsub.f32 %v7702, %v7830
          %v7959 = vsub.f32 %v7703, %v7831
          %v7960 = vsub.f32 %v7704, %v7832
          %v7961 = vsub.f32 %v7705, %v7833
          %v7962 = vsub.f32 %v7706, %v7834
          %v7963 = vsub.f32 %v7707, %v7835
          %v7964 = vsub.f32 %v7708, %v7836
          %v7965 = vsub.f32 %v7709, %v7837
          %v7966 = vsub.f32 %v7710, %v7838
          %v7967 = vsub.f32 %v7711, %v7839
          %v7968 = vsub.f32 %v7712, %v7840
          %v7969 = vsub.f32 %v7713, %v7841
          %v7970 = vsub.f32 %v7714, %v7842
          %v7971 = vsub.f32 %v7715, %v7843
          %v7972 = vsub.f32 %v7716, %v7844
          %v7973 = vsub.f32 %v7717, %v7845
          %v7974 = vmul.f32 %v7846, %v7846
          %v7975 = vmul.f32 %v7847, %v7847
          %v7976 = vmul.f32 %v7848, %v7848
          %v7977 = vmul.f32 %v7849, %v7849
          %v7978 = vmul.f32 %v7850, %v7850
          %v7979 = vmul.f32 %v7851, %v7851
          %v7980 = vmul.f32 %v7852, %v7852
          %v7981 = vmul.f32 %v7853, %v7853
          %v7982 = vmul.f32 %v7854, %v7854
          %v7983 = vmul.f32 %v7855, %v7855
          %v7984 = vmul.f32 %v7856, %v7856
          %v7985 = vmul.f32 %v7857, %v7857
          %v7986 = vmul.f32 %v7858, %v7858
          %v7987 = vmul.f32 %v7859, %v7859
          %v7988 = vmul.f32 %v7860, %v7860
          %v7989 = vmul.f32 %v7861, %v7861
          %v7990 = vmul.f32 %v7862, %v7862
          %v7991 = vmul.f32 %v7863, %v7863
          %v7992 = vmul.f32 %v7864, %v7864
          %v7993 = vmul.f32 %v7865, %v7865
          %v7994 = vmul.f32 %v7866, %v7866
          %v7995 = vmul.f32 %v7867, %v7867
          %v7996 = vmul.f32 %v7868, %v7868
          %v7997 = vmul.f32 %v7869, %v7869
          %v7998 = vmul.f32 %v7870, %v7870
          %v7999 = vmul.f32 %v7871, %v7871
          %v8000 = vmul.f32 %v7872, %v7872
          %v8001 = vmul.f32 %v7873, %v7873
          %v8002 = vmul.f32 %v7874, %v7874
          %v8003 = vmul.f32 %v7875, %v7875
          %v8004 = vmul.f32 %v7876, %v7876
          %v8005 = vmul.f32 %v7877, %v7877
          %v8006 = vmul.f32 %v7878, %v7878
          %v8007 = vmul.f32 %v7879, %v7879
          %v8008 = vmul.f32 %v7880, %v7880
          %v8009 = vmul.f32 %v7881, %v7881
          %v8010 = vmul.f32 %v7882, %v7882
          %v8011 = vmul.f32 %v7883, %v7883
          %v8012 = vmul.f32 %v7884, %v7884
          %v8013 = vmul.f32 %v7885, %v7885
          %v8014 = vmul.f32 %v7886, %v7886
          %v8015 = vmul.f32 %v7887, %v7887
          %v8016 = vmul.f32 %v7888, %v7888
          %v8017 = vmul.f32 %v7889, %v7889
          %v8018 = vmul.f32 %v7890, %v7890
          %v8019 = vmul.f32 %v7891, %v7891
          %v8020 = vmul.f32 %v7892, %v7892
          %v8021 = vmul.f32 %v7893, %v7893
          %v8022 = vmul.f32 %v7894, %v7894
          %v8023 = vmul.f32 %v7895, %v7895
          %v8024 = vmul.f32 %v7896, %v7896
          %v8025 = vmul.f32 %v7897, %v7897
          %v8026 = vmul.f32 %v7898, %v7898
          %v8027 = vmul.f32 %v7899, %v7899
          %v8028 = vmul.f32 %v7900, %v7900
          %v8029 = vmul.f32 %v7901, %v7901
          %v8030 = vmul.f32 %v7902, %v7902
          %v8031 = vmul.f32 %v7903, %v7903
          %v8032 = vmul.f32 %v7904, %v7904
          %v8033 = vmul.f32 %v7905, %v7905
          %v8034 = vmul.f32 %v7906, %v7906
          %v8035 = vmul.f32 %v7907, %v7907
          %v8036 = vmul.f32 %v7908, %v7908
          %v8037 = vmul.f32 %v7909, %v7909
          %v8038 = vmul.f32 %v7910, %v7910
          %v8039 = vmul.f32 %v7911, %v7911
          %v8040 = vmul.f32 %v7912, %v7912
          %v8041 = vmul.f32 %v7913, %v7913
          %v8042 = vmul.f32 %v7914, %v7914
          %v8043 = vmul.f32 %v7915, %v7915
          %v8044 = vmul.f32 %v7916, %v7916
          %v8045 = vmul.f32 %v7917, %v7917
          %v8046 = vmul.f32 %v7918, %v7918
          %v8047 = vmul.f32 %v7919, %v7919
          %v8048 = vmul.f32 %v7920, %v7920
          %v8049 = vmul.f32 %v7921, %v7921
          %v8050 = vmul.f32 %v7922, %v7922
          %v8051 = vmul.f32 %v7923, %v7923
          %v8052 = vmul.f32 %v7924, %v7924
          %v8053 = vmul.f32 %v7925, %v7925
          %v8054 = vmul.f32 %v7926, %v7926
          %v8055 = vmul.f32 %v7927, %v7927
          %v8056 = vmul.f32 %v7928, %v7928
          %v8057 = vmul.f32 %v7929, %v7929
          %v8058 = vmul.f32 %v7930, %v7930
          %v8059 = vmul.f32 %v7931, %v7931
          %v8060 = vmul.f32 %v7932, %v7932
          %v8061 = vmul.f32 %v7933, %v7933
          %v8062 = vmul.f32 %v7934, %v7934
          %v8063 = vmul.f32 %v7935, %v7935
          %v8064 = vmul.f32 %v7936, %v7936
          %v8065 = vmul.f32 %v7937, %v7937
          %v8066 = vmul.f32 %v7938, %v7938
          %v8067 = vmul.f32 %v7939, %v7939
          %v8068 = vmul.f32 %v7940, %v7940
          %v8069 = vmul.f32 %v7941, %v7941
          %v8070 = vmul.f32 %v7942, %v7942
          %v8071 = vmul.f32 %v7943, %v7943
          %v8072 = vmul.f32 %v7944, %v7944
          %v8073 = vmul.f32 %v7945, %v7945
          %v8074 = vmul.f32 %v7946, %v7946
          %v8075 = vmul.f32 %v7947, %v7947
          %v8076 = vmul.f32 %v7948, %v7948
          %v8077 = vmul.f32 %v7949, %v7949
          %v8078 = vmul.f32 %v7950, %v7950
          %v8079 = vmul.f32 %v7951, %v7951
          %v8080 = vmul.f32 %v7952, %v7952
          %v8081 = vmul.f32 %v7953, %v7953
          %v8082 = vmul.f32 %v7954, %v7954
          %v8083 = vmul.f32 %v7955, %v7955
          %v8084 = vmul.f32 %v7956, %v7956
          %v8085 = vmul.f32 %v7957, %v7957
          %v8086 = vmul.f32 %v7958, %v7958
          %v8087 = vmul.f32 %v7959, %v7959
          %v8088 = vmul.f32 %v7960, %v7960
          %v8089 = vmul.f32 %v7961, %v7961
          %v8090 = vmul.f32 %v7962, %v7962
          %v8091 = vmul.f32 %v7963, %v7963
          %v8092 = vmul.f32 %v7964, %v7964
          %v8093 = vmul.f32 %v7965, %v7965
          %v8094 = vmul.f32 %v7966, %v7966
          %v8095 = vmul.f32 %v7967, %v7967
          %v8096 = vmul.f32 %v7968, %v7968
          %v8097 = vmul.f32 %v7969, %v7969
          %v8098 = vmul.f32 %v7970, %v7970
          %v8099 = vmul.f32 %v7971, %v7971
          %v8100 = vmul.f32 %v7972, %v7972
          %v8101 = vmul.f32 %v7973, %v7973
          %v8102 = vadd.f32 %v7974, %v7975
          %v8103 = vadd.f32 %v8102, %v7976
          %v8104 = vadd.f32 %v8103, %v7977
          %v8105 = vadd.f32 %v8104, %v7978
          %v8106 = vadd.f32 %v8105, %v7979
          %v8107 = vadd.f32 %v8106, %v7980
          %v8108 = vadd.f32 %v8107, %v7981
          %v8109 = vadd.f32 %v8108, %v7982
          %v8110 = vadd.f32 %v8109, %v7983
          %v8111 = vadd.f32 %v8110, %v7984
          %v8112 = vadd.f32 %v8111, %v7985
          %v8113 = vadd.f32 %v8112, %v7986
          %v8114 = vadd.f32 %v8113, %v7987
          %v8115 = vadd.f32 %v8114, %v7988
          %v8116 = vadd.f32 %v8115, %v7989
          %v8117 = vadd.f32 %v8116, %v7990
          %v8118 = vadd.f32 %v8117, %v7991
          %v8119 = vadd.f32 %v8118, %v7992
          %v8120 = vadd.f32 %v8119, %v7993
          %v8121 = vadd.f32 %v8120, %v7994
          %v8122 = vadd.f32 %v8121, %v7995
          %v8123 = vadd.f32 %v8122, %v7996
          %v8124 = vadd.f32 %v8123, %v7997
          %v8125 = vadd.f32 %v8124, %v7998
          %v8126 = vadd.f32 %v8125, %v7999
          %v8127 = vadd.f32 %v8126, %v8000
          %v8128 = vadd.f32 %v8127, %v8001
          %v8129 = vadd.f32 %v8128, %v8002
          %v8130 = vadd.f32 %v8129, %v8003
          %v8131 = vadd.f32 %v8130, %v8004
          %v8132 = vadd.f32 %v8131, %v8005
          %v8133 = vadd.f32 %v8132, %v8006
          %v8134 = vadd.f32 %v8133, %v8007
          %v8135 = vadd.f32 %v8134, %v8008
          %v8136 = vadd.f32 %v8135, %v8009
          %v8137 = vadd.f32 %v8136, %v8010
          %v8138 = vadd.f32 %v8137, %v8011
          %v8139 = vadd.f32 %v8138, %v8012
          %v8140 = vadd.f32 %v8139, %v8013
          %v8141 = vadd.f32 %v8140, %v8014
          %v8142 = vadd.f32 %v8141, %v8015
          %v8143 = vadd.f32 %v8142, %v8016
          %v8144 = vadd.f32 %v8143, %v8017
          %v8145 = vadd.f32 %v8144, %v8018
          %v8146 = vadd.f32 %v8145, %v8019
          %v8147 = vadd.f32 %v8146, %v8020
          %v8148 = vadd.f32 %v8147, %v8021
          %v8149 = vadd.f32 %v8148, %v8022
          %v8150 = vadd.f32 %v8149, %v8023
          %v8151 = vadd.f32 %v8150, %v8024
          %v8152 = vadd.f32 %v8151, %v8025
          %v8153 = vadd.f32 %v8152, %v8026
          %v8154 = vadd.f32 %v8153, %v8027
          %v8155 = vadd.f32 %v8154, %v8028
          %v8156 = vadd.f32 %v8155, %v8029
          %v8157 = vadd.f32 %v8156, %v8030
          %v8158 = vadd.f32 %v8157, %v8031
          %v8159 = vadd.f32 %v8158, %v8032
          %v8160 = vadd.f32 %v8159, %v8033
          %v8161 = vadd.f32 %v8160, %v8034
          %v8162 = vadd.f32 %v8161, %v8035
          %v8163 = vadd.f32 %v8162, %v8036
          %v8164 = vadd.f32 %v8163, %v8037
          %v8165 = vadd.f32 %v8164, %v8038
          %v8166 = vadd.f32 %v8165, %v8039
          %v8167 = vadd.f32 %v8166, %v8040
          %v8168 = vadd.f32 %v8167, %v8041
          %v8169 = vadd.f32 %v8168, %v8042
          %v8170 = vadd.f32 %v8169, %v8043
          %v8171 = vadd.f32 %v8170, %v8044
          %v8172 = vadd.f32 %v8171, %v8045
          %v8173 = vadd.f32 %v8172, %v8046
          %v8174 = vadd.f32 %v8173, %v8047
          %v8175 = vadd.f32 %v8174, %v8048
          %v8176 = vadd.f32 %v8175, %v8049
          %v8177 = vadd.f32 %v8176, %v8050
          %v8178 = vadd.f32 %v8177, %v8051
          %v8179 = vadd.f32 %v8178, %v8052
          %v8180 = vadd.f32 %v8179, %v8053
          %v8181 = vadd.f32 %v8180, %v8054
          %v8182 = vadd.f32 %v8181, %v8055
          %v8183 = vadd.f32 %v8182, %v8056
          %v8184 = vadd.f32 %v8183, %v8057
          %v8185 = vadd.f32 %v8184, %v8058
          %v8186 = vadd.f32 %v8185, %v8059
          %v8187 = vadd.f32 %v8186, %v8060
          %v8188 = vadd.f32 %v8187, %v8061
          %v8189 = vadd.f32 %v8188, %v8062
          %v8190 = vadd.f32 %v8189, %v8063
          %v8191 = vadd.f32 %v8190, %v8064
          %v8192 = vadd.f32 %v8191, %v8065
          %v8193 = vadd.f32 %v8192, %v8066
          %v8194 = vadd.f32 %v8193, %v8067
          %v8195 = vadd.f32 %v8194, %v8068
          %v8196 = vadd.f32 %v8195, %v8069
          %v8197 = vadd.f32 %v8196, %v8070
          %v8198 = vadd.f32 %v8197, %v8071
          %v8199 = vadd.f32 %v8198, %v8072
          %v8200 = vadd.f32 %v8199, %v8073
          %v8201 = vadd.f32 %v8200, %v8074
          %v8202 = vadd.f32 %v8201, %v8075
          %v8203 = vadd.f32 %v8202, %v8076
          %v8204 = vadd.f32 %v8203, %v8077
          %v8205 = vadd.f32 %v8204, %v8078
          %v8206 = vadd.f32 %v8205, %v8079
          %v8207 = vadd.f32 %v8206, %v8080
          %v8208 = vadd.f32 %v8207, %v8081
          %v8209 = vadd.f32 %v8208, %v8082
          %v8210 = vadd.f32 %v8209, %v8083
          %v8211 = vadd.f32 %v8210, %v8084
          %v8212 = vadd.f32 %v8211, %v8085
          %v8213 = vadd.f32 %v8212, %v8086
          %v8214 = vadd.f32 %v8213, %v8087
          %v8215 = vadd.f32 %v8214, %v8088
          %v8216 = vadd.f32 %v8215, %v8089
          %v8217 = vadd.f32 %v8216, %v8090
          %v8218 = vadd.f32 %v8217, %v8091
          %v8219 = vadd.f32 %v8218, %v8092
          %v8220 = vadd.f32 %v8219, %v8093
          %v8221 = vadd.f32 %v8220, %v8094
          %v8222 = vadd.f32 %v8221, %v8095
          %v8223 = vadd.f32 %v8222, %v8096
          %v8224 = vadd.f32 %v8223, %v8097
          %v8225 = vadd.f32 %v8224, %v8098
          %v8226 = vadd.f32 %v8225, %v8099
          %v8227 = vadd.f32 %v8226, %v8100
          %v8228 = vadd.f32 %v8227, %v8101
          %8229 = vadd.xlane.f32.xlu0 %v8228
          %v8230 = vpop.xlane.xlu0 %8229
          %v8231 = vrot.slane %v8230, 4
          %v8232 = vadd.f32 %v8230, %v8231
          %v8233 = vrot.slane %v8232, 2
          %v8234 = vadd.f32 %v8232, %v8233
          %v8235 = vrot.slane %v8234, 1
          %v8236 = vadd.f32 %v8234, %v8235
          %s8237 = vtos %v8236
          %v8238 = vstv %s8237
          %8239 = vst [vmem:[%s311] sm:$0xff] %v8238
        $region56: #{tpu_custom_call.1} parent=35 // pred_fallthru
          _
        %s8240 = sand.u32 %s145, 1
        %s8241 = scalar_lea.sflag [#allocation5], %s8240
        %s8242 = sand.u32 %s145, 1
        %s8243 = smul.addr %s8242, 8
        %s8244 = scalar_lea.vmem [#allocation9], %s8243
        // Predicated region
        $region57: #{tpu_custom_call.1} parent=35 // pred_check
          %p8245 = pneg %p155
        $region58: #{tpu_custom_call.1} parent=35 // pred_check_branch
          %8247 = sbr.rel (%p8245) target = $region60
        $region59: #{tpu_custom_call.1} parent=35 // pred_region
          %s8249 = ssub.s32 128, 128
          %8250 = vsyncadd %s8241, %s8249
          %s8251 = smul.addr %s28, 128
          %s8252 = scalar_lea.hbm %s4, %s8251
          %s8254 = sshll.u32 %s8244, 4
          %s8255 = int_to_ptr.vmem [resolvable:$true] %s8254
          %8257 = dma.vmem_to_hbm [thread:$0]  %s8255, 128, %s8252, %s8241
        $region60: #{tpu_custom_call.1} parent=35 // pred_fallthru
          _
      $region36: #{tpu_custom_call.1} parent=5 // pred_fallthru
        _
      %p8258 = scmp.le.s32.totalorder 2, %s19
      // Predicated region
      $region61: #{tpu_custom_call.1} parent=5 // pred_check
        %p8259 = pneg %p8258
      $region62: #{tpu_custom_call.1} parent=5 // pred_check_branch
        %8261 = sbr.rel (%p8259) target = $region64
      $region63: #{tpu_custom_call.1} parent=5 // pred_region
        %s8262 = ssub.s32 %s19, 2
        // Predicated region
        $region65: #{tpu_custom_call.1} parent=63 // pred_check
          %p8263 = pneg %p161
        $region66: #{tpu_custom_call.1} parent=63 // pred_check_branch
          %8265 = sbr.rel (%p8263) target = $region68
        $region67: #{tpu_custom_call.1} parent=63 // pred_region
          %s8266 = sand.u32 %s146, 1
          %s8267 = scalar_lea.sflag [#allocation5], %s8266
          %s8268 = sand.u32 %s146, 1
          %s8269 = smul.addr %s8268, 8
          %s8270 = scalar_lea.vmem [#allocation9], %s8269
          %8271 = dma.done %s8267, 128
        $region68: #{tpu_custom_call.1} parent=63 // pred_fallthru
          _
      $region64: #{tpu_custom_call.1} parent=5 // pred_fallthru
        _
    $region6: #{tpu_custom_call.1} parent=1 // loop_footer
      %s23 = sadd.s32 1, %s19
    $region7: #{tpu_custom_call.1} parent=1 // loop_footer_branch
      %18 = sbr.rel target = $region3
    $region8: #{tpu_custom_call.1} parent=1 // loop_exit
      _
    %8272 = vsyncpa [#allocation4], 1
    %s8273 = scalar_lea.sflag [#allocation4], 1
    %8274 = vsyncpa %s8273, 1
    %8275 = vsyncpa [#allocation7], 1
    %s8276 = scalar_lea.sflag [#allocation7], 1
    %8277 = vsyncpa %s8276, 1
    %8278 = vsyncpa [#allocation5], 1
    %s8279 = scalar_lea.sflag [#allocation5], 1
    %8280 = vsyncpa %s8279, 1

</llo_original>
